<compile_context>
chip_gen: v6e
topology: v6e:2x2x1
jax: 0.10.0
libtpu: 0.0.40
codegen_flags: <defaults>
</compile_context>

<pallas_src>
import jax
import jax.numpy as jnp
from jax import lax
from jax.experimental import pallas as pl
from jax.experimental.pallas import tpu as pltpu


# ------------------------- in-kernel math helpers ---------------------------
def _erf(x):
    # Abramowitz & Stegun 7.1.26 rational approximation (|err| < 1.5e-7), built
    # only from ops with guaranteed Mosaic lowerings (abs/exp/mul/add/where).
    a1, a2, a3, a4, a5 = (0.254829592, -0.284496736, 1.421413741,
                          -1.453152027, 1.061405429)
    p = 0.3275911
    sign = jnp.where(x >= 0.0, 1.0, -1.0)
    ax = jnp.abs(x)
    t = 1.0 / (1.0 + p * ax)
    poly = ((((a5 * t + a4) * t + a3) * t + a2) * t + a1) * t
    return sign * (1.0 - poly * jnp.exp(-ax * ax))


def _gelu_exact(x):
    # torch.nn.GELU() default = exact (erf-based) GELU.
    return 0.5 * x * (1.0 + _erf(x * 0.7071067811865476))


def _layer_norm(x, gamma, beta, eps=1e-5):
    mu = jnp.mean(x, axis=-1, keepdims=True)
    var = jnp.mean(jnp.square(x - mu), axis=-1, keepdims=True)
    return (x - mu) * lax.rsqrt(var + eps) * gamma + beta


def _lstm_cell(gates, c_prev, H):
    # gates: (B, 4H) f32, columns ordered (i, f, o, g): one contiguous sigmoid
    # over i|f|o (3H lanes) and one tanh over g (H lanes).
    sig = jax.nn.sigmoid(gates[:, 0:3 * H])
    i_g = sig[:, 0:H]
    f_g = sig[:, H:2 * H]
    o_g = sig[:, 2 * H:3 * H]
    g_g = jnp.tanh(gates[:, 3 * H:4 * H])
    c_new = f_g * c_prev + i_g * g_g
    h_new = o_g * jnp.tanh(c_new)
    return h_new, c_new


# --------------------------- fused network kernel ---------------------------
def _make_fused_kernel(num_layers, n_td):
    def kernel(*refs):
        idx = 0
        x_ref = refs[idx]; idx += 1
        lstm = refs[idx: idx + 4 * num_layers]; idx += 4 * num_layers
        td_g_ref, td_b_ref = refs[idx], refs[idx + 1]; idx += 2
        td_wb = refs[idx: idx + 2 * n_td]; idx += 2 * n_td
        (c_g_ref, c_b_ref, c_w1_ref, c_b1_ref,
         c_w2_ref, c_b2_ref) = refs[idx: idx + 6]; idx += 6
        labels_ref, td_out_ref = refs[idx], refs[idx + 1]; idx += 2
        hf_ref, hb_ref = refs[idx], refs[idx + 1]          # VMEM scratch (B,T,H)

        B, T, _ = x_ref.shape
        H = hf_ref.shape[-1]

        # Layer-0 input, flattened batch-major (row index = b*T + t).
        layer_in = x_ref[...].astype(jnp.float32).reshape(B * T, x_ref.shape[-1])
        layer_out = None

        for l in range(num_layers):
            wih_ref  = lstm[4 * l + 0]        # (Din, 8H) bf16  [fwd gates | bwd gates]
            whhf_ref = lstm[4 * l + 1]        # (H, 4H)   bf16
            whhb_ref = lstm[4 * l + 2]        # (H, 4H)   bf16
            bias_ref = lstm[4 * l + 3]        # (1, 8H)   f32  (b_ih + b_hh, both dirs)

            whh_f = whhf_ref[...]
            whh_b = whhb_ref[...]

            # Hoisted input projection for BOTH directions: one wide MXU matmul.
            xg = (jnp.dot(layer_in.astype(jnp.bfloat16), wih_ref[...],
                          preferred_element_type=jnp.float32)
                  + bias_ref[...])                           # (B*T, 8H) f32
            xg = xg.reshape(B, T, 8 * H)

            h_f = jnp.zeros((B, H), jnp.float32)
            c_f = jnp.zeros((B, H), jnp.float32)
            h_b = jnp.zeros((B, H), jnp.float32)
            c_b = jnp.zeros((B, H), jnp.float32)

            # Fully unrolled recurrence (T is a static Python int): only the
            # small h @ W_hh matmul remains on the serial critical path.
            for t in range(T):
                # forward direction, timestep t
                gf = xg[:, t, 0:4 * H] + jnp.dot(
                    h_f.astype(jnp.bfloat16), whh_f,
                    preferred_element_type=jnp.float32)
                h_f, c_f = _lstm_cell(gf, c_f, H)
                hf_ref[:, t, :] = h_f
                # backward direction, timestep T-1-t
                tb = T - 1 - t
                gb = xg[:, tb, 4 * H:8 * H] + jnp.dot(
                    h_b.astype(jnp.bfloat16), whh_b,
                    preferred_element_type=jnp.float32)
                h_b, c_b = _lstm_cell(gb, c_b, H)
                hb_ref[:, tb, :] = h_b

            layer_out = jnp.concatenate([hf_ref[...], hb_ref[...]], axis=-1)  # (B,T,2H)
            layer_in = layer_out.reshape(B * T, 2 * H)

        # ------------------ classifier branch (mean over time) ------------------
        mem = jnp.sum(layer_out, axis=1) * (1.0 / T)          # (B, 2H)
        hcls = _layer_norm(mem, c_g_ref[...], c_b_ref[...])
        # Dropout -> identity (inference).
        hcls = jnp.dot(hcls.astype(jnp.bfloat16), c_w1_ref[...],
                       preferred_element_type=jnp.float32) + c_b1_ref[...]
        hcls = _gelu_exact(hcls)
        hcls = jnp.dot(hcls.astype(jnp.bfloat16), c_w2_ref[...],
                       preferred_element_type=jnp.float32) + c_b2_ref[...]
        labels_ref[...] = jax.nn.sigmoid(hcls).astype(labels_ref.dtype)

        # ------------------ TimeDistributed(FeatLayer) branch -------------------
        # torch: x.reshape(T, B, 2H) — a row-major reshape (NOT a transpose) of
        # the batch-major LSTM output; `layer_in` already carries that flat
        # order, so the reshape is free here (this faithfully replicates the
        # reference, including its batch/time interleave when B > 1).
        xn = _layer_norm(layer_in, td_g_ref[...], td_b_ref[...])    # (B*T, 2H)
        h = xn.reshape(T, B, 2 * H)
        for li in range(n_td):
            w_ref = td_wb[2 * li]
            b_ref = td_wb[2 * li + 1]
            if li < n_td - 1:
                # per-timestep batched linear, all T at once (batched dot_general)
                h = jnp.einsum("tbd,tde->tbe", h.astype(jnp.bfloat16), w_ref[...],
                               preferred_element_type=jnp.float32) + b_ref[...]
                h = _gelu_exact(h)
            else:
                # Final linear has out_features == 1: weight is stored
                # pre-transposed as (T, 1, d) so it becomes mul + lane-reduce
                # (avoids a degenerate 1-column MXU matmul).
                h = jnp.sum(h * w_ref[...], axis=-1, keepdims=True) + b_ref[...]
                h = jax.nn.sigmoid(h)                               # (T, B, 1)
        td_out_ref[...] = h.astype(td_out_ref.dtype)

    return kernel


# ------------------------------- parameters ---------------------------------
def _uniform(key, shape, scale):
    return jax.random.uniform(key, shape, jnp.float32, -scale, scale)


def init_params(key, E, H, num_layers, T, labels_num):
    params = {"lstm": [], "td": {}, "cls": {}}
    keys = iter(jax.random.split(key, 64))
    scale = 1.0 / (H ** 0.5)

    d_in = E
    for _ in range(num_layers):
        lp = {}
        # Fused input-projection weight: columns = [fwd (i,f,o,g) | bwd (i,f,o,g)].
        lp["wih"] = _uniform(next(keys), (d_in, 8 * H), scale).astype(jnp.bfloat16)
        lp["whh_f"] = _uniform(next(keys), (H, 4 * H), scale).astype(jnp.bfloat16)
        lp["whh_b"] = _uniform(next(keys), (H, 4 * H), scale).astype(jnp.bfloat16)
        # Combined bias (b_ih + b_hh) for both directions; init statistics differ
        # slightly from torch's two separate draws — irrelevant for loaded weights.
        lp["b"] = _uniform(next(keys), (1, 8 * H), scale)
        params["lstm"].append(lp)
        d_in = 2 * H

    # FeatLayer(max_len=T, dim_in=2H, dim_out=1)
    dim_in, dim_out = 2 * H, 1
    sizes = []
    while dim_in > dim_out:
        sizes.append(dim_in)
        dim_in //= 8
    dims = sizes + [dim_out]
    params["td"]["ln_g"] = jnp.ones((1, sizes[0]), jnp.float32)
    params["td"]["ln_b"] = jnp.zeros((1, sizes[0]), jnp.float32)
    ws, bs = [], []
    n_lin = len(dims) - 1
    for i in range(n_lin):
        s = 1.0 / (dims[i] ** 0.5)
        if i < n_lin - 1:
            ws.append(_uniform(next(keys), (T, dims[i], dims[i + 1]), s)
                      .astype(jnp.bfloat16))
        else:
            # final batch3Linear (out_features == 1): stored pre-transposed as
            # (T, 1, in_features); equals the torch (T, in, 1) weight with the
            # last two axes swapped.
            ws.append(_uniform(next(keys), (T, 1, dims[i]), s))
        bs.append(_uniform(next(keys), (T, 1, dims[i + 1]), s))
    params["td"]["ws"] = ws
    params["td"]["bs"] = bs

    # classifier
    params["cls"]["ln_g"] = jnp.ones((1, 2 * H), jnp.float32)
    params["cls"]["ln_b"] = jnp.zeros((1, 2 * H), jnp.float32)
    s1 = 1.0 / ((2 * H) ** 0.5)
    params["cls"]["w1"] = _uniform(next(keys), (2 * H, 64), s1).astype(jnp.bfloat16)
    params["cls"]["b1"] = _uniform(next(keys), (1, 64), s1)
    s2 = 1.0 / (64 ** 0.5)
    params["cls"]["w2"] = _uniform(next(keys), (64, labels_num), s2).astype(jnp.bfloat16)
    params["cls"]["b2"] = _uniform(next(keys), (1, labels_num), s2)
    return params


# --------------------------------- forward ----------------------------------
def forward(inputs, params):
    B, T, _ = inputs.shape
    H = params["lstm"][0]["whh_f"].shape[0]
    labels_num = params["cls"]["w2"].shape[1]
    num_layers = len(params["lstm"])
    n_td = len(params["td"]["ws"])

    args = [inputs]
    for lp in params["lstm"]:
        args += [lp["wih"], lp["whh_f"], lp["whh_b"], lp["b"]]
    args += [params["td"]["ln_g"], params["td"]["ln_b"]]
    for w, b in zip(params["td"]["ws"], params["td"]["bs"]):
        args += [w, b]
    args += [params["cls"]["ln_g"], params["cls"]["ln_b"],
             params["cls"]["w1"], params["cls"]["b1"],
             params["cls"]["w2"], params["cls"]["b2"]]

    vmem = pl.BlockSpec(memory_space=pltpu.MemorySpace.VMEM)
    labels, td_tb1 = pl.pallas_call(
        _make_fused_kernel(num_layers, n_td),
        out_shape=(jax.ShapeDtypeStruct((B, labels_num), jnp.float32),
                   jax.ShapeDtypeStruct((T, B, 1), jnp.float32)),
        in_specs=[vmem] * len(args),
        out_specs=(vmem, vmem),
        scratch_shapes=[pltpu.VMEM((B, T, H), jnp.float32),   # fwd hidden seq
                        pltpu.VMEM((B, T, H), jnp.float32)],  # bwd hidden seq
    )(*args)

    # TimeDistributed epilogue, exactly as torch: y.reshape(B, T, -1).squeeze(-1)
    td = jnp.reshape(td_tb1, (B, T))
    # Final `TD.squeeze()` from the torch module (no-op for B, T > 1; for B == 1
    # torch would also drop the batch dim, and we replicate that faithfully).
    td = jnp.squeeze(td)
    return labels, td


if __name__ == "__main__":
    B, T, E, H, NUM_LAYERS, LABELS = 2, 8, 16, 32, 2, 4   # T == max_len
    key = jax.random.PRNGKey(0)
    k_in, k_p = jax.random.split(key)
    inputs = jax.random.normal(k_in, (B, T, E), jnp.float32)
    params = init_params(k_p, E, H, NUM_LAYERS, T, LABELS)

    labels, td = jax.jit(forward)(inputs, params)
    labels, td = jax.block_until_ready((labels, td))

    assert labels.shape == (B, LABELS), labels.shape
    assert td.shape == (B, T), td.shape
    assert bool(jnp.all(jnp.isfinite(labels))) and bool(jnp.all(jnp.isfinite(td)))
    print("KERNEL_OK")
</pallas_src>

<mosaic_0001>
module attributes {stable_mosaic.version = 11 : i64} {
  func.func @kernel(%arg0: memref<2x8x16xf32, #tpu.memory_space<vmem>>, %arg1: memref<16x256xbf16, #tpu.memory_space<vmem>>, %arg2: memref<32x128xbf16, #tpu.memory_space<vmem>>, %arg3: memref<32x128xbf16, #tpu.memory_space<vmem>>, %arg4: memref<1x256xf32, #tpu.memory_space<vmem>>, %arg5: memref<64x256xbf16, #tpu.memory_space<vmem>>, %arg6: memref<32x128xbf16, #tpu.memory_space<vmem>>, %arg7: memref<32x128xbf16, #tpu.memory_space<vmem>>, %arg8: memref<1x256xf32, #tpu.memory_space<vmem>>, %arg9: memref<1x64xf32, #tpu.memory_space<vmem>>, %arg10: memref<1x64xf32, #tpu.memory_space<vmem>>, %arg11: memref<8x64x8xbf16, #tpu.memory_space<vmem>>, %arg12: memref<8x1x8xf32, #tpu.memory_space<vmem>>, %arg13: memref<8x1x8xf32, #tpu.memory_space<vmem>>, %arg14: memref<8x1x1xf32, #tpu.memory_space<vmem>>, %arg15: memref<1x64xf32, #tpu.memory_space<vmem>>, %arg16: memref<1x64xf32, #tpu.memory_space<vmem>>, %arg17: memref<64x64xbf16, #tpu.memory_space<vmem>>, %arg18: memref<1x64xf32, #tpu.memory_space<vmem>>, %arg19: memref<64x4xbf16, #tpu.memory_space<vmem>>, %arg20: memref<1x4xf32, #tpu.memory_space<vmem>>, %arg21: memref<2x4xf32, #tpu.memory_space<vmem>>, %arg22: memref<8x2x1xf32, #tpu.memory_space<vmem>>, %arg23: memref<2x8x32xf32, #tpu.memory_space<vmem>>, %arg24: memref<2x8x32xf32, #tpu.memory_space<vmem>>) attributes {dimension_semantics = [], scalar_prefetch = 0 : i64, scratch_operands = 2 : i64, tpu.core_type = #tpu.core_type<tc>} {
    %c0 = arith.constant 0 : index
    %c0_0 = arith.constant 0 : index
    %c0_1 = arith.constant 0 : index
    %0 = vector.load %arg0[%c0, %c0_0, %c0_1] : memref<2x8x16xf32, #tpu.memory_space<vmem>>, vector<2x8x16xf32>
    %1 = vector.shape_cast %0 : vector<2x8x16xf32> to vector<16x16xf32>
    %c0_2 = arith.constant 0 : index
    %c0_3 = arith.constant 0 : index
    %2 = vector.load %arg2[%c0_2, %c0_3] : memref<32x128xbf16, #tpu.memory_space<vmem>>, vector<32x128xbf16>
    %c0_4 = arith.constant 0 : index
    %c0_5 = arith.constant 0 : index
    %3 = vector.load %arg3[%c0_4, %c0_5] : memref<32x128xbf16, #tpu.memory_space<vmem>>, vector<32x128xbf16>
    %4 = arith.truncf %1 : vector<16x16xf32> to vector<16x16xbf16>
    %c0_6 = arith.constant 0 : index
    %c0_7 = arith.constant 0 : index
    %5 = vector.load %arg1[%c0_6, %c0_7] : memref<16x256xbf16, #tpu.memory_space<vmem>>, vector<16x256xbf16>
    %cst = arith.constant dense<0.000000e+00> : vector<16x256xf32>
    %6 = tpu.matmul %4, %5, %cst {dimension_numbers = #tpu.dot_dimension_numbers<[1], [0], [0], [1], [0, 0, 1, 1], [], []>} : vector<16x16xbf16>, vector<16x256xbf16>, vector<16x256xf32> -> vector<16x256xf32>
    %c0_8 = arith.constant 0 : index
    %c0_9 = arith.constant 0 : index
    %7 = vector.load %arg4[%c0_8, %c0_9] : memref<1x256xf32, #tpu.memory_space<vmem>>, vector<1x256xf32>
    %8 = vector.broadcast %7 : vector<1x256xf32> to vector<16x256xf32>
    %9 = arith.addf %6, %8 : vector<16x256xf32>
    %10 = vector.shape_cast %9 : vector<16x256xf32> to vector<2x8x256xf32>
    %cst_10 = arith.constant 0.000000e+00 : f32
    %11 = vector.broadcast %cst_10 : f32 to vector<2x32xf32>
    %cst_11 = arith.constant 0.000000e+00 : f32
    %12 = vector.broadcast %cst_11 : f32 to vector<2x32xf32>
    %cst_12 = arith.constant 0.000000e+00 : f32
    %13 = vector.broadcast %cst_12 : f32 to vector<2x32xf32>
    %cst_13 = arith.constant 0.000000e+00 : f32
    %14 = vector.broadcast %cst_13 : f32 to vector<2x32xf32>
    %15 = vector.extract_strided_slice %10 {offsets = [0, 0, 0], sizes = [2, 1, 128], strides = [1, 1, 1]} : vector<2x8x256xf32> to vector<2x1x128xf32>
    %16 = vector.shape_cast %15 : vector<2x1x128xf32> to vector<2x128xf32>
    %17 = arith.truncf %11 : vector<2x32xf32> to vector<2x32xbf16>
    %cst_14 = arith.constant dense<0.000000e+00> : vector<2x128xf32>
    %18 = tpu.matmul %17, %2, %cst_14 {dimension_numbers = #tpu.dot_dimension_numbers<[1], [0], [0], [1], [0, 0, 1, 1], [], []>} : vector<2x32xbf16>, vector<32x128xbf16>, vector<2x128xf32> -> vector<2x128xf32>
    %19 = arith.addf %16, %18 : vector<2x128xf32>
    %20 = vector.extract_strided_slice %19 {offsets = [0, 0], sizes = [2, 96], strides = [1, 1]} : vector<2x128xf32> to vector<2x96xf32>
    %21 = arith.negf %20 : vector<2x96xf32>
    %22 = math.exp %21 : vector<2x96xf32>
    %cst_15 = arith.constant 1.000000e+00 : f32
    %23 = vector.broadcast %cst_15 : f32 to vector<2x96xf32>
    %24 = arith.addf %23, %22 : vector<2x96xf32>
    %25 = arith.divf %23, %24 : vector<2x96xf32>
    %26 = vector.extract_strided_slice %25 {offsets = [0, 0], sizes = [2, 32], strides = [1, 1]} : vector<2x96xf32> to vector<2x32xf32>
    %27 = vector.extract_strided_slice %25 {offsets = [0, 32], sizes = [2, 32], strides = [1, 1]} : vector<2x96xf32> to vector<2x32xf32>
    %28 = vector.extract_strided_slice %25 {offsets = [0, 64], sizes = [2, 32], strides = [1, 1]} : vector<2x96xf32> to vector<2x32xf32>
    %29 = vector.extract_strided_slice %19 {offsets = [0, 96], sizes = [2, 32], strides = [1, 1]} : vector<2x128xf32> to vector<2x32xf32>
    %30 = math.tanh %29 : vector<2x32xf32>
    %31 = arith.mulf %27, %12 : vector<2x32xf32>
    %32 = arith.mulf %26, %30 : vector<2x32xf32>
    %33 = arith.addf %31, %32 : vector<2x32xf32>
    %34 = math.tanh %33 : vector<2x32xf32>
    %35 = arith.mulf %28, %34 : vector<2x32xf32>
    %c0_16 = arith.constant 0 : index
    %c0_17 = arith.constant 0 : index
    %c0_18 = arith.constant 0 : index
    %36 = vector.load %arg23[%c0_16, %c0_17, %c0_18] : memref<2x8x32xf32, #tpu.memory_space<vmem>>, vector<2x1x32xf32>
    %37 = vector.shape_cast %36 : vector<2x1x32xf32> to vector<2x32xf32>
    %38 = vector.shape_cast %35 : vector<2x32xf32> to vector<2x1x32xf32>
    tpu.vector_store %arg23[%c0_16, %c0_17, %c0_18], %38 {strides = array<i32>} : memref<2x8x32xf32, #tpu.memory_space<vmem>>, vector<2x1x32xf32>,
    %39 = vector.extract_strided_slice %10 {offsets = [0, 7, 128], sizes = [2, 1, 128], strides = [1, 1, 1]} : vector<2x8x256xf32> to vector<2x1x128xf32>
    %40 = vector.shape_cast %39 : vector<2x1x128xf32> to vector<2x128xf32>
    %41 = arith.truncf %13 : vector<2x32xf32> to vector<2x32xbf16>
    %cst_19 = arith.constant dense<0.000000e+00> : vector<2x128xf32>
    %42 = tpu.matmul %41, %3, %cst_19 {dimension_numbers = #tpu.dot_dimension_numbers<[1], [0], [0], [1], [0, 0, 1, 1], [], []>} : vector<2x32xbf16>, vector<32x128xbf16>, vector<2x128xf32> -> vector<2x128xf32>
    %43 = arith.addf %40, %42 : vector<2x128xf32>
    %44 = vector.extract_strided_slice %43 {offsets = [0, 0], sizes = [2, 96], strides = [1, 1]} : vector<2x128xf32> to vector<2x96xf32>
    %45 = arith.negf %44 : vector<2x96xf32>
    %46 = math.exp %45 : vector<2x96xf32>
    %cst_20 = arith.constant 1.000000e+00 : f32
    %47 = vector.broadcast %cst_20 : f32 to vector<2x96xf32>
    %48 = arith.addf %47, %46 : vector<2x96xf32>
    %49 = arith.divf %47, %48 : vector<2x96xf32>
    %50 = vector.extract_strided_slice %49 {offsets = [0, 0], sizes = [2, 32], strides = [1, 1]} : vector<2x96xf32> to vector<2x32xf32>
    %51 = vector.extract_strided_slice %49 {offsets = [0, 32], sizes = [2, 32], strides = [1, 1]} : vector<2x96xf32> to vector<2x32xf32>
    %52 = vector.extract_strided_slice %49 {offsets = [0, 64], sizes = [2, 32], strides = [1, 1]} : vector<2x96xf32> to vector<2x32xf32>
    %53 = vector.extract_strided_slice %43 {offsets = [0, 96], sizes = [2, 32], strides = [1, 1]} : vector<2x128xf32> to vector<2x32xf32>
    %54 = math.tanh %53 : vector<2x32xf32>
    %55 = arith.mulf %51, %14 : vector<2x32xf32>
    %56 = arith.mulf %50, %54 : vector<2x32xf32>
    %57 = arith.addf %55, %56 : vector<2x32xf32>
    %58 = math.tanh %57 : vector<2x32xf32>
    %59 = arith.mulf %52, %58 : vector<2x32xf32>
    %c0_21 = arith.constant 0 : index
    %c7 = arith.constant 7 : index
    %c0_22 = arith.constant 0 : index
    %60 = vector.load %arg24[%c0_21, %c7, %c0_22] : memref<2x8x32xf32, #tpu.memory_space<vmem>>, vector<2x1x32xf32>
    %61 = vector.shape_cast %60 : vector<2x1x32xf32> to vector<2x32xf32>
    %62 = vector.shape_cast %59 : vector<2x32xf32> to vector<2x1x32xf32>
    tpu.vector_store %arg24[%c0_21, %c7, %c0_22], %62 {strides = array<i32>} : memref<2x8x32xf32, #tpu.memory_space<vmem>>, vector<2x1x32xf32>,
    %63 = vector.extract_strided_slice %10 {offsets = [0, 1, 0], sizes = [2, 1, 128], strides = [1, 1, 1]} : vector<2x8x256xf32> to vector<2x1x128xf32>
    %64 = vector.shape_cast %63 : vector<2x1x128xf32> to vector<2x128xf32>
    %65 = arith.truncf %35 : vector<2x32xf32> to vector<2x32xbf16>
    %cst_23 = arith.constant dense<0.000000e+00> : vector<2x128xf32>
    %66 = tpu.matmul %65, %2, %cst_23 {dimension_numbers = #tpu.dot_dimension_numbers<[1], [0], [0], [1], [0, 0, 1, 1], [], []>} : vector<2x32xbf16>, vector<32x128xbf16>, vector<2x128xf32> -> vector<2x128xf32>
    %67 = arith.addf %64, %66 : vector<2x128xf32>
    %68 = vector.extract_strided_slice %67 {offsets = [0, 0], sizes = [2, 96], strides = [1, 1]} : vector<2x128xf32> to vector<2x96xf32>
    %69 = arith.negf %68 : vector<2x96xf32>
    %70 = math.exp %69 : vector<2x96xf32>
    %cst_24 = arith.constant 1.000000e+00 : f32
    %71 = vector.broadcast %cst_24 : f32 to vector<2x96xf32>
    %72 = arith.addf %71, %70 : vector<2x96xf32>
    %73 = arith.divf %71, %72 : vector<2x96xf32>
    %74 = vector.extract_strided_slice %73 {offsets = [0, 0], sizes = [2, 32], strides = [1, 1]} : vector<2x96xf32> to vector<2x32xf32>
    %75 = vector.extract_strided_slice %73 {offsets = [0, 32], sizes = [2, 32], strides = [1, 1]} : vector<2x96xf32> to vector<2x32xf32>
    %76 = vector.extract_strided_slice %73 {offsets = [0, 64], sizes = [2, 32], strides = [1, 1]} : vector<2x96xf32> to vector<2x32xf32>
    %77 = vector.extract_strided_slice %67 {offsets = [0, 96], sizes = [2, 32], strides = [1, 1]} : vector<2x128xf32> to vector<2x32xf32>
    %78 = math.tanh %77 : vector<2x32xf32>
    %79 = arith.mulf %75, %33 : vector<2x32xf32>
    %80 = arith.mulf %74, %78 : vector<2x32xf32>
    %81 = arith.addf %79, %80 : vector<2x32xf32>
    %82 = math.tanh %81 : vector<2x32xf32>
    %83 = arith.mulf %76, %82 : vector<2x32xf32>
    %c0_25 = arith.constant 0 : index
    %c1 = arith.constant 1 : index
    %c0_26 = arith.constant 0 : index
    %84 = vector.load %arg23[%c0_25, %c1, %c0_26] : memref<2x8x32xf32, #tpu.memory_space<vmem>>, vector<2x1x32xf32>
    %85 = vector.shape_cast %84 : vector<2x1x32xf32> to vector<2x32xf32>
    %86 = vector.shape_cast %83 : vector<2x32xf32> to vector<2x1x32xf32>
    tpu.vector_store %arg23[%c0_25, %c1, %c0_26], %86 {strides = array<i32>} : memref<2x8x32xf32, #tpu.memory_space<vmem>>, vector<2x1x32xf32>,
    %87 = vector.extract_strided_slice %10 {offsets = [0, 6, 128], sizes = [2, 1, 128], strides = [1, 1, 1]} : vector<2x8x256xf32> to vector<2x1x128xf32>
    %88 = vector.shape_cast %87 : vector<2x1x128xf32> to vector<2x128xf32>
    %89 = arith.truncf %59 : vector<2x32xf32> to vector<2x32xbf16>
    %cst_27 = arith.constant dense<0.000000e+00> : vector<2x128xf32>
    %90 = tpu.matmul %89, %3, %cst_27 {dimension_numbers = #tpu.dot_dimension_numbers<[1], [0], [0], [1], [0, 0, 1, 1], [], []>} : vector<2x32xbf16>, vector<32x128xbf16>, vector<2x128xf32> -> vector<2x128xf32>
    %91 = arith.addf %88, %90 : vector<2x128xf32>
    %92 = vector.extract_strided_slice %91 {offsets = [0, 0], sizes = [2, 96], strides = [1, 1]} : vector<2x128xf32> to vector<2x96xf32>
    %93 = arith.negf %92 : vector<2x96xf32>
    %94 = math.exp %93 : vector<2x96xf32>
    %cst_28 = arith.constant 1.000000e+00 : f32
    %95 = vector.broadcast %cst_28 : f32 to vector<2x96xf32>
    %96 = arith.addf %95, %94 : vector<2x96xf32>
    %97 = arith.divf %95, %96 : vector<2x96xf32>
    %98 = vector.extract_strided_slice %97 {offsets = [0, 0], sizes = [2, 32], strides = [1, 1]} : vector<2x96xf32> to vector<2x32xf32>
    %99 = vector.extract_strided_slice %97 {offsets = [0, 32], sizes = [2, 32], strides = [1, 1]} : vector<2x96xf32> to vector<2x32xf32>
    %100 = vector.extract_strided_slice %97 {offsets = [0, 64], sizes = [2, 32], strides = [1, 1]} : vector<2x96xf32> to vector<2x32xf32>
    %101 = vector.extract_strided_slice %91 {offsets = [0, 96], sizes = [2, 32], strides = [1, 1]} : vector<2x128xf32> to vector<2x32xf32>
    %102 = math.tanh %101 : vector<2x32xf32>
    %103 = arith.mulf %99, %57 : vector<2x32xf32>
    %104 = arith.mulf %98, %102 : vector<2x32xf32>
    %105 = arith.addf %103, %104 : vector<2x32xf32>
    %106 = math.tanh %105 : vector<2x32xf32>
    %107 = arith.mulf %100, %106 : vector<2x32xf32>
    %c0_29 = arith.constant 0 : index
    %c6 = arith.constant 6 : index
    %c0_30 = arith.constant 0 : index
    %108 = vector.load %arg24[%c0_29, %c6, %c0_30] : memref<2x8x32xf32, #tpu.memory_space<vmem>>, vector<2x1x32xf32>
    %109 = vector.shape_cast %108 : vector<2x1x32xf32> to vector<2x32xf32>
    %110 = vector.shape_cast %107 : vector<2x32xf32> to vector<2x1x32xf32>
    tpu.vector_store %arg24[%c0_29, %c6, %c0_30], %110 {strides = array<i32>} : memref<2x8x32xf32, #tpu.memory_space<vmem>>, vector<2x1x32xf32>,
    %111 = vector.extract_strided_slice %10 {offsets = [0, 2, 0], sizes = [2, 1, 128], strides = [1, 1, 1]} : vector<2x8x256xf32> to vector<2x1x128xf32>
    %112 = vector.shape_cast %111 : vector<2x1x128xf32> to vector<2x128xf32>
    %113 = arith.truncf %83 : vector<2x32xf32> to vector<2x32xbf16>
    %cst_31 = arith.constant dense<0.000000e+00> : vector<2x128xf32>
    %114 = tpu.matmul %113, %2, %cst_31 {dimension_numbers = #tpu.dot_dimension_numbers<[1], [0], [0], [1], [0, 0, 1, 1], [], []>} : vector<2x32xbf16>, vector<32x128xbf16>, vector<2x128xf32> -> vector<2x128xf32>
    %115 = arith.addf %112, %114 : vector<2x128xf32>
    %116 = vector.extract_strided_slice %115 {offsets = [0, 0], sizes = [2, 96], strides = [1, 1]} : vector<2x128xf32> to vector<2x96xf32>
    %117 = arith.negf %116 : vector<2x96xf32>
    %118 = math.exp %117 : vector<2x96xf32>
    %cst_32 = arith.constant 1.000000e+00 : f32
    %119 = vector.broadcast %cst_32 : f32 to vector<2x96xf32>
    %120 = arith.addf %119, %118 : vector<2x96xf32>
    %121 = arith.divf %119, %120 : vector<2x96xf32>
    %122 = vector.extract_strided_slice %121 {offsets = [0, 0], sizes = [2, 32], strides = [1, 1]} : vector<2x96xf32> to vector<2x32xf32>
    %123 = vector.extract_strided_slice %121 {offsets = [0, 32], sizes = [2, 32], strides = [1, 1]} : vector<2x96xf32> to vector<2x32xf32>
    %124 = vector.extract_strided_slice %121 {offsets = [0, 64], sizes = [2, 32], strides = [1, 1]} : vector<2x96xf32> to vector<2x32xf32>
    %125 = vector.extract_strided_slice %115 {offsets = [0, 96], sizes = [2, 32], strides = [1, 1]} : vector<2x128xf32> to vector<2x32xf32>
    %126 = math.tanh %125 : vector<2x32xf32>
    %127 = arith.mulf %123, %81 : vector<2x32xf32>
    %128 = arith.mulf %122, %126 : vector<2x32xf32>
    %129 = arith.addf %127, %128 : vector<2x32xf32>
    %130 = math.tanh %129 : vector<2x32xf32>
    %131 = arith.mulf %124, %130 : vector<2x32xf32>
    %c0_33 = arith.constant 0 : index
    %c2 = arith.constant 2 : index
    %c0_34 = arith.constant 0 : index
    %132 = vector.load %arg23[%c0_33, %c2, %c0_34] : memref<2x8x32xf32, #tpu.memory_space<vmem>>, vector<2x1x32xf32>
    %133 = vector.shape_cast %132 : vector<2x1x32xf32> to vector<2x32xf32>
    %134 = vector.shape_cast %131 : vector<2x32xf32> to vector<2x1x32xf32>
    tpu.vector_store %arg23[%c0_33, %c2, %c0_34], %134 {strides = array<i32>} : memref<2x8x32xf32, #tpu.memory_space<vmem>>, vector<2x1x32xf32>,
    %135 = vector.extract_strided_slice %10 {offsets = [0, 5, 128], sizes = [2, 1, 128], strides = [1, 1, 1]} : vector<2x8x256xf32> to vector<2x1x128xf32>
    %136 = vector.shape_cast %135 : vector<2x1x128xf32> to vector<2x128xf32>
    %137 = arith.truncf %107 : vector<2x32xf32> to vector<2x32xbf16>
    %cst_35 = arith.constant dense<0.000000e+00> : vector<2x128xf32>
    %138 = tpu.matmul %137, %3, %cst_35 {dimension_numbers = #tpu.dot_dimension_numbers<[1], [0], [0], [1], [0, 0, 1, 1], [], []>} : vector<2x32xbf16>, vector<32x128xbf16>, vector<2x128xf32> -> vector<2x128xf32>
    %139 = arith.addf %136, %138 : vector<2x128xf32>
    %140 = vector.extract_strided_slice %139 {offsets = [0, 0], sizes = [2, 96], strides = [1, 1]} : vector<2x128xf32> to vector<2x96xf32>
    %141 = arith.negf %140 : vector<2x96xf32>
    %142 = math.exp %141 : vector<2x96xf32>
    %cst_36 = arith.constant 1.000000e+00 : f32
    %143 = vector.broadcast %cst_36 : f32 to vector<2x96xf32>
    %144 = arith.addf %143, %142 : vector<2x96xf32>
    %145 = arith.divf %143, %144 : vector<2x96xf32>
    %146 = vector.extract_strided_slice %145 {offsets = [0, 0], sizes = [2, 32], strides = [1, 1]} : vector<2x96xf32> to vector<2x32xf32>
    %147 = vector.extract_strided_slice %145 {offsets = [0, 32], sizes = [2, 32], strides = [1, 1]} : vector<2x96xf32> to vector<2x32xf32>
    %148 = vector.extract_strided_slice %145 {offsets = [0, 64], sizes = [2, 32], strides = [1, 1]} : vector<2x96xf32> to vector<2x32xf32>
    %149 = vector.extract_strided_slice %139 {offsets = [0, 96], sizes = [2, 32], strides = [1, 1]} : vector<2x128xf32> to vector<2x32xf32>
    %150 = math.tanh %149 : vector<2x32xf32>
    %151 = arith.mulf %147, %105 : vector<2x32xf32>
    %152 = arith.mulf %146, %150 : vector<2x32xf32>
    %153 = arith.addf %151, %152 : vector<2x32xf32>
    %154 = math.tanh %153 : vector<2x32xf32>
    %155 = arith.mulf %148, %154 : vector<2x32xf32>
    %c0_37 = arith.constant 0 : index
    %c5 = arith.constant 5 : index
    %c0_38 = arith.constant 0 : index
    %156 = vector.load %arg24[%c0_37, %c5, %c0_38] : memref<2x8x32xf32, #tpu.memory_space<vmem>>, vector<2x1x32xf32>
    %157 = vector.shape_cast %156 : vector<2x1x32xf32> to vector<2x32xf32>
    %158 = vector.shape_cast %155 : vector<2x32xf32> to vector<2x1x32xf32>
    tpu.vector_store %arg24[%c0_37, %c5, %c0_38], %158 {strides = array<i32>} : memref<2x8x32xf32, #tpu.memory_space<vmem>>, vector<2x1x32xf32>,
    %159 = vector.extract_strided_slice %10 {offsets = [0, 3, 0], sizes = [2, 1, 128], strides = [1, 1, 1]} : vector<2x8x256xf32> to vector<2x1x128xf32>
    %160 = vector.shape_cast %159 : vector<2x1x128xf32> to vector<2x128xf32>
    %161 = arith.truncf %131 : vector<2x32xf32> to vector<2x32xbf16>
    %cst_39 = arith.constant dense<0.000000e+00> : vector<2x128xf32>
    %162 = tpu.matmul %161, %2, %cst_39 {dimension_numbers = #tpu.dot_dimension_numbers<[1], [0], [0], [1], [0, 0, 1, 1], [], []>} : vector<2x32xbf16>, vector<32x128xbf16>, vector<2x128xf32> -> vector<2x128xf32>
    %163 = arith.addf %160, %162 : vector<2x128xf32>
    %164 = vector.extract_strided_slice %163 {offsets = [0, 0], sizes = [2, 96], strides = [1, 1]} : vector<2x128xf32> to vector<2x96xf32>
    %165 = arith.negf %164 : vector<2x96xf32>
    %166 = math.exp %165 : vector<2x96xf32>
    %cst_40 = arith.constant 1.000000e+00 : f32
    %167 = vector.broadcast %cst_40 : f32 to vector<2x96xf32>
    %168 = arith.addf %167, %166 : vector<2x96xf32>
    %169 = arith.divf %167, %168 : vector<2x96xf32>
    %170 = vector.extract_strided_slice %169 {offsets = [0, 0], sizes = [2, 32], strides = [1, 1]} : vector<2x96xf32> to vector<2x32xf32>
    %171 = vector.extract_strided_slice %169 {offsets = [0, 32], sizes = [2, 32], strides = [1, 1]} : vector<2x96xf32> to vector<2x32xf32>
    %172 = vector.extract_strided_slice %169 {offsets = [0, 64], sizes = [2, 32], strides = [1, 1]} : vector<2x96xf32> to vector<2x32xf32>
    %173 = vector.extract_strided_slice %163 {offsets = [0, 96], sizes = [2, 32], strides = [1, 1]} : vector<2x128xf32> to vector<2x32xf32>
    %174 = math.tanh %173 : vector<2x32xf32>
    %175 = arith.mulf %171, %129 : vector<2x32xf32>
    %176 = arith.mulf %170, %174 : vector<2x32xf32>
    %177 = arith.addf %175, %176 : vector<2x32xf32>
    %178 = math.tanh %177 : vector<2x32xf32>
    %179 = arith.mulf %172, %178 : vector<2x32xf32>
    %c0_41 = arith.constant 0 : index
    %c3 = arith.constant 3 : index
    %c0_42 = arith.constant 0 : index
    %180 = vector.load %arg23[%c0_41, %c3, %c0_42] : memref<2x8x32xf32, #tpu.memory_space<vmem>>, vector<2x1x32xf32>
    %181 = vector.shape_cast %180 : vector<2x1x32xf32> to vector<2x32xf32>
    %182 = vector.shape_cast %179 : vector<2x32xf32> to vector<2x1x32xf32>
    tpu.vector_store %arg23[%c0_41, %c3, %c0_42], %182 {strides = array<i32>} : memref<2x8x32xf32, #tpu.memory_space<vmem>>, vector<2x1x32xf32>,
    %183 = vector.extract_strided_slice %10 {offsets = [0, 4, 128], sizes = [2, 1, 128], strides = [1, 1, 1]} : vector<2x8x256xf32> to vector<2x1x128xf32>
    %184 = vector.shape_cast %183 : vector<2x1x128xf32> to vector<2x128xf32>
    %185 = arith.truncf %155 : vector<2x32xf32> to vector<2x32xbf16>
    %cst_43 = arith.constant dense<0.000000e+00> : vector<2x128xf32>
    %186 = tpu.matmul %185, %3, %cst_43 {dimension_numbers = #tpu.dot_dimension_numbers<[1], [0], [0], [1], [0, 0, 1, 1], [], []>} : vector<2x32xbf16>, vector<32x128xbf16>, vector<2x128xf32> -> vector<2x128xf32>
    %187 = arith.addf %184, %186 : vector<2x128xf32>
    %188 = vector.extract_strided_slice %187 {offsets = [0, 0], sizes = [2, 96], strides = [1, 1]} : vector<2x128xf32> to vector<2x96xf32>
    %189 = arith.negf %188 : vector<2x96xf32>
    %190 = math.exp %189 : vector<2x96xf32>
    %cst_44 = arith.constant 1.000000e+00 : f32
    %191 = vector.broadcast %cst_44 : f32 to vector<2x96xf32>
    %192 = arith.addf %191, %190 : vector<2x96xf32>
    %193 = arith.divf %191, %192 : vector<2x96xf32>
    %194 = vector.extract_strided_slice %193 {offsets = [0, 0], sizes = [2, 32], strides = [1, 1]} : vector<2x96xf32> to vector<2x32xf32>
    %195 = vector.extract_strided_slice %193 {offsets = [0, 32], sizes = [2, 32], strides = [1, 1]} : vector<2x96xf32> to vector<2x32xf32>
    %196 = vector.extract_strided_slice %193 {offsets = [0, 64], sizes = [2, 32], strides = [1, 1]} : vector<2x96xf32> to vector<2x32xf32>
    %197 = vector.extract_strided_slice %187 {offsets = [0, 96], sizes = [2, 32], strides = [1, 1]} : vector<2x128xf32> to vector<2x32xf32>
    %198 = math.tanh %197 : vector<2x32xf32>
    %199 = arith.mulf %195, %153 : vector<2x32xf32>
    %200 = arith.mulf %194, %198 : vector<2x32xf32>
    %201 = arith.addf %199, %200 : vector<2x32xf32>
    %202 = math.tanh %201 : vector<2x32xf32>
    %203 = arith.mulf %196, %202 : vector<2x32xf32>
    %c0_45 = arith.constant 0 : index
    %c4 = arith.constant 4 : index
    %c0_46 = arith.constant 0 : index
    %204 = vector.load %arg24[%c0_45, %c4, %c0_46] : memref<2x8x32xf32, #tpu.memory_space<vmem>>, vector<2x1x32xf32>
    %205 = vector.shape_cast %204 : vector<2x1x32xf32> to vector<2x32xf32>
    %206 = vector.shape_cast %203 : vector<2x32xf32> to vector<2x1x32xf32>
    tpu.vector_store %arg24[%c0_45, %c4, %c0_46], %206 {strides = array<i32>} : memref<2x8x32xf32, #tpu.memory_space<vmem>>, vector<2x1x32xf32>,
    %207 = vector.extract_strided_slice %10 {offsets = [0, 4, 0], sizes = [2, 1, 128], strides = [1, 1, 1]} : vector<2x8x256xf32> to vector<2x1x128xf32>
    %208 = vector.shape_cast %207 : vector<2x1x128xf32> to vector<2x128xf32>
    %209 = arith.truncf %179 : vector<2x32xf32> to vector<2x32xbf16>
    %cst_47 = arith.constant dense<0.000000e+00> : vector<2x128xf32>
    %210 = tpu.matmul %209, %2, %cst_47 {dimension_numbers = #tpu.dot_dimension_numbers<[1], [0], [0], [1], [0, 0, 1, 1], [], []>} : vector<2x32xbf16>, vector<32x128xbf16>, vector<2x128xf32> -> vector<2x128xf32>
    %211 = arith.addf %208, %210 : vector<2x128xf32>
    %212 = vector.extract_strided_slice %211 {offsets = [0, 0], sizes = [2, 96], strides = [1, 1]} : vector<2x128xf32> to vector<2x96xf32>
    %213 = arith.negf %212 : vector<2x96xf32>
    %214 = math.exp %213 : vector<2x96xf32>
    %cst_48 = arith.constant 1.000000e+00 : f32
    %215 = vector.broadcast %cst_48 : f32 to vector<2x96xf32>
    %216 = arith.addf %215, %214 : vector<2x96xf32>
    %217 = arith.divf %215, %216 : vector<2x96xf32>
    %218 = vector.extract_strided_slice %217 {offsets = [0, 0], sizes = [2, 32], strides = [1, 1]} : vector<2x96xf32> to vector<2x32xf32>
    %219 = vector.extract_strided_slice %217 {offsets = [0, 32], sizes = [2, 32], strides = [1, 1]} : vector<2x96xf32> to vector<2x32xf32>
    %220 = vector.extract_strided_slice %217 {offsets = [0, 64], sizes = [2, 32], strides = [1, 1]} : vector<2x96xf32> to vector<2x32xf32>
    %221 = vector.extract_strided_slice %211 {offsets = [0, 96], sizes = [2, 32], strides = [1, 1]} : vector<2x128xf32> to vector<2x32xf32>
    %222 = math.tanh %221 : vector<2x32xf32>
    %223 = arith.mulf %219, %177 : vector<2x32xf32>
    %224 = arith.mulf %218, %222 : vector<2x32xf32>
    %225 = arith.addf %223, %224 : vector<2x32xf32>
    %226 = math.tanh %225 : vector<2x32xf32>
    %227 = arith.mulf %220, %226 : vector<2x32xf32>
    %c0_49 = arith.constant 0 : index
    %c4_50 = arith.constant 4 : index
    %c0_51 = arith.constant 0 : index
    %228 = vector.load %arg23[%c0_49, %c4_50, %c0_51] : memref<2x8x32xf32, #tpu.memory_space<vmem>>, vector<2x1x32xf32>
    %229 = vector.shape_cast %228 : vector<2x1x32xf32> to vector<2x32xf32>
    %230 = vector.shape_cast %227 : vector<2x32xf32> to vector<2x1x32xf32>
    tpu.vector_store %arg23[%c0_49, %c4_50, %c0_51], %230 {strides = array<i32>} : memref<2x8x32xf32, #tpu.memory_space<vmem>>, vector<2x1x32xf32>,
    %231 = vector.extract_strided_slice %10 {offsets = [0, 3, 128], sizes = [2, 1, 128], strides = [1, 1, 1]} : vector<2x8x256xf32> to vector<2x1x128xf32>
    %232 = vector.shape_cast %231 : vector<2x1x128xf32> to vector<2x128xf32>
    %233 = arith.truncf %203 : vector<2x32xf32> to vector<2x32xbf16>
    %cst_52 = arith.constant dense<0.000000e+00> : vector<2x128xf32>
    %234 = tpu.matmul %233, %3, %cst_52 {dimension_numbers = #tpu.dot_dimension_numbers<[1], [0], [0], [1], [0, 0, 1, 1], [], []>} : vector<2x32xbf16>, vector<32x128xbf16>, vector<2x128xf32> -> vector<2x128xf32>
    %235 = arith.addf %232, %234 : vector<2x128xf32>
    %236 = vector.extract_strided_slice %235 {offsets = [0, 0], sizes = [2, 96], strides = [1, 1]} : vector<2x128xf32> to vector<2x96xf32>
    %237 = arith.negf %236 : vector<2x96xf32>
    %238 = math.exp %237 : vector<2x96xf32>
    %cst_53 = arith.constant 1.000000e+00 : f32
    %239 = vector.broadcast %cst_53 : f32 to vector<2x96xf32>
    %240 = arith.addf %239, %238 : vector<2x96xf32>
    %241 = arith.divf %239, %240 : vector<2x96xf32>
    %242 = vector.extract_strided_slice %241 {offsets = [0, 0], sizes = [2, 32], strides = [1, 1]} : vector<2x96xf32> to vector<2x32xf32>
    %243 = vector.extract_strided_slice %241 {offsets = [0, 32], sizes = [2, 32], strides = [1, 1]} : vector<2x96xf32> to vector<2x32xf32>
    %244 = vector.extract_strided_slice %241 {offsets = [0, 64], sizes = [2, 32], strides = [1, 1]} : vector<2x96xf32> to vector<2x32xf32>
    %245 = vector.extract_strided_slice %235 {offsets = [0, 96], sizes = [2, 32], strides = [1, 1]} : vector<2x128xf32> to vector<2x32xf32>
    %246 = math.tanh %245 : vector<2x32xf32>
    %247 = arith.mulf %243, %201 : vector<2x32xf32>
    %248 = arith.mulf %242, %246 : vector<2x32xf32>
    %249 = arith.addf %247, %248 : vector<2x32xf32>
    %250 = math.tanh %249 : vector<2x32xf32>
    %251 = arith.mulf %244, %250 : vector<2x32xf32>
    %c0_54 = arith.constant 0 : index
    %c3_55 = arith.constant 3 : index
    %c0_56 = arith.constant 0 : index
    %252 = vector.load %arg24[%c0_54, %c3_55, %c0_56] : memref<2x8x32xf32, #tpu.memory_space<vmem>>, vector<2x1x32xf32>
    %253 = vector.shape_cast %252 : vector<2x1x32xf32> to vector<2x32xf32>
    %254 = vector.shape_cast %251 : vector<2x32xf32> to vector<2x1x32xf32>
    tpu.vector_store %arg24[%c0_54, %c3_55, %c0_56], %254 {strides = array<i32>} : memref<2x8x32xf32, #tpu.memory_space<vmem>>, vector<2x1x32xf32>,
    %255 = vector.extract_strided_slice %10 {offsets = [0, 5, 0], sizes = [2, 1, 128], strides = [1, 1, 1]} : vector<2x8x256xf32> to vector<2x1x128xf32>
    %256 = vector.shape_cast %255 : vector<2x1x128xf32> to vector<2x128xf32>
    %257 = arith.truncf %227 : vector<2x32xf32> to vector<2x32xbf16>
    %cst_57 = arith.constant dense<0.000000e+00> : vector<2x128xf32>
    %258 = tpu.matmul %257, %2, %cst_57 {dimension_numbers = #tpu.dot_dimension_numbers<[1], [0], [0], [1], [0, 0, 1, 1], [], []>} : vector<2x32xbf16>, vector<32x128xbf16>, vector<2x128xf32> -> vector<2x128xf32>
    %259 = arith.addf %256, %258 : vector<2x128xf32>
    %260 = vector.extract_strided_slice %259 {offsets = [0, 0], sizes = [2, 96], strides = [1, 1]} : vector<2x128xf32> to vector<2x96xf32>
    %261 = arith.negf %260 : vector<2x96xf32>
    %262 = math.exp %261 : vector<2x96xf32>
    %cst_58 = arith.constant 1.000000e+00 : f32
    %263 = vector.broadcast %cst_58 : f32 to vector<2x96xf32>
    %264 = arith.addf %263, %262 : vector<2x96xf32>
    %265 = arith.divf %263, %264 : vector<2x96xf32>
    %266 = vector.extract_strided_slice %265 {offsets = [0, 0], sizes = [2, 32], strides = [1, 1]} : vector<2x96xf32> to vector<2x32xf32>
    %267 = vector.extract_strided_slice %265 {offsets = [0, 32], sizes = [2, 32], strides = [1, 1]} : vector<2x96xf32> to vector<2x32xf32>
    %268 = vector.extract_strided_slice %265 {offsets = [0, 64], sizes = [2, 32], strides = [1, 1]} : vector<2x96xf32> to vector<2x32xf32>
    %269 = vector.extract_strided_slice %259 {offsets = [0, 96], sizes = [2, 32], strides = [1, 1]} : vector<2x128xf32> to vector<2x32xf32>
    %270 = math.tanh %269 : vector<2x32xf32>
    %271 = arith.mulf %267, %225 : vector<2x32xf32>
    %272 = arith.mulf %266, %270 : vector<2x32xf32>
    %273 = arith.addf %271, %272 : vector<2x32xf32>
    %274 = math.tanh %273 : vector<2x32xf32>
    %275 = arith.mulf %268, %274 : vector<2x32xf32>
    %c0_59 = arith.constant 0 : index
    %c5_60 = arith.constant 5 : index
    %c0_61 = arith.constant 0 : index
    %276 = vector.load %arg23[%c0_59, %c5_60, %c0_61] : memref<2x8x32xf32, #tpu.memory_space<vmem>>, vector<2x1x32xf32>
    %277 = vector.shape_cast %276 : vector<2x1x32xf32> to vector<2x32xf32>
    %278 = vector.shape_cast %275 : vector<2x32xf32> to vector<2x1x32xf32>
    tpu.vector_store %arg23[%c0_59, %c5_60, %c0_61], %278 {strides = array<i32>} : memref<2x8x32xf32, #tpu.memory_space<vmem>>, vector<2x1x32xf32>,
    %279 = vector.extract_strided_slice %10 {offsets = [0, 2, 128], sizes = [2, 1, 128], strides = [1, 1, 1]} : vector<2x8x256xf32> to vector<2x1x128xf32>
    %280 = vector.shape_cast %279 : vector<2x1x128xf32> to vector<2x128xf32>
    %281 = arith.truncf %251 : vector<2x32xf32> to vector<2x32xbf16>
    %cst_62 = arith.constant dense<0.000000e+00> : vector<2x128xf32>
    %282 = tpu.matmul %281, %3, %cst_62 {dimension_numbers = #tpu.dot_dimension_numbers<[1], [0], [0], [1], [0, 0, 1, 1], [], []>} : vector<2x32xbf16>, vector<32x128xbf16>, vector<2x128xf32> -> vector<2x128xf32>
    %283 = arith.addf %280, %282 : vector<2x128xf32>
    %284 = vector.extract_strided_slice %283 {offsets = [0, 0], sizes = [2, 96], strides = [1, 1]} : vector<2x128xf32> to vector<2x96xf32>
    %285 = arith.negf %284 : vector<2x96xf32>
    %286 = math.exp %285 : vector<2x96xf32>
    %cst_63 = arith.constant 1.000000e+00 : f32
    %287 = vector.broadcast %cst_63 : f32 to vector<2x96xf32>
    %288 = arith.addf %287, %286 : vector<2x96xf32>
    %289 = arith.divf %287, %288 : vector<2x96xf32>
    %290 = vector.extract_strided_slice %289 {offsets = [0, 0], sizes = [2, 32], strides = [1, 1]} : vector<2x96xf32> to vector<2x32xf32>
    %291 = vector.extract_strided_slice %289 {offsets = [0, 32], sizes = [2, 32], strides = [1, 1]} : vector<2x96xf32> to vector<2x32xf32>
    %292 = vector.extract_strided_slice %289 {offsets = [0, 64], sizes = [2, 32], strides = [1, 1]} : vector<2x96xf32> to vector<2x32xf32>
    %293 = vector.extract_strided_slice %283 {offsets = [0, 96], sizes = [2, 32], strides = [1, 1]} : vector<2x128xf32> to vector<2x32xf32>
    %294 = math.tanh %293 : vector<2x32xf32>
    %295 = arith.mulf %291, %249 : vector<2x32xf32>
    %296 = arith.mulf %290, %294 : vector<2x32xf32>
    %297 = arith.addf %295, %296 : vector<2x32xf32>
    %298 = math.tanh %297 : vector<2x32xf32>
    %299 = arith.mulf %292, %298 : vector<2x32xf32>
    %c0_64 = arith.constant 0 : index
    %c2_65 = arith.constant 2 : index
    %c0_66 = arith.constant 0 : index
    %300 = vector.load %arg24[%c0_64, %c2_65, %c0_66] : memref<2x8x32xf32, #tpu.memory_space<vmem>>, vector<2x1x32xf32>
    %301 = vector.shape_cast %300 : vector<2x1x32xf32> to vector<2x32xf32>
    %302 = vector.shape_cast %299 : vector<2x32xf32> to vector<2x1x32xf32>
    tpu.vector_store %arg24[%c0_64, %c2_65, %c0_66], %302 {strides = array<i32>} : memref<2x8x32xf32, #tpu.memory_space<vmem>>, vector<2x1x32xf32>,
    %303 = vector.extract_strided_slice %10 {offsets = [0, 6, 0], sizes = [2, 1, 128], strides = [1, 1, 1]} : vector<2x8x256xf32> to vector<2x1x128xf32>
    %304 = vector.shape_cast %303 : vector<2x1x128xf32> to vector<2x128xf32>
    %305 = arith.truncf %275 : vector<2x32xf32> to vector<2x32xbf16>
    %cst_67 = arith.constant dense<0.000000e+00> : vector<2x128xf32>
    %306 = tpu.matmul %305, %2, %cst_67 {dimension_numbers = #tpu.dot_dimension_numbers<[1], [0], [0], [1], [0, 0, 1, 1], [], []>} : vector<2x32xbf16>, vector<32x128xbf16>, vector<2x128xf32> -> vector<2x128xf32>
    %307 = arith.addf %304, %306 : vector<2x128xf32>
    %308 = vector.extract_strided_slice %307 {offsets = [0, 0], sizes = [2, 96], strides = [1, 1]} : vector<2x128xf32> to vector<2x96xf32>
    %309 = arith.negf %308 : vector<2x96xf32>
    %310 = math.exp %309 : vector<2x96xf32>
    %cst_68 = arith.constant 1.000000e+00 : f32
    %311 = vector.broadcast %cst_68 : f32 to vector<2x96xf32>
    %312 = arith.addf %311, %310 : vector<2x96xf32>
    %313 = arith.divf %311, %312 : vector<2x96xf32>
    %314 = vector.extract_strided_slice %313 {offsets = [0, 0], sizes = [2, 32], strides = [1, 1]} : vector<2x96xf32> to vector<2x32xf32>
    %315 = vector.extract_strided_slice %313 {offsets = [0, 32], sizes = [2, 32], strides = [1, 1]} : vector<2x96xf32> to vector<2x32xf32>
    %316 = vector.extract_strided_slice %313 {offsets = [0, 64], sizes = [2, 32], strides = [1, 1]} : vector<2x96xf32> to vector<2x32xf32>
    %317 = vector.extract_strided_slice %307 {offsets = [0, 96], sizes = [2, 32], strides = [1, 1]} : vector<2x128xf32> to vector<2x32xf32>
    %318 = math.tanh %317 : vector<2x32xf32>
    %319 = arith.mulf %315, %273 : vector<2x32xf32>
    %320 = arith.mulf %314, %318 : vector<2x32xf32>
    %321 = arith.addf %319, %320 : vector<2x32xf32>
    %322 = math.tanh %321 : vector<2x32xf32>
    %323 = arith.mulf %316, %322 : vector<2x32xf32>
    %c0_69 = arith.constant 0 : index
    %c6_70 = arith.constant 6 : index
    %c0_71 = arith.constant 0 : index
    %324 = vector.load %arg23[%c0_69, %c6_70, %c0_71] : memref<2x8x32xf32, #tpu.memory_space<vmem>>, vector<2x1x32xf32>
    %325 = vector.shape_cast %324 : vector<2x1x32xf32> to vector<2x32xf32>
    %326 = vector.shape_cast %323 : vector<2x32xf32> to vector<2x1x32xf32>
    tpu.vector_store %arg23[%c0_69, %c6_70, %c0_71], %326 {strides = array<i32>} : memref<2x8x32xf32, #tpu.memory_space<vmem>>, vector<2x1x32xf32>,
    %327 = vector.extract_strided_slice %10 {offsets = [0, 1, 128], sizes = [2, 1, 128], strides = [1, 1, 1]} : vector<2x8x256xf32> to vector<2x1x128xf32>
    %328 = vector.shape_cast %327 : vector<2x1x128xf32> to vector<2x128xf32>
    %329 = arith.truncf %299 : vector<2x32xf32> to vector<2x32xbf16>
    %cst_72 = arith.constant dense<0.000000e+00> : vector<2x128xf32>
    %330 = tpu.matmul %329, %3, %cst_72 {dimension_numbers = #tpu.dot_dimension_numbers<[1], [0], [0], [1], [0, 0, 1, 1], [], []>} : vector<2x32xbf16>, vector<32x128xbf16>, vector<2x128xf32> -> vector<2x128xf32>
    %331 = arith.addf %328, %330 : vector<2x128xf32>
    %332 = vector.extract_strided_slice %331 {offsets = [0, 0], sizes = [2, 96], strides = [1, 1]} : vector<2x128xf32> to vector<2x96xf32>
    %333 = arith.negf %332 : vector<2x96xf32>
    %334 = math.exp %333 : vector<2x96xf32>
    %cst_73 = arith.constant 1.000000e+00 : f32
    %335 = vector.broadcast %cst_73 : f32 to vector<2x96xf32>
    %336 = arith.addf %335, %334 : vector<2x96xf32>
    %337 = arith.divf %335, %336 : vector<2x96xf32>
    %338 = vector.extract_strided_slice %337 {offsets = [0, 0], sizes = [2, 32], strides = [1, 1]} : vector<2x96xf32> to vector<2x32xf32>
    %339 = vector.extract_strided_slice %337 {offsets = [0, 32], sizes = [2, 32], strides = [1, 1]} : vector<2x96xf32> to vector<2x32xf32>
    %340 = vector.extract_strided_slice %337 {offsets = [0, 64], sizes = [2, 32], strides = [1, 1]} : vector<2x96xf32> to vector<2x32xf32>
    %341 = vector.extract_strided_slice %331 {offsets = [0, 96], sizes = [2, 32], strides = [1, 1]} : vector<2x128xf32> to vector<2x32xf32>
    %342 = math.tanh %341 : vector<2x32xf32>
    %343 = arith.mulf %339, %297 : vector<2x32xf32>
    %344 = arith.mulf %338, %342 : vector<2x32xf32>
    %345 = arith.addf %343, %344 : vector<2x32xf32>
    %346 = math.tanh %345 : vector<2x32xf32>
    %347 = arith.mulf %340, %346 : vector<2x32xf32>
    %c0_74 = arith.constant 0 : index
    %c1_75 = arith.constant 1 : index
    %c0_76 = arith.constant 0 : index
    %348 = vector.load %arg24[%c0_74, %c1_75, %c0_76] : memref<2x8x32xf32, #tpu.memory_space<vmem>>, vector<2x1x32xf32>
    %349 = vector.shape_cast %348 : vector<2x1x32xf32> to vector<2x32xf32>
    %350 = vector.shape_cast %347 : vector<2x32xf32> to vector<2x1x32xf32>
    tpu.vector_store %arg24[%c0_74, %c1_75, %c0_76], %350 {strides = array<i32>} : memref<2x8x32xf32, #tpu.memory_space<vmem>>, vector<2x1x32xf32>,
    %351 = vector.extract_strided_slice %10 {offsets = [0, 7, 0], sizes = [2, 1, 128], strides = [1, 1, 1]} : vector<2x8x256xf32> to vector<2x1x128xf32>
    %352 = vector.shape_cast %351 : vector<2x1x128xf32> to vector<2x128xf32>
    %353 = arith.truncf %323 : vector<2x32xf32> to vector<2x32xbf16>
    %cst_77 = arith.constant dense<0.000000e+00> : vector<2x128xf32>
    %354 = tpu.matmul %353, %2, %cst_77 {dimension_numbers = #tpu.dot_dimension_numbers<[1], [0], [0], [1], [0, 0, 1, 1], [], []>} : vector<2x32xbf16>, vector<32x128xbf16>, vector<2x128xf32> -> vector<2x128xf32>
    %355 = arith.addf %352, %354 : vector<2x128xf32>
    %356 = vector.extract_strided_slice %355 {offsets = [0, 0], sizes = [2, 96], strides = [1, 1]} : vector<2x128xf32> to vector<2x96xf32>
    %357 = arith.negf %356 : vector<2x96xf32>
    %358 = math.exp %357 : vector<2x96xf32>
    %cst_78 = arith.constant 1.000000e+00 : f32
    %359 = vector.broadcast %cst_78 : f32 to vector<2x96xf32>
    %360 = arith.addf %359, %358 : vector<2x96xf32>
    %361 = arith.divf %359, %360 : vector<2x96xf32>
    %362 = vector.extract_strided_slice %361 {offsets = [0, 0], sizes = [2, 32], strides = [1, 1]} : vector<2x96xf32> to vector<2x32xf32>
    %363 = vector.extract_strided_slice %361 {offsets = [0, 32], sizes = [2, 32], strides = [1, 1]} : vector<2x96xf32> to vector<2x32xf32>
    %364 = vector.extract_strided_slice %361 {offsets = [0, 64], sizes = [2, 32], strides = [1, 1]} : vector<2x96xf32> to vector<2x32xf32>
    %365 = vector.extract_strided_slice %355 {offsets = [0, 96], sizes = [2, 32], strides = [1, 1]} : vector<2x128xf32> to vector<2x32xf32>
    %366 = math.tanh %365 : vector<2x32xf32>
    %367 = arith.mulf %363, %321 : vector<2x32xf32>
    %368 = arith.mulf %362, %366 : vector<2x32xf32>
    %369 = arith.addf %367, %368 : vector<2x32xf32>
    %370 = math.tanh %369 : vector<2x32xf32>
    %371 = arith.mulf %364, %370 : vector<2x32xf32>
    %c0_79 = arith.constant 0 : index
    %c7_80 = arith.constant 7 : index
    %c0_81 = arith.constant 0 : index
    %372 = vector.load %arg23[%c0_79, %c7_80, %c0_81] : memref<2x8x32xf32, #tpu.memory_space<vmem>>, vector<2x1x32xf32>
    %373 = vector.shape_cast %372 : vector<2x1x32xf32> to vector<2x32xf32>
    %374 = vector.shape_cast %371 : vector<2x32xf32> to vector<2x1x32xf32>
    tpu.vector_store %arg23[%c0_79, %c7_80, %c0_81], %374 {strides = array<i32>} : memref<2x8x32xf32, #tpu.memory_space<vmem>>, vector<2x1x32xf32>,
    %375 = vector.extract_strided_slice %10 {offsets = [0, 0, 128], sizes = [2, 1, 128], strides = [1, 1, 1]} : vector<2x8x256xf32> to vector<2x1x128xf32>
    %376 = vector.shape_cast %375 : vector<2x1x128xf32> to vector<2x128xf32>
    %377 = arith.truncf %347 : vector<2x32xf32> to vector<2x32xbf16>
    %cst_82 = arith.constant dense<0.000000e+00> : vector<2x128xf32>
    %378 = tpu.matmul %377, %3, %cst_82 {dimension_numbers = #tpu.dot_dimension_numbers<[1], [0], [0], [1], [0, 0, 1, 1], [], []>} : vector<2x32xbf16>, vector<32x128xbf16>, vector<2x128xf32> -> vector<2x128xf32>
    %379 = arith.addf %376, %378 : vector<2x128xf32>
    %380 = vector.extract_strided_slice %379 {offsets = [0, 0], sizes = [2, 96], strides = [1, 1]} : vector<2x128xf32> to vector<2x96xf32>
    %381 = arith.negf %380 : vector<2x96xf32>
    %382 = math.exp %381 : vector<2x96xf32>
    %cst_83 = arith.constant 1.000000e+00 : f32
    %383 = vector.broadcast %cst_83 : f32 to vector<2x96xf32>
    %384 = arith.addf %383, %382 : vector<2x96xf32>
    %385 = arith.divf %383, %384 : vector<2x96xf32>
    %386 = vector.extract_strided_slice %385 {offsets = [0, 0], sizes = [2, 32], strides = [1, 1]} : vector<2x96xf32> to vector<2x32xf32>
    %387 = vector.extract_strided_slice %385 {offsets = [0, 32], sizes = [2, 32], strides = [1, 1]} : vector<2x96xf32> to vector<2x32xf32>
    %388 = vector.extract_strided_slice %385 {offsets = [0, 64], sizes = [2, 32], strides = [1, 1]} : vector<2x96xf32> to vector<2x32xf32>
    %389 = vector.extract_strided_slice %379 {offsets = [0, 96], sizes = [2, 32], strides = [1, 1]} : vector<2x128xf32> to vector<2x32xf32>
    %390 = math.tanh %389 : vector<2x32xf32>
    %391 = arith.mulf %387, %345 : vector<2x32xf32>
    %392 = arith.mulf %386, %390 : vector<2x32xf32>
    %393 = arith.addf %391, %392 : vector<2x32xf32>
    %394 = math.tanh %393 : vector<2x32xf32>
    %395 = arith.mulf %388, %394 : vector<2x32xf32>
    %c0_84 = arith.constant 0 : index
    %c0_85 = arith.constant 0 : index
    %c0_86 = arith.constant 0 : index
    %396 = vector.load %arg24[%c0_84, %c0_85, %c0_86] : memref<2x8x32xf32, #tpu.memory_space<vmem>>, vector<2x1x32xf32>
    %397 = vector.shape_cast %396 : vector<2x1x32xf32> to vector<2x32xf32>
    %398 = vector.shape_cast %395 : vector<2x32xf32> to vector<2x1x32xf32>
    tpu.vector_store %arg24[%c0_84, %c0_85, %c0_86], %398 {strides = array<i32>} : memref<2x8x32xf32, #tpu.memory_space<vmem>>, vector<2x1x32xf32>,
    %c0_87 = arith.constant 0 : index
    %c0_88 = arith.constant 0 : index
    %c0_89 = arith.constant 0 : index
    %399 = vector.load %arg23[%c0_87, %c0_88, %c0_89] : memref<2x8x32xf32, #tpu.memory_space<vmem>>, vector<2x8x32xf32>
    %c0_90 = arith.constant 0 : index
    %c0_91 = arith.constant 0 : index
    %c0_92 = arith.constant 0 : index
    %400 = vector.load %arg24[%c0_90, %c0_91, %c0_92] : memref<2x8x32xf32, #tpu.memory_space<vmem>>, vector<2x8x32xf32>
    %401 = tpu.concatenate %399, %400 in 2 : vector<2x8x32xf32>, vector<2x8x32xf32> -> vector<2x8x64xf32>
    %402 = vector.shape_cast %401 : vector<2x8x64xf32> to vector<16x64xf32>
    %c0_93 = arith.constant 0 : index
    %c0_94 = arith.constant 0 : index
    %403 = vector.load %arg6[%c0_93, %c0_94] : memref<32x128xbf16, #tpu.memory_space<vmem>>, vector<32x128xbf16>
    %c0_95 = arith.constant 0 : index
    %c0_96 = arith.constant 0 : index
    %404 = vector.load %arg7[%c0_95, %c0_96] : memref<32x128xbf16, #tpu.memory_space<vmem>>, vector<32x128xbf16>
    %405 = arith.truncf %402 : vector<16x64xf32> to vector<16x64xbf16>
    %c0_97 = arith.constant 0 : index
    %c0_98 = arith.constant 0 : index
    %406 = vector.load %arg5[%c0_97, %c0_98] : memref<64x256xbf16, #tpu.memory_space<vmem>>, vector<64x256xbf16>
    %cst_99 = arith.constant dense<0.000000e+00> : vector<16x256xf32>
    %407 = tpu.matmul %405, %406, %cst_99 {dimension_numbers = #tpu.dot_dimension_numbers<[1], [0], [0], [1], [0, 0, 1, 1], [], []>} : vector<16x64xbf16>, vector<64x256xbf16>, vector<16x256xf32> -> vector<16x256xf32>
    %c0_100 = arith.constant 0 : index
    %c0_101 = arith.constant 0 : index
    %408 = vector.load %arg8[%c0_100, %c0_101] : memref<1x256xf32, #tpu.memory_space<vmem>>, vector<1x256xf32>
    %409 = vector.broadcast %408 : vector<1x256xf32> to vector<16x256xf32>
    %410 = arith.addf %407, %409 : vector<16x256xf32>
    %411 = vector.shape_cast %410 : vector<16x256xf32> to vector<2x8x256xf32>
    %cst_102 = arith.constant 0.000000e+00 : f32
    %412 = vector.broadcast %cst_102 : f32 to vector<2x32xf32>
    %cst_103 = arith.constant 0.000000e+00 : f32
    %413 = vector.broadcast %cst_103 : f32 to vector<2x32xf32>
    %cst_104 = arith.constant 0.000000e+00 : f32
    %414 = vector.broadcast %cst_104 : f32 to vector<2x32xf32>
    %cst_105 = arith.constant 0.000000e+00 : f32
    %415 = vector.broadcast %cst_105 : f32 to vector<2x32xf32>
    %416 = vector.extract_strided_slice %411 {offsets = [0, 0, 0], sizes = [2, 1, 128], strides = [1, 1, 1]} : vector<2x8x256xf32> to vector<2x1x128xf32>
    %417 = vector.shape_cast %416 : vector<2x1x128xf32> to vector<2x128xf32>
    %418 = arith.truncf %412 : vector<2x32xf32> to vector<2x32xbf16>
    %cst_106 = arith.constant dense<0.000000e+00> : vector<2x128xf32>
    %419 = tpu.matmul %418, %403, %cst_106 {dimension_numbers = #tpu.dot_dimension_numbers<[1], [0], [0], [1], [0, 0, 1, 1], [], []>} : vector<2x32xbf16>, vector<32x128xbf16>, vector<2x128xf32> -> vector<2x128xf32>
    %420 = arith.addf %417, %419 : vector<2x128xf32>
    %421 = vector.extract_strided_slice %420 {offsets = [0, 0], sizes = [2, 96], strides = [1, 1]} : vector<2x128xf32> to vector<2x96xf32>
    %422 = arith.negf %421 : vector<2x96xf32>
    %423 = math.exp %422 : vector<2x96xf32>
    %cst_107 = arith.constant 1.000000e+00 : f32
    %424 = vector.broadcast %cst_107 : f32 to vector<2x96xf32>
    %425 = arith.addf %424, %423 : vector<2x96xf32>
    %426 = arith.divf %424, %425 : vector<2x96xf32>
    %427 = vector.extract_strided_slice %426 {offsets = [0, 0], sizes = [2, 32], strides = [1, 1]} : vector<2x96xf32> to vector<2x32xf32>
    %428 = vector.extract_strided_slice %426 {offsets = [0, 32], sizes = [2, 32], strides = [1, 1]} : vector<2x96xf32> to vector<2x32xf32>
    %429 = vector.extract_strided_slice %426 {offsets = [0, 64], sizes = [2, 32], strides = [1, 1]} : vector<2x96xf32> to vector<2x32xf32>
    %430 = vector.extract_strided_slice %420 {offsets = [0, 96], sizes = [2, 32], strides = [1, 1]} : vector<2x128xf32> to vector<2x32xf32>
    %431 = math.tanh %430 : vector<2x32xf32>
    %432 = arith.mulf %428, %413 : vector<2x32xf32>
    %433 = arith.mulf %427, %431 : vector<2x32xf32>
    %434 = arith.addf %432, %433 : vector<2x32xf32>
    %435 = math.tanh %434 : vector<2x32xf32>
    %436 = arith.mulf %429, %435 : vector<2x32xf32>
    %c0_108 = arith.constant 0 : index
    %c0_109 = arith.constant 0 : index
    %c0_110 = arith.constant 0 : index
    %437 = vector.load %arg23[%c0_108, %c0_109, %c0_110] : memref<2x8x32xf32, #tpu.memory_space<vmem>>, vector<2x1x32xf32>
    %438 = vector.shape_cast %437 : vector<2x1x32xf32> to vector<2x32xf32>
    %439 = vector.shape_cast %436 : vector<2x32xf32> to vector<2x1x32xf32>
    tpu.vector_store %arg23[%c0_108, %c0_109, %c0_110], %439 {strides = array<i32>} : memref<2x8x32xf32, #tpu.memory_space<vmem>>, vector<2x1x32xf32>,
    %440 = vector.extract_strided_slice %411 {offsets = [0, 7, 128], sizes = [2, 1, 128], strides = [1, 1, 1]} : vector<2x8x256xf32> to vector<2x1x128xf32>
    %441 = vector.shape_cast %440 : vector<2x1x128xf32> to vector<2x128xf32>
    %442 = arith.truncf %414 : vector<2x32xf32> to vector<2x32xbf16>
    %cst_111 = arith.constant dense<0.000000e+00> : vector<2x128xf32>
    %443 = tpu.matmul %442, %404, %cst_111 {dimension_numbers = #tpu.dot_dimension_numbers<[1], [0], [0], [1], [0, 0, 1, 1], [], []>} : vector<2x32xbf16>, vector<32x128xbf16>, vector<2x128xf32> -> vector<2x128xf32>
    %444 = arith.addf %441, %443 : vector<2x128xf32>
    %445 = vector.extract_strided_slice %444 {offsets = [0, 0], sizes = [2, 96], strides = [1, 1]} : vector<2x128xf32> to vector<2x96xf32>
    %446 = arith.negf %445 : vector<2x96xf32>
    %447 = math.exp %446 : vector<2x96xf32>
    %cst_112 = arith.constant 1.000000e+00 : f32
    %448 = vector.broadcast %cst_112 : f32 to vector<2x96xf32>
    %449 = arith.addf %448, %447 : vector<2x96xf32>
    %450 = arith.divf %448, %449 : vector<2x96xf32>
    %451 = vector.extract_strided_slice %450 {offsets = [0, 0], sizes = [2, 32], strides = [1, 1]} : vector<2x96xf32> to vector<2x32xf32>
    %452 = vector.extract_strided_slice %450 {offsets = [0, 32], sizes = [2, 32], strides = [1, 1]} : vector<2x96xf32> to vector<2x32xf32>
    %453 = vector.extract_strided_slice %450 {offsets = [0, 64], sizes = [2, 32], strides = [1, 1]} : vector<2x96xf32> to vector<2x32xf32>
    %454 = vector.extract_strided_slice %444 {offsets = [0, 96], sizes = [2, 32], strides = [1, 1]} : vector<2x128xf32> to vector<2x32xf32>
    %455 = math.tanh %454 : vector<2x32xf32>
    %456 = arith.mulf %452, %415 : vector<2x32xf32>
    %457 = arith.mulf %451, %455 : vector<2x32xf32>
    %458 = arith.addf %456, %457 : vector<2x32xf32>
    %459 = math.tanh %458 : vector<2x32xf32>
    %460 = arith.mulf %453, %459 : vector<2x32xf32>
    %c0_113 = arith.constant 0 : index
    %c7_114 = arith.constant 7 : index
    %c0_115 = arith.constant 0 : index
    %461 = vector.load %arg24[%c0_113, %c7_114, %c0_115] : memref<2x8x32xf32, #tpu.memory_space<vmem>>, vector<2x1x32xf32>
    %462 = vector.shape_cast %461 : vector<2x1x32xf32> to vector<2x32xf32>
    %463 = vector.shape_cast %460 : vector<2x32xf32> to vector<2x1x32xf32>
    tpu.vector_store %arg24[%c0_113, %c7_114, %c0_115], %463 {strides = array<i32>} : memref<2x8x32xf32, #tpu.memory_space<vmem>>, vector<2x1x32xf32>,
    %464 = vector.extract_strided_slice %411 {offsets = [0, 1, 0], sizes = [2, 1, 128], strides = [1, 1, 1]} : vector<2x8x256xf32> to vector<2x1x128xf32>
    %465 = vector.shape_cast %464 : vector<2x1x128xf32> to vector<2x128xf32>
    %466 = arith.truncf %436 : vector<2x32xf32> to vector<2x32xbf16>
    %cst_116 = arith.constant dense<0.000000e+00> : vector<2x128xf32>
    %467 = tpu.matmul %466, %403, %cst_116 {dimension_numbers = #tpu.dot_dimension_numbers<[1], [0], [0], [1], [0, 0, 1, 1], [], []>} : vector<2x32xbf16>, vector<32x128xbf16>, vector<2x128xf32> -> vector<2x128xf32>
    %468 = arith.addf %465, %467 : vector<2x128xf32>
    %469 = vector.extract_strided_slice %468 {offsets = [0, 0], sizes = [2, 96], strides = [1, 1]} : vector<2x128xf32> to vector<2x96xf32>
    %470 = arith.negf %469 : vector<2x96xf32>
    %471 = math.exp %470 : vector<2x96xf32>
    %cst_117 = arith.constant 1.000000e+00 : f32
    %472 = vector.broadcast %cst_117 : f32 to vector<2x96xf32>
    %473 = arith.addf %472, %471 : vector<2x96xf32>
    %474 = arith.divf %472, %473 : vector<2x96xf32>
    %475 = vector.extract_strided_slice %474 {offsets = [0, 0], sizes = [2, 32], strides = [1, 1]} : vector<2x96xf32> to vector<2x32xf32>
    %476 = vector.extract_strided_slice %474 {offsets = [0, 32], sizes = [2, 32], strides = [1, 1]} : vector<2x96xf32> to vector<2x32xf32>
    %477 = vector.extract_strided_slice %474 {offsets = [0, 64], sizes = [2, 32], strides = [1, 1]} : vector<2x96xf32> to vector<2x32xf32>
    %478 = vector.extract_strided_slice %468 {offsets = [0, 96], sizes = [2, 32], strides = [1, 1]} : vector<2x128xf32> to vector<2x32xf32>
    %479 = math.tanh %478 : vector<2x32xf32>
    %480 = arith.mulf %476, %434 : vector<2x32xf32>
    %481 = arith.mulf %475, %479 : vector<2x32xf32>
    %482 = arith.addf %480, %481 : vector<2x32xf32>
    %483 = math.tanh %482 : vector<2x32xf32>
    %484 = arith.mulf %477, %483 : vector<2x32xf32>
    %c0_118 = arith.constant 0 : index
    %c1_119 = arith.constant 1 : index
    %c0_120 = arith.constant 0 : index
    %485 = vector.load %arg23[%c0_118, %c1_119, %c0_120] : memref<2x8x32xf32, #tpu.memory_space<vmem>>, vector<2x1x32xf32>
    %486 = vector.shape_cast %485 : vector<2x1x32xf32> to vector<2x32xf32>
    %487 = vector.shape_cast %484 : vector<2x32xf32> to vector<2x1x32xf32>
    tpu.vector_store %arg23[%c0_118, %c1_119, %c0_120], %487 {strides = array<i32>} : memref<2x8x32xf32, #tpu.memory_space<vmem>>, vector<2x1x32xf32>,
    %488 = vector.extract_strided_slice %411 {offsets = [0, 6, 128], sizes = [2, 1, 128], strides = [1, 1, 1]} : vector<2x8x256xf32> to vector<2x1x128xf32>
    %489 = vector.shape_cast %488 : vector<2x1x128xf32> to vector<2x128xf32>
    %490 = arith.truncf %460 : vector<2x32xf32> to vector<2x32xbf16>
    %cst_121 = arith.constant dense<0.000000e+00> : vector<2x128xf32>
    %491 = tpu.matmul %490, %404, %cst_121 {dimension_numbers = #tpu.dot_dimension_numbers<[1], [0], [0], [1], [0, 0, 1, 1], [], []>} : vector<2x32xbf16>, vector<32x128xbf16>, vector<2x128xf32> -> vector<2x128xf32>
    %492 = arith.addf %489, %491 : vector<2x128xf32>
    %493 = vector.extract_strided_slice %492 {offsets = [0, 0], sizes = [2, 96], strides = [1, 1]} : vector<2x128xf32> to vector<2x96xf32>
    %494 = arith.negf %493 : vector<2x96xf32>
    %495 = math.exp %494 : vector<2x96xf32>
    %cst_122 = arith.constant 1.000000e+00 : f32
    %496 = vector.broadcast %cst_122 : f32 to vector<2x96xf32>
    %497 = arith.addf %496, %495 : vector<2x96xf32>
    %498 = arith.divf %496, %497 : vector<2x96xf32>
    %499 = vector.extract_strided_slice %498 {offsets = [0, 0], sizes = [2, 32], strides = [1, 1]} : vector<2x96xf32> to vector<2x32xf32>
    %500 = vector.extract_strided_slice %498 {offsets = [0, 32], sizes = [2, 32], strides = [1, 1]} : vector<2x96xf32> to vector<2x32xf32>
    %501 = vector.extract_strided_slice %498 {offsets = [0, 64], sizes = [2, 32], strides = [1, 1]} : vector<2x96xf32> to vector<2x32xf32>
    %502 = vector.extract_strided_slice %492 {offsets = [0, 96], sizes = [2, 32], strides = [1, 1]} : vector<2x128xf32> to vector<2x32xf32>
    %503 = math.tanh %502 : vector<2x32xf32>
    %504 = arith.mulf %500, %458 : vector<2x32xf32>
    %505 = arith.mulf %499, %503 : vector<2x32xf32>
    %506 = arith.addf %504, %505 : vector<2x32xf32>
    %507 = math.tanh %506 : vector<2x32xf32>
    %508 = arith.mulf %501, %507 : vector<2x32xf32>
    %c0_123 = arith.constant 0 : index
    %c6_124 = arith.constant 6 : index
    %c0_125 = arith.constant 0 : index
    %509 = vector.load %arg24[%c0_123, %c6_124, %c0_125] : memref<2x8x32xf32, #tpu.memory_space<vmem>>, vector<2x1x32xf32>
    %510 = vector.shape_cast %509 : vector<2x1x32xf32> to vector<2x32xf32>
    %511 = vector.shape_cast %508 : vector<2x32xf32> to vector<2x1x32xf32>
    tpu.vector_store %arg24[%c0_123, %c6_124, %c0_125], %511 {strides = array<i32>} : memref<2x8x32xf32, #tpu.memory_space<vmem>>, vector<2x1x32xf32>,
    %512 = vector.extract_strided_slice %411 {offsets = [0, 2, 0], sizes = [2, 1, 128], strides = [1, 1, 1]} : vector<2x8x256xf32> to vector<2x1x128xf32>
    %513 = vector.shape_cast %512 : vector<2x1x128xf32> to vector<2x128xf32>
    %514 = arith.truncf %484 : vector<2x32xf32> to vector<2x32xbf16>
    %cst_126 = arith.constant dense<0.000000e+00> : vector<2x128xf32>
    %515 = tpu.matmul %514, %403, %cst_126 {dimension_numbers = #tpu.dot_dimension_numbers<[1], [0], [0], [1], [0, 0, 1, 1], [], []>} : vector<2x32xbf16>, vector<32x128xbf16>, vector<2x128xf32> -> vector<2x128xf32>
    %516 = arith.addf %513, %515 : vector<2x128xf32>
    %517 = vector.extract_strided_slice %516 {offsets = [0, 0], sizes = [2, 96], strides = [1, 1]} : vector<2x128xf32> to vector<2x96xf32>
    %518 = arith.negf %517 : vector<2x96xf32>
    %519 = math.exp %518 : vector<2x96xf32>
    %cst_127 = arith.constant 1.000000e+00 : f32
    %520 = vector.broadcast %cst_127 : f32 to vector<2x96xf32>
    %521 = arith.addf %520, %519 : vector<2x96xf32>
    %522 = arith.divf %520, %521 : vector<2x96xf32>
    %523 = vector.extract_strided_slice %522 {offsets = [0, 0], sizes = [2, 32], strides = [1, 1]} : vector<2x96xf32> to vector<2x32xf32>
    %524 = vector.extract_strided_slice %522 {offsets = [0, 32], sizes = [2, 32], strides = [1, 1]} : vector<2x96xf32> to vector<2x32xf32>
    %525 = vector.extract_strided_slice %522 {offsets = [0, 64], sizes = [2, 32], strides = [1, 1]} : vector<2x96xf32> to vector<2x32xf32>
    %526 = vector.extract_strided_slice %516 {offsets = [0, 96], sizes = [2, 32], strides = [1, 1]} : vector<2x128xf32> to vector<2x32xf32>
    %527 = math.tanh %526 : vector<2x32xf32>
    %528 = arith.mulf %524, %482 : vector<2x32xf32>
    %529 = arith.mulf %523, %527 : vector<2x32xf32>
    %530 = arith.addf %528, %529 : vector<2x32xf32>
    %531 = math.tanh %530 : vector<2x32xf32>
    %532 = arith.mulf %525, %531 : vector<2x32xf32>
    %c0_128 = arith.constant 0 : index
    %c2_129 = arith.constant 2 : index
    %c0_130 = arith.constant 0 : index
    %533 = vector.load %arg23[%c0_128, %c2_129, %c0_130] : memref<2x8x32xf32, #tpu.memory_space<vmem>>, vector<2x1x32xf32>
    %534 = vector.shape_cast %533 : vector<2x1x32xf32> to vector<2x32xf32>
    %535 = vector.shape_cast %532 : vector<2x32xf32> to vector<2x1x32xf32>
    tpu.vector_store %arg23[%c0_128, %c2_129, %c0_130], %535 {strides = array<i32>} : memref<2x8x32xf32, #tpu.memory_space<vmem>>, vector<2x1x32xf32>,
    %536 = vector.extract_strided_slice %411 {offsets = [0, 5, 128], sizes = [2, 1, 128], strides = [1, 1, 1]} : vector<2x8x256xf32> to vector<2x1x128xf32>
    %537 = vector.shape_cast %536 : vector<2x1x128xf32> to vector<2x128xf32>
    %538 = arith.truncf %508 : vector<2x32xf32> to vector<2x32xbf16>
    %cst_131 = arith.constant dense<0.000000e+00> : vector<2x128xf32>
    %539 = tpu.matmul %538, %404, %cst_131 {dimension_numbers = #tpu.dot_dimension_numbers<[1], [0], [0], [1], [0, 0, 1, 1], [], []>} : vector<2x32xbf16>, vector<32x128xbf16>, vector<2x128xf32> -> vector<2x128xf32>
    %540 = arith.addf %537, %539 : vector<2x128xf32>
    %541 = vector.extract_strided_slice %540 {offsets = [0, 0], sizes = [2, 96], strides = [1, 1]} : vector<2x128xf32> to vector<2x96xf32>
    %542 = arith.negf %541 : vector<2x96xf32>
    %543 = math.exp %542 : vector<2x96xf32>
    %cst_132 = arith.constant 1.000000e+00 : f32
    %544 = vector.broadcast %cst_132 : f32 to vector<2x96xf32>
    %545 = arith.addf %544, %543 : vector<2x96xf32>
    %546 = arith.divf %544, %545 : vector<2x96xf32>
    %547 = vector.extract_strided_slice %546 {offsets = [0, 0], sizes = [2, 32], strides = [1, 1]} : vector<2x96xf32> to vector<2x32xf32>
    %548 = vector.extract_strided_slice %546 {offsets = [0, 32], sizes = [2, 32], strides = [1, 1]} : vector<2x96xf32> to vector<2x32xf32>
    %549 = vector.extract_strided_slice %546 {offsets = [0, 64], sizes = [2, 32], strides = [1, 1]} : vector<2x96xf32> to vector<2x32xf32>
    %550 = vector.extract_strided_slice %540 {offsets = [0, 96], sizes = [2, 32], strides = [1, 1]} : vector<2x128xf32> to vector<2x32xf32>
    %551 = math.tanh %550 : vector<2x32xf32>
    %552 = arith.mulf %548, %506 : vector<2x32xf32>
    %553 = arith.mulf %547, %551 : vector<2x32xf32>
    %554 = arith.addf %552, %553 : vector<2x32xf32>
    %555 = math.tanh %554 : vector<2x32xf32>
    %556 = arith.mulf %549, %555 : vector<2x32xf32>
    %c0_133 = arith.constant 0 : index
    %c5_134 = arith.constant 5 : index
    %c0_135 = arith.constant 0 : index
    %557 = vector.load %arg24[%c0_133, %c5_134, %c0_135] : memref<2x8x32xf32, #tpu.memory_space<vmem>>, vector<2x1x32xf32>
    %558 = vector.shape_cast %557 : vector<2x1x32xf32> to vector<2x32xf32>
    %559 = vector.shape_cast %556 : vector<2x32xf32> to vector<2x1x32xf32>
    tpu.vector_store %arg24[%c0_133, %c5_134, %c0_135], %559 {strides = array<i32>} : memref<2x8x32xf32, #tpu.memory_space<vmem>>, vector<2x1x32xf32>,
    %560 = vector.extract_strided_slice %411 {offsets = [0, 3, 0], sizes = [2, 1, 128], strides = [1, 1, 1]} : vector<2x8x256xf32> to vector<2x1x128xf32>
    %561 = vector.shape_cast %560 : vector<2x1x128xf32> to vector<2x128xf32>
    %562 = arith.truncf %532 : vector<2x32xf32> to vector<2x32xbf16>
    %cst_136 = arith.constant dense<0.000000e+00> : vector<2x128xf32>
    %563 = tpu.matmul %562, %403, %cst_136 {dimension_numbers = #tpu.dot_dimension_numbers<[1], [0], [0], [1], [0, 0, 1, 1], [], []>} : vector<2x32xbf16>, vector<32x128xbf16>, vector<2x128xf32> -> vector<2x128xf32>
    %564 = arith.addf %561, %563 : vector<2x128xf32>
    %565 = vector.extract_strided_slice %564 {offsets = [0, 0], sizes = [2, 96], strides = [1, 1]} : vector<2x128xf32> to vector<2x96xf32>
    %566 = arith.negf %565 : vector<2x96xf32>
    %567 = math.exp %566 : vector<2x96xf32>
    %cst_137 = arith.constant 1.000000e+00 : f32
    %568 = vector.broadcast %cst_137 : f32 to vector<2x96xf32>
    %569 = arith.addf %568, %567 : vector<2x96xf32>
    %570 = arith.divf %568, %569 : vector<2x96xf32>
    %571 = vector.extract_strided_slice %570 {offsets = [0, 0], sizes = [2, 32], strides = [1, 1]} : vector<2x96xf32> to vector<2x32xf32>
    %572 = vector.extract_strided_slice %570 {offsets = [0, 32], sizes = [2, 32], strides = [1, 1]} : vector<2x96xf32> to vector<2x32xf32>
    %573 = vector.extract_strided_slice %570 {offsets = [0, 64], sizes = [2, 32], strides = [1, 1]} : vector<2x96xf32> to vector<2x32xf32>
    %574 = vector.extract_strided_slice %564 {offsets = [0, 96], sizes = [2, 32], strides = [1, 1]} : vector<2x128xf32> to vector<2x32xf32>
    %575 = math.tanh %574 : vector<2x32xf32>
    %576 = arith.mulf %572, %530 : vector<2x32xf32>
    %577 = arith.mulf %571, %575 : vector<2x32xf32>
    %578 = arith.addf %576, %577 : vector<2x32xf32>
    %579 = math.tanh %578 : vector<2x32xf32>
    %580 = arith.mulf %573, %579 : vector<2x32xf32>
    %c0_138 = arith.constant 0 : index
    %c3_139 = arith.constant 3 : index
    %c0_140 = arith.constant 0 : index
    %581 = vector.load %arg23[%c0_138, %c3_139, %c0_140] : memref<2x8x32xf32, #tpu.memory_space<vmem>>, vector<2x1x32xf32>
    %582 = vector.shape_cast %581 : vector<2x1x32xf32> to vector<2x32xf32>
    %583 = vector.shape_cast %580 : vector<2x32xf32> to vector<2x1x32xf32>
    tpu.vector_store %arg23[%c0_138, %c3_139, %c0_140], %583 {strides = array<i32>} : memref<2x8x32xf32, #tpu.memory_space<vmem>>, vector<2x1x32xf32>,
    %584 = vector.extract_strided_slice %411 {offsets = [0, 4, 128], sizes = [2, 1, 128], strides = [1, 1, 1]} : vector<2x8x256xf32> to vector<2x1x128xf32>
    %585 = vector.shape_cast %584 : vector<2x1x128xf32> to vector<2x128xf32>
    %586 = arith.truncf %556 : vector<2x32xf32> to vector<2x32xbf16>
    %cst_141 = arith.constant dense<0.000000e+00> : vector<2x128xf32>
    %587 = tpu.matmul %586, %404, %cst_141 {dimension_numbers = #tpu.dot_dimension_numbers<[1], [0], [0], [1], [0, 0, 1, 1], [], []>} : vector<2x32xbf16>, vector<32x128xbf16>, vector<2x128xf32> -> vector<2x128xf32>
    %588 = arith.addf %585, %587 : vector<2x128xf32>
    %589 = vector.extract_strided_slice %588 {offsets = [0, 0], sizes = [2, 96], strides = [1, 1]} : vector<2x128xf32> to vector<2x96xf32>
    %590 = arith.negf %589 : vector<2x96xf32>
    %591 = math.exp %590 : vector<2x96xf32>
    %cst_142 = arith.constant 1.000000e+00 : f32
    %592 = vector.broadcast %cst_142 : f32 to vector<2x96xf32>
    %593 = arith.addf %592, %591 : vector<2x96xf32>
    %594 = arith.divf %592, %593 : vector<2x96xf32>
    %595 = vector.extract_strided_slice %594 {offsets = [0, 0], sizes = [2, 32], strides = [1, 1]} : vector<2x96xf32> to vector<2x32xf32>
    %596 = vector.extract_strided_slice %594 {offsets = [0, 32], sizes = [2, 32], strides = [1, 1]} : vector<2x96xf32> to vector<2x32xf32>
    %597 = vector.extract_strided_slice %594 {offsets = [0, 64], sizes = [2, 32], strides = [1, 1]} : vector<2x96xf32> to vector<2x32xf32>
    %598 = vector.extract_strided_slice %588 {offsets = [0, 96], sizes = [2, 32], strides = [1, 1]} : vector<2x128xf32> to vector<2x32xf32>
    %599 = math.tanh %598 : vector<2x32xf32>
    %600 = arith.mulf %596, %554 : vector<2x32xf32>
    %601 = arith.mulf %595, %599 : vector<2x32xf32>
    %602 = arith.addf %600, %601 : vector<2x32xf32>
    %603 = math.tanh %602 : vector<2x32xf32>
    %604 = arith.mulf %597, %603 : vector<2x32xf32>
    %c0_143 = arith.constant 0 : index
    %c4_144 = arith.constant 4 : index
    %c0_145 = arith.constant 0 : index
    %605 = vector.load %arg24[%c0_143, %c4_144, %c0_145] : memref<2x8x32xf32, #tpu.memory_space<vmem>>, vector<2x1x32xf32>
    %606 = vector.shape_cast %605 : vector<2x1x32xf32> to vector<2x32xf32>
    %607 = vector.shape_cast %604 : vector<2x32xf32> to vector<2x1x32xf32>
    tpu.vector_store %arg24[%c0_143, %c4_144, %c0_145], %607 {strides = array<i32>} : memref<2x8x32xf32, #tpu.memory_space<vmem>>, vector<2x1x32xf32>,
    %608 = vector.extract_strided_slice %411 {offsets = [0, 4, 0], sizes = [2, 1, 128], strides = [1, 1, 1]} : vector<2x8x256xf32> to vector<2x1x128xf32>
    %609 = vector.shape_cast %608 : vector<2x1x128xf32> to vector<2x128xf32>
    %610 = arith.truncf %580 : vector<2x32xf32> to vector<2x32xbf16>
    %cst_146 = arith.constant dense<0.000000e+00> : vector<2x128xf32>
    %611 = tpu.matmul %610, %403, %cst_146 {dimension_numbers = #tpu.dot_dimension_numbers<[1], [0], [0], [1], [0, 0, 1, 1], [], []>} : vector<2x32xbf16>, vector<32x128xbf16>, vector<2x128xf32> -> vector<2x128xf32>
    %612 = arith.addf %609, %611 : vector<2x128xf32>
    %613 = vector.extract_strided_slice %612 {offsets = [0, 0], sizes = [2, 96], strides = [1, 1]} : vector<2x128xf32> to vector<2x96xf32>
    %614 = arith.negf %613 : vector<2x96xf32>
    %615 = math.exp %614 : vector<2x96xf32>
    %cst_147 = arith.constant 1.000000e+00 : f32
    %616 = vector.broadcast %cst_147 : f32 to vector<2x96xf32>
    %617 = arith.addf %616, %615 : vector<2x96xf32>
    %618 = arith.divf %616, %617 : vector<2x96xf32>
    %619 = vector.extract_strided_slice %618 {offsets = [0, 0], sizes = [2, 32], strides = [1, 1]} : vector<2x96xf32> to vector<2x32xf32>
    %620 = vector.extract_strided_slice %618 {offsets = [0, 32], sizes = [2, 32], strides = [1, 1]} : vector<2x96xf32> to vector<2x32xf32>
    %621 = vector.extract_strided_slice %618 {offsets = [0, 64], sizes = [2, 32], strides = [1, 1]} : vector<2x96xf32> to vector<2x32xf32>
    %622 = vector.extract_strided_slice %612 {offsets = [0, 96], sizes = [2, 32], strides = [1, 1]} : vector<2x128xf32> to vector<2x32xf32>
    %623 = math.tanh %622 : vector<2x32xf32>
    %624 = arith.mulf %620, %578 : vector<2x32xf32>
    %625 = arith.mulf %619, %623 : vector<2x32xf32>
    %626 = arith.addf %624, %625 : vector<2x32xf32>
    %627 = math.tanh %626 : vector<2x32xf32>
    %628 = arith.mulf %621, %627 : vector<2x32xf32>
    %c0_148 = arith.constant 0 : index
    %c4_149 = arith.constant 4 : index
    %c0_150 = arith.constant 0 : index
    %629 = vector.load %arg23[%c0_148, %c4_149, %c0_150] : memref<2x8x32xf32, #tpu.memory_space<vmem>>, vector<2x1x32xf32>
    %630 = vector.shape_cast %629 : vector<2x1x32xf32> to vector<2x32xf32>
    %631 = vector.shape_cast %628 : vector<2x32xf32> to vector<2x1x32xf32>
    tpu.vector_store %arg23[%c0_148, %c4_149, %c0_150], %631 {strides = array<i32>} : memref<2x8x32xf32, #tpu.memory_space<vmem>>, vector<2x1x32xf32>,
    %632 = vector.extract_strided_slice %411 {offsets = [0, 3, 128], sizes = [2, 1, 128], strides = [1, 1, 1]} : vector<2x8x256xf32> to vector<2x1x128xf32>
    %633 = vector.shape_cast %632 : vector<2x1x128xf32> to vector<2x128xf32>
    %634 = arith.truncf %604 : vector<2x32xf32> to vector<2x32xbf16>
    %cst_151 = arith.constant dense<0.000000e+00> : vector<2x128xf32>
    %635 = tpu.matmul %634, %404, %cst_151 {dimension_numbers = #tpu.dot_dimension_numbers<[1], [0], [0], [1], [0, 0, 1, 1], [], []>} : vector<2x32xbf16>, vector<32x128xbf16>, vector<2x128xf32> -> vector<2x128xf32>
    %636 = arith.addf %633, %635 : vector<2x128xf32>
    %637 = vector.extract_strided_slice %636 {offsets = [0, 0], sizes = [2, 96], strides = [1, 1]} : vector<2x128xf32> to vector<2x96xf32>
    %638 = arith.negf %637 : vector<2x96xf32>
    %639 = math.exp %638 : vector<2x96xf32>
    %cst_152 = arith.constant 1.000000e+00 : f32
    %640 = vector.broadcast %cst_152 : f32 to vector<2x96xf32>
    %641 = arith.addf %640, %639 : vector<2x96xf32>
    %642 = arith.divf %640, %641 : vector<2x96xf32>
    %643 = vector.extract_strided_slice %642 {offsets = [0, 0], sizes = [2, 32], strides = [1, 1]} : vector<2x96xf32> to vector<2x32xf32>
    %644 = vector.extract_strided_slice %642 {offsets = [0, 32], sizes = [2, 32], strides = [1, 1]} : vector<2x96xf32> to vector<2x32xf32>
    %645 = vector.extract_strided_slice %642 {offsets = [0, 64], sizes = [2, 32], strides = [1, 1]} : vector<2x96xf32> to vector<2x32xf32>
    %646 = vector.extract_strided_slice %636 {offsets = [0, 96], sizes = [2, 32], strides = [1, 1]} : vector<2x128xf32> to vector<2x32xf32>
    %647 = math.tanh %646 : vector<2x32xf32>
    %648 = arith.mulf %644, %602 : vector<2x32xf32>
    %649 = arith.mulf %643, %647 : vector<2x32xf32>
    %650 = arith.addf %648, %649 : vector<2x32xf32>
    %651 = math.tanh %650 : vector<2x32xf32>
    %652 = arith.mulf %645, %651 : vector<2x32xf32>
    %c0_153 = arith.constant 0 : index
    %c3_154 = arith.constant 3 : index
    %c0_155 = arith.constant 0 : index
    %653 = vector.load %arg24[%c0_153, %c3_154, %c0_155] : memref<2x8x32xf32, #tpu.memory_space<vmem>>, vector<2x1x32xf32>
    %654 = vector.shape_cast %653 : vector<2x1x32xf32> to vector<2x32xf32>
    %655 = vector.shape_cast %652 : vector<2x32xf32> to vector<2x1x32xf32>
    tpu.vector_store %arg24[%c0_153, %c3_154, %c0_155], %655 {strides = array<i32>} : memref<2x8x32xf32, #tpu.memory_space<vmem>>, vector<2x1x32xf32>,
    %656 = vector.extract_strided_slice %411 {offsets = [0, 5, 0], sizes = [2, 1, 128], strides = [1, 1, 1]} : vector<2x8x256xf32> to vector<2x1x128xf32>
    %657 = vector.shape_cast %656 : vector<2x1x128xf32> to vector<2x128xf32>
    %658 = arith.truncf %628 : vector<2x32xf32> to vector<2x32xbf16>
    %cst_156 = arith.constant dense<0.000000e+00> : vector<2x128xf32>
    %659 = tpu.matmul %658, %403, %cst_156 {dimension_numbers = #tpu.dot_dimension_numbers<[1], [0], [0], [1], [0, 0, 1, 1], [], []>} : vector<2x32xbf16>, vector<32x128xbf16>, vector<2x128xf32> -> vector<2x128xf32>
    %660 = arith.addf %657, %659 : vector<2x128xf32>
    %661 = vector.extract_strided_slice %660 {offsets = [0, 0], sizes = [2, 96], strides = [1, 1]} : vector<2x128xf32> to vector<2x96xf32>
    %662 = arith.negf %661 : vector<2x96xf32>
    %663 = math.exp %662 : vector<2x96xf32>
    %cst_157 = arith.constant 1.000000e+00 : f32
    %664 = vector.broadcast %cst_157 : f32 to vector<2x96xf32>
    %665 = arith.addf %664, %663 : vector<2x96xf32>
    %666 = arith.divf %664, %665 : vector<2x96xf32>
    %667 = vector.extract_strided_slice %666 {offsets = [0, 0], sizes = [2, 32], strides = [1, 1]} : vector<2x96xf32> to vector<2x32xf32>
    %668 = vector.extract_strided_slice %666 {offsets = [0, 32], sizes = [2, 32], strides = [1, 1]} : vector<2x96xf32> to vector<2x32xf32>
    %669 = vector.extract_strided_slice %666 {offsets = [0, 64], sizes = [2, 32], strides = [1, 1]} : vector<2x96xf32> to vector<2x32xf32>
    %670 = vector.extract_strided_slice %660 {offsets = [0, 96], sizes = [2, 32], strides = [1, 1]} : vector<2x128xf32> to vector<2x32xf32>
    %671 = math.tanh %670 : vector<2x32xf32>
    %672 = arith.mulf %668, %626 : vector<2x32xf32>
    %673 = arith.mulf %667, %671 : vector<2x32xf32>
    %674 = arith.addf %672, %673 : vector<2x32xf32>
    %675 = math.tanh %674 : vector<2x32xf32>
    %676 = arith.mulf %669, %675 : vector<2x32xf32>
    %c0_158 = arith.constant 0 : index
    %c5_159 = arith.constant 5 : index
    %c0_160 = arith.constant 0 : index
    %677 = vector.load %arg23[%c0_158, %c5_159, %c0_160] : memref<2x8x32xf32, #tpu.memory_space<vmem>>, vector<2x1x32xf32>
    %678 = vector.shape_cast %677 : vector<2x1x32xf32> to vector<2x32xf32>
    %679 = vector.shape_cast %676 : vector<2x32xf32> to vector<2x1x32xf32>
    tpu.vector_store %arg23[%c0_158, %c5_159, %c0_160], %679 {strides = array<i32>} : memref<2x8x32xf32, #tpu.memory_space<vmem>>, vector<2x1x32xf32>,
    %680 = vector.extract_strided_slice %411 {offsets = [0, 2, 128], sizes = [2, 1, 128], strides = [1, 1, 1]} : vector<2x8x256xf32> to vector<2x1x128xf32>
    %681 = vector.shape_cast %680 : vector<2x1x128xf32> to vector<2x128xf32>
    %682 = arith.truncf %652 : vector<2x32xf32> to vector<2x32xbf16>
    %cst_161 = arith.constant dense<0.000000e+00> : vector<2x128xf32>
    %683 = tpu.matmul %682, %404, %cst_161 {dimension_numbers = #tpu.dot_dimension_numbers<[1], [0], [0], [1], [0, 0, 1, 1], [], []>} : vector<2x32xbf16>, vector<32x128xbf16>, vector<2x128xf32> -> vector<2x128xf32>
    %684 = arith.addf %681, %683 : vector<2x128xf32>
    %685 = vector.extract_strided_slice %684 {offsets = [0, 0], sizes = [2, 96], strides = [1, 1]} : vector<2x128xf32> to vector<2x96xf32>
    %686 = arith.negf %685 : vector<2x96xf32>
    %687 = math.exp %686 : vector<2x96xf32>
    %cst_162 = arith.constant 1.000000e+00 : f32
    %688 = vector.broadcast %cst_162 : f32 to vector<2x96xf32>
    %689 = arith.addf %688, %687 : vector<2x96xf32>
    %690 = arith.divf %688, %689 : vector<2x96xf32>
    %691 = vector.extract_strided_slice %690 {offsets = [0, 0], sizes = [2, 32], strides = [1, 1]} : vector<2x96xf32> to vector<2x32xf32>
    %692 = vector.extract_strided_slice %690 {offsets = [0, 32], sizes = [2, 32], strides = [1, 1]} : vector<2x96xf32> to vector<2x32xf32>
    %693 = vector.extract_strided_slice %690 {offsets = [0, 64], sizes = [2, 32], strides = [1, 1]} : vector<2x96xf32> to vector<2x32xf32>
    %694 = vector.extract_strided_slice %684 {offsets = [0, 96], sizes = [2, 32], strides = [1, 1]} : vector<2x128xf32> to vector<2x32xf32>
    %695 = math.tanh %694 : vector<2x32xf32>
    %696 = arith.mulf %692, %650 : vector<2x32xf32>
    %697 = arith.mulf %691, %695 : vector<2x32xf32>
    %698 = arith.addf %696, %697 : vector<2x32xf32>
    %699 = math.tanh %698 : vector<2x32xf32>
    %700 = arith.mulf %693, %699 : vector<2x32xf32>
    %c0_163 = arith.constant 0 : index
    %c2_164 = arith.constant 2 : index
    %c0_165 = arith.constant 0 : index
    %701 = vector.load %arg24[%c0_163, %c2_164, %c0_165] : memref<2x8x32xf32, #tpu.memory_space<vmem>>, vector<2x1x32xf32>
    %702 = vector.shape_cast %701 : vector<2x1x32xf32> to vector<2x32xf32>
    %703 = vector.shape_cast %700 : vector<2x32xf32> to vector<2x1x32xf32>
    tpu.vector_store %arg24[%c0_163, %c2_164, %c0_165], %703 {strides = array<i32>} : memref<2x8x32xf32, #tpu.memory_space<vmem>>, vector<2x1x32xf32>,
    %704 = vector.extract_strided_slice %411 {offsets = [0, 6, 0], sizes = [2, 1, 128], strides = [1, 1, 1]} : vector<2x8x256xf32> to vector<2x1x128xf32>
    %705 = vector.shape_cast %704 : vector<2x1x128xf32> to vector<2x128xf32>
    %706 = arith.truncf %676 : vector<2x32xf32> to vector<2x32xbf16>
    %cst_166 = arith.constant dense<0.000000e+00> : vector<2x128xf32>
    %707 = tpu.matmul %706, %403, %cst_166 {dimension_numbers = #tpu.dot_dimension_numbers<[1], [0], [0], [1], [0, 0, 1, 1], [], []>} : vector<2x32xbf16>, vector<32x128xbf16>, vector<2x128xf32> -> vector<2x128xf32>
    %708 = arith.addf %705, %707 : vector<2x128xf32>
    %709 = vector.extract_strided_slice %708 {offsets = [0, 0], sizes = [2, 96], strides = [1, 1]} : vector<2x128xf32> to vector<2x96xf32>
    %710 = arith.negf %709 : vector<2x96xf32>
    %711 = math.exp %710 : vector<2x96xf32>
    %cst_167 = arith.constant 1.000000e+00 : f32
    %712 = vector.broadcast %cst_167 : f32 to vector<2x96xf32>
    %713 = arith.addf %712, %711 : vector<2x96xf32>
    %714 = arith.divf %712, %713 : vector<2x96xf32>
    %715 = vector.extract_strided_slice %714 {offsets = [0, 0], sizes = [2, 32], strides = [1, 1]} : vector<2x96xf32> to vector<2x32xf32>
    %716 = vector.extract_strided_slice %714 {offsets = [0, 32], sizes = [2, 32], strides = [1, 1]} : vector<2x96xf32> to vector<2x32xf32>
    %717 = vector.extract_strided_slice %714 {offsets = [0, 64], sizes = [2, 32], strides = [1, 1]} : vector<2x96xf32> to vector<2x32xf32>
    %718 = vector.extract_strided_slice %708 {offsets = [0, 96], sizes = [2, 32], strides = [1, 1]} : vector<2x128xf32> to vector<2x32xf32>
    %719 = math.tanh %718 : vector<2x32xf32>
    %720 = arith.mulf %716, %674 : vector<2x32xf32>
    %721 = arith.mulf %715, %719 : vector<2x32xf32>
    %722 = arith.addf %720, %721 : vector<2x32xf32>
    %723 = math.tanh %722 : vector<2x32xf32>
    %724 = arith.mulf %717, %723 : vector<2x32xf32>
    %c0_168 = arith.constant 0 : index
    %c6_169 = arith.constant 6 : index
    %c0_170 = arith.constant 0 : index
    %725 = vector.load %arg23[%c0_168, %c6_169, %c0_170] : memref<2x8x32xf32, #tpu.memory_space<vmem>>, vector<2x1x32xf32>
    %726 = vector.shape_cast %725 : vector<2x1x32xf32> to vector<2x32xf32>
    %727 = vector.shape_cast %724 : vector<2x32xf32> to vector<2x1x32xf32>
    tpu.vector_store %arg23[%c0_168, %c6_169, %c0_170], %727 {strides = array<i32>} : memref<2x8x32xf32, #tpu.memory_space<vmem>>, vector<2x1x32xf32>,
    %728 = vector.extract_strided_slice %411 {offsets = [0, 1, 128], sizes = [2, 1, 128], strides = [1, 1, 1]} : vector<2x8x256xf32> to vector<2x1x128xf32>
    %729 = vector.shape_cast %728 : vector<2x1x128xf32> to vector<2x128xf32>
    %730 = arith.truncf %700 : vector<2x32xf32> to vector<2x32xbf16>
    %cst_171 = arith.constant dense<0.000000e+00> : vector<2x128xf32>
    %731 = tpu.matmul %730, %404, %cst_171 {dimension_numbers = #tpu.dot_dimension_numbers<[1], [0], [0], [1], [0, 0, 1, 1], [], []>} : vector<2x32xbf16>, vector<32x128xbf16>, vector<2x128xf32> -> vector<2x128xf32>
    %732 = arith.addf %729, %731 : vector<2x128xf32>
    %733 = vector.extract_strided_slice %732 {offsets = [0, 0], sizes = [2, 96], strides = [1, 1]} : vector<2x128xf32> to vector<2x96xf32>
    %734 = arith.negf %733 : vector<2x96xf32>
    %735 = math.exp %734 : vector<2x96xf32>
    %cst_172 = arith.constant 1.000000e+00 : f32
    %736 = vector.broadcast %cst_172 : f32 to vector<2x96xf32>
    %737 = arith.addf %736, %735 : vector<2x96xf32>
    %738 = arith.divf %736, %737 : vector<2x96xf32>
    %739 = vector.extract_strided_slice %738 {offsets = [0, 0], sizes = [2, 32], strides = [1, 1]} : vector<2x96xf32> to vector<2x32xf32>
    %740 = vector.extract_strided_slice %738 {offsets = [0, 32], sizes = [2, 32], strides = [1, 1]} : vector<2x96xf32> to vector<2x32xf32>
    %741 = vector.extract_strided_slice %738 {offsets = [0, 64], sizes = [2, 32], strides = [1, 1]} : vector<2x96xf32> to vector<2x32xf32>
    %742 = vector.extract_strided_slice %732 {offsets = [0, 96], sizes = [2, 32], strides = [1, 1]} : vector<2x128xf32> to vector<2x32xf32>
    %743 = math.tanh %742 : vector<2x32xf32>
    %744 = arith.mulf %740, %698 : vector<2x32xf32>
    %745 = arith.mulf %739, %743 : vector<2x32xf32>
    %746 = arith.addf %744, %745 : vector<2x32xf32>
    %747 = math.tanh %746 : vector<2x32xf32>
    %748 = arith.mulf %741, %747 : vector<2x32xf32>
    %c0_173 = arith.constant 0 : index
    %c1_174 = arith.constant 1 : index
    %c0_175 = arith.constant 0 : index
    %749 = vector.load %arg24[%c0_173, %c1_174, %c0_175] : memref<2x8x32xf32, #tpu.memory_space<vmem>>, vector<2x1x32xf32>
    %750 = vector.shape_cast %749 : vector<2x1x32xf32> to vector<2x32xf32>
    %751 = vector.shape_cast %748 : vector<2x32xf32> to vector<2x1x32xf32>
    tpu.vector_store %arg24[%c0_173, %c1_174, %c0_175], %751 {strides = array<i32>} : memref<2x8x32xf32, #tpu.memory_space<vmem>>, vector<2x1x32xf32>,
    %752 = vector.extract_strided_slice %411 {offsets = [0, 7, 0], sizes = [2, 1, 128], strides = [1, 1, 1]} : vector<2x8x256xf32> to vector<2x1x128xf32>
    %753 = vector.shape_cast %752 : vector<2x1x128xf32> to vector<2x128xf32>
    %754 = arith.truncf %724 : vector<2x32xf32> to vector<2x32xbf16>
    %cst_176 = arith.constant dense<0.000000e+00> : vector<2x128xf32>
    %755 = tpu.matmul %754, %403, %cst_176 {dimension_numbers = #tpu.dot_dimension_numbers<[1], [0], [0], [1], [0, 0, 1, 1], [], []>} : vector<2x32xbf16>, vector<32x128xbf16>, vector<2x128xf32> -> vector<2x128xf32>
    %756 = arith.addf %753, %755 : vector<2x128xf32>
    %757 = vector.extract_strided_slice %756 {offsets = [0, 0], sizes = [2, 96], strides = [1, 1]} : vector<2x128xf32> to vector<2x96xf32>
    %758 = arith.negf %757 : vector<2x96xf32>
    %759 = math.exp %758 : vector<2x96xf32>
    %cst_177 = arith.constant 1.000000e+00 : f32
    %760 = vector.broadcast %cst_177 : f32 to vector<2x96xf32>
    %761 = arith.addf %760, %759 : vector<2x96xf32>
    %762 = arith.divf %760, %761 : vector<2x96xf32>
    %763 = vector.extract_strided_slice %762 {offsets = [0, 0], sizes = [2, 32], strides = [1, 1]} : vector<2x96xf32> to vector<2x32xf32>
    %764 = vector.extract_strided_slice %762 {offsets = [0, 32], sizes = [2, 32], strides = [1, 1]} : vector<2x96xf32> to vector<2x32xf32>
    %765 = vector.extract_strided_slice %762 {offsets = [0, 64], sizes = [2, 32], strides = [1, 1]} : vector<2x96xf32> to vector<2x32xf32>
    %766 = vector.extract_strided_slice %756 {offsets = [0, 96], sizes = [2, 32], strides = [1, 1]} : vector<2x128xf32> to vector<2x32xf32>
    %767 = math.tanh %766 : vector<2x32xf32>
    %768 = arith.mulf %764, %722 : vector<2x32xf32>
    %769 = arith.mulf %763, %767 : vector<2x32xf32>
    %770 = arith.addf %768, %769 : vector<2x32xf32>
    %771 = math.tanh %770 : vector<2x32xf32>
    %772 = arith.mulf %765, %771 : vector<2x32xf32>
    %c0_178 = arith.constant 0 : index
    %c7_179 = arith.constant 7 : index
    %c0_180 = arith.constant 0 : index
    %773 = vector.load %arg23[%c0_178, %c7_179, %c0_180] : memref<2x8x32xf32, #tpu.memory_space<vmem>>, vector<2x1x32xf32>
    %774 = vector.shape_cast %773 : vector<2x1x32xf32> to vector<2x32xf32>
    %775 = vector.shape_cast %772 : vector<2x32xf32> to vector<2x1x32xf32>
    tpu.vector_store %arg23[%c0_178, %c7_179, %c0_180], %775 {strides = array<i32>} : memref<2x8x32xf32, #tpu.memory_space<vmem>>, vector<2x1x32xf32>,
    %776 = vector.extract_strided_slice %411 {offsets = [0, 0, 128], sizes = [2, 1, 128], strides = [1, 1, 1]} : vector<2x8x256xf32> to vector<2x1x128xf32>
    %777 = vector.shape_cast %776 : vector<2x1x128xf32> to vector<2x128xf32>
    %778 = arith.truncf %748 : vector<2x32xf32> to vector<2x32xbf16>
    %cst_181 = arith.constant dense<0.000000e+00> : vector<2x128xf32>
    %779 = tpu.matmul %778, %404, %cst_181 {dimension_numbers = #tpu.dot_dimension_numbers<[1], [0], [0], [1], [0, 0, 1, 1], [], []>} : vector<2x32xbf16>, vector<32x128xbf16>, vector<2x128xf32> -> vector<2x128xf32>
    %780 = arith.addf %777, %779 : vector<2x128xf32>
    %781 = vector.extract_strided_slice %780 {offsets = [0, 0], sizes = [2, 96], strides = [1, 1]} : vector<2x128xf32> to vector<2x96xf32>
    %782 = arith.negf %781 : vector<2x96xf32>
    %783 = math.exp %782 : vector<2x96xf32>
    %cst_182 = arith.constant 1.000000e+00 : f32
    %784 = vector.broadcast %cst_182 : f32 to vector<2x96xf32>
    %785 = arith.addf %784, %783 : vector<2x96xf32>
    %786 = arith.divf %784, %785 : vector<2x96xf32>
    %787 = vector.extract_strided_slice %786 {offsets = [0, 0], sizes = [2, 32], strides = [1, 1]} : vector<2x96xf32> to vector<2x32xf32>
    %788 = vector.extract_strided_slice %786 {offsets = [0, 32], sizes = [2, 32], strides = [1, 1]} : vector<2x96xf32> to vector<2x32xf32>
    %789 = vector.extract_strided_slice %786 {offsets = [0, 64], sizes = [2, 32], strides = [1, 1]} : vector<2x96xf32> to vector<2x32xf32>
    %790 = vector.extract_strided_slice %780 {offsets = [0, 96], sizes = [2, 32], strides = [1, 1]} : vector<2x128xf32> to vector<2x32xf32>
    %791 = math.tanh %790 : vector<2x32xf32>
    %792 = arith.mulf %788, %746 : vector<2x32xf32>
    %793 = arith.mulf %787, %791 : vector<2x32xf32>
    %794 = arith.addf %792, %793 : vector<2x32xf32>
    %795 = math.tanh %794 : vector<2x32xf32>
    %796 = arith.mulf %789, %795 : vector<2x32xf32>
    %c0_183 = arith.constant 0 : index
    %c0_184 = arith.constant 0 : index
    %c0_185 = arith.constant 0 : index
    %797 = vector.load %arg24[%c0_183, %c0_184, %c0_185] : memref<2x8x32xf32, #tpu.memory_space<vmem>>, vector<2x1x32xf32>
    %798 = vector.shape_cast %797 : vector<2x1x32xf32> to vector<2x32xf32>
    %799 = vector.shape_cast %796 : vector<2x32xf32> to vector<2x1x32xf32>
    tpu.vector_store %arg24[%c0_183, %c0_184, %c0_185], %799 {strides = array<i32>} : memref<2x8x32xf32, #tpu.memory_space<vmem>>, vector<2x1x32xf32>,
    %c0_186 = arith.constant 0 : index
    %c0_187 = arith.constant 0 : index
    %c0_188 = arith.constant 0 : index
    %800 = vector.load %arg23[%c0_186, %c0_187, %c0_188] : memref<2x8x32xf32, #tpu.memory_space<vmem>>, vector<2x8x32xf32>
    %c0_189 = arith.constant 0 : index
    %c0_190 = arith.constant 0 : index
    %c0_191 = arith.constant 0 : index
    %801 = vector.load %arg24[%c0_189, %c0_190, %c0_191] : memref<2x8x32xf32, #tpu.memory_space<vmem>>, vector<2x8x32xf32>
    %802 = tpu.concatenate %800, %801 in 2 : vector<2x8x32xf32>, vector<2x8x32xf32> -> vector<2x8x64xf32>
    %803 = vector.shape_cast %802 : vector<2x8x64xf32> to vector<16x64xf32>
    %cst_192 = arith.constant dense<0.000000e+00> : vector<2x64xf32>
    %804 = vector.multi_reduction <add>, %802, %cst_192 [1] : vector<2x8x64xf32> to vector<2x64xf32>
    %cst_193 = arith.constant 1.250000e-01 : f32
    %805 = vector.broadcast %cst_193 : f32 to vector<2x64xf32>
    %806 = arith.mulf %804, %805 : vector<2x64xf32>
    %c0_194 = arith.constant 0 : index
    %c0_195 = arith.constant 0 : index
    %807 = vector.load %arg15[%c0_194, %c0_195] : memref<1x64xf32, #tpu.memory_space<vmem>>, vector<1x64xf32>
    %c0_196 = arith.constant 0 : index
    %c0_197 = arith.constant 0 : index
    %808 = vector.load %arg16[%c0_196, %c0_197] : memref<1x64xf32, #tpu.memory_space<vmem>>, vector<1x64xf32>
    %cst_198 = arith.constant dense<0.000000e+00> : vector<2xf32>
    %809 = vector.multi_reduction <add>, %806, %cst_198 [1] : vector<2x64xf32> to vector<2xf32>
    %810 = vector.shape_cast %809 : vector<2xf32> to vector<2x1xf32>
    %cst_199 = arith.constant 6.400000e+01 : f32
    %811 = vector.broadcast %cst_199 : f32 to vector<2x1xf32>
    %812 = arith.divf %810, %811 : vector<2x1xf32>
    %813 = vector.broadcast %812 : vector<2x1xf32> to vector<2x64xf32>
    %814 = arith.subf %806, %813 : vector<2x64xf32>
    %815 = arith.mulf %814, %814 : vector<2x64xf32>
    %cst_200 = arith.constant dense<0.000000e+00> : vector<2xf32>
    %816 = vector.multi_reduction <add>, %815, %cst_200 [1] : vector<2x64xf32> to vector<2xf32>
    %817 = vector.shape_cast %816 : vector<2xf32> to vector<2x1xf32>
    %cst_201 = arith.constant 6.400000e+01 : f32
    %818 = vector.broadcast %cst_201 : f32 to vector<2x1xf32>
    %819 = arith.divf %817, %818 : vector<2x1xf32>
    %820 = vector.broadcast %812 : vector<2x1xf32> to vector<2x64xf32>
    %821 = arith.subf %806, %820 : vector<2x64xf32>
    %cst_202 = arith.constant 9.99999974E-6 : f32
    %822 = vector.broadcast %cst_202 : f32 to vector<2x1xf32>
    %823 = arith.addf %819, %822 : vector<2x1xf32>
    %824 = math.rsqrt %823 : vector<2x1xf32>
    %825 = vector.broadcast %824 : vector<2x1xf32> to vector<2x64xf32>
    %826 = arith.mulf %821, %825 : vector<2x64xf32>
    %827 = vector.broadcast %807 : vector<1x64xf32> to vector<2x64xf32>
    %828 = arith.mulf %826, %827 : vector<2x64xf32>
    %829 = vector.broadcast %808 : vector<1x64xf32> to vector<2x64xf32>
    %830 = arith.addf %828, %829 : vector<2x64xf32>
    %831 = arith.truncf %830 : vector<2x64xf32> to vector<2x64xbf16>
    %c0_203 = arith.constant 0 : index
    %c0_204 = arith.constant 0 : index
    %832 = vector.load %arg17[%c0_203, %c0_204] : memref<64x64xbf16, #tpu.memory_space<vmem>>, vector<64x64xbf16>
    %cst_205 = arith.constant dense<0.000000e+00> : vector<2x64xf32>
    %833 = tpu.matmul %831, %832, %cst_205 {dimension_numbers = #tpu.dot_dimension_numbers<[1], [0], [0], [1], [0, 0, 1, 1], [], []>} : vector<2x64xbf16>, vector<64x64xbf16>, vector<2x64xf32> -> vector<2x64xf32>
    %c0_206 = arith.constant 0 : index
    %c0_207 = arith.constant 0 : index
    %834 = vector.load %arg18[%c0_206, %c0_207] : memref<1x64xf32, #tpu.memory_space<vmem>>, vector<1x64xf32>
    %835 = vector.broadcast %834 : vector<1x64xf32> to vector<2x64xf32>
    %836 = arith.addf %833, %835 : vector<2x64xf32>
    %cst_208 = arith.constant 5.000000e-01 : f32
    %837 = vector.broadcast %cst_208 : f32 to vector<2x64xf32>
    %838 = arith.mulf %837, %836 : vector<2x64xf32>
    %cst_209 = arith.constant 0.707106769 : f32
    %839 = vector.broadcast %cst_209 : f32 to vector<2x64xf32>
    %840 = arith.mulf %836, %839 : vector<2x64xf32>
    %cst_210 = arith.constant 0.000000e+00 : f32
    %841 = vector.broadcast %cst_210 : f32 to vector<2x64xf32>
    %842 = arith.cmpf oge, %840, %841 : vector<2x64xf32>
    %cst_211 = arith.constant 1.000000e+00 : f32
    %cst_212 = arith.constant -1.000000e+00 : f32
    %843 = vector.broadcast %cst_211 : f32 to vector<2x64xf32>
    %844 = vector.broadcast %cst_212 : f32 to vector<2x64xf32>
    %845 = arith.select %842, %843, %844 : vector<2x64xi1>, vector<2x64xf32>
    %846 = math.absf %840 : vector<2x64xf32>
    %cst_213 = arith.constant 0.327591091 : f32
    %847 = vector.broadcast %cst_213 : f32 to vector<2x64xf32>
    %848 = arith.mulf %847, %846 : vector<2x64xf32>
    %cst_214 = arith.constant 1.000000e+00 : f32
    %849 = vector.broadcast %cst_214 : f32 to vector<2x64xf32>
    %850 = arith.addf %849, %848 : vector<2x64xf32>
    %cst_215 = arith.constant 1.000000e+00 : f32
    %851 = vector.broadcast %cst_215 : f32 to vector<2x64xf32>
    %852 = arith.divf %851, %850 : vector<2x64xf32>
    %cst_216 = arith.constant 1.06140542 : f32
    %853 = vector.broadcast %cst_216 : f32 to vector<2x64xf32>
    %854 = arith.mulf %853, %852 : vector<2x64xf32>
    %cst_217 = arith.constant -1.45315206 : f32
    %855 = vector.broadcast %cst_217 : f32 to vector<2x64xf32>
    %856 = arith.addf %854, %855 : vector<2x64xf32>
    %857 = arith.mulf %856, %852 : vector<2x64xf32>
    %cst_218 = arith.constant 1.42141378 : f32
    %858 = vector.broadcast %cst_218 : f32 to vector<2x64xf32>
    %859 = arith.addf %857, %858 : vector<2x64xf32>
    %860 = arith.mulf %859, %852 : vector<2x64xf32>
    %cst_219 = arith.constant -0.284496725 : f32
    %861 = vector.broadcast %cst_219 : f32 to vector<2x64xf32>
    %862 = arith.addf %860, %861 : vector<2x64xf32>
    %863 = arith.mulf %862, %852 : vector<2x64xf32>
    %cst_220 = arith.constant 0.254829586 : f32
    %864 = vector.broadcast %cst_220 : f32 to vector<2x64xf32>
    %865 = arith.addf %863, %864 : vector<2x64xf32>
    %866 = arith.mulf %865, %852 : vector<2x64xf32>
    %cst_221 = arith.constant 0.000000e+00 : f32
    %867 = vector.broadcast %cst_221 : f32 to vector<2x64xf32>
    %868 = arith.subf %867, %846 : vector<2x64xf32>
    %869 = arith.mulf %868, %846 : vector<2x64xf32>
    %870 = math.exp %869 : vector<2x64xf32>
    %871 = arith.mulf %866, %870 : vector<2x64xf32>
    %cst_222 = arith.constant 1.000000e+00 : f32
    %872 = vector.broadcast %cst_222 : f32 to vector<2x64xf32>
    %873 = arith.subf %872, %871 : vector<2x64xf32>
    %874 = arith.mulf %845, %873 : vector<2x64xf32>
    %cst_223 = arith.constant 1.000000e+00 : f32
    %875 = vector.broadcast %cst_223 : f32 to vector<2x64xf32>
    %876 = arith.addf %875, %874 : vector<2x64xf32>
    %877 = arith.mulf %838, %876 : vector<2x64xf32>
    %878 = arith.truncf %877 : vector<2x64xf32> to vector<2x64xbf16>
    %c0_224 = arith.constant 0 : index
    %c0_225 = arith.constant 0 : index
    %879 = vector.load %arg19[%c0_224, %c0_225] : memref<64x4xbf16, #tpu.memory_space<vmem>>, vector<64x4xbf16>
    %cst_226 = arith.constant dense<0.000000e+00> : vector<2x4xf32>
    %880 = tpu.matmul %878, %879, %cst_226 {dimension_numbers = #tpu.dot_dimension_numbers<[1], [0], [0], [1], [0, 0, 1, 1], [], []>} : vector<2x64xbf16>, vector<64x4xbf16>, vector<2x4xf32> -> vector<2x4xf32>
    %c0_227 = arith.constant 0 : index
    %c0_228 = arith.constant 0 : index
    %881 = vector.load %arg20[%c0_227, %c0_228] : memref<1x4xf32, #tpu.memory_space<vmem>>, vector<1x4xf32>
    %882 = vector.broadcast %881 : vector<1x4xf32> to vector<2x4xf32>
    %883 = arith.addf %880, %882 : vector<2x4xf32>
    %884 = arith.negf %883 : vector<2x4xf32>
    %885 = math.exp %884 : vector<2x4xf32>
    %cst_229 = arith.constant 1.000000e+00 : f32
    %886 = vector.broadcast %cst_229 : f32 to vector<2x4xf32>
    %887 = arith.addf %886, %885 : vector<2x4xf32>
    %888 = arith.divf %886, %887 : vector<2x4xf32>
    %c0_230 = arith.constant 0 : index
    %c0_231 = arith.constant 0 : index
    %889 = vector.load %arg21[%c0_230, %c0_231] : memref<2x4xf32, #tpu.memory_space<vmem>>, vector<2x4xf32>
    tpu.vector_store %arg21[%c0_230, %c0_231], %888 {strides = array<i32>} : memref<2x4xf32, #tpu.memory_space<vmem>>, vector<2x4xf32>,
    %c0_232 = arith.constant 0 : index
    %c0_233 = arith.constant 0 : index
    %890 = vector.load %arg9[%c0_232, %c0_233] : memref<1x64xf32, #tpu.memory_space<vmem>>, vector<1x64xf32>
    %c0_234 = arith.constant 0 : index
    %c0_235 = arith.constant 0 : index
    %891 = vector.load %arg10[%c0_234, %c0_235] : memref<1x64xf32, #tpu.memory_space<vmem>>, vector<1x64xf32>
    %cst_236 = arith.constant dense<0.000000e+00> : vector<16xf32>
    %892 = vector.multi_reduction <add>, %803, %cst_236 [1] : vector<16x64xf32> to vector<16xf32>
    %893 = vector.shape_cast %892 : vector<16xf32> to vector<16x1xf32>
    %cst_237 = arith.constant 6.400000e+01 : f32
    %894 = vector.broadcast %cst_237 : f32 to vector<16x1xf32>
    %895 = arith.divf %893, %894 : vector<16x1xf32>
    %896 = vector.broadcast %895 : vector<16x1xf32> to vector<16x64xf32>
    %897 = arith.subf %803, %896 : vector<16x64xf32>
    %898 = arith.mulf %897, %897 : vector<16x64xf32>
    %cst_238 = arith.constant dense<0.000000e+00> : vector<16xf32>
    %899 = vector.multi_reduction <add>, %898, %cst_238 [1] : vector<16x64xf32> to vector<16xf32>
    %900 = vector.shape_cast %899 : vector<16xf32> to vector<16x1xf32>
    %cst_239 = arith.constant 6.400000e+01 : f32
    %901 = vector.broadcast %cst_239 : f32 to vector<16x1xf32>
    %902 = arith.divf %900, %901 : vector<16x1xf32>
    %903 = vector.broadcast %895 : vector<16x1xf32> to vector<16x64xf32>
    %904 = arith.subf %803, %903 : vector<16x64xf32>
    %cst_240 = arith.constant 9.99999974E-6 : f32
    %905 = vector.broadcast %cst_240 : f32 to vector<16x1xf32>
    %906 = arith.addf %902, %905 : vector<16x1xf32>
    %907 = math.rsqrt %906 : vector<16x1xf32>
    %908 = vector.broadcast %907 : vector<16x1xf32> to vector<16x64xf32>
    %909 = arith.mulf %904, %908 : vector<16x64xf32>
    %910 = vector.broadcast %890 : vector<1x64xf32> to vector<16x64xf32>
    %911 = arith.mulf %909, %910 : vector<16x64xf32>
    %912 = vector.broadcast %891 : vector<1x64xf32> to vector<16x64xf32>
    %913 = arith.addf %911, %912 : vector<16x64xf32>
    %914 = vector.shape_cast %913 : vector<16x64xf32> to vector<8x2x64xf32>
    %915 = arith.truncf %914 : vector<8x2x64xf32> to vector<8x2x64xbf16>
    %c0_241 = arith.constant 0 : index
    %c0_242 = arith.constant 0 : index
    %c0_243 = arith.constant 0 : index
    %916 = vector.load %arg11[%c0_241, %c0_242, %c0_243] : memref<8x64x8xbf16, #tpu.memory_space<vmem>>, vector<8x64x8xbf16>
    "tpu.trace_start"() <{level = 10 : i32, message = "tbd,tde->tbe"}> : () -> ()
    %cst_244 = arith.constant dense<0.000000e+00> : vector<8x2x8xf32>
    %917 = tpu.matmul %915, %916, %cst_244 {dimension_numbers = #tpu.dot_dimension_numbers<[2], [1], [1], [2], [0, 0, 0, 1, 1, 2], [0], [0]>} : vector<8x2x64xbf16>, vector<8x64x8xbf16>, vector<8x2x8xf32> -> vector<8x2x8xf32>
    "tpu.trace_stop"() : () -> ()
    %c0_245 = arith.constant 0 : index
    %c0_246 = arith.constant 0 : index
    %c0_247 = arith.constant 0 : index
    %918 = vector.load %arg12[%c0_245, %c0_246, %c0_247] : memref<8x1x8xf32, #tpu.memory_space<vmem>>, vector<8x1x8xf32>
    %919 = vector.broadcast %918 : vector<8x1x8xf32> to vector<8x2x8xf32>
    %920 = arith.addf %917, %919 : vector<8x2x8xf32>
    %cst_248 = arith.constant 5.000000e-01 : f32
    %921 = vector.broadcast %cst_248 : f32 to vector<8x2x8xf32>
    %922 = arith.mulf %921, %920 : vector<8x2x8xf32>
    %cst_249 = arith.constant 0.707106769 : f32
    %923 = vector.broadcast %cst_249 : f32 to vector<8x2x8xf32>
    %924 = arith.mulf %920, %923 : vector<8x2x8xf32>
    %cst_250 = arith.constant 0.000000e+00 : f32
    %925 = vector.broadcast %cst_250 : f32 to vector<8x2x8xf32>
    %926 = arith.cmpf oge, %924, %925 : vector<8x2x8xf32>
    %cst_251 = arith.constant 1.000000e+00 : f32
    %cst_252 = arith.constant -1.000000e+00 : f32
    %927 = vector.broadcast %cst_251 : f32 to vector<8x2x8xf32>
    %928 = vector.broadcast %cst_252 : f32 to vector<8x2x8xf32>
    %929 = arith.select %926, %927, %928 : vector<8x2x8xi1>, vector<8x2x8xf32>
    %930 = math.absf %924 : vector<8x2x8xf32>
    %cst_253 = arith.constant 0.327591091 : f32
    %931 = vector.broadcast %cst_253 : f32 to vector<8x2x8xf32>
    %932 = arith.mulf %931, %930 : vector<8x2x8xf32>
    %cst_254 = arith.constant 1.000000e+00 : f32
    %933 = vector.broadcast %cst_254 : f32 to vector<8x2x8xf32>
    %934 = arith.addf %933, %932 : vector<8x2x8xf32>
    %cst_255 = arith.constant 1.000000e+00 : f32
    %935 = vector.broadcast %cst_255 : f32 to vector<8x2x8xf32>
    %936 = arith.divf %935, %934 : vector<8x2x8xf32>
    %cst_256 = arith.constant 1.06140542 : f32
    %937 = vector.broadcast %cst_256 : f32 to vector<8x2x8xf32>
    %938 = arith.mulf %937, %936 : vector<8x2x8xf32>
    %cst_257 = arith.constant -1.45315206 : f32
    %939 = vector.broadcast %cst_257 : f32 to vector<8x2x8xf32>
    %940 = arith.addf %938, %939 : vector<8x2x8xf32>
    %941 = arith.mulf %940, %936 : vector<8x2x8xf32>
    %cst_258 = arith.constant 1.42141378 : f32
    %942 = vector.broadcast %cst_258 : f32 to vector<8x2x8xf32>
    %943 = arith.addf %941, %942 : vector<8x2x8xf32>
    %944 = arith.mulf %943, %936 : vector<8x2x8xf32>
    %cst_259 = arith.constant -0.284496725 : f32
    %945 = vector.broadcast %cst_259 : f32 to vector<8x2x8xf32>
    %946 = arith.addf %944, %945 : vector<8x2x8xf32>
    %947 = arith.mulf %946, %936 : vector<8x2x8xf32>
    %cst_260 = arith.constant 0.254829586 : f32
    %948 = vector.broadcast %cst_260 : f32 to vector<8x2x8xf32>
    %949 = arith.addf %947, %948 : vector<8x2x8xf32>
    %950 = arith.mulf %949, %936 : vector<8x2x8xf32>
    %cst_261 = arith.constant 0.000000e+00 : f32
    %951 = vector.broadcast %cst_261 : f32 to vector<8x2x8xf32>
    %952 = arith.subf %951, %930 : vector<8x2x8xf32>
    %953 = arith.mulf %952, %930 : vector<8x2x8xf32>
    %954 = math.exp %953 : vector<8x2x8xf32>
    %955 = arith.mulf %950, %954 : vector<8x2x8xf32>
    %cst_262 = arith.constant 1.000000e+00 : f32
    %956 = vector.broadcast %cst_262 : f32 to vector<8x2x8xf32>
    %957 = arith.subf %956, %955 : vector<8x2x8xf32>
    %958 = arith.mulf %929, %957 : vector<8x2x8xf32>
    %cst_263 = arith.constant 1.000000e+00 : f32
    %959 = vector.broadcast %cst_263 : f32 to vector<8x2x8xf32>
    %960 = arith.addf %959, %958 : vector<8x2x8xf32>
    %961 = arith.mulf %922, %960 : vector<8x2x8xf32>
    %c0_264 = arith.constant 0 : index
    %c0_265 = arith.constant 0 : index
    %c0_266 = arith.constant 0 : index
    %962 = vector.load %arg13[%c0_264, %c0_265, %c0_266] : memref<8x1x8xf32, #tpu.memory_space<vmem>>, vector<8x1x8xf32>
    %963 = vector.broadcast %962 : vector<8x1x8xf32> to vector<8x2x8xf32>
    %964 = arith.mulf %961, %963 : vector<8x2x8xf32>
    %cst_267 = arith.constant dense<0.000000e+00> : vector<8x2xf32>
    %965 = vector.multi_reduction <add>, %964, %cst_267 [2] : vector<8x2x8xf32> to vector<8x2xf32>
    %966 = vector.shape_cast %965 : vector<8x2xf32> to vector<8x2x1xf32>
    %c0_268 = arith.constant 0 : index
    %c0_269 = arith.constant 0 : index
    %c0_270 = arith.constant 0 : index
    %967 = vector.load %arg14[%c0_268, %c0_269, %c0_270] : memref<8x1x1xf32, #tpu.memory_space<vmem>>, vector<8x1x1xf32>
    %968 = vector.broadcast %967 : vector<8x1x1xf32> to vector<8x2x1xf32>
    %969 = arith.addf %966, %968 : vector<8x2x1xf32>
    %970 = arith.negf %969 : vector<8x2x1xf32>
    %971 = math.exp %970 : vector<8x2x1xf32>
    %cst_271 = arith.constant 1.000000e+00 : f32
    %972 = vector.broadcast %cst_271 : f32 to vector<8x2x1xf32>
    %973 = arith.addf %972, %971 : vector<8x2x1xf32>
    %974 = arith.divf %972, %973 : vector<8x2x1xf32>
    %c0_272 = arith.constant 0 : index
    %c0_273 = arith.constant 0 : index
    %c0_274 = arith.constant 0 : index
    %975 = vector.load %arg22[%c0_272, %c0_273, %c0_274] : memref<8x2x1xf32, #tpu.memory_space<vmem>>, vector<8x2x1xf32>
    tpu.vector_store %arg22[%c0_272, %c0_273, %c0_274], %974 {strides = array<i32>} : memref<8x2x1xf32, #tpu.memory_space<vmem>>, vector<8x2x1xf32>,
    return
  }
}

</mosaic_0001>

<llo_original>
// kernel: forward.1
$region0: #{forward.1}
  #allocation0 [shape = 'u32[]', space=smem, size = 0x4, offset = 0x4, fixed_abs, tag = 'smem constant byte address 0x4 - core index']
  #allocation1 [shape = 'u32[144,128]{1,0:T(1,128)}', space=vmem, size = 0x12000, scoped, tag = 'internal scratch']
  #allocation2 [shape = 'f32[2,8,32]{2,1,0:T(8,128)}', space=vmem, size = 0x2000, scoped, tag = 'scratch operand']
  #allocation3 [shape = 'f32[2,8,32]{2,1,0:T(8,128)}', space=vmem, size = 0x2000, scoped, tag = 'scratch operand']
  %s0 = inlined_call_operand.vmem [shape: f32[2,8,16], index: 0, kind: input, shape index: {}]
  %s1 = inlined_call_operand.vmem [shape: bf16[16,256], index: 1, kind: input, shape index: {}]
  %s2 = inlined_call_operand.vmem [shape: bf16[32,128], index: 2, kind: input, shape index: {}]
  %s3 = inlined_call_operand.vmem [shape: bf16[32,128], index: 3, kind: input, shape index: {}]
  %s4 = inlined_call_operand.vmem [shape: f32[1,256], index: 4, kind: input, shape index: {}]
  %s5 = inlined_call_operand.vmem [shape: bf16[64,256], index: 5, kind: input, shape index: {}]
  %s6 = inlined_call_operand.vmem [shape: bf16[32,128], index: 6, kind: input, shape index: {}]
  %s7 = inlined_call_operand.vmem [shape: bf16[32,128], index: 7, kind: input, shape index: {}]
  %s8 = inlined_call_operand.vmem [shape: f32[1,256], index: 8, kind: input, shape index: {}]
  %s9 = inlined_call_operand.vmem [shape: f32[1,64], index: 9, kind: input, shape index: {}]
  %s10 = inlined_call_operand.vmem [shape: f32[1,64], index: 10, kind: input, shape index: {}]
  %s11 = inlined_call_operand.vmem [shape: bf16[8,64,8], index: 11, kind: input, shape index: {}]
  %s12 = inlined_call_operand.vmem [shape: f32[8,1,8], index: 12, kind: input, shape index: {}]
  %s13 = inlined_call_operand.vmem [shape: f32[8,1,8], index: 13, kind: input, shape index: {}]
  %s14 = inlined_call_operand.vmem [shape: f32[8,1,1], index: 14, kind: input, shape index: {}]
  %s15 = inlined_call_operand.vmem [shape: f32[1,64], index: 15, kind: input, shape index: {}]
  %s16 = inlined_call_operand.vmem [shape: f32[1,64], index: 16, kind: input, shape index: {}]
  %s17 = inlined_call_operand.vmem [shape: bf16[64,64], index: 17, kind: input, shape index: {}]
  %s18 = inlined_call_operand.vmem [shape: f32[1,64], index: 18, kind: input, shape index: {}]
  %s19 = inlined_call_operand.vmem [shape: bf16[64,4], index: 19, kind: input, shape index: {}]
  %s20 = inlined_call_operand.vmem [shape: f32[1,4], index: 20, kind: input, shape index: {}]
  %s21 = inlined_call_operand.hbm [shape: f32[2,4], index: 21, kind: output, shape index: {0}]
  %s22 = inlined_call_operand.vmem [shape: f32[8,2,1], index: 22, kind: output, shape index: {1}]
  %23 = xla_tuple %s21, %s22
  %s24 = sld [smem:[#allocation0]]
  $region102: #{forward.1} parent=0
    _
  %s26 = ssub.s32 1, %s24
  %s27 = scalar_select 0, %s26, %s24
  $region1: #{forward.1} parent=0
    #allocation4 [shape = 'u8[1024]{0}', space=vmem, size = 0x400, scoped, tag = 'output window, operand 0, single buffered']
    #allocation5 [shape = 's32[1]{0}', space=sflag, size = 0x4, scoped, tag = 'scoped memory for forward.1']
    %28 = vsyncpa [#allocation5], 0
    // Predicated region
    $region2: #{forward.1} parent=1 // pred_check
      _
    $region3: #{forward.1} parent=1 // pred_check_branch
      %30 = sbr.rel (0) target = $region5
    $region4: #{forward.1} parent=1 // pred_region
      _
    $region5: #{forward.1} parent=1 // pred_fallthru
      _
    // Predicated region
    $region6: #{forward.1} parent=1 // pred_check
      _
    $region7: #{forward.1} parent=1 // pred_check_branch
      %32 = sbr.rel (0) target = $region9
    $region8: #{forward.1} parent=1 // pred_region
      _
    $region9: #{forward.1} parent=1 // pred_fallthru
      _
    // Predicated region
    $region10: #{forward.1} parent=1 // pred_check
      _
    $region11: #{forward.1} parent=1 // pred_check_branch
      %34 = sbr.rel (0) target = $region13
    $region12: #{forward.1} parent=1 // pred_region
      _
    $region13: #{forward.1} parent=1 // pred_fallthru
      _
    // Predicated region
    $region14: #{forward.1} parent=1 // pred_check
      _
    $region15: #{forward.1} parent=1 // pred_check_branch
      %36 = sbr.rel (0) target = $region17
    $region16: #{forward.1} parent=1 // pred_region
      _
    $region17: #{forward.1} parent=1 // pred_fallthru
      _
    // Predicated region
    $region18: #{forward.1} parent=1 // pred_check
      _
    $region19: #{forward.1} parent=1 // pred_check_branch
      %38 = sbr.rel (0) target = $region21
    $region20: #{forward.1} parent=1 // pred_region
      _
    $region21: #{forward.1} parent=1 // pred_fallthru
      _
    // Predicated region
    $region22: #{forward.1} parent=1 // pred_check
      _
    $region23: #{forward.1} parent=1 // pred_check_branch
      %40 = sbr.rel (0) target = $region25
    $region24: #{forward.1} parent=1 // pred_region
      _
    $region25: #{forward.1} parent=1 // pred_fallthru
      _
    // Predicated region
    $region26: #{forward.1} parent=1 // pred_check
      _
    $region27: #{forward.1} parent=1 // pred_check_branch
      %42 = sbr.rel (0) target = $region29
    $region28: #{forward.1} parent=1 // pred_region
      _
    $region29: #{forward.1} parent=1 // pred_fallthru
      _
    // Predicated region
    $region30: #{forward.1} parent=1 // pred_check
      _
    $region31: #{forward.1} parent=1 // pred_check_branch
      %44 = sbr.rel (0) target = $region33
    $region32: #{forward.1} parent=1 // pred_region
      _
    $region33: #{forward.1} parent=1 // pred_fallthru
      _
    // Predicated region
    $region34: #{forward.1} parent=1 // pred_check
      _
    $region35: #{forward.1} parent=1 // pred_check_branch
      %46 = sbr.rel (0) target = $region37
    $region36: #{forward.1} parent=1 // pred_region
      _
    $region37: #{forward.1} parent=1 // pred_fallthru
      _
    // Predicated region
    $region38: #{forward.1} parent=1 // pred_check
      _
    $region39: #{forward.1} parent=1 // pred_check_branch
      %48 = sbr.rel (0) target = $region41
    $region40: #{forward.1} parent=1 // pred_region
      _
    $region41: #{forward.1} parent=1 // pred_fallthru
      _
    // Predicated region
    $region42: #{forward.1} parent=1 // pred_check
      _
    $region43: #{forward.1} parent=1 // pred_check_branch
      %50 = sbr.rel (0) target = $region45
    $region44: #{forward.1} parent=1 // pred_region
      _
    $region45: #{forward.1} parent=1 // pred_fallthru
      _
    // Predicated region
    $region46: #{forward.1} parent=1 // pred_check
      _
    $region47: #{forward.1} parent=1 // pred_check_branch
      %52 = sbr.rel (0) target = $region49
    $region48: #{forward.1} parent=1 // pred_region
      _
    $region49: #{forward.1} parent=1 // pred_fallthru
      _
    // Predicated region
    $region50: #{forward.1} parent=1 // pred_check
      _
    $region51: #{forward.1} parent=1 // pred_check_branch
      %54 = sbr.rel (0) target = $region53
    $region52: #{forward.1} parent=1 // pred_region
      _
    $region53: #{forward.1} parent=1 // pred_fallthru
      _
    // Predicated region
    $region54: #{forward.1} parent=1 // pred_check
      _
    $region55: #{forward.1} parent=1 // pred_check_branch
      %56 = sbr.rel (0) target = $region57
    $region56: #{forward.1} parent=1 // pred_region
      _
    $region57: #{forward.1} parent=1 // pred_fallthru
      _
    // Predicated region
    $region58: #{forward.1} parent=1 // pred_check
      _
    $region59: #{forward.1} parent=1 // pred_check_branch
      %58 = sbr.rel (0) target = $region61
    $region60: #{forward.1} parent=1 // pred_region
      _
    $region61: #{forward.1} parent=1 // pred_fallthru
      _
    // Predicated region
    $region62: #{forward.1} parent=1 // pred_check
      _
    $region63: #{forward.1} parent=1 // pred_check_branch
      %60 = sbr.rel (0) target = $region65
    $region64: #{forward.1} parent=1 // pred_region
      _
    $region65: #{forward.1} parent=1 // pred_fallthru
      _
    // Predicated region
    $region66: #{forward.1} parent=1 // pred_check
      _
    $region67: #{forward.1} parent=1 // pred_check_branch
      %62 = sbr.rel (0) target = $region69
    $region68: #{forward.1} parent=1 // pred_region
      _
    $region69: #{forward.1} parent=1 // pred_fallthru
      _
    // Predicated region
    $region70: #{forward.1} parent=1 // pred_check
      _
    $region71: #{forward.1} parent=1 // pred_check_branch
      %64 = sbr.rel (0) target = $region73
    $region72: #{forward.1} parent=1 // pred_region
      _
    $region73: #{forward.1} parent=1 // pred_fallthru
      _
    // Predicated region
    $region74: #{forward.1} parent=1 // pred_check
      _
    $region75: #{forward.1} parent=1 // pred_check_branch
      %66 = sbr.rel (0) target = $region77
    $region76: #{forward.1} parent=1 // pred_region
      _
    $region77: #{forward.1} parent=1 // pred_fallthru
      _
    // Predicated region
    $region78: #{forward.1} parent=1 // pred_check
      _
    $region79: #{forward.1} parent=1 // pred_check_branch
      %68 = sbr.rel (0) target = $region81
    $region80: #{forward.1} parent=1 // pred_region
      _
    $region81: #{forward.1} parent=1 // pred_fallthru
      _
    // Predicated region
    $region82: #{forward.1} parent=1 // pred_check
      _
    $region83: #{forward.1} parent=1 // pred_check_branch
      %70 = sbr.rel (0) target = $region85
    $region84: #{forward.1} parent=1 // pred_region
      _
    $region85: #{forward.1} parent=1 // pred_fallthru
      _
    %v72 = vld [vmem:[%s0] sm:$0xff]
    %v73 = vld [vmem:[%s0 + $0x8] sm:$0xff]
    %v74 = vld [vmem:[%s2] sm:$0xf]
    %v75 = vld [vmem:[%s2 + $0x4] sm:$0xf]
    %v76 = vld [vmem:[%s2 + $0x8] sm:$0xf]
    %v77 = vld [vmem:[%s2 + $0xc] sm:$0xf]
    %v78 = vld [vmem:[%s3] sm:$0xf]
    %v79 = vld [vmem:[%s3 + $0x4] sm:$0xf]
    %v80 = vld [vmem:[%s3 + $0x8] sm:$0xf]
    %v81 = vld [vmem:[%s3 + $0xc] sm:$0xf]
    %v82 = vpack.c.bf16 %v73, %v72
    %v83 = vld [vmem:[%s1] sm:$0xff]
    %v84 = vld [vmem:[%s1 + $0x8] sm:$0xff]
    %v85 = vld [vmem:[%s4] sm:$0x3]
    %v87 = vlaneseq
    %v88 = vshrl.u32 %v87, 7
    %v89 = vsub.s32 0, %v88
    %v90 = vrot.slane %v85, %v89
    %v91 = vlaneseq
    %v92 = vshrl.u32 %v91, 7
    %v93 = vsub.s32 1, %v92
    %v94 = vrot.slane %v85, %v93
    %v99 = vunpack.c.l.b16 %v83
    %v100 = vunpack.c.h.b16 %v83
    %v101 = vunpack.c.l.b16 %v84
    %v102 = vunpack.c.h.b16 %v84
    %v103 = vpack.c.b16 %v101, %v99
    %v104 = vpack.c.b16 %v102, %v100
    %vm107 = vcmask 130048
    %v109 = vsel %vm107, %v82, 0
    %111 = vmatprep.subr.bf16.mxu0 0
    %112 = vmatpush1.bf16.msra.mxu0 0
    %113 = vmatprep.subr.bf16.mxu0 0
    %114 = vmatpush1.bf16.msra.mxu0 0
    %115 = vmatprep.subr.bf16.mxu0 0
    %116 = vmatpush1.bf16.msra.mxu0 0
    %117 = vmatprep.subr.bf16.mxu0 0
    %118 = vmatpush1.bf16.msra.mxu0 0
    %119 = vmatprep.subr.bf16.mxu0 0
    %120 = vmatpush1.bf16.msra.mxu0 0
    %121 = vmatprep.subr.bf16.mxu0 0
    %122 = vmatpush1.bf16.msra.mxu0 0
    %123 = vmatprep.subr.bf16.mxu0 0
    %124 = vmatpush1.bf16.msra.mxu0 0
    %125 = vmatprep.subr.bf16.mxu0 %v104
    %126 = vmatpush1.bf16.msra.mxu0 %v103
    %127 = vmatprep.subr.bf16.mxu0 0
    %128 = vmatpush2.bf16.msra.mxu0 0
    %129 = vmatprep.subr.bf16.mxu0 0
    %130 = vmatpush2.bf16.msra.mxu0 0
    %131 = vmatprep.subr.bf16.mxu0 0
    %132 = vmatpush2.bf16.msra.mxu0 0
    %133 = vmatprep.subr.bf16.mxu0 0
    %134 = vmatpush2.bf16.msra.mxu0 0
    %135 = vmatprep.subr.bf16.mxu0 0
    %136 = vmatpush2.bf16.msra.mxu0 0
    %137 = vmatprep.subr.bf16.mxu0 0
    %138 = vmatpush2.bf16.msra.mxu0 0
    %139 = vmatprep.subr.bf16.mxu0 0
    %140 = vmatpush2.bf16.msra.mxu0 0
    %141 = vmatprep.subr.bf16.mxu0 0
    %142 = vmatpush2.bf16.msra.mxu0 0
    %143 = vmatprep.mubr.bf16.mxu0 0
    %144 = vmatmul.mubr.bf16.gmra.mxu0 %v109
    %v145 = vpop.f32.mrf.mxu0
    %v146 = vadd.f32 %v90, %v145
    %v147 = vpop.f32.mrf.mxu0
    %v148 = vadd.f32 %v94, %v147
    %v149 = vpop.f32.mrf.mxu0
    %v150 = vadd.f32 %v90, %v149
    %v151 = vpop.f32.mrf.mxu0
    %v152 = vadd.f32 %v94, %v151
    %153 = vdwg.mxu0
    %v158 = vunpack.c.l.b16 %v74
    %v159 = vunpack.c.l.b16 %v75
    %v160 = vunpack.c.l.b16 %v76
    %v161 = vunpack.c.l.b16 %v77
    %v162 = vpack.c.b16 %v159, %v158
    %v163 = vpack.c.b16 %v161, %v160
    %vm166 = vcmask 261120
    %v168 = vsel %vm166, 0, 0
    %170 = vmatprep.subr.bf16.mxu0 0
    %171 = vmatpush1.bf16.msra.mxu0 0
    %172 = vmatprep.subr.bf16.mxu0 0
    %173 = vmatpush1.bf16.msra.mxu0 0
    %174 = vmatprep.subr.bf16.mxu0 0
    %175 = vmatpush1.bf16.msra.mxu0 0
    %176 = vmatprep.subr.bf16.mxu0 0
    %177 = vmatpush1.bf16.msra.mxu0 0
    %178 = vmatprep.subr.bf16.mxu0 0
    %179 = vmatpush1.bf16.msra.mxu0 0
    %180 = vmatprep.subr.bf16.mxu0 0
    %181 = vmatpush1.bf16.msra.mxu0 0
    %182 = vmatprep.subr.bf16.mxu0 0
    %183 = vmatpush1.bf16.msra.mxu0 %v163
    %184 = vmatprep.subr.bf16.mxu0 0
    %185 = vmatpush1.bf16.msra.mxu0 %v162
    %186 = vmatprep.subr.bf16.mxu0 0
    %187 = vmatpush2.bf16.msra.mxu0 0
    %188 = vmatprep.subr.bf16.mxu0 0
    %189 = vmatpush2.bf16.msra.mxu0 0
    %190 = vmatprep.subr.bf16.mxu0 0
    %191 = vmatpush2.bf16.msra.mxu0 0
    %192 = vmatprep.subr.bf16.mxu0 0
    %193 = vmatpush2.bf16.msra.mxu0 0
    %194 = vmatprep.subr.bf16.mxu0 0
    %195 = vmatpush2.bf16.msra.mxu0 0
    %196 = vmatprep.subr.bf16.mxu0 0
    %197 = vmatpush2.bf16.msra.mxu0 0
    %198 = vmatprep.subr.bf16.mxu0 0
    %199 = vmatpush2.bf16.msra.mxu0 0
    %200 = vmatprep.subr.bf16.mxu0 0
    %201 = vmatpush2.bf16.msra.mxu0 0
    %202 = vmatprep.mubr.bf16.mxu0 0
    %203 = vmatmul.mubr.bf16.gmra.mxu0 %v168
    %v204 = vpop.f32.mrf.mxu0
    %v205 = vadd.f32 0.0, %v204
    %v206 = vpop.f32.mrf.mxu0
    %v207 = vpop.f32.mrf.mxu0
    %v208 = vpop.f32.mrf.mxu0
    %209 = vdwg.mxu0
    %v211 = vrot.slane %v205, 1
    %v214 = vadd.f32 %v146, %v205
    %v215 = vadd.f32 %v150, %v211
    %v216 = vxor.u32 %v214, 2147483648
    %v217 = vxor.u32 %v215, 2147483648
    %v218 = vmul.f32 %v216, 1.442695
    %v219 = vpow.pop %v218
    %v220 = vmul.f32 %v217, 1.442695
    %v221 = vpow.pop %v220
    %v222 = vadd.f32 %v219, 1.0
    %v223 = vadd.f32 %v221, 1.0
    %v224 = vrcp.pop %v222
    %v225 = vmul.f32 1.0, %v224
    %v226 = vrcp.pop %v223
    %v227 = vmul.f32 1.0, %v226
    %v228 = vtanh.pop %v214
    %v229 = vtanh.pop %v215
    %v230 = vmul.f32 %v225, 0.0
    %v231 = vmul.f32 %v227, 0.0
    %234 = vrot.lane.b32.xlu0 %v228, 32
    %v235 = vpop.permute.xlu0 %234
    %236 = vrot.lane.b32.xlu0 %v229, 32
    %v237 = vpop.permute.xlu0 %236
    %v240 = vmul.f32 %v225, %v235
    %v241 = vmul.f32 %v227, %v237
    %244 = vrot.lane.b32.xlu0 %v240, 32
    %v245 = vpop.permute.xlu0 %244
    %246 = vrot.lane.b32.xlu0 %v241, 32
    %v247 = vpop.permute.xlu0 %246
    %v250 = vadd.f32 %v230, %v245
    %v251 = vadd.f32 %v231, %v247
    %v252 = vtanh.pop %v250
    %v253 = vtanh.pop %v251
    %256 = vrot.lane.b32.xlu0 %v252, 32
    %v257 = vpop.permute.xlu0 %256
    %258 = vrot.lane.b32.xlu0 %v253, 32
    %v259 = vpop.permute.xlu0 %258
    %v262 = vmul.f32 %v225, %v257
    %v263 = vmul.f32 %v227, %v259
    %266 = vrot.lane.b32.xlu0 %v262, 64
    %v267 = vpop.permute.xlu0 %266
    %268 = vrot.lane.b32.xlu0 %v263, 64
    %v269 = vpop.permute.xlu0 %268
    %vm272 = vcmask 253952
    %273 = vst.msk [vmem:[#allocation2] sm:$0x1] %vm272, %v267
    %274 = vst.msk [vmem:[#allocation2 + $0x8] sm:$0x1] %vm272, %v269
    %v279 = vunpack.c.l.b16 %v78
    %v280 = vunpack.c.l.b16 %v79
    %v281 = vunpack.c.l.b16 %v80
    %v282 = vunpack.c.l.b16 %v81
    %v283 = vpack.c.b16 %v280, %v279
    %v284 = vpack.c.b16 %v282, %v281
    %287 = vmatprep.subr.bf16.mxu0 0
    %288 = vmatpush1.bf16.msra.mxu0 0
    %289 = vmatprep.subr.bf16.mxu0 0
    %290 = vmatpush1.bf16.msra.mxu0 0
    %291 = vmatprep.subr.bf16.mxu0 0
    %292 = vmatpush1.bf16.msra.mxu0 0
    %293 = vmatprep.subr.bf16.mxu0 0
    %294 = vmatpush1.bf16.msra.mxu0 0
    %295 = vmatprep.subr.bf16.mxu0 0
    %296 = vmatpush1.bf16.msra.mxu0 0
    %297 = vmatprep.subr.bf16.mxu0 0
    %298 = vmatpush1.bf16.msra.mxu0 0
    %299 = vmatprep.subr.bf16.mxu0 0
    %300 = vmatpush1.bf16.msra.mxu0 %v284
    %301 = vmatprep.subr.bf16.mxu0 0
    %302 = vmatpush1.bf16.msra.mxu0 %v283
    %303 = vmatprep.subr.bf16.mxu0 0
    %304 = vmatpush2.bf16.msra.mxu0 0
    %305 = vmatprep.subr.bf16.mxu0 0
    %306 = vmatpush2.bf16.msra.mxu0 0
    %307 = vmatprep.subr.bf16.mxu0 0
    %308 = vmatpush2.bf16.msra.mxu0 0
    %309 = vmatprep.subr.bf16.mxu0 0
    %310 = vmatpush2.bf16.msra.mxu0 0
    %311 = vmatprep.subr.bf16.mxu0 0
    %312 = vmatpush2.bf16.msra.mxu0 0
    %313 = vmatprep.subr.bf16.mxu0 0
    %314 = vmatpush2.bf16.msra.mxu0 0
    %315 = vmatprep.subr.bf16.mxu0 0
    %316 = vmatpush2.bf16.msra.mxu0 0
    %317 = vmatprep.subr.bf16.mxu0 0
    %318 = vmatpush2.bf16.msra.mxu0 0
    %319 = vmatprep.mubr.bf16.mxu0 0
    %320 = vmatmul.mubr.bf16.gmra.mxu0 %v168
    %v321 = vpop.f32.mrf.mxu0
    %v322 = vadd.f32 0.0, %v321
    %v323 = vpop.f32.mrf.mxu0
    %v324 = vpop.f32.mrf.mxu0
    %v325 = vpop.f32.mrf.mxu0
    %326 = vdwg.mxu0
    %v328 = vrot.slane %v322, 1
    %v329 = vrot.slane %v322, 2
    %v332 = vadd.f32 %v148, %v328
    %v333 = vadd.f32 %v152, %v329
    %v334 = vxor.u32 %v332, 2147483648
    %v335 = vxor.u32 %v333, 2147483648
    %v336 = vmul.f32 %v334, 1.442695
    %v337 = vpow.pop %v336
    %v338 = vmul.f32 %v335, 1.442695
    %v339 = vpow.pop %v338
    %v340 = vadd.f32 %v337, 1.0
    %v341 = vadd.f32 %v339, 1.0
    %v342 = vrcp.pop %v340
    %v343 = vmul.f32 1.0, %v342
    %v344 = vrcp.pop %v341
    %v345 = vmul.f32 1.0, %v344
    %v346 = vtanh.pop %v332
    %v347 = vtanh.pop %v333
    %v348 = vmul.f32 %v343, 0.0
    %v349 = vmul.f32 %v345, 0.0
    %352 = vrot.lane.b32.xlu0 %v346, 32
    %v353 = vpop.permute.xlu0 %352
    %354 = vrot.lane.b32.xlu0 %v347, 32
    %v355 = vpop.permute.xlu0 %354
    %v358 = vmul.f32 %v343, %v353
    %v359 = vmul.f32 %v345, %v355
    %362 = vrot.lane.b32.xlu0 %v358, 32
    %v363 = vpop.permute.xlu0 %362
    %364 = vrot.lane.b32.xlu0 %v359, 32
    %v365 = vpop.permute.xlu0 %364
    %v368 = vadd.f32 %v348, %v363
    %v369 = vadd.f32 %v349, %v365
    %v370 = vtanh.pop %v368
    %v371 = vtanh.pop %v369
    %374 = vrot.lane.b32.xlu0 %v370, 32
    %v375 = vpop.permute.xlu0 %374
    %376 = vrot.lane.b32.xlu0 %v371, 32
    %v377 = vpop.permute.xlu0 %376
    %v380 = vmul.f32 %v343, %v375
    %v381 = vmul.f32 %v345, %v377
    %384 = vrot.lane.b32.xlu0 %v380, 64
    %v385 = vpop.permute.xlu0 %384
    %386 = vrot.lane.b32.xlu0 %v381, 64
    %v387 = vpop.permute.xlu0 %386
    %vm390 = vcmask 261127
    %391 = vst.msk [vmem:[#allocation3] sm:$0x80] %vm390, %v385
    %392 = vst.msk [vmem:[#allocation3 + $0x8] sm:$0x80] %vm390, %v387
    %v393 = vpack.c.bf16 %v262, %v262
    %v394 = vpack.c.bf16 %v263, %v263
    %v397 = vunpack.c.l.b16 %v393
    %v398 = vunpack.c.l.b16 %v394
    %v399 = vrot.slane %v398, 7
    %vm400 = vcmask 1041409
    %v401 = vsel %vm400, %v399, %v397
    %v402 = vpack.c.b16 %v401, %v401
    %403 = vrot.lane.b32.xlu0 %v402, 64
    %v404 = vpop.permute.xlu0 %403
    %v406 = vsel %vm166, %v404, 0
    %408 = vmatprep.subr.bf16.mxu0 0
    %409 = vmatpush1.bf16.msra.mxu0 0
    %410 = vmatprep.subr.bf16.mxu0 0
    %411 = vmatpush1.bf16.msra.mxu0 0
    %412 = vmatprep.subr.bf16.mxu0 0
    %413 = vmatpush1.bf16.msra.mxu0 0
    %414 = vmatprep.subr.bf16.mxu0 0
    %415 = vmatpush1.bf16.msra.mxu0 0
    %416 = vmatprep.subr.bf16.mxu0 0
    %417 = vmatpush1.bf16.msra.mxu0 0
    %418 = vmatprep.subr.bf16.mxu0 0
    %419 = vmatpush1.bf16.msra.mxu0 0
    %420 = vmatprep.subr.bf16.mxu0 0
    %421 = vmatpush1.bf16.msra.mxu0 %v163
    %422 = vmatprep.subr.bf16.mxu0 0
    %423 = vmatpush1.bf16.msra.mxu0 %v162
    %424 = vmatprep.subr.bf16.mxu0 0
    %425 = vmatpush2.bf16.msra.mxu0 0
    %426 = vmatprep.subr.bf16.mxu0 0
    %427 = vmatpush2.bf16.msra.mxu0 0
    %428 = vmatprep.subr.bf16.mxu0 0
    %429 = vmatpush2.bf16.msra.mxu0 0
    %430 = vmatprep.subr.bf16.mxu0 0
    %431 = vmatpush2.bf16.msra.mxu0 0
    %432 = vmatprep.subr.bf16.mxu0 0
    %433 = vmatpush2.bf16.msra.mxu0 0
    %434 = vmatprep.subr.bf16.mxu0 0
    %435 = vmatpush2.bf16.msra.mxu0 0
    %436 = vmatprep.subr.bf16.mxu0 0
    %437 = vmatpush2.bf16.msra.mxu0 0
    %438 = vmatprep.subr.bf16.mxu0 0
    %439 = vmatpush2.bf16.msra.mxu0 0
    %440 = vmatprep.mubr.bf16.mxu0 0
    %441 = vmatmul.mubr.bf16.gmra.mxu0 %v406
    %v442 = vpop.f32.mrf.mxu0
    %v443 = vadd.f32 0.0, %v442
    %v444 = vpop.f32.mrf.mxu0
    %v445 = vpop.f32.mrf.mxu0
    %v446 = vpop.f32.mrf.mxu0
    %447 = vdwg.mxu0
    %v449 = vrot.slane %v443, 7
    %v452 = vadd.f32 %v146, %v449
    %v453 = vadd.f32 %v150, %v443
    %v454 = vxor.u32 %v452, 2147483648
    %v455 = vxor.u32 %v453, 2147483648
    %v456 = vmul.f32 %v454, 1.442695
    %v457 = vpow.pop %v456
    %v458 = vmul.f32 %v455, 1.442695
    %v459 = vpow.pop %v458
    %v460 = vadd.f32 %v457, 1.0
    %v461 = vadd.f32 %v459, 1.0
    %v462 = vrcp.pop %v460
    %v463 = vmul.f32 1.0, %v462
    %v464 = vrcp.pop %v461
    %v465 = vmul.f32 1.0, %v464
    %v466 = vtanh.pop %v452
    %v467 = vtanh.pop %v453
    %v470 = vrot.slane %v250, 7
    %v471 = vrot.slane %v251, 7
    %v474 = vmul.f32 %v463, %v470
    %v475 = vmul.f32 %v465, %v471
    %478 = vrot.lane.b32.xlu0 %v466, 32
    %v479 = vpop.permute.xlu0 %478
    %480 = vrot.lane.b32.xlu0 %v467, 32
    %v481 = vpop.permute.xlu0 %480
    %v484 = vmul.f32 %v463, %v479
    %v485 = vmul.f32 %v465, %v481
    %488 = vrot.lane.b32.xlu0 %v484, 32
    %v489 = vpop.permute.xlu0 %488
    %490 = vrot.lane.b32.xlu0 %v485, 32
    %v491 = vpop.permute.xlu0 %490
    %v494 = vadd.f32 %v474, %v489
    %v495 = vadd.f32 %v475, %v491
    %v496 = vtanh.pop %v494
    %v497 = vtanh.pop %v495
    %500 = vrot.lane.b32.xlu0 %v496, 32
    %v501 = vpop.permute.xlu0 %500
    %502 = vrot.lane.b32.xlu0 %v497, 32
    %v503 = vpop.permute.xlu0 %502
    %v506 = vmul.f32 %v463, %v501
    %v507 = vmul.f32 %v465, %v503
    %510 = vrot.lane.b32.xlu0 %v506, 64
    %v511 = vpop.permute.xlu0 %510
    %512 = vrot.lane.b32.xlu0 %v507, 64
    %v513 = vpop.permute.xlu0 %512
    %vm516 = vcmask 254977
    %517 = vst.msk [vmem:[#allocation2] sm:$0x2] %vm516, %v511
    %518 = vst.msk [vmem:[#allocation2 + $0x8] sm:$0x2] %vm516, %v513
    %v519 = vpack.c.bf16 %v380, %v380
    %v520 = vpack.c.bf16 %v381, %v381
    %v523 = vunpack.c.l.b16 %v519
    %v524 = vunpack.c.l.b16 %v520
    %v525 = vrot.slane %v523, 7
    %v526 = vrot.slane %v524, 6
    %v527 = vsel %vm400, %v526, %v525
    %v528 = vpack.c.b16 %v527, %v527
    %529 = vrot.lane.b32.xlu0 %v528, 64
    %v530 = vpop.permute.xlu0 %529
    %v532 = vsel %vm166, %v530, 0
    %534 = vmatprep.subr.bf16.mxu0 0
    %535 = vmatpush1.bf16.msra.mxu0 0
    %536 = vmatprep.subr.bf16.mxu0 0
    %537 = vmatpush1.bf16.msra.mxu0 0
    %538 = vmatprep.subr.bf16.mxu0 0
    %539 = vmatpush1.bf16.msra.mxu0 0
    %540 = vmatprep.subr.bf16.mxu0 0
    %541 = vmatpush1.bf16.msra.mxu0 0
    %542 = vmatprep.subr.bf16.mxu0 0
    %543 = vmatpush1.bf16.msra.mxu0 0
    %544 = vmatprep.subr.bf16.mxu0 0
    %545 = vmatpush1.bf16.msra.mxu0 0
    %546 = vmatprep.subr.bf16.mxu0 0
    %547 = vmatpush1.bf16.msra.mxu0 %v284
    %548 = vmatprep.subr.bf16.mxu0 0
    %549 = vmatpush1.bf16.msra.mxu0 %v283
    %550 = vmatprep.subr.bf16.mxu0 0
    %551 = vmatpush2.bf16.msra.mxu0 0
    %552 = vmatprep.subr.bf16.mxu0 0
    %553 = vmatpush2.bf16.msra.mxu0 0
    %554 = vmatprep.subr.bf16.mxu0 0
    %555 = vmatpush2.bf16.msra.mxu0 0
    %556 = vmatprep.subr.bf16.mxu0 0
    %557 = vmatpush2.bf16.msra.mxu0 0
    %558 = vmatprep.subr.bf16.mxu0 0
    %559 = vmatpush2.bf16.msra.mxu0 0
    %560 = vmatprep.subr.bf16.mxu0 0
    %561 = vmatpush2.bf16.msra.mxu0 0
    %562 = vmatprep.subr.bf16.mxu0 0
    %563 = vmatpush2.bf16.msra.mxu0 0
    %564 = vmatprep.subr.bf16.mxu0 0
    %565 = vmatpush2.bf16.msra.mxu0 0
    %566 = vmatprep.mubr.bf16.mxu0 0
    %567 = vmatmul.mubr.bf16.gmra.mxu0 %v532
    %v568 = vpop.f32.mrf.mxu0
    %v569 = vadd.f32 0.0, %v568
    %v570 = vpop.f32.mrf.mxu0
    %v571 = vpop.f32.mrf.mxu0
    %v572 = vpop.f32.mrf.mxu0
    %573 = vdwg.mxu0
    %v575 = vrot.slane %v569, 2
    %v576 = vrot.slane %v569, 3
    %v579 = vadd.f32 %v148, %v575
    %v580 = vadd.f32 %v152, %v576
    %v581 = vxor.u32 %v579, 2147483648
    %v582 = vxor.u32 %v580, 2147483648
    %v583 = vmul.f32 %v581, 1.442695
    %v584 = vpow.pop %v583
    %v585 = vmul.f32 %v582, 1.442695
    %v586 = vpow.pop %v585
    %v587 = vadd.f32 %v584, 1.0
    %v588 = vadd.f32 %v586, 1.0
    %v589 = vrcp.pop %v587
    %v590 = vmul.f32 1.0, %v589
    %v591 = vrcp.pop %v588
    %v592 = vmul.f32 1.0, %v591
    %v593 = vtanh.pop %v579
    %v594 = vtanh.pop %v580
    %v597 = vrot.slane %v368, 1
    %v598 = vrot.slane %v369, 1
    %v601 = vmul.f32 %v590, %v597
    %v602 = vmul.f32 %v592, %v598
    %605 = vrot.lane.b32.xlu0 %v593, 32
    %v606 = vpop.permute.xlu0 %605
    %607 = vrot.lane.b32.xlu0 %v594, 32
    %v608 = vpop.permute.xlu0 %607
    %v611 = vmul.f32 %v590, %v606
    %v612 = vmul.f32 %v592, %v608
    %615 = vrot.lane.b32.xlu0 %v611, 32
    %v616 = vpop.permute.xlu0 %615
    %617 = vrot.lane.b32.xlu0 %v612, 32
    %v618 = vpop.permute.xlu0 %617
    %v621 = vadd.f32 %v601, %v616
    %v622 = vadd.f32 %v602, %v618
    %v623 = vtanh.pop %v621
    %v624 = vtanh.pop %v622
    %627 = vrot.lane.b32.xlu0 %v623, 32
    %v628 = vpop.permute.xlu0 %627
    %629 = vrot.lane.b32.xlu0 %v624, 32
    %v630 = vpop.permute.xlu0 %629
    %v633 = vmul.f32 %v590, %v628
    %v634 = vmul.f32 %v592, %v630
    %637 = vrot.lane.b32.xlu0 %v633, 64
    %v638 = vpop.permute.xlu0 %637
    %639 = vrot.lane.b32.xlu0 %v634, 64
    %v640 = vpop.permute.xlu0 %639
    %vm643 = vcmask 260102
    %644 = vst.msk [vmem:[#allocation3] sm:$0x40] %vm643, %v638
    %645 = vst.msk [vmem:[#allocation3 + $0x8] sm:$0x40] %vm643, %v640
    %v646 = vpack.c.bf16 %v506, %v506
    %v647 = vpack.c.bf16 %v507, %v507
    %v650 = vunpack.c.l.b16 %v646
    %v651 = vunpack.c.l.b16 %v647
    %v652 = vrot.slane %v650, 1
    %v653 = vsel %vm400, %v651, %v652
    %v654 = vpack.c.b16 %v653, %v653
    %655 = vrot.lane.b32.xlu0 %v654, 64
    %v656 = vpop.permute.xlu0 %655
    %v658 = vsel %vm166, %v656, 0
    %660 = vmatprep.subr.bf16.mxu0 0
    %661 = vmatpush1.bf16.msra.mxu0 0
    %662 = vmatprep.subr.bf16.mxu0 0
    %663 = vmatpush1.bf16.msra.mxu0 0
    %664 = vmatprep.subr.bf16.mxu0 0
    %665 = vmatpush1.bf16.msra.mxu0 0
    %666 = vmatprep.subr.bf16.mxu0 0
    %667 = vmatpush1.bf16.msra.mxu0 0
    %668 = vmatprep.subr.bf16.mxu0 0
    %669 = vmatpush1.bf16.msra.mxu0 0
    %670 = vmatprep.subr.bf16.mxu0 0
    %671 = vmatpush1.bf16.msra.mxu0 0
    %672 = vmatprep.subr.bf16.mxu0 0
    %673 = vmatpush1.bf16.msra.mxu0 %v163
    %674 = vmatprep.subr.bf16.mxu0 0
    %675 = vmatpush1.bf16.msra.mxu0 %v162
    %676 = vmatprep.subr.bf16.mxu0 0
    %677 = vmatpush2.bf16.msra.mxu0 0
    %678 = vmatprep.subr.bf16.mxu0 0
    %679 = vmatpush2.bf16.msra.mxu0 0
    %680 = vmatprep.subr.bf16.mxu0 0
    %681 = vmatpush2.bf16.msra.mxu0 0
    %682 = vmatprep.subr.bf16.mxu0 0
    %683 = vmatpush2.bf16.msra.mxu0 0
    %684 = vmatprep.subr.bf16.mxu0 0
    %685 = vmatpush2.bf16.msra.mxu0 0
    %686 = vmatprep.subr.bf16.mxu0 0
    %687 = vmatpush2.bf16.msra.mxu0 0
    %688 = vmatprep.subr.bf16.mxu0 0
    %689 = vmatpush2.bf16.msra.mxu0 0
    %690 = vmatprep.subr.bf16.mxu0 0
    %691 = vmatpush2.bf16.msra.mxu0 0
    %692 = vmatprep.mubr.bf16.mxu0 0
    %693 = vmatmul.mubr.bf16.gmra.mxu0 %v658
    %v694 = vpop.f32.mrf.mxu0
    %v695 = vadd.f32 0.0, %v694
    %v696 = vpop.f32.mrf.mxu0
    %v697 = vpop.f32.mrf.mxu0
    %v698 = vpop.f32.mrf.mxu0
    %699 = vdwg.mxu0
    %v701 = vrot.slane %v695, 6
    %v702 = vrot.slane %v695, 7
    %v705 = vadd.f32 %v146, %v701
    %v706 = vadd.f32 %v150, %v702
    %v707 = vxor.u32 %v705, 2147483648
    %v708 = vxor.u32 %v706, 2147483648
    %v709 = vmul.f32 %v707, 1.442695
    %v710 = vpow.pop %v709
    %v711 = vmul.f32 %v708, 1.442695
    %v712 = vpow.pop %v711
    %v713 = vadd.f32 %v710, 1.0
    %v714 = vadd.f32 %v712, 1.0
    %v715 = vrcp.pop %v713
    %v716 = vmul.f32 1.0, %v715
    %v717 = vrcp.pop %v714
    %v718 = vmul.f32 1.0, %v717
    %v719 = vtanh.pop %v705
    %v720 = vtanh.pop %v706
    %v723 = vrot.slane %v494, 7
    %v724 = vrot.slane %v495, 7
    %v727 = vmul.f32 %v716, %v723
    %v728 = vmul.f32 %v718, %v724
    %731 = vrot.lane.b32.xlu0 %v719, 32
    %v732 = vpop.permute.xlu0 %731
    %733 = vrot.lane.b32.xlu0 %v720, 32
    %v734 = vpop.permute.xlu0 %733
    %v737 = vmul.f32 %v716, %v732
    %v738 = vmul.f32 %v718, %v734
    %741 = vrot.lane.b32.xlu0 %v737, 32
    %v742 = vpop.permute.xlu0 %741
    %743 = vrot.lane.b32.xlu0 %v738, 32
    %v744 = vpop.permute.xlu0 %743
    %v747 = vadd.f32 %v727, %v742
    %v748 = vadd.f32 %v728, %v744
    %v749 = vtanh.pop %v747
    %v750 = vtanh.pop %v748
    %753 = vrot.lane.b32.xlu0 %v749, 32
    %v754 = vpop.permute.xlu0 %753
    %755 = vrot.lane.b32.xlu0 %v750, 32
    %v756 = vpop.permute.xlu0 %755
    %v759 = vmul.f32 %v716, %v754
    %v760 = vmul.f32 %v718, %v756
    %763 = vrot.lane.b32.xlu0 %v759, 64
    %v764 = vpop.permute.xlu0 %763
    %765 = vrot.lane.b32.xlu0 %v760, 64
    %v766 = vpop.permute.xlu0 %765
    %vm769 = vcmask 256002
    %770 = vst.msk [vmem:[#allocation2] sm:$0x4] %vm769, %v764
    %771 = vst.msk [vmem:[#allocation2 + $0x8] sm:$0x4] %vm769, %v766
    %v772 = vpack.c.bf16 %v633, %v633
    %v773 = vpack.c.bf16 %v634, %v634
    %v776 = vunpack.c.l.b16 %v772
    %v777 = vunpack.c.l.b16 %v773
    %v778 = vrot.slane %v776, 6
    %v779 = vrot.slane %v777, 5
    %v780 = vsel %vm400, %v779, %v778
    %v781 = vpack.c.b16 %v780, %v780
    %782 = vrot.lane.b32.xlu0 %v781, 64
    %v783 = vpop.permute.xlu0 %782
    %v785 = vsel %vm166, %v783, 0
    %787 = vmatprep.subr.bf16.mxu0 0
    %788 = vmatpush1.bf16.msra.mxu0 0
    %789 = vmatprep.subr.bf16.mxu0 0
    %790 = vmatpush1.bf16.msra.mxu0 0
    %791 = vmatprep.subr.bf16.mxu0 0
    %792 = vmatpush1.bf16.msra.mxu0 0
    %793 = vmatprep.subr.bf16.mxu0 0
    %794 = vmatpush1.bf16.msra.mxu0 0
    %795 = vmatprep.subr.bf16.mxu0 0
    %796 = vmatpush1.bf16.msra.mxu0 0
    %797 = vmatprep.subr.bf16.mxu0 0
    %798 = vmatpush1.bf16.msra.mxu0 0
    %799 = vmatprep.subr.bf16.mxu0 0
    %800 = vmatpush1.bf16.msra.mxu0 %v284
    %801 = vmatprep.subr.bf16.mxu0 0
    %802 = vmatpush1.bf16.msra.mxu0 %v283
    %803 = vmatprep.subr.bf16.mxu0 0
    %804 = vmatpush2.bf16.msra.mxu0 0
    %805 = vmatprep.subr.bf16.mxu0 0
    %806 = vmatpush2.bf16.msra.mxu0 0
    %807 = vmatprep.subr.bf16.mxu0 0
    %808 = vmatpush2.bf16.msra.mxu0 0
    %809 = vmatprep.subr.bf16.mxu0 0
    %810 = vmatpush2.bf16.msra.mxu0 0
    %811 = vmatprep.subr.bf16.mxu0 0
    %812 = vmatpush2.bf16.msra.mxu0 0
    %813 = vmatprep.subr.bf16.mxu0 0
    %814 = vmatpush2.bf16.msra.mxu0 0
    %815 = vmatprep.subr.bf16.mxu0 0
    %816 = vmatpush2.bf16.msra.mxu0 0
    %817 = vmatprep.subr.bf16.mxu0 0
    %818 = vmatpush2.bf16.msra.mxu0 0
    %819 = vmatprep.mubr.bf16.mxu0 0
    %820 = vmatmul.mubr.bf16.gmra.mxu0 %v785
    %v821 = vpop.f32.mrf.mxu0
    %v822 = vadd.f32 0.0, %v821
    %v823 = vpop.f32.mrf.mxu0
    %v824 = vpop.f32.mrf.mxu0
    %v825 = vpop.f32.mrf.mxu0
    %826 = vdwg.mxu0
    %v828 = vrot.slane %v822, 3
    %v829 = vrot.slane %v822, 4
    %v832 = vadd.f32 %v148, %v828
    %v833 = vadd.f32 %v152, %v829
    %v834 = vxor.u32 %v832, 2147483648
    %v835 = vxor.u32 %v833, 2147483648
    %v836 = vmul.f32 %v834, 1.442695
    %v837 = vpow.pop %v836
    %v838 = vmul.f32 %v835, 1.442695
    %v839 = vpow.pop %v838
    %v840 = vadd.f32 %v837, 1.0
    %v841 = vadd.f32 %v839, 1.0
    %v842 = vrcp.pop %v840
    %v843 = vmul.f32 1.0, %v842
    %v844 = vrcp.pop %v841
    %v845 = vmul.f32 1.0, %v844
    %v846 = vtanh.pop %v832
    %v847 = vtanh.pop %v833
    %v850 = vrot.slane %v621, 1
    %v851 = vrot.slane %v622, 1
    %v854 = vmul.f32 %v843, %v850
    %v855 = vmul.f32 %v845, %v851
    %858 = vrot.lane.b32.xlu0 %v846, 32
    %v859 = vpop.permute.xlu0 %858
    %860 = vrot.lane.b32.xlu0 %v847, 32
    %v861 = vpop.permute.xlu0 %860
    %v864 = vmul.f32 %v843, %v859
    %v865 = vmul.f32 %v845, %v861
    %868 = vrot.lane.b32.xlu0 %v864, 32
    %v869 = vpop.permute.xlu0 %868
    %870 = vrot.lane.b32.xlu0 %v865, 32
    %v871 = vpop.permute.xlu0 %870
    %v874 = vadd.f32 %v854, %v869
    %v875 = vadd.f32 %v855, %v871
    %v876 = vtanh.pop %v874
    %v877 = vtanh.pop %v875
    %880 = vrot.lane.b32.xlu0 %v876, 32
    %v881 = vpop.permute.xlu0 %880
    %882 = vrot.lane.b32.xlu0 %v877, 32
    %v883 = vpop.permute.xlu0 %882
    %v886 = vmul.f32 %v843, %v881
    %v887 = vmul.f32 %v845, %v883
    %890 = vrot.lane.b32.xlu0 %v886, 64
    %v891 = vpop.permute.xlu0 %890
    %892 = vrot.lane.b32.xlu0 %v887, 64
    %v893 = vpop.permute.xlu0 %892
    %vm896 = vcmask 259077
    %897 = vst.msk [vmem:[#allocation3] sm:$0x20] %vm896, %v891
    %898 = vst.msk [vmem:[#allocation3 + $0x8] sm:$0x20] %vm896, %v893
    %v899 = vpack.c.bf16 %v759, %v759
    %v900 = vpack.c.bf16 %v760, %v760
    %v903 = vunpack.c.l.b16 %v899
    %v904 = vunpack.c.l.b16 %v900
    %v905 = vrot.slane %v903, 2
    %v906 = vrot.slane %v904, 1
    %v907 = vsel %vm400, %v906, %v905
    %v908 = vpack.c.b16 %v907, %v907
    %909 = vrot.lane.b32.xlu0 %v908, 64
    %v910 = vpop.permute.xlu0 %909
    %v912 = vsel %vm166, %v910, 0
    %914 = vmatprep.subr.bf16.mxu0 0
    %915 = vmatpush1.bf16.msra.mxu0 0
    %916 = vmatprep.subr.bf16.mxu0 0
    %917 = vmatpush1.bf16.msra.mxu0 0
    %918 = vmatprep.subr.bf16.mxu0 0
    %919 = vmatpush1.bf16.msra.mxu0 0
    %920 = vmatprep.subr.bf16.mxu0 0
    %921 = vmatpush1.bf16.msra.mxu0 0
    %922 = vmatprep.subr.bf16.mxu0 0
    %923 = vmatpush1.bf16.msra.mxu0 0
    %924 = vmatprep.subr.bf16.mxu0 0
    %925 = vmatpush1.bf16.msra.mxu0 0
    %926 = vmatprep.subr.bf16.mxu0 0
    %927 = vmatpush1.bf16.msra.mxu0 %v163
    %928 = vmatprep.subr.bf16.mxu0 0
    %929 = vmatpush1.bf16.msra.mxu0 %v162
    %930 = vmatprep.subr.bf16.mxu0 0
    %931 = vmatpush2.bf16.msra.mxu0 0
    %932 = vmatprep.subr.bf16.mxu0 0
    %933 = vmatpush2.bf16.msra.mxu0 0
    %934 = vmatprep.subr.bf16.mxu0 0
    %935 = vmatpush2.bf16.msra.mxu0 0
    %936 = vmatprep.subr.bf16.mxu0 0
    %937 = vmatpush2.bf16.msra.mxu0 0
    %938 = vmatprep.subr.bf16.mxu0 0
    %939 = vmatpush2.bf16.msra.mxu0 0
    %940 = vmatprep.subr.bf16.mxu0 0
    %941 = vmatpush2.bf16.msra.mxu0 0
    %942 = vmatprep.subr.bf16.mxu0 0
    %943 = vmatpush2.bf16.msra.mxu0 0
    %944 = vmatprep.subr.bf16.mxu0 0
    %945 = vmatpush2.bf16.msra.mxu0 0
    %946 = vmatprep.mubr.bf16.mxu0 0
    %947 = vmatmul.mubr.bf16.gmra.mxu0 %v912
    %v948 = vpop.f32.mrf.mxu0
    %v949 = vadd.f32 0.0, %v948
    %v950 = vpop.f32.mrf.mxu0
    %v951 = vpop.f32.mrf.mxu0
    %v952 = vpop.f32.mrf.mxu0
    %953 = vdwg.mxu0
    %v955 = vrot.slane %v949, 5
    %v956 = vrot.slane %v949, 6
    %v959 = vadd.f32 %v146, %v955
    %v960 = vadd.f32 %v150, %v956
    %v961 = vxor.u32 %v959, 2147483648
    %v962 = vxor.u32 %v960, 2147483648
    %v963 = vmul.f32 %v961, 1.442695
    %v964 = vpow.pop %v963
    %v965 = vmul.f32 %v962, 1.442695
    %v966 = vpow.pop %v965
    %v967 = vadd.f32 %v964, 1.0
    %v968 = vadd.f32 %v966, 1.0
    %v969 = vrcp.pop %v967
    %v970 = vmul.f32 1.0, %v969
    %v971 = vrcp.pop %v968
    %v972 = vmul.f32 1.0, %v971
    %v973 = vtanh.pop %v959
    %v974 = vtanh.pop %v960
    %v977 = vrot.slane %v747, 7
    %v978 = vrot.slane %v748, 7
    %v981 = vmul.f32 %v970, %v977
    %v982 = vmul.f32 %v972, %v978
    %985 = vrot.lane.b32.xlu0 %v973, 32
    %v986 = vpop.permute.xlu0 %985
    %987 = vrot.lane.b32.xlu0 %v974, 32
    %v988 = vpop.permute.xlu0 %987
    %v991 = vmul.f32 %v970, %v986
    %v992 = vmul.f32 %v972, %v988
    %995 = vrot.lane.b32.xlu0 %v991, 32
    %v996 = vpop.permute.xlu0 %995
    %997 = vrot.lane.b32.xlu0 %v992, 32
    %v998 = vpop.permute.xlu0 %997
    %v1001 = vadd.f32 %v981, %v996
    %v1002 = vadd.f32 %v982, %v998
    %v1003 = vtanh.pop %v1001
    %v1004 = vtanh.pop %v1002
    %1007 = vrot.lane.b32.xlu0 %v1003, 32
    %v1008 = vpop.permute.xlu0 %1007
    %1009 = vrot.lane.b32.xlu0 %v1004, 32
    %v1010 = vpop.permute.xlu0 %1009
    %v1013 = vmul.f32 %v970, %v1008
    %v1014 = vmul.f32 %v972, %v1010
    %1017 = vrot.lane.b32.xlu0 %v1013, 64
    %v1018 = vpop.permute.xlu0 %1017
    %1019 = vrot.lane.b32.xlu0 %v1014, 64
    %v1020 = vpop.permute.xlu0 %1019
    %vm1023 = vcmask 257027
    %1024 = vst.msk [vmem:[#allocation2] sm:$0x8] %vm1023, %v1018
    %1025 = vst.msk [vmem:[#allocation2 + $0x8] sm:$0x8] %vm1023, %v1020
    %v1026 = vpack.c.bf16 %v886, %v886
    %v1027 = vpack.c.bf16 %v887, %v887
    %v1030 = vunpack.c.l.b16 %v1026
    %v1031 = vunpack.c.l.b16 %v1027
    %v1032 = vrot.slane %v1030, 5
    %v1033 = vrot.slane %v1031, 4
    %v1034 = vsel %vm400, %v1033, %v1032
    %v1035 = vpack.c.b16 %v1034, %v1034
    %1036 = vrot.lane.b32.xlu0 %v1035, 64
    %v1037 = vpop.permute.xlu0 %1036
    %v1039 = vsel %vm166, %v1037, 0
    %1041 = vmatprep.subr.bf16.mxu0 0
    %1042 = vmatpush1.bf16.msra.mxu0 0
    %1043 = vmatprep.subr.bf16.mxu0 0
    %1044 = vmatpush1.bf16.msra.mxu0 0
    %1045 = vmatprep.subr.bf16.mxu0 0
    %1046 = vmatpush1.bf16.msra.mxu0 0
    %1047 = vmatprep.subr.bf16.mxu0 0
    %1048 = vmatpush1.bf16.msra.mxu0 0
    %1049 = vmatprep.subr.bf16.mxu0 0
    %1050 = vmatpush1.bf16.msra.mxu0 0
    %1051 = vmatprep.subr.bf16.mxu0 0
    %1052 = vmatpush1.bf16.msra.mxu0 0
    %1053 = vmatprep.subr.bf16.mxu0 0
    %1054 = vmatpush1.bf16.msra.mxu0 %v284
    %1055 = vmatprep.subr.bf16.mxu0 0
    %1056 = vmatpush1.bf16.msra.mxu0 %v283
    %1057 = vmatprep.subr.bf16.mxu0 0
    %1058 = vmatpush2.bf16.msra.mxu0 0
    %1059 = vmatprep.subr.bf16.mxu0 0
    %1060 = vmatpush2.bf16.msra.mxu0 0
    %1061 = vmatprep.subr.bf16.mxu0 0
    %1062 = vmatpush2.bf16.msra.mxu0 0
    %1063 = vmatprep.subr.bf16.mxu0 0
    %1064 = vmatpush2.bf16.msra.mxu0 0
    %1065 = vmatprep.subr.bf16.mxu0 0
    %1066 = vmatpush2.bf16.msra.mxu0 0
    %1067 = vmatprep.subr.bf16.mxu0 0
    %1068 = vmatpush2.bf16.msra.mxu0 0
    %1069 = vmatprep.subr.bf16.mxu0 0
    %1070 = vmatpush2.bf16.msra.mxu0 0
    %1071 = vmatprep.subr.bf16.mxu0 0
    %1072 = vmatpush2.bf16.msra.mxu0 0
    %1073 = vmatprep.mubr.bf16.mxu0 0
    %1074 = vmatmul.mubr.bf16.gmra.mxu0 %v1039
    %v1075 = vpop.f32.mrf.mxu0
    %v1076 = vadd.f32 0.0, %v1075
    %v1077 = vpop.f32.mrf.mxu0
    %v1078 = vpop.f32.mrf.mxu0
    %v1079 = vpop.f32.mrf.mxu0
    %1080 = vdwg.mxu0
    %v1082 = vrot.slane %v1076, 4
    %v1083 = vrot.slane %v1076, 5
    %v1086 = vadd.f32 %v148, %v1082
    %v1087 = vadd.f32 %v152, %v1083
    %v1088 = vxor.u32 %v1086, 2147483648
    %v1089 = vxor.u32 %v1087, 2147483648
    %v1090 = vmul.f32 %v1088, 1.442695
    %v1091 = vpow.pop %v1090
    %v1092 = vmul.f32 %v1089, 1.442695
    %v1093 = vpow.pop %v1092
    %v1094 = vadd.f32 %v1091, 1.0
    %v1095 = vadd.f32 %v1093, 1.0
    %v1096 = vrcp.pop %v1094
    %v1097 = vmul.f32 1.0, %v1096
    %v1098 = vrcp.pop %v1095
    %v1099 = vmul.f32 1.0, %v1098
    %v1100 = vtanh.pop %v1086
    %v1101 = vtanh.pop %v1087
    %v1104 = vrot.slane %v874, 1
    %v1105 = vrot.slane %v875, 1
    %v1108 = vmul.f32 %v1097, %v1104
    %v1109 = vmul.f32 %v1099, %v1105
    %1112 = vrot.lane.b32.xlu0 %v1100, 32
    %v1113 = vpop.permute.xlu0 %1112
    %1114 = vrot.lane.b32.xlu0 %v1101, 32
    %v1115 = vpop.permute.xlu0 %1114
    %v1118 = vmul.f32 %v1097, %v1113
    %v1119 = vmul.f32 %v1099, %v1115
    %1122 = vrot.lane.b32.xlu0 %v1118, 32
    %v1123 = vpop.permute.xlu0 %1122
    %1124 = vrot.lane.b32.xlu0 %v1119, 32
    %v1125 = vpop.permute.xlu0 %1124
    %v1128 = vadd.f32 %v1108, %v1123
    %v1129 = vadd.f32 %v1109, %v1125
    %v1130 = vtanh.pop %v1128
    %v1131 = vtanh.pop %v1129
    %1134 = vrot.lane.b32.xlu0 %v1130, 32
    %v1135 = vpop.permute.xlu0 %1134
    %1136 = vrot.lane.b32.xlu0 %v1131, 32
    %v1137 = vpop.permute.xlu0 %1136
    %v1140 = vmul.f32 %v1097, %v1135
    %v1141 = vmul.f32 %v1099, %v1137
    %1144 = vrot.lane.b32.xlu0 %v1140, 64
    %v1145 = vpop.permute.xlu0 %1144
    %1146 = vrot.lane.b32.xlu0 %v1141, 64
    %v1147 = vpop.permute.xlu0 %1146
    %vm1150 = vcmask 258052
    %1151 = vst.msk [vmem:[#allocation3] sm:$0x10] %vm1150, %v1145
    %1152 = vst.msk [vmem:[#allocation3 + $0x8] sm:$0x10] %vm1150, %v1147
    %v1153 = vpack.c.bf16 %v1013, %v1013
    %v1154 = vpack.c.bf16 %v1014, %v1014
    %v1157 = vunpack.c.l.b16 %v1153
    %v1158 = vunpack.c.l.b16 %v1154
    %v1159 = vrot.slane %v1157, 3
    %v1160 = vrot.slane %v1158, 2
    %v1161 = vsel %vm400, %v1160, %v1159
    %v1162 = vpack.c.b16 %v1161, %v1161
    %1163 = vrot.lane.b32.xlu0 %v1162, 64
    %v1164 = vpop.permute.xlu0 %1163
    %v1166 = vsel %vm166, %v1164, 0
    %1168 = vmatprep.subr.bf16.mxu0 0
    %1169 = vmatpush1.bf16.msra.mxu0 0
    %1170 = vmatprep.subr.bf16.mxu0 0
    %1171 = vmatpush1.bf16.msra.mxu0 0
    %1172 = vmatprep.subr.bf16.mxu0 0
    %1173 = vmatpush1.bf16.msra.mxu0 0
    %1174 = vmatprep.subr.bf16.mxu0 0
    %1175 = vmatpush1.bf16.msra.mxu0 0
    %1176 = vmatprep.subr.bf16.mxu0 0
    %1177 = vmatpush1.bf16.msra.mxu0 0
    %1178 = vmatprep.subr.bf16.mxu0 0
    %1179 = vmatpush1.bf16.msra.mxu0 0
    %1180 = vmatprep.subr.bf16.mxu0 0
    %1181 = vmatpush1.bf16.msra.mxu0 %v163
    %1182 = vmatprep.subr.bf16.mxu0 0
    %1183 = vmatpush1.bf16.msra.mxu0 %v162
    %1184 = vmatprep.subr.bf16.mxu0 0
    %1185 = vmatpush2.bf16.msra.mxu0 0
    %1186 = vmatprep.subr.bf16.mxu0 0
    %1187 = vmatpush2.bf16.msra.mxu0 0
    %1188 = vmatprep.subr.bf16.mxu0 0
    %1189 = vmatpush2.bf16.msra.mxu0 0
    %1190 = vmatprep.subr.bf16.mxu0 0
    %1191 = vmatpush2.bf16.msra.mxu0 0
    %1192 = vmatprep.subr.bf16.mxu0 0
    %1193 = vmatpush2.bf16.msra.mxu0 0
    %1194 = vmatprep.subr.bf16.mxu0 0
    %1195 = vmatpush2.bf16.msra.mxu0 0
    %1196 = vmatprep.subr.bf16.mxu0 0
    %1197 = vmatpush2.bf16.msra.mxu0 0
    %1198 = vmatprep.subr.bf16.mxu0 0
    %1199 = vmatpush2.bf16.msra.mxu0 0
    %1200 = vmatprep.mubr.bf16.mxu0 0
    %1201 = vmatmul.mubr.bf16.gmra.mxu0 %v1166
    %v1202 = vpop.f32.mrf.mxu0
    %v1203 = vadd.f32 0.0, %v1202
    %v1204 = vpop.f32.mrf.mxu0
    %v1205 = vpop.f32.mrf.mxu0
    %v1206 = vpop.f32.mrf.mxu0
    %1207 = vdwg.mxu0
    %v1209 = vrot.slane %v1203, 4
    %v1210 = vrot.slane %v1203, 5
    %v1213 = vadd.f32 %v146, %v1209
    %v1214 = vadd.f32 %v150, %v1210
    %v1215 = vxor.u32 %v1213, 2147483648
    %v1216 = vxor.u32 %v1214, 2147483648
    %v1217 = vmul.f32 %v1215, 1.442695
    %v1218 = vpow.pop %v1217
    %v1219 = vmul.f32 %v1216, 1.442695
    %v1220 = vpow.pop %v1219
    %v1221 = vadd.f32 %v1218, 1.0
    %v1222 = vadd.f32 %v1220, 1.0
    %v1223 = vrcp.pop %v1221
    %v1224 = vmul.f32 1.0, %v1223
    %v1225 = vrcp.pop %v1222
    %v1226 = vmul.f32 1.0, %v1225
    %v1227 = vtanh.pop %v1213
    %v1228 = vtanh.pop %v1214
    %v1231 = vrot.slane %v1001, 7
    %v1232 = vrot.slane %v1002, 7
    %v1235 = vmul.f32 %v1224, %v1231
    %v1236 = vmul.f32 %v1226, %v1232
    %1239 = vrot.lane.b32.xlu0 %v1227, 32
    %v1240 = vpop.permute.xlu0 %1239
    %1241 = vrot.lane.b32.xlu0 %v1228, 32
    %v1242 = vpop.permute.xlu0 %1241
    %v1245 = vmul.f32 %v1224, %v1240
    %v1246 = vmul.f32 %v1226, %v1242
    %1249 = vrot.lane.b32.xlu0 %v1245, 32
    %v1250 = vpop.permute.xlu0 %1249
    %1251 = vrot.lane.b32.xlu0 %v1246, 32
    %v1252 = vpop.permute.xlu0 %1251
    %v1255 = vadd.f32 %v1235, %v1250
    %v1256 = vadd.f32 %v1236, %v1252
    %v1257 = vtanh.pop %v1255
    %v1258 = vtanh.pop %v1256
    %1261 = vrot.lane.b32.xlu0 %v1257, 32
    %v1262 = vpop.permute.xlu0 %1261
    %1263 = vrot.lane.b32.xlu0 %v1258, 32
    %v1264 = vpop.permute.xlu0 %1263
    %v1267 = vmul.f32 %v1224, %v1262
    %v1268 = vmul.f32 %v1226, %v1264
    %1271 = vrot.lane.b32.xlu0 %v1267, 64
    %v1272 = vpop.permute.xlu0 %1271
    %1273 = vrot.lane.b32.xlu0 %v1268, 64
    %v1274 = vpop.permute.xlu0 %1273
    %1277 = vst.msk [vmem:[#allocation2] sm:$0x10] %vm1150, %v1272
    %1278 = vst.msk [vmem:[#allocation2 + $0x8] sm:$0x10] %vm1150, %v1274
    %v1279 = vpack.c.bf16 %v1140, %v1140
    %v1280 = vpack.c.bf16 %v1141, %v1141
    %v1283 = vunpack.c.l.b16 %v1279
    %v1284 = vunpack.c.l.b16 %v1280
    %v1285 = vrot.slane %v1283, 4
    %v1286 = vrot.slane %v1284, 3
    %v1287 = vsel %vm400, %v1286, %v1285
    %v1288 = vpack.c.b16 %v1287, %v1287
    %1289 = vrot.lane.b32.xlu0 %v1288, 64
    %v1290 = vpop.permute.xlu0 %1289
    %v1292 = vsel %vm166, %v1290, 0
    %1294 = vmatprep.subr.bf16.mxu0 0
    %1295 = vmatpush1.bf16.msra.mxu0 0
    %1296 = vmatprep.subr.bf16.mxu0 0
    %1297 = vmatpush1.bf16.msra.mxu0 0
    %1298 = vmatprep.subr.bf16.mxu0 0
    %1299 = vmatpush1.bf16.msra.mxu0 0
    %1300 = vmatprep.subr.bf16.mxu0 0
    %1301 = vmatpush1.bf16.msra.mxu0 0
    %1302 = vmatprep.subr.bf16.mxu0 0
    %1303 = vmatpush1.bf16.msra.mxu0 0
    %1304 = vmatprep.subr.bf16.mxu0 0
    %1305 = vmatpush1.bf16.msra.mxu0 0
    %1306 = vmatprep.subr.bf16.mxu0 0
    %1307 = vmatpush1.bf16.msra.mxu0 %v284
    %1308 = vmatprep.subr.bf16.mxu0 0
    %1309 = vmatpush1.bf16.msra.mxu0 %v283
    %1310 = vmatprep.subr.bf16.mxu0 0
    %1311 = vmatpush2.bf16.msra.mxu0 0
    %1312 = vmatprep.subr.bf16.mxu0 0
    %1313 = vmatpush2.bf16.msra.mxu0 0
    %1314 = vmatprep.subr.bf16.mxu0 0
    %1315 = vmatpush2.bf16.msra.mxu0 0
    %1316 = vmatprep.subr.bf16.mxu0 0
    %1317 = vmatpush2.bf16.msra.mxu0 0
    %1318 = vmatprep.subr.bf16.mxu0 0
    %1319 = vmatpush2.bf16.msra.mxu0 0
    %1320 = vmatprep.subr.bf16.mxu0 0
    %1321 = vmatpush2.bf16.msra.mxu0 0
    %1322 = vmatprep.subr.bf16.mxu0 0
    %1323 = vmatpush2.bf16.msra.mxu0 0
    %1324 = vmatprep.subr.bf16.mxu0 0
    %1325 = vmatpush2.bf16.msra.mxu0 0
    %1326 = vmatprep.mubr.bf16.mxu0 0
    %1327 = vmatmul.mubr.bf16.gmra.mxu0 %v1292
    %v1328 = vpop.f32.mrf.mxu0
    %v1329 = vadd.f32 0.0, %v1328
    %v1330 = vpop.f32.mrf.mxu0
    %v1331 = vpop.f32.mrf.mxu0
    %v1332 = vpop.f32.mrf.mxu0
    %1333 = vdwg.mxu0
    %v1335 = vrot.slane %v1329, 5
    %v1336 = vrot.slane %v1329, 6
    %v1339 = vadd.f32 %v148, %v1335
    %v1340 = vadd.f32 %v152, %v1336
    %v1341 = vxor.u32 %v1339, 2147483648
    %v1342 = vxor.u32 %v1340, 2147483648
    %v1343 = vmul.f32 %v1341, 1.442695
    %v1344 = vpow.pop %v1343
    %v1345 = vmul.f32 %v1342, 1.442695
    %v1346 = vpow.pop %v1345
    %v1347 = vadd.f32 %v1344, 1.0
    %v1348 = vadd.f32 %v1346, 1.0
    %v1349 = vrcp.pop %v1347
    %v1350 = vmul.f32 1.0, %v1349
    %v1351 = vrcp.pop %v1348
    %v1352 = vmul.f32 1.0, %v1351
    %v1353 = vtanh.pop %v1339
    %v1354 = vtanh.pop %v1340
    %v1357 = vrot.slane %v1128, 1
    %v1358 = vrot.slane %v1129, 1
    %v1361 = vmul.f32 %v1350, %v1357
    %v1362 = vmul.f32 %v1352, %v1358
    %1365 = vrot.lane.b32.xlu0 %v1353, 32
    %v1366 = vpop.permute.xlu0 %1365
    %1367 = vrot.lane.b32.xlu0 %v1354, 32
    %v1368 = vpop.permute.xlu0 %1367
    %v1371 = vmul.f32 %v1350, %v1366
    %v1372 = vmul.f32 %v1352, %v1368
    %1375 = vrot.lane.b32.xlu0 %v1371, 32
    %v1376 = vpop.permute.xlu0 %1375
    %1377 = vrot.lane.b32.xlu0 %v1372, 32
    %v1378 = vpop.permute.xlu0 %1377
    %v1381 = vadd.f32 %v1361, %v1376
    %v1382 = vadd.f32 %v1362, %v1378
    %v1383 = vtanh.pop %v1381
    %v1384 = vtanh.pop %v1382
    %1387 = vrot.lane.b32.xlu0 %v1383, 32
    %v1388 = vpop.permute.xlu0 %1387
    %1389 = vrot.lane.b32.xlu0 %v1384, 32
    %v1390 = vpop.permute.xlu0 %1389
    %v1393 = vmul.f32 %v1350, %v1388
    %v1394 = vmul.f32 %v1352, %v1390
    %1397 = vrot.lane.b32.xlu0 %v1393, 64
    %v1398 = vpop.permute.xlu0 %1397
    %1399 = vrot.lane.b32.xlu0 %v1394, 64
    %v1400 = vpop.permute.xlu0 %1399
    %1403 = vst.msk [vmem:[#allocation3] sm:$0x8] %vm1023, %v1398
    %1404 = vst.msk [vmem:[#allocation3 + $0x8] sm:$0x8] %vm1023, %v1400
    %v1405 = vpack.c.bf16 %v1267, %v1267
    %v1406 = vpack.c.bf16 %v1268, %v1268
    %v1409 = vunpack.c.l.b16 %v1405
    %v1410 = vunpack.c.l.b16 %v1406
    %v1411 = vrot.slane %v1409, 4
    %v1412 = vrot.slane %v1410, 3
    %v1413 = vsel %vm400, %v1412, %v1411
    %v1414 = vpack.c.b16 %v1413, %v1413
    %1415 = vrot.lane.b32.xlu0 %v1414, 64
    %v1416 = vpop.permute.xlu0 %1415
    %v1418 = vsel %vm166, %v1416, 0
    %1420 = vmatprep.subr.bf16.mxu0 0
    %1421 = vmatpush1.bf16.msra.mxu0 0
    %1422 = vmatprep.subr.bf16.mxu0 0
    %1423 = vmatpush1.bf16.msra.mxu0 0
    %1424 = vmatprep.subr.bf16.mxu0 0
    %1425 = vmatpush1.bf16.msra.mxu0 0
    %1426 = vmatprep.subr.bf16.mxu0 0
    %1427 = vmatpush1.bf16.msra.mxu0 0
    %1428 = vmatprep.subr.bf16.mxu0 0
    %1429 = vmatpush1.bf16.msra.mxu0 0
    %1430 = vmatprep.subr.bf16.mxu0 0
    %1431 = vmatpush1.bf16.msra.mxu0 0
    %1432 = vmatprep.subr.bf16.mxu0 0
    %1433 = vmatpush1.bf16.msra.mxu0 %v163
    %1434 = vmatprep.subr.bf16.mxu0 0
    %1435 = vmatpush1.bf16.msra.mxu0 %v162
    %1436 = vmatprep.subr.bf16.mxu0 0
    %1437 = vmatpush2.bf16.msra.mxu0 0
    %1438 = vmatprep.subr.bf16.mxu0 0
    %1439 = vmatpush2.bf16.msra.mxu0 0
    %1440 = vmatprep.subr.bf16.mxu0 0
    %1441 = vmatpush2.bf16.msra.mxu0 0
    %1442 = vmatprep.subr.bf16.mxu0 0
    %1443 = vmatpush2.bf16.msra.mxu0 0
    %1444 = vmatprep.subr.bf16.mxu0 0
    %1445 = vmatpush2.bf16.msra.mxu0 0
    %1446 = vmatprep.subr.bf16.mxu0 0
    %1447 = vmatpush2.bf16.msra.mxu0 0
    %1448 = vmatprep.subr.bf16.mxu0 0
    %1449 = vmatpush2.bf16.msra.mxu0 0
    %1450 = vmatprep.subr.bf16.mxu0 0
    %1451 = vmatpush2.bf16.msra.mxu0 0
    %1452 = vmatprep.mubr.bf16.mxu0 0
    %1453 = vmatmul.mubr.bf16.gmra.mxu0 %v1418
    %v1454 = vpop.f32.mrf.mxu0
    %v1455 = vadd.f32 0.0, %v1454
    %v1456 = vpop.f32.mrf.mxu0
    %v1457 = vpop.f32.mrf.mxu0
    %v1458 = vpop.f32.mrf.mxu0
    %1459 = vdwg.mxu0
    %v1461 = vrot.slane %v1455, 3
    %v1462 = vrot.slane %v1455, 4
    %v1465 = vadd.f32 %v146, %v1461
    %v1466 = vadd.f32 %v150, %v1462
    %v1467 = vxor.u32 %v1465, 2147483648
    %v1468 = vxor.u32 %v1466, 2147483648
    %v1469 = vmul.f32 %v1467, 1.442695
    %v1470 = vpow.pop %v1469
    %v1471 = vmul.f32 %v1468, 1.442695
    %v1472 = vpow.pop %v1471
    %v1473 = vadd.f32 %v1470, 1.0
    %v1474 = vadd.f32 %v1472, 1.0
    %v1475 = vrcp.pop %v1473
    %v1476 = vmul.f32 1.0, %v1475
    %v1477 = vrcp.pop %v1474
    %v1478 = vmul.f32 1.0, %v1477
    %v1479 = vtanh.pop %v1465
    %v1480 = vtanh.pop %v1466
    %v1483 = vrot.slane %v1255, 7
    %v1484 = vrot.slane %v1256, 7
    %v1487 = vmul.f32 %v1476, %v1483
    %v1488 = vmul.f32 %v1478, %v1484
    %1491 = vrot.lane.b32.xlu0 %v1479, 32
    %v1492 = vpop.permute.xlu0 %1491
    %1493 = vrot.lane.b32.xlu0 %v1480, 32
    %v1494 = vpop.permute.xlu0 %1493
    %v1497 = vmul.f32 %v1476, %v1492
    %v1498 = vmul.f32 %v1478, %v1494
    %1501 = vrot.lane.b32.xlu0 %v1497, 32
    %v1502 = vpop.permute.xlu0 %1501
    %1503 = vrot.lane.b32.xlu0 %v1498, 32
    %v1504 = vpop.permute.xlu0 %1503
    %v1507 = vadd.f32 %v1487, %v1502
    %v1508 = vadd.f32 %v1488, %v1504
    %v1509 = vtanh.pop %v1507
    %v1510 = vtanh.pop %v1508
    %1513 = vrot.lane.b32.xlu0 %v1509, 32
    %v1514 = vpop.permute.xlu0 %1513
    %1515 = vrot.lane.b32.xlu0 %v1510, 32
    %v1516 = vpop.permute.xlu0 %1515
    %v1519 = vmul.f32 %v1476, %v1514
    %v1520 = vmul.f32 %v1478, %v1516
    %1523 = vrot.lane.b32.xlu0 %v1519, 64
    %v1524 = vpop.permute.xlu0 %1523
    %1525 = vrot.lane.b32.xlu0 %v1520, 64
    %v1526 = vpop.permute.xlu0 %1525
    %1529 = vst.msk [vmem:[#allocation2] sm:$0x20] %vm896, %v1524
    %1530 = vst.msk [vmem:[#allocation2 + $0x8] sm:$0x20] %vm896, %v1526
    %v1531 = vpack.c.bf16 %v1393, %v1393
    %v1532 = vpack.c.bf16 %v1394, %v1394
    %v1535 = vunpack.c.l.b16 %v1531
    %v1536 = vunpack.c.l.b16 %v1532
    %v1537 = vrot.slane %v1535, 3
    %v1538 = vrot.slane %v1536, 2
    %v1539 = vsel %vm400, %v1538, %v1537
    %v1540 = vpack.c.b16 %v1539, %v1539
    %1541 = vrot.lane.b32.xlu0 %v1540, 64
    %v1542 = vpop.permute.xlu0 %1541
    %v1544 = vsel %vm166, %v1542, 0
    %1546 = vmatprep.subr.bf16.mxu0 0
    %1547 = vmatpush1.bf16.msra.mxu0 0
    %1548 = vmatprep.subr.bf16.mxu0 0
    %1549 = vmatpush1.bf16.msra.mxu0 0
    %1550 = vmatprep.subr.bf16.mxu0 0
    %1551 = vmatpush1.bf16.msra.mxu0 0
    %1552 = vmatprep.subr.bf16.mxu0 0
    %1553 = vmatpush1.bf16.msra.mxu0 0
    %1554 = vmatprep.subr.bf16.mxu0 0
    %1555 = vmatpush1.bf16.msra.mxu0 0
    %1556 = vmatprep.subr.bf16.mxu0 0
    %1557 = vmatpush1.bf16.msra.mxu0 0
    %1558 = vmatprep.subr.bf16.mxu0 0
    %1559 = vmatpush1.bf16.msra.mxu0 %v284
    %1560 = vmatprep.subr.bf16.mxu0 0
    %1561 = vmatpush1.bf16.msra.mxu0 %v283
    %1562 = vmatprep.subr.bf16.mxu0 0
    %1563 = vmatpush2.bf16.msra.mxu0 0
    %1564 = vmatprep.subr.bf16.mxu0 0
    %1565 = vmatpush2.bf16.msra.mxu0 0
    %1566 = vmatprep.subr.bf16.mxu0 0
    %1567 = vmatpush2.bf16.msra.mxu0 0
    %1568 = vmatprep.subr.bf16.mxu0 0
    %1569 = vmatpush2.bf16.msra.mxu0 0
    %1570 = vmatprep.subr.bf16.mxu0 0
    %1571 = vmatpush2.bf16.msra.mxu0 0
    %1572 = vmatprep.subr.bf16.mxu0 0
    %1573 = vmatpush2.bf16.msra.mxu0 0
    %1574 = vmatprep.subr.bf16.mxu0 0
    %1575 = vmatpush2.bf16.msra.mxu0 0
    %1576 = vmatprep.subr.bf16.mxu0 0
    %1577 = vmatpush2.bf16.msra.mxu0 0
    %1578 = vmatprep.mubr.bf16.mxu0 0
    %1579 = vmatmul.mubr.bf16.gmra.mxu0 %v1544
    %v1580 = vpop.f32.mrf.mxu0
    %v1581 = vadd.f32 0.0, %v1580
    %v1582 = vpop.f32.mrf.mxu0
    %v1583 = vpop.f32.mrf.mxu0
    %v1584 = vpop.f32.mrf.mxu0
    %1585 = vdwg.mxu0
    %v1587 = vrot.slane %v1581, 6
    %v1588 = vrot.slane %v1581, 7
    %v1591 = vadd.f32 %v148, %v1587
    %v1592 = vadd.f32 %v152, %v1588
    %v1593 = vxor.u32 %v1591, 2147483648
    %v1594 = vxor.u32 %v1592, 2147483648
    %v1595 = vmul.f32 %v1593, 1.442695
    %v1596 = vpow.pop %v1595
    %v1597 = vmul.f32 %v1594, 1.442695
    %v1598 = vpow.pop %v1597
    %v1599 = vadd.f32 %v1596, 1.0
    %v1600 = vadd.f32 %v1598, 1.0
    %v1601 = vrcp.pop %v1599
    %v1602 = vmul.f32 1.0, %v1601
    %v1603 = vrcp.pop %v1600
    %v1604 = vmul.f32 1.0, %v1603
    %v1605 = vtanh.pop %v1591
    %v1606 = vtanh.pop %v1592
    %v1609 = vrot.slane %v1381, 1
    %v1610 = vrot.slane %v1382, 1
    %v1613 = vmul.f32 %v1602, %v1609
    %v1614 = vmul.f32 %v1604, %v1610
    %1617 = vrot.lane.b32.xlu0 %v1605, 32
    %v1618 = vpop.permute.xlu0 %1617
    %1619 = vrot.lane.b32.xlu0 %v1606, 32
    %v1620 = vpop.permute.xlu0 %1619
    %v1623 = vmul.f32 %v1602, %v1618
    %v1624 = vmul.f32 %v1604, %v1620
    %1627 = vrot.lane.b32.xlu0 %v1623, 32
    %v1628 = vpop.permute.xlu0 %1627
    %1629 = vrot.lane.b32.xlu0 %v1624, 32
    %v1630 = vpop.permute.xlu0 %1629
    %v1633 = vadd.f32 %v1613, %v1628
    %v1634 = vadd.f32 %v1614, %v1630
    %v1635 = vtanh.pop %v1633
    %v1636 = vtanh.pop %v1634
    %1639 = vrot.lane.b32.xlu0 %v1635, 32
    %v1640 = vpop.permute.xlu0 %1639
    %1641 = vrot.lane.b32.xlu0 %v1636, 32
    %v1642 = vpop.permute.xlu0 %1641
    %v1645 = vmul.f32 %v1602, %v1640
    %v1646 = vmul.f32 %v1604, %v1642
    %1649 = vrot.lane.b32.xlu0 %v1645, 64
    %v1650 = vpop.permute.xlu0 %1649
    %1651 = vrot.lane.b32.xlu0 %v1646, 64
    %v1652 = vpop.permute.xlu0 %1651
    %1655 = vst.msk [vmem:[#allocation3] sm:$0x4] %vm769, %v1650
    %1656 = vst.msk [vmem:[#allocation3 + $0x8] sm:$0x4] %vm769, %v1652
    %v1657 = vpack.c.bf16 %v1519, %v1519
    %v1658 = vpack.c.bf16 %v1520, %v1520
    %v1661 = vunpack.c.l.b16 %v1657
    %v1662 = vunpack.c.l.b16 %v1658
    %v1663 = vrot.slane %v1661, 5
    %v1664 = vrot.slane %v1662, 4
    %v1665 = vsel %vm400, %v1664, %v1663
    %v1666 = vpack.c.b16 %v1665, %v1665
    %1667 = vrot.lane.b32.xlu0 %v1666, 64
    %v1668 = vpop.permute.xlu0 %1667
    %v1670 = vsel %vm166, %v1668, 0
    %1672 = vmatprep.subr.bf16.mxu0 0
    %1673 = vmatpush1.bf16.msra.mxu0 0
    %1674 = vmatprep.subr.bf16.mxu0 0
    %1675 = vmatpush1.bf16.msra.mxu0 0
    %1676 = vmatprep.subr.bf16.mxu0 0
    %1677 = vmatpush1.bf16.msra.mxu0 0
    %1678 = vmatprep.subr.bf16.mxu0 0
    %1679 = vmatpush1.bf16.msra.mxu0 0
    %1680 = vmatprep.subr.bf16.mxu0 0
    %1681 = vmatpush1.bf16.msra.mxu0 0
    %1682 = vmatprep.subr.bf16.mxu0 0
    %1683 = vmatpush1.bf16.msra.mxu0 0
    %1684 = vmatprep.subr.bf16.mxu0 0
    %1685 = vmatpush1.bf16.msra.mxu0 %v163
    %1686 = vmatprep.subr.bf16.mxu0 0
    %1687 = vmatpush1.bf16.msra.mxu0 %v162
    %1688 = vmatprep.subr.bf16.mxu0 0
    %1689 = vmatpush2.bf16.msra.mxu0 0
    %1690 = vmatprep.subr.bf16.mxu0 0
    %1691 = vmatpush2.bf16.msra.mxu0 0
    %1692 = vmatprep.subr.bf16.mxu0 0
    %1693 = vmatpush2.bf16.msra.mxu0 0
    %1694 = vmatprep.subr.bf16.mxu0 0
    %1695 = vmatpush2.bf16.msra.mxu0 0
    %1696 = vmatprep.subr.bf16.mxu0 0
    %1697 = vmatpush2.bf16.msra.mxu0 0
    %1698 = vmatprep.subr.bf16.mxu0 0
    %1699 = vmatpush2.bf16.msra.mxu0 0
    %1700 = vmatprep.subr.bf16.mxu0 0
    %1701 = vmatpush2.bf16.msra.mxu0 0
    %1702 = vmatprep.subr.bf16.mxu0 0
    %1703 = vmatpush2.bf16.msra.mxu0 0
    %1704 = vmatprep.mubr.bf16.mxu0 0
    %1705 = vmatmul.mubr.bf16.gmra.mxu0 %v1670
    %v1706 = vpop.f32.mrf.mxu0
    %v1707 = vadd.f32 0.0, %v1706
    %v1708 = vpop.f32.mrf.mxu0
    %v1709 = vpop.f32.mrf.mxu0
    %v1710 = vpop.f32.mrf.mxu0
    %1711 = vdwg.mxu0
    %v1713 = vrot.slane %v1707, 2
    %v1714 = vrot.slane %v1707, 3
    %v1717 = vadd.f32 %v146, %v1713
    %v1718 = vadd.f32 %v150, %v1714
    %v1719 = vxor.u32 %v1717, 2147483648
    %v1720 = vxor.u32 %v1718, 2147483648
    %v1721 = vmul.f32 %v1719, 1.442695
    %v1722 = vpow.pop %v1721
    %v1723 = vmul.f32 %v1720, 1.442695
    %v1724 = vpow.pop %v1723
    %v1725 = vadd.f32 %v1722, 1.0
    %v1726 = vadd.f32 %v1724, 1.0
    %v1727 = vrcp.pop %v1725
    %v1728 = vmul.f32 1.0, %v1727
    %v1729 = vrcp.pop %v1726
    %v1730 = vmul.f32 1.0, %v1729
    %v1731 = vtanh.pop %v1717
    %v1732 = vtanh.pop %v1718
    %v1735 = vrot.slane %v1507, 7
    %v1736 = vrot.slane %v1508, 7
    %v1739 = vmul.f32 %v1728, %v1735
    %v1740 = vmul.f32 %v1730, %v1736
    %1743 = vrot.lane.b32.xlu0 %v1731, 32
    %v1744 = vpop.permute.xlu0 %1743
    %1745 = vrot.lane.b32.xlu0 %v1732, 32
    %v1746 = vpop.permute.xlu0 %1745
    %v1749 = vmul.f32 %v1728, %v1744
    %v1750 = vmul.f32 %v1730, %v1746
    %1753 = vrot.lane.b32.xlu0 %v1749, 32
    %v1754 = vpop.permute.xlu0 %1753
    %1755 = vrot.lane.b32.xlu0 %v1750, 32
    %v1756 = vpop.permute.xlu0 %1755
    %v1759 = vadd.f32 %v1739, %v1754
    %v1760 = vadd.f32 %v1740, %v1756
    %v1761 = vtanh.pop %v1759
    %v1762 = vtanh.pop %v1760
    %1765 = vrot.lane.b32.xlu0 %v1761, 32
    %v1766 = vpop.permute.xlu0 %1765
    %1767 = vrot.lane.b32.xlu0 %v1762, 32
    %v1768 = vpop.permute.xlu0 %1767
    %v1771 = vmul.f32 %v1728, %v1766
    %v1772 = vmul.f32 %v1730, %v1768
    %1775 = vrot.lane.b32.xlu0 %v1771, 64
    %v1776 = vpop.permute.xlu0 %1775
    %1777 = vrot.lane.b32.xlu0 %v1772, 64
    %v1778 = vpop.permute.xlu0 %1777
    %1781 = vst.msk [vmem:[#allocation2] sm:$0x40] %vm643, %v1776
    %1782 = vst.msk [vmem:[#allocation2 + $0x8] sm:$0x40] %vm643, %v1778
    %v1783 = vpack.c.bf16 %v1645, %v1645
    %v1784 = vpack.c.bf16 %v1646, %v1646
    %v1787 = vunpack.c.l.b16 %v1783
    %v1788 = vunpack.c.l.b16 %v1784
    %v1789 = vrot.slane %v1787, 2
    %v1790 = vrot.slane %v1788, 1
    %v1791 = vsel %vm400, %v1790, %v1789
    %v1792 = vpack.c.b16 %v1791, %v1791
    %1793 = vrot.lane.b32.xlu0 %v1792, 64
    %v1794 = vpop.permute.xlu0 %1793
    %v1796 = vsel %vm166, %v1794, 0
    %1798 = vmatprep.subr.bf16.mxu0 0
    %1799 = vmatpush1.bf16.msra.mxu0 0
    %1800 = vmatprep.subr.bf16.mxu0 0
    %1801 = vmatpush1.bf16.msra.mxu0 0
    %1802 = vmatprep.subr.bf16.mxu0 0
    %1803 = vmatpush1.bf16.msra.mxu0 0
    %1804 = vmatprep.subr.bf16.mxu0 0
    %1805 = vmatpush1.bf16.msra.mxu0 0
    %1806 = vmatprep.subr.bf16.mxu0 0
    %1807 = vmatpush1.bf16.msra.mxu0 0
    %1808 = vmatprep.subr.bf16.mxu0 0
    %1809 = vmatpush1.bf16.msra.mxu0 0
    %1810 = vmatprep.subr.bf16.mxu0 0
    %1811 = vmatpush1.bf16.msra.mxu0 %v284
    %1812 = vmatprep.subr.bf16.mxu0 0
    %1813 = vmatpush1.bf16.msra.mxu0 %v283
    %1814 = vmatprep.subr.bf16.mxu0 0
    %1815 = vmatpush2.bf16.msra.mxu0 0
    %1816 = vmatprep.subr.bf16.mxu0 0
    %1817 = vmatpush2.bf16.msra.mxu0 0
    %1818 = vmatprep.subr.bf16.mxu0 0
    %1819 = vmatpush2.bf16.msra.mxu0 0
    %1820 = vmatprep.subr.bf16.mxu0 0
    %1821 = vmatpush2.bf16.msra.mxu0 0
    %1822 = vmatprep.subr.bf16.mxu0 0
    %1823 = vmatpush2.bf16.msra.mxu0 0
    %1824 = vmatprep.subr.bf16.mxu0 0
    %1825 = vmatpush2.bf16.msra.mxu0 0
    %1826 = vmatprep.subr.bf16.mxu0 0
    %1827 = vmatpush2.bf16.msra.mxu0 0
    %1828 = vmatprep.subr.bf16.mxu0 0
    %1829 = vmatpush2.bf16.msra.mxu0 0
    %1830 = vmatprep.mubr.bf16.mxu0 0
    %1831 = vmatmul.mubr.bf16.gmra.mxu0 %v1796
    %v1832 = vpop.f32.mrf.mxu0
    %v1833 = vadd.f32 0.0, %v1832
    %v1834 = vpop.f32.mrf.mxu0
    %v1835 = vpop.f32.mrf.mxu0
    %v1836 = vpop.f32.mrf.mxu0
    %1837 = vdwg.mxu0
    %v1839 = vrot.slane %v1833, 7
    %v1842 = vadd.f32 %v148, %v1839
    %v1843 = vadd.f32 %v152, %v1833
    %v1844 = vxor.u32 %v1842, 2147483648
    %v1845 = vxor.u32 %v1843, 2147483648
    %v1846 = vmul.f32 %v1844, 1.442695
    %v1847 = vpow.pop %v1846
    %v1848 = vmul.f32 %v1845, 1.442695
    %v1849 = vpow.pop %v1848
    %v1850 = vadd.f32 %v1847, 1.0
    %v1851 = vadd.f32 %v1849, 1.0
    %v1852 = vrcp.pop %v1850
    %v1853 = vmul.f32 1.0, %v1852
    %v1854 = vrcp.pop %v1851
    %v1855 = vmul.f32 1.0, %v1854
    %v1856 = vtanh.pop %v1842
    %v1857 = vtanh.pop %v1843
    %v1860 = vrot.slane %v1633, 1
    %v1861 = vrot.slane %v1634, 1
    %v1864 = vmul.f32 %v1853, %v1860
    %v1865 = vmul.f32 %v1855, %v1861
    %1868 = vrot.lane.b32.xlu0 %v1856, 32
    %v1869 = vpop.permute.xlu0 %1868
    %1870 = vrot.lane.b32.xlu0 %v1857, 32
    %v1871 = vpop.permute.xlu0 %1870
    %v1874 = vmul.f32 %v1853, %v1869
    %v1875 = vmul.f32 %v1855, %v1871
    %1878 = vrot.lane.b32.xlu0 %v1874, 32
    %v1879 = vpop.permute.xlu0 %1878
    %1880 = vrot.lane.b32.xlu0 %v1875, 32
    %v1881 = vpop.permute.xlu0 %1880
    %v1884 = vadd.f32 %v1864, %v1879
    %v1885 = vadd.f32 %v1865, %v1881
    %v1886 = vtanh.pop %v1884
    %v1887 = vtanh.pop %v1885
    %1890 = vrot.lane.b32.xlu0 %v1886, 32
    %v1891 = vpop.permute.xlu0 %1890
    %1892 = vrot.lane.b32.xlu0 %v1887, 32
    %v1893 = vpop.permute.xlu0 %1892
    %v1896 = vmul.f32 %v1853, %v1891
    %v1897 = vmul.f32 %v1855, %v1893
    %1900 = vrot.lane.b32.xlu0 %v1896, 64
    %v1901 = vpop.permute.xlu0 %1900
    %1902 = vrot.lane.b32.xlu0 %v1897, 64
    %v1903 = vpop.permute.xlu0 %1902
    %1906 = vst.msk [vmem:[#allocation3] sm:$0x2] %vm516, %v1901
    %1907 = vst.msk [vmem:[#allocation3 + $0x8] sm:$0x2] %vm516, %v1903
    %v1908 = vpack.c.bf16 %v1771, %v1771
    %v1909 = vpack.c.bf16 %v1772, %v1772
    %v1912 = vunpack.c.l.b16 %v1908
    %v1913 = vunpack.c.l.b16 %v1909
    %v1914 = vrot.slane %v1912, 6
    %v1915 = vrot.slane %v1913, 5
    %v1916 = vsel %vm400, %v1915, %v1914
    %v1917 = vpack.c.b16 %v1916, %v1916
    %1918 = vrot.lane.b32.xlu0 %v1917, 64
    %v1919 = vpop.permute.xlu0 %1918
    %v1921 = vsel %vm166, %v1919, 0
    %1923 = vmatprep.subr.bf16.mxu0 0
    %1924 = vmatpush1.bf16.msra.mxu0 0
    %1925 = vmatprep.subr.bf16.mxu0 0
    %1926 = vmatpush1.bf16.msra.mxu0 0
    %1927 = vmatprep.subr.bf16.mxu0 0
    %1928 = vmatpush1.bf16.msra.mxu0 0
    %1929 = vmatprep.subr.bf16.mxu0 0
    %1930 = vmatpush1.bf16.msra.mxu0 0
    %1931 = vmatprep.subr.bf16.mxu0 0
    %1932 = vmatpush1.bf16.msra.mxu0 0
    %1933 = vmatprep.subr.bf16.mxu0 0
    %1934 = vmatpush1.bf16.msra.mxu0 0
    %1935 = vmatprep.subr.bf16.mxu0 0
    %1936 = vmatpush1.bf16.msra.mxu0 %v163
    %1937 = vmatprep.subr.bf16.mxu0 0
    %1938 = vmatpush1.bf16.msra.mxu0 %v162
    %1939 = vmatprep.subr.bf16.mxu0 0
    %1940 = vmatpush2.bf16.msra.mxu0 0
    %1941 = vmatprep.subr.bf16.mxu0 0
    %1942 = vmatpush2.bf16.msra.mxu0 0
    %1943 = vmatprep.subr.bf16.mxu0 0
    %1944 = vmatpush2.bf16.msra.mxu0 0
    %1945 = vmatprep.subr.bf16.mxu0 0
    %1946 = vmatpush2.bf16.msra.mxu0 0
    %1947 = vmatprep.subr.bf16.mxu0 0
    %1948 = vmatpush2.bf16.msra.mxu0 0
    %1949 = vmatprep.subr.bf16.mxu0 0
    %1950 = vmatpush2.bf16.msra.mxu0 0
    %1951 = vmatprep.subr.bf16.mxu0 0
    %1952 = vmatpush2.bf16.msra.mxu0 0
    %1953 = vmatprep.subr.bf16.mxu0 0
    %1954 = vmatpush2.bf16.msra.mxu0 0
    %1955 = vmatprep.mubr.bf16.mxu0 0
    %1956 = vmatmul.mubr.bf16.gmra.mxu0 %v1921
    %v1957 = vpop.f32.mrf.mxu0
    %v1958 = vadd.f32 0.0, %v1957
    %v1959 = vpop.f32.mrf.mxu0
    %v1960 = vpop.f32.mrf.mxu0
    %v1961 = vpop.f32.mrf.mxu0
    %1962 = vdwg.mxu0
    %v1964 = vrot.slane %v1958, 1
    %v1965 = vrot.slane %v1958, 2
    %v1968 = vadd.f32 %v146, %v1964
    %v1969 = vadd.f32 %v150, %v1965
    %v1970 = vxor.u32 %v1968, 2147483648
    %v1971 = vxor.u32 %v1969, 2147483648
    %v1972 = vmul.f32 %v1970, 1.442695
    %v1973 = vpow.pop %v1972
    %v1974 = vmul.f32 %v1971, 1.442695
    %v1975 = vpow.pop %v1974
    %v1976 = vadd.f32 %v1973, 1.0
    %v1977 = vadd.f32 %v1975, 1.0
    %v1978 = vrcp.pop %v1976
    %v1979 = vmul.f32 1.0, %v1978
    %v1980 = vrcp.pop %v1977
    %v1981 = vmul.f32 1.0, %v1980
    %v1982 = vtanh.pop %v1968
    %v1983 = vtanh.pop %v1969
    %v1986 = vrot.slane %v1759, 7
    %v1987 = vrot.slane %v1760, 7
    %v1990 = vmul.f32 %v1979, %v1986
    %v1991 = vmul.f32 %v1981, %v1987
    %1994 = vrot.lane.b32.xlu0 %v1982, 32
    %v1995 = vpop.permute.xlu0 %1994
    %1996 = vrot.lane.b32.xlu0 %v1983, 32
    %v1997 = vpop.permute.xlu0 %1996
    %v2000 = vmul.f32 %v1979, %v1995
    %v2001 = vmul.f32 %v1981, %v1997
    %2004 = vrot.lane.b32.xlu0 %v2000, 32
    %v2005 = vpop.permute.xlu0 %2004
    %2006 = vrot.lane.b32.xlu0 %v2001, 32
    %v2007 = vpop.permute.xlu0 %2006
    %v2010 = vadd.f32 %v1990, %v2005
    %v2011 = vadd.f32 %v1991, %v2007
    %v2012 = vtanh.pop %v2010
    %v2013 = vtanh.pop %v2011
    %2016 = vrot.lane.b32.xlu0 %v2012, 32
    %v2017 = vpop.permute.xlu0 %2016
    %2018 = vrot.lane.b32.xlu0 %v2013, 32
    %v2019 = vpop.permute.xlu0 %2018
    %v2022 = vmul.f32 %v1979, %v2017
    %v2023 = vmul.f32 %v1981, %v2019
    %2026 = vrot.lane.b32.xlu0 %v2022, 64
    %v2027 = vpop.permute.xlu0 %2026
    %2028 = vrot.lane.b32.xlu0 %v2023, 64
    %v2029 = vpop.permute.xlu0 %2028
    %2032 = vst.msk [vmem:[#allocation2] sm:$0x80] %vm390, %v2027
    %2033 = vst.msk [vmem:[#allocation2 + $0x8] sm:$0x80] %vm390, %v2029
    %v2034 = vpack.c.bf16 %v1896, %v1896
    %v2035 = vpack.c.bf16 %v1897, %v1897
    %v2038 = vunpack.c.l.b16 %v2034
    %v2039 = vunpack.c.l.b16 %v2035
    %v2040 = vrot.slane %v2038, 1
    %v2041 = vsel %vm400, %v2039, %v2040
    %v2042 = vpack.c.b16 %v2041, %v2041
    %2043 = vrot.lane.b32.xlu0 %v2042, 64
    %v2044 = vpop.permute.xlu0 %2043
    %v2046 = vsel %vm166, %v2044, 0
    %2048 = vmatprep.subr.bf16.mxu0 0
    %2049 = vmatpush1.bf16.msra.mxu0 0
    %2050 = vmatprep.subr.bf16.mxu0 0
    %2051 = vmatpush1.bf16.msra.mxu0 0
    %2052 = vmatprep.subr.bf16.mxu0 0
    %2053 = vmatpush1.bf16.msra.mxu0 0
    %2054 = vmatprep.subr.bf16.mxu0 0
    %2055 = vmatpush1.bf16.msra.mxu0 0
    %2056 = vmatprep.subr.bf16.mxu0 0
    %2057 = vmatpush1.bf16.msra.mxu0 0
    %2058 = vmatprep.subr.bf16.mxu0 0
    %2059 = vmatpush1.bf16.msra.mxu0 0
    %2060 = vmatprep.subr.bf16.mxu0 0
    %2061 = vmatpush1.bf16.msra.mxu0 %v284
    %2062 = vmatprep.subr.bf16.mxu0 0
    %2063 = vmatpush1.bf16.msra.mxu0 %v283
    %2064 = vmatprep.subr.bf16.mxu0 0
    %2065 = vmatpush2.bf16.msra.mxu0 0
    %2066 = vmatprep.subr.bf16.mxu0 0
    %2067 = vmatpush2.bf16.msra.mxu0 0
    %2068 = vmatprep.subr.bf16.mxu0 0
    %2069 = vmatpush2.bf16.msra.mxu0 0
    %2070 = vmatprep.subr.bf16.mxu0 0
    %2071 = vmatpush2.bf16.msra.mxu0 0
    %2072 = vmatprep.subr.bf16.mxu0 0
    %2073 = vmatpush2.bf16.msra.mxu0 0
    %2074 = vmatprep.subr.bf16.mxu0 0
    %2075 = vmatpush2.bf16.msra.mxu0 0
    %2076 = vmatprep.subr.bf16.mxu0 0
    %2077 = vmatpush2.bf16.msra.mxu0 0
    %2078 = vmatprep.subr.bf16.mxu0 0
    %2079 = vmatpush2.bf16.msra.mxu0 0
    %2080 = vmatprep.mubr.bf16.mxu0 0
    %2081 = vmatmul.mubr.bf16.gmra.mxu0 %v2046
    %v2082 = vpop.f32.mrf.mxu0
    %v2083 = vadd.f32 0.0, %v2082
    %v2084 = vpop.f32.mrf.mxu0
    %v2085 = vpop.f32.mrf.mxu0
    %v2086 = vpop.f32.mrf.mxu0
    %2087 = vdwg.mxu0
    %v2089 = vrot.slane %v2083, 1
    %v2092 = vadd.f32 %v148, %v2083
    %v2093 = vadd.f32 %v152, %v2089
    %v2094 = vxor.u32 %v2092, 2147483648
    %v2095 = vxor.u32 %v2093, 2147483648
    %v2096 = vmul.f32 %v2094, 1.442695
    %v2097 = vpow.pop %v2096
    %v2098 = vmul.f32 %v2095, 1.442695
    %v2099 = vpow.pop %v2098
    %v2100 = vadd.f32 %v2097, 1.0
    %v2101 = vadd.f32 %v2099, 1.0
    %v2102 = vrcp.pop %v2100
    %v2103 = vmul.f32 1.0, %v2102
    %v2104 = vrcp.pop %v2101
    %v2105 = vmul.f32 1.0, %v2104
    %v2106 = vtanh.pop %v2092
    %v2107 = vtanh.pop %v2093
    %v2110 = vrot.slane %v1884, 1
    %v2111 = vrot.slane %v1885, 1
    %v2114 = vmul.f32 %v2103, %v2110
    %v2115 = vmul.f32 %v2105, %v2111
    %2118 = vrot.lane.b32.xlu0 %v2106, 32
    %v2119 = vpop.permute.xlu0 %2118
    %2120 = vrot.lane.b32.xlu0 %v2107, 32
    %v2121 = vpop.permute.xlu0 %2120
    %v2124 = vmul.f32 %v2103, %v2119
    %v2125 = vmul.f32 %v2105, %v2121
    %2128 = vrot.lane.b32.xlu0 %v2124, 32
    %v2129 = vpop.permute.xlu0 %2128
    %2130 = vrot.lane.b32.xlu0 %v2125, 32
    %v2131 = vpop.permute.xlu0 %2130
    %v2134 = vadd.f32 %v2114, %v2129
    %v2135 = vadd.f32 %v2115, %v2131
    %v2136 = vtanh.pop %v2134
    %v2137 = vtanh.pop %v2135
    %2140 = vrot.lane.b32.xlu0 %v2136, 32
    %v2141 = vpop.permute.xlu0 %2140
    %2142 = vrot.lane.b32.xlu0 %v2137, 32
    %v2143 = vpop.permute.xlu0 %2142
    %v2146 = vmul.f32 %v2103, %v2141
    %v2147 = vmul.f32 %v2105, %v2143
    %2150 = vrot.lane.b32.xlu0 %v2146, 64
    %v2151 = vpop.permute.xlu0 %2150
    %2152 = vrot.lane.b32.xlu0 %v2147, 64
    %v2153 = vpop.permute.xlu0 %2152
    %2156 = vst.msk [vmem:[#allocation3] sm:$0x1] %vm272, %v2151
    %2157 = vst.msk [vmem:[#allocation3 + $0x8] sm:$0x1] %vm272, %v2153
    %v2158 = vld [vmem:[#allocation2] sm:$0xff]
    %v2159 = vld [vmem:[#allocation2 + $0x8] sm:$0xff]
    %v2160 = vld [vmem:[#allocation3] sm:$0xff]
    %v2161 = vld [vmem:[#allocation3 + $0x8] sm:$0xff]
    %2164 = vrot.lane.b32.xlu0 %v2160, 32
    %v2165 = vpop.permute.xlu0 %2164
    %2166 = vrot.lane.b32.xlu0 %v2161, 32
    %v2167 = vpop.permute.xlu0 %2166
    %v2170 = vsel %vm166, %v2158, %v2165
    %v2171 = vsel %vm166, %v2159, %v2167
    %v2172 = vld [vmem:[%s6] sm:$0xf]
    %v2173 = vld [vmem:[%s6 + $0x4] sm:$0xf]
    %v2174 = vld [vmem:[%s6 + $0x8] sm:$0xf]
    %v2175 = vld [vmem:[%s6 + $0xc] sm:$0xf]
    %v2176 = vld [vmem:[%s7] sm:$0xf]
    %v2177 = vld [vmem:[%s7 + $0x4] sm:$0xf]
    %v2178 = vld [vmem:[%s7 + $0x8] sm:$0xf]
    %v2179 = vld [vmem:[%s7 + $0xc] sm:$0xf]
    %v2180 = vpack.c.bf16 %v2171, %v2170
    %v2181 = vld [vmem:[%s5] sm:$0xff]
    %v2182 = vld [vmem:[%s5 + $0x8] sm:$0xff]
    %v2183 = vld [vmem:[%s5 + $0x10] sm:$0xff]
    %v2184 = vld [vmem:[%s5 + $0x18] sm:$0xff]
    %v2185 = vld [vmem:[%s5 + $0x20] sm:$0xff]
    %v2186 = vld [vmem:[%s5 + $0x28] sm:$0xff]
    %v2187 = vld [vmem:[%s5 + $0x30] sm:$0xff]
    %v2188 = vld [vmem:[%s5 + $0x38] sm:$0xff]
    %v2189 = vld [vmem:[%s8] sm:$0x3]
    %v2191 = vlaneseq
    %v2192 = vshrl.u32 %v2191, 7
    %v2193 = vsub.s32 0, %v2192
    %v2194 = vrot.slane %v2189, %v2193
    %v2195 = vlaneseq
    %v2196 = vshrl.u32 %v2195, 7
    %v2197 = vsub.s32 1, %v2196
    %v2198 = vrot.slane %v2189, %v2197
    %v2209 = vunpack.c.l.b16 %v2181
    %v2210 = vunpack.c.h.b16 %v2181
    %v2211 = vunpack.c.l.b16 %v2182
    %v2212 = vunpack.c.h.b16 %v2182
    %v2213 = vunpack.c.l.b16 %v2183
    %v2214 = vunpack.c.h.b16 %v2183
    %v2215 = vunpack.c.l.b16 %v2184
    %v2216 = vunpack.c.h.b16 %v2184
    %v2217 = vunpack.c.l.b16 %v2185
    %v2218 = vunpack.c.h.b16 %v2185
    %v2219 = vunpack.c.l.b16 %v2186
    %v2220 = vunpack.c.h.b16 %v2186
    %v2221 = vunpack.c.l.b16 %v2187
    %v2222 = vunpack.c.h.b16 %v2187
    %v2223 = vunpack.c.l.b16 %v2188
    %v2224 = vunpack.c.h.b16 %v2188
    %v2225 = vpack.c.b16 %v2211, %v2209
    %v2226 = vpack.c.b16 %v2212, %v2210
    %v2227 = vpack.c.b16 %v2215, %v2213
    %v2228 = vpack.c.b16 %v2216, %v2214
    %v2229 = vpack.c.b16 %v2219, %v2217
    %v2230 = vpack.c.b16 %v2220, %v2218
    %v2231 = vpack.c.b16 %v2223, %v2221
    %v2232 = vpack.c.b16 %v2224, %v2222
    %vm2241 = vcmask 523264
    %v2243 = vsel %vm2241, %v2180, 0
    %2245 = vmatprep.subr.bf16.mxu0 0
    %2246 = vmatpush1.bf16.msra.mxu0 0
    %2247 = vmatprep.subr.bf16.mxu0 0
    %2248 = vmatpush1.bf16.msra.mxu0 0
    %2249 = vmatprep.subr.bf16.mxu0 0
    %2250 = vmatpush1.bf16.msra.mxu0 0
    %2251 = vmatprep.subr.bf16.mxu0 0
    %2252 = vmatpush1.bf16.msra.mxu0 0
    %2253 = vmatprep.subr.bf16.mxu0 %v2232
    %2254 = vmatpush1.bf16.msra.mxu0 %v2231
    %2255 = vmatprep.subr.bf16.mxu0 %v2230
    %2256 = vmatpush1.bf16.msra.mxu0 %v2229
    %2257 = vmatprep.subr.bf16.mxu0 %v2228
    %2258 = vmatpush1.bf16.msra.mxu0 %v2227
    %2259 = vmatprep.subr.bf16.mxu0 %v2226
    %2260 = vmatpush1.bf16.msra.mxu0 %v2225
    %2261 = vmatprep.subr.bf16.mxu0 0
    %2262 = vmatpush2.bf16.msra.mxu0 0
    %2263 = vmatprep.subr.bf16.mxu0 0
    %2264 = vmatpush2.bf16.msra.mxu0 0
    %2265 = vmatprep.subr.bf16.mxu0 0
    %2266 = vmatpush2.bf16.msra.mxu0 0
    %2267 = vmatprep.subr.bf16.mxu0 0
    %2268 = vmatpush2.bf16.msra.mxu0 0
    %2269 = vmatprep.subr.bf16.mxu0 0
    %2270 = vmatpush2.bf16.msra.mxu0 0
    %2271 = vmatprep.subr.bf16.mxu0 0
    %2272 = vmatpush2.bf16.msra.mxu0 0
    %2273 = vmatprep.subr.bf16.mxu0 0
    %2274 = vmatpush2.bf16.msra.mxu0 0
    %2275 = vmatprep.subr.bf16.mxu0 0
    %2276 = vmatpush2.bf16.msra.mxu0 0
    %2277 = vmatprep.mubr.bf16.mxu0 0
    %2278 = vmatmul.mubr.bf16.gmra.mxu0 %v2243
    %v2279 = vpop.f32.mrf.mxu0
    %v2280 = vadd.f32 %v2194, %v2279
    %v2281 = vpop.f32.mrf.mxu0
    %v2282 = vadd.f32 %v2198, %v2281
    %v2283 = vpop.f32.mrf.mxu0
    %v2284 = vadd.f32 %v2194, %v2283
    %v2285 = vpop.f32.mrf.mxu0
    %v2286 = vadd.f32 %v2198, %v2285
    %2287 = vdwg.mxu0
    %v2292 = vunpack.c.l.b16 %v2172
    %v2293 = vunpack.c.l.b16 %v2173
    %v2294 = vunpack.c.l.b16 %v2174
    %v2295 = vunpack.c.l.b16 %v2175
    %v2296 = vpack.c.b16 %v2293, %v2292
    %v2297 = vpack.c.b16 %v2295, %v2294
    %2300 = vmatprep.subr.bf16.mxu0 0
    %2301 = vmatpush1.bf16.msra.mxu0 0
    %2302 = vmatprep.subr.bf16.mxu0 0
    %2303 = vmatpush1.bf16.msra.mxu0 0
    %2304 = vmatprep.subr.bf16.mxu0 0
    %2305 = vmatpush1.bf16.msra.mxu0 0
    %2306 = vmatprep.subr.bf16.mxu0 0
    %2307 = vmatpush1.bf16.msra.mxu0 0
    %2308 = vmatprep.subr.bf16.mxu0 0
    %2309 = vmatpush1.bf16.msra.mxu0 0
    %2310 = vmatprep.subr.bf16.mxu0 0
    %2311 = vmatpush1.bf16.msra.mxu0 0
    %2312 = vmatprep.subr.bf16.mxu0 0
    %2313 = vmatpush1.bf16.msra.mxu0 %v2297
    %2314 = vmatprep.subr.bf16.mxu0 0
    %2315 = vmatpush1.bf16.msra.mxu0 %v2296
    %2316 = vmatprep.subr.bf16.mxu0 0
    %2317 = vmatpush2.bf16.msra.mxu0 0
    %2318 = vmatprep.subr.bf16.mxu0 0
    %2319 = vmatpush2.bf16.msra.mxu0 0
    %2320 = vmatprep.subr.bf16.mxu0 0
    %2321 = vmatpush2.bf16.msra.mxu0 0
    %2322 = vmatprep.subr.bf16.mxu0 0
    %2323 = vmatpush2.bf16.msra.mxu0 0
    %2324 = vmatprep.subr.bf16.mxu0 0
    %2325 = vmatpush2.bf16.msra.mxu0 0
    %2326 = vmatprep.subr.bf16.mxu0 0
    %2327 = vmatpush2.bf16.msra.mxu0 0
    %2328 = vmatprep.subr.bf16.mxu0 0
    %2329 = vmatpush2.bf16.msra.mxu0 0
    %2330 = vmatprep.subr.bf16.mxu0 0
    %2331 = vmatpush2.bf16.msra.mxu0 0
    %2332 = vmatprep.mubr.bf16.mxu0 0
    %2333 = vmatmul.mubr.bf16.gmra.mxu0 %v168
    %v2334 = vpop.f32.mrf.mxu0
    %v2335 = vadd.f32 0.0, %v2334
    %v2336 = vpop.f32.mrf.mxu0
    %v2337 = vpop.f32.mrf.mxu0
    %v2338 = vpop.f32.mrf.mxu0
    %2339 = vdwg.mxu0
    %v2341 = vrot.slane %v2335, 1
    %v2344 = vadd.f32 %v2280, %v2335
    %v2345 = vadd.f32 %v2284, %v2341
    %v2346 = vxor.u32 %v2344, 2147483648
    %v2347 = vxor.u32 %v2345, 2147483648
    %v2348 = vmul.f32 %v2346, 1.442695
    %v2349 = vpow.pop %v2348
    %v2350 = vmul.f32 %v2347, 1.442695
    %v2351 = vpow.pop %v2350
    %v2352 = vadd.f32 %v2349, 1.0
    %v2353 = vadd.f32 %v2351, 1.0
    %v2354 = vrcp.pop %v2352
    %v2355 = vmul.f32 1.0, %v2354
    %v2356 = vrcp.pop %v2353
    %v2357 = vmul.f32 1.0, %v2356
    %v2358 = vtanh.pop %v2344
    %v2359 = vtanh.pop %v2345
    %v2360 = vmul.f32 %v2355, 0.0
    %v2361 = vmul.f32 %v2357, 0.0
    %2364 = vrot.lane.b32.xlu0 %v2358, 32
    %v2365 = vpop.permute.xlu0 %2364
    %2366 = vrot.lane.b32.xlu0 %v2359, 32
    %v2367 = vpop.permute.xlu0 %2366
    %v2370 = vmul.f32 %v2355, %v2365
    %v2371 = vmul.f32 %v2357, %v2367
    %2374 = vrot.lane.b32.xlu0 %v2370, 32
    %v2375 = vpop.permute.xlu0 %2374
    %2376 = vrot.lane.b32.xlu0 %v2371, 32
    %v2377 = vpop.permute.xlu0 %2376
    %v2380 = vadd.f32 %v2360, %v2375
    %v2381 = vadd.f32 %v2361, %v2377
    %v2382 = vtanh.pop %v2380
    %v2383 = vtanh.pop %v2381
    %2386 = vrot.lane.b32.xlu0 %v2382, 32
    %v2387 = vpop.permute.xlu0 %2386
    %2388 = vrot.lane.b32.xlu0 %v2383, 32
    %v2389 = vpop.permute.xlu0 %2388
    %v2392 = vmul.f32 %v2355, %v2387
    %v2393 = vmul.f32 %v2357, %v2389
    %2396 = vrot.lane.b32.xlu0 %v2392, 64
    %v2397 = vpop.permute.xlu0 %2396
    %2398 = vrot.lane.b32.xlu0 %v2393, 64
    %v2399 = vpop.permute.xlu0 %2398
    %2402 = vst.msk [vmem:[#allocation2] sm:$0x1] %vm272, %v2397
    %2403 = vst.msk [vmem:[#allocation2 + $0x8] sm:$0x1] %vm272, %v2399
    %v2408 = vunpack.c.l.b16 %v2176
    %v2409 = vunpack.c.l.b16 %v2177
    %v2410 = vunpack.c.l.b16 %v2178
    %v2411 = vunpack.c.l.b16 %v2179
    %v2412 = vpack.c.b16 %v2409, %v2408
    %v2413 = vpack.c.b16 %v2411, %v2410
    %2416 = vmatprep.subr.bf16.mxu0 0
    %2417 = vmatpush1.bf16.msra.mxu0 0
    %2418 = vmatprep.subr.bf16.mxu0 0
    %2419 = vmatpush1.bf16.msra.mxu0 0
    %2420 = vmatprep.subr.bf16.mxu0 0
    %2421 = vmatpush1.bf16.msra.mxu0 0
    %2422 = vmatprep.subr.bf16.mxu0 0
    %2423 = vmatpush1.bf16.msra.mxu0 0
    %2424 = vmatprep.subr.bf16.mxu0 0
    %2425 = vmatpush1.bf16.msra.mxu0 0
    %2426 = vmatprep.subr.bf16.mxu0 0
    %2427 = vmatpush1.bf16.msra.mxu0 0
    %2428 = vmatprep.subr.bf16.mxu0 0
    %2429 = vmatpush1.bf16.msra.mxu0 %v2413
    %2430 = vmatprep.subr.bf16.mxu0 0
    %2431 = vmatpush1.bf16.msra.mxu0 %v2412
    %2432 = vmatprep.subr.bf16.mxu0 0
    %2433 = vmatpush2.bf16.msra.mxu0 0
    %2434 = vmatprep.subr.bf16.mxu0 0
    %2435 = vmatpush2.bf16.msra.mxu0 0
    %2436 = vmatprep.subr.bf16.mxu0 0
    %2437 = vmatpush2.bf16.msra.mxu0 0
    %2438 = vmatprep.subr.bf16.mxu0 0
    %2439 = vmatpush2.bf16.msra.mxu0 0
    %2440 = vmatprep.subr.bf16.mxu0 0
    %2441 = vmatpush2.bf16.msra.mxu0 0
    %2442 = vmatprep.subr.bf16.mxu0 0
    %2443 = vmatpush2.bf16.msra.mxu0 0
    %2444 = vmatprep.subr.bf16.mxu0 0
    %2445 = vmatpush2.bf16.msra.mxu0 0
    %2446 = vmatprep.subr.bf16.mxu0 0
    %2447 = vmatpush2.bf16.msra.mxu0 0
    %2448 = vmatprep.mubr.bf16.mxu0 0
    %2449 = vmatmul.mubr.bf16.gmra.mxu0 %v168
    %v2450 = vpop.f32.mrf.mxu0
    %v2451 = vadd.f32 0.0, %v2450
    %v2452 = vpop.f32.mrf.mxu0
    %v2453 = vpop.f32.mrf.mxu0
    %v2454 = vpop.f32.mrf.mxu0
    %2455 = vdwg.mxu0
    %v2457 = vrot.slane %v2451, 1
    %v2458 = vrot.slane %v2451, 2
    %v2461 = vadd.f32 %v2282, %v2457
    %v2462 = vadd.f32 %v2286, %v2458
    %v2463 = vxor.u32 %v2461, 2147483648
    %v2464 = vxor.u32 %v2462, 2147483648
    %v2465 = vmul.f32 %v2463, 1.442695
    %v2466 = vpow.pop %v2465
    %v2467 = vmul.f32 %v2464, 1.442695
    %v2468 = vpow.pop %v2467
    %v2469 = vadd.f32 %v2466, 1.0
    %v2470 = vadd.f32 %v2468, 1.0
    %v2471 = vrcp.pop %v2469
    %v2472 = vmul.f32 1.0, %v2471
    %v2473 = vrcp.pop %v2470
    %v2474 = vmul.f32 1.0, %v2473
    %v2475 = vtanh.pop %v2461
    %v2476 = vtanh.pop %v2462
    %v2477 = vmul.f32 %v2472, 0.0
    %v2478 = vmul.f32 %v2474, 0.0
    %2481 = vrot.lane.b32.xlu0 %v2475, 32
    %v2482 = vpop.permute.xlu0 %2481
    %2483 = vrot.lane.b32.xlu0 %v2476, 32
    %v2484 = vpop.permute.xlu0 %2483
    %v2487 = vmul.f32 %v2472, %v2482
    %v2488 = vmul.f32 %v2474, %v2484
    %2491 = vrot.lane.b32.xlu0 %v2487, 32
    %v2492 = vpop.permute.xlu0 %2491
    %2493 = vrot.lane.b32.xlu0 %v2488, 32
    %v2494 = vpop.permute.xlu0 %2493
    %v2497 = vadd.f32 %v2477, %v2492
    %v2498 = vadd.f32 %v2478, %v2494
    %v2499 = vtanh.pop %v2497
    %v2500 = vtanh.pop %v2498
    %2503 = vrot.lane.b32.xlu0 %v2499, 32
    %v2504 = vpop.permute.xlu0 %2503
    %2505 = vrot.lane.b32.xlu0 %v2500, 32
    %v2506 = vpop.permute.xlu0 %2505
    %v2509 = vmul.f32 %v2472, %v2504
    %v2510 = vmul.f32 %v2474, %v2506
    %2513 = vrot.lane.b32.xlu0 %v2509, 64
    %v2514 = vpop.permute.xlu0 %2513
    %2515 = vrot.lane.b32.xlu0 %v2510, 64
    %v2516 = vpop.permute.xlu0 %2515
    %2519 = vst.msk [vmem:[#allocation3] sm:$0x80] %vm390, %v2514
    %2520 = vst.msk [vmem:[#allocation3 + $0x8] sm:$0x80] %vm390, %v2516
    %v2521 = vpack.c.bf16 %v2392, %v2392
    %v2522 = vpack.c.bf16 %v2393, %v2393
    %v2525 = vunpack.c.l.b16 %v2521
    %v2526 = vunpack.c.l.b16 %v2522
    %v2527 = vrot.slane %v2526, 7
    %v2528 = vsel %vm400, %v2527, %v2525
    %v2529 = vpack.c.b16 %v2528, %v2528
    %2530 = vrot.lane.b32.xlu0 %v2529, 64
    %v2531 = vpop.permute.xlu0 %2530
    %v2533 = vsel %vm166, %v2531, 0
    %2535 = vmatprep.subr.bf16.mxu0 0
    %2536 = vmatpush1.bf16.msra.mxu0 0
    %2537 = vmatprep.subr.bf16.mxu0 0
    %2538 = vmatpush1.bf16.msra.mxu0 0
    %2539 = vmatprep.subr.bf16.mxu0 0
    %2540 = vmatpush1.bf16.msra.mxu0 0
    %2541 = vmatprep.subr.bf16.mxu0 0
    %2542 = vmatpush1.bf16.msra.mxu0 0
    %2543 = vmatprep.subr.bf16.mxu0 0
    %2544 = vmatpush1.bf16.msra.mxu0 0
    %2545 = vmatprep.subr.bf16.mxu0 0
    %2546 = vmatpush1.bf16.msra.mxu0 0
    %2547 = vmatprep.subr.bf16.mxu0 0
    %2548 = vmatpush1.bf16.msra.mxu0 %v2297
    %2549 = vmatprep.subr.bf16.mxu0 0
    %2550 = vmatpush1.bf16.msra.mxu0 %v2296
    %2551 = vmatprep.subr.bf16.mxu0 0
    %2552 = vmatpush2.bf16.msra.mxu0 0
    %2553 = vmatprep.subr.bf16.mxu0 0
    %2554 = vmatpush2.bf16.msra.mxu0 0
    %2555 = vmatprep.subr.bf16.mxu0 0
    %2556 = vmatpush2.bf16.msra.mxu0 0
    %2557 = vmatprep.subr.bf16.mxu0 0
    %2558 = vmatpush2.bf16.msra.mxu0 0
    %2559 = vmatprep.subr.bf16.mxu0 0
    %2560 = vmatpush2.bf16.msra.mxu0 0
    %2561 = vmatprep.subr.bf16.mxu0 0
    %2562 = vmatpush2.bf16.msra.mxu0 0
    %2563 = vmatprep.subr.bf16.mxu0 0
    %2564 = vmatpush2.bf16.msra.mxu0 0
    %2565 = vmatprep.subr.bf16.mxu0 0
    %2566 = vmatpush2.bf16.msra.mxu0 0
    %2567 = vmatprep.mubr.bf16.mxu0 0
    %2568 = vmatmul.mubr.bf16.gmra.mxu0 %v2533
    %v2569 = vpop.f32.mrf.mxu0
    %v2570 = vadd.f32 0.0, %v2569
    %v2571 = vpop.f32.mrf.mxu0
    %v2572 = vpop.f32.mrf.mxu0
    %v2573 = vpop.f32.mrf.mxu0
    %2574 = vdwg.mxu0
    %v2576 = vrot.slane %v2570, 7
    %v2579 = vadd.f32 %v2280, %v2576
    %v2580 = vadd.f32 %v2284, %v2570
    %v2581 = vxor.u32 %v2579, 2147483648
    %v2582 = vxor.u32 %v2580, 2147483648
    %v2583 = vmul.f32 %v2581, 1.442695
    %v2584 = vpow.pop %v2583
    %v2585 = vmul.f32 %v2582, 1.442695
    %v2586 = vpow.pop %v2585
    %v2587 = vadd.f32 %v2584, 1.0
    %v2588 = vadd.f32 %v2586, 1.0
    %v2589 = vrcp.pop %v2587
    %v2590 = vmul.f32 1.0, %v2589
    %v2591 = vrcp.pop %v2588
    %v2592 = vmul.f32 1.0, %v2591
    %v2593 = vtanh.pop %v2579
    %v2594 = vtanh.pop %v2580
    %v2597 = vrot.slane %v2380, 7
    %v2598 = vrot.slane %v2381, 7
    %v2601 = vmul.f32 %v2590, %v2597
    %v2602 = vmul.f32 %v2592, %v2598
    %2605 = vrot.lane.b32.xlu0 %v2593, 32
    %v2606 = vpop.permute.xlu0 %2605
    %2607 = vrot.lane.b32.xlu0 %v2594, 32
    %v2608 = vpop.permute.xlu0 %2607
    %v2611 = vmul.f32 %v2590, %v2606
    %v2612 = vmul.f32 %v2592, %v2608
    %2615 = vrot.lane.b32.xlu0 %v2611, 32
    %v2616 = vpop.permute.xlu0 %2615
    %2617 = vrot.lane.b32.xlu0 %v2612, 32
    %v2618 = vpop.permute.xlu0 %2617
    %v2621 = vadd.f32 %v2601, %v2616
    %v2622 = vadd.f32 %v2602, %v2618
    %v2623 = vtanh.pop %v2621
    %v2624 = vtanh.pop %v2622
    %2627 = vrot.lane.b32.xlu0 %v2623, 32
    %v2628 = vpop.permute.xlu0 %2627
    %2629 = vrot.lane.b32.xlu0 %v2624, 32
    %v2630 = vpop.permute.xlu0 %2629
    %v2633 = vmul.f32 %v2590, %v2628
    %v2634 = vmul.f32 %v2592, %v2630
    %2637 = vrot.lane.b32.xlu0 %v2633, 64
    %v2638 = vpop.permute.xlu0 %2637
    %2639 = vrot.lane.b32.xlu0 %v2634, 64
    %v2640 = vpop.permute.xlu0 %2639
    %2643 = vst.msk [vmem:[#allocation2] sm:$0x2] %vm516, %v2638
    %2644 = vst.msk [vmem:[#allocation2 + $0x8] sm:$0x2] %vm516, %v2640
    %v2645 = vpack.c.bf16 %v2509, %v2509
    %v2646 = vpack.c.bf16 %v2510, %v2510
    %v2649 = vunpack.c.l.b16 %v2645
    %v2650 = vunpack.c.l.b16 %v2646
    %v2651 = vrot.slane %v2649, 7
    %v2652 = vrot.slane %v2650, 6
    %v2653 = vsel %vm400, %v2652, %v2651
    %v2654 = vpack.c.b16 %v2653, %v2653
    %2655 = vrot.lane.b32.xlu0 %v2654, 64
    %v2656 = vpop.permute.xlu0 %2655
    %v2658 = vsel %vm166, %v2656, 0
    %2660 = vmatprep.subr.bf16.mxu0 0
    %2661 = vmatpush1.bf16.msra.mxu0 0
    %2662 = vmatprep.subr.bf16.mxu0 0
    %2663 = vmatpush1.bf16.msra.mxu0 0
    %2664 = vmatprep.subr.bf16.mxu0 0
    %2665 = vmatpush1.bf16.msra.mxu0 0
    %2666 = vmatprep.subr.bf16.mxu0 0
    %2667 = vmatpush1.bf16.msra.mxu0 0
    %2668 = vmatprep.subr.bf16.mxu0 0
    %2669 = vmatpush1.bf16.msra.mxu0 0
    %2670 = vmatprep.subr.bf16.mxu0 0
    %2671 = vmatpush1.bf16.msra.mxu0 0
    %2672 = vmatprep.subr.bf16.mxu0 0
    %2673 = vmatpush1.bf16.msra.mxu0 %v2413
    %2674 = vmatprep.subr.bf16.mxu0 0
    %2675 = vmatpush1.bf16.msra.mxu0 %v2412
    %2676 = vmatprep.subr.bf16.mxu0 0
    %2677 = vmatpush2.bf16.msra.mxu0 0
    %2678 = vmatprep.subr.bf16.mxu0 0
    %2679 = vmatpush2.bf16.msra.mxu0 0
    %2680 = vmatprep.subr.bf16.mxu0 0
    %2681 = vmatpush2.bf16.msra.mxu0 0
    %2682 = vmatprep.subr.bf16.mxu0 0
    %2683 = vmatpush2.bf16.msra.mxu0 0
    %2684 = vmatprep.subr.bf16.mxu0 0
    %2685 = vmatpush2.bf16.msra.mxu0 0
    %2686 = vmatprep.subr.bf16.mxu0 0
    %2687 = vmatpush2.bf16.msra.mxu0 0
    %2688 = vmatprep.subr.bf16.mxu0 0
    %2689 = vmatpush2.bf16.msra.mxu0 0
    %2690 = vmatprep.subr.bf16.mxu0 0
    %2691 = vmatpush2.bf16.msra.mxu0 0
    %2692 = vmatprep.mubr.bf16.mxu0 0
    %2693 = vmatmul.mubr.bf16.gmra.mxu0 %v2658
    %v2694 = vpop.f32.mrf.mxu0
    %v2695 = vadd.f32 0.0, %v2694
    %v2696 = vpop.f32.mrf.mxu0
    %v2697 = vpop.f32.mrf.mxu0
    %v2698 = vpop.f32.mrf.mxu0
    %2699 = vdwg.mxu0
    %v2701 = vrot.slane %v2695, 2
    %v2702 = vrot.slane %v2695, 3
    %v2705 = vadd.f32 %v2282, %v2701
    %v2706 = vadd.f32 %v2286, %v2702
    %v2707 = vxor.u32 %v2705, 2147483648
    %v2708 = vxor.u32 %v2706, 2147483648
    %v2709 = vmul.f32 %v2707, 1.442695
    %v2710 = vpow.pop %v2709
    %v2711 = vmul.f32 %v2708, 1.442695
    %v2712 = vpow.pop %v2711
    %v2713 = vadd.f32 %v2710, 1.0
    %v2714 = vadd.f32 %v2712, 1.0
    %v2715 = vrcp.pop %v2713
    %v2716 = vmul.f32 1.0, %v2715
    %v2717 = vrcp.pop %v2714
    %v2718 = vmul.f32 1.0, %v2717
    %v2719 = vtanh.pop %v2705
    %v2720 = vtanh.pop %v2706
    %v2723 = vrot.slane %v2497, 1
    %v2724 = vrot.slane %v2498, 1
    %v2727 = vmul.f32 %v2716, %v2723
    %v2728 = vmul.f32 %v2718, %v2724
    %2731 = vrot.lane.b32.xlu0 %v2719, 32
    %v2732 = vpop.permute.xlu0 %2731
    %2733 = vrot.lane.b32.xlu0 %v2720, 32
    %v2734 = vpop.permute.xlu0 %2733
    %v2737 = vmul.f32 %v2716, %v2732
    %v2738 = vmul.f32 %v2718, %v2734
    %2741 = vrot.lane.b32.xlu0 %v2737, 32
    %v2742 = vpop.permute.xlu0 %2741
    %2743 = vrot.lane.b32.xlu0 %v2738, 32
    %v2744 = vpop.permute.xlu0 %2743
    %v2747 = vadd.f32 %v2727, %v2742
    %v2748 = vadd.f32 %v2728, %v2744
    %v2749 = vtanh.pop %v2747
    %v2750 = vtanh.pop %v2748
    %2753 = vrot.lane.b32.xlu0 %v2749, 32
    %v2754 = vpop.permute.xlu0 %2753
    %2755 = vrot.lane.b32.xlu0 %v2750, 32
    %v2756 = vpop.permute.xlu0 %2755
    %v2759 = vmul.f32 %v2716, %v2754
    %v2760 = vmul.f32 %v2718, %v2756
    %2763 = vrot.lane.b32.xlu0 %v2759, 64
    %v2764 = vpop.permute.xlu0 %2763
    %2765 = vrot.lane.b32.xlu0 %v2760, 64
    %v2766 = vpop.permute.xlu0 %2765
    %2769 = vst.msk [vmem:[#allocation3] sm:$0x40] %vm643, %v2764
    %2770 = vst.msk [vmem:[#allocation3 + $0x8] sm:$0x40] %vm643, %v2766
    %v2771 = vpack.c.bf16 %v2633, %v2633
    %v2772 = vpack.c.bf16 %v2634, %v2634
    %v2775 = vunpack.c.l.b16 %v2771
    %v2776 = vunpack.c.l.b16 %v2772
    %v2777 = vrot.slane %v2775, 1
    %v2778 = vsel %vm400, %v2776, %v2777
    %v2779 = vpack.c.b16 %v2778, %v2778
    %2780 = vrot.lane.b32.xlu0 %v2779, 64
    %v2781 = vpop.permute.xlu0 %2780
    %v2783 = vsel %vm166, %v2781, 0
    %2785 = vmatprep.subr.bf16.mxu0 0
    %2786 = vmatpush1.bf16.msra.mxu0 0
    %2787 = vmatprep.subr.bf16.mxu0 0
    %2788 = vmatpush1.bf16.msra.mxu0 0
    %2789 = vmatprep.subr.bf16.mxu0 0
    %2790 = vmatpush1.bf16.msra.mxu0 0
    %2791 = vmatprep.subr.bf16.mxu0 0
    %2792 = vmatpush1.bf16.msra.mxu0 0
    %2793 = vmatprep.subr.bf16.mxu0 0
    %2794 = vmatpush1.bf16.msra.mxu0 0
    %2795 = vmatprep.subr.bf16.mxu0 0
    %2796 = vmatpush1.bf16.msra.mxu0 0
    %2797 = vmatprep.subr.bf16.mxu0 0
    %2798 = vmatpush1.bf16.msra.mxu0 %v2297
    %2799 = vmatprep.subr.bf16.mxu0 0
    %2800 = vmatpush1.bf16.msra.mxu0 %v2296
    %2801 = vmatprep.subr.bf16.mxu0 0
    %2802 = vmatpush2.bf16.msra.mxu0 0
    %2803 = vmatprep.subr.bf16.mxu0 0
    %2804 = vmatpush2.bf16.msra.mxu0 0
    %2805 = vmatprep.subr.bf16.mxu0 0
    %2806 = vmatpush2.bf16.msra.mxu0 0
    %2807 = vmatprep.subr.bf16.mxu0 0
    %2808 = vmatpush2.bf16.msra.mxu0 0
    %2809 = vmatprep.subr.bf16.mxu0 0
    %2810 = vmatpush2.bf16.msra.mxu0 0
    %2811 = vmatprep.subr.bf16.mxu0 0
    %2812 = vmatpush2.bf16.msra.mxu0 0
    %2813 = vmatprep.subr.bf16.mxu0 0
    %2814 = vmatpush2.bf16.msra.mxu0 0
    %2815 = vmatprep.subr.bf16.mxu0 0
    %2816 = vmatpush2.bf16.msra.mxu0 0
    %2817 = vmatprep.mubr.bf16.mxu0 0
    %2818 = vmatmul.mubr.bf16.gmra.mxu0 %v2783
    %v2819 = vpop.f32.mrf.mxu0
    %v2820 = vadd.f32 0.0, %v2819
    %v2821 = vpop.f32.mrf.mxu0
    %v2822 = vpop.f32.mrf.mxu0
    %v2823 = vpop.f32.mrf.mxu0
    %2824 = vdwg.mxu0
    %v2826 = vrot.slane %v2820, 6
    %v2827 = vrot.slane %v2820, 7
    %v2830 = vadd.f32 %v2280, %v2826
    %v2831 = vadd.f32 %v2284, %v2827
    %v2832 = vxor.u32 %v2830, 2147483648
    %v2833 = vxor.u32 %v2831, 2147483648
    %v2834 = vmul.f32 %v2832, 1.442695
    %v2835 = vpow.pop %v2834
    %v2836 = vmul.f32 %v2833, 1.442695
    %v2837 = vpow.pop %v2836
    %v2838 = vadd.f32 %v2835, 1.0
    %v2839 = vadd.f32 %v2837, 1.0
    %v2840 = vrcp.pop %v2838
    %v2841 = vmul.f32 1.0, %v2840
    %v2842 = vrcp.pop %v2839
    %v2843 = vmul.f32 1.0, %v2842
    %v2844 = vtanh.pop %v2830
    %v2845 = vtanh.pop %v2831
    %v2848 = vrot.slane %v2621, 7
    %v2849 = vrot.slane %v2622, 7
    %v2852 = vmul.f32 %v2841, %v2848
    %v2853 = vmul.f32 %v2843, %v2849
    %2856 = vrot.lane.b32.xlu0 %v2844, 32
    %v2857 = vpop.permute.xlu0 %2856
    %2858 = vrot.lane.b32.xlu0 %v2845, 32
    %v2859 = vpop.permute.xlu0 %2858
    %v2862 = vmul.f32 %v2841, %v2857
    %v2863 = vmul.f32 %v2843, %v2859
    %2866 = vrot.lane.b32.xlu0 %v2862, 32
    %v2867 = vpop.permute.xlu0 %2866
    %2868 = vrot.lane.b32.xlu0 %v2863, 32
    %v2869 = vpop.permute.xlu0 %2868
    %v2872 = vadd.f32 %v2852, %v2867
    %v2873 = vadd.f32 %v2853, %v2869
    %v2874 = vtanh.pop %v2872
    %v2875 = vtanh.pop %v2873
    %2878 = vrot.lane.b32.xlu0 %v2874, 32
    %v2879 = vpop.permute.xlu0 %2878
    %2880 = vrot.lane.b32.xlu0 %v2875, 32
    %v2881 = vpop.permute.xlu0 %2880
    %v2884 = vmul.f32 %v2841, %v2879
    %v2885 = vmul.f32 %v2843, %v2881
    %2888 = vrot.lane.b32.xlu0 %v2884, 64
    %v2889 = vpop.permute.xlu0 %2888
    %2890 = vrot.lane.b32.xlu0 %v2885, 64
    %v2891 = vpop.permute.xlu0 %2890
    %2894 = vst.msk [vmem:[#allocation2] sm:$0x4] %vm769, %v2889
    %2895 = vst.msk [vmem:[#allocation2 + $0x8] sm:$0x4] %vm769, %v2891
    %v2896 = vpack.c.bf16 %v2759, %v2759
    %v2897 = vpack.c.bf16 %v2760, %v2760
    %v2900 = vunpack.c.l.b16 %v2896
    %v2901 = vunpack.c.l.b16 %v2897
    %v2902 = vrot.slane %v2900, 6
    %v2903 = vrot.slane %v2901, 5
    %v2904 = vsel %vm400, %v2903, %v2902
    %v2905 = vpack.c.b16 %v2904, %v2904
    %2906 = vrot.lane.b32.xlu0 %v2905, 64
    %v2907 = vpop.permute.xlu0 %2906
    %v2909 = vsel %vm166, %v2907, 0
    %2911 = vmatprep.subr.bf16.mxu0 0
    %2912 = vmatpush1.bf16.msra.mxu0 0
    %2913 = vmatprep.subr.bf16.mxu0 0
    %2914 = vmatpush1.bf16.msra.mxu0 0
    %2915 = vmatprep.subr.bf16.mxu0 0
    %2916 = vmatpush1.bf16.msra.mxu0 0
    %2917 = vmatprep.subr.bf16.mxu0 0
    %2918 = vmatpush1.bf16.msra.mxu0 0
    %2919 = vmatprep.subr.bf16.mxu0 0
    %2920 = vmatpush1.bf16.msra.mxu0 0
    %2921 = vmatprep.subr.bf16.mxu0 0
    %2922 = vmatpush1.bf16.msra.mxu0 0
    %2923 = vmatprep.subr.bf16.mxu0 0
    %2924 = vmatpush1.bf16.msra.mxu0 %v2413
    %2925 = vmatprep.subr.bf16.mxu0 0
    %2926 = vmatpush1.bf16.msra.mxu0 %v2412
    %2927 = vmatprep.subr.bf16.mxu0 0
    %2928 = vmatpush2.bf16.msra.mxu0 0
    %2929 = vmatprep.subr.bf16.mxu0 0
    %2930 = vmatpush2.bf16.msra.mxu0 0
    %2931 = vmatprep.subr.bf16.mxu0 0
    %2932 = vmatpush2.bf16.msra.mxu0 0
    %2933 = vmatprep.subr.bf16.mxu0 0
    %2934 = vmatpush2.bf16.msra.mxu0 0
    %2935 = vmatprep.subr.bf16.mxu0 0
    %2936 = vmatpush2.bf16.msra.mxu0 0
    %2937 = vmatprep.subr.bf16.mxu0 0
    %2938 = vmatpush2.bf16.msra.mxu0 0
    %2939 = vmatprep.subr.bf16.mxu0 0
    %2940 = vmatpush2.bf16.msra.mxu0 0
    %2941 = vmatprep.subr.bf16.mxu0 0
    %2942 = vmatpush2.bf16.msra.mxu0 0
    %2943 = vmatprep.mubr.bf16.mxu0 0
    %2944 = vmatmul.mubr.bf16.gmra.mxu0 %v2909
    %v2945 = vpop.f32.mrf.mxu0
    %v2946 = vadd.f32 0.0, %v2945
    %v2947 = vpop.f32.mrf.mxu0
    %v2948 = vpop.f32.mrf.mxu0
    %v2949 = vpop.f32.mrf.mxu0
    %2950 = vdwg.mxu0
    %v2952 = vrot.slane %v2946, 3
    %v2953 = vrot.slane %v2946, 4
    %v2956 = vadd.f32 %v2282, %v2952
    %v2957 = vadd.f32 %v2286, %v2953
    %v2958 = vxor.u32 %v2956, 2147483648
    %v2959 = vxor.u32 %v2957, 2147483648
    %v2960 = vmul.f32 %v2958, 1.442695
    %v2961 = vpow.pop %v2960
    %v2962 = vmul.f32 %v2959, 1.442695
    %v2963 = vpow.pop %v2962
    %v2964 = vadd.f32 %v2961, 1.0
    %v2965 = vadd.f32 %v2963, 1.0
    %v2966 = vrcp.pop %v2964
    %v2967 = vmul.f32 1.0, %v2966
    %v2968 = vrcp.pop %v2965
    %v2969 = vmul.f32 1.0, %v2968
    %v2970 = vtanh.pop %v2956
    %v2971 = vtanh.pop %v2957
    %v2974 = vrot.slane %v2747, 1
    %v2975 = vrot.slane %v2748, 1
    %v2978 = vmul.f32 %v2967, %v2974
    %v2979 = vmul.f32 %v2969, %v2975
    %2982 = vrot.lane.b32.xlu0 %v2970, 32
    %v2983 = vpop.permute.xlu0 %2982
    %2984 = vrot.lane.b32.xlu0 %v2971, 32
    %v2985 = vpop.permute.xlu0 %2984
    %v2988 = vmul.f32 %v2967, %v2983
    %v2989 = vmul.f32 %v2969, %v2985
    %2992 = vrot.lane.b32.xlu0 %v2988, 32
    %v2993 = vpop.permute.xlu0 %2992
    %2994 = vrot.lane.b32.xlu0 %v2989, 32
    %v2995 = vpop.permute.xlu0 %2994
    %v2998 = vadd.f32 %v2978, %v2993
    %v2999 = vadd.f32 %v2979, %v2995
    %v3000 = vtanh.pop %v2998
    %v3001 = vtanh.pop %v2999
    %3004 = vrot.lane.b32.xlu0 %v3000, 32
    %v3005 = vpop.permute.xlu0 %3004
    %3006 = vrot.lane.b32.xlu0 %v3001, 32
    %v3007 = vpop.permute.xlu0 %3006
    %v3010 = vmul.f32 %v2967, %v3005
    %v3011 = vmul.f32 %v2969, %v3007
    %3014 = vrot.lane.b32.xlu0 %v3010, 64
    %v3015 = vpop.permute.xlu0 %3014
    %3016 = vrot.lane.b32.xlu0 %v3011, 64
    %v3017 = vpop.permute.xlu0 %3016
    %3020 = vst.msk [vmem:[#allocation3] sm:$0x20] %vm896, %v3015
    %3021 = vst.msk [vmem:[#allocation3 + $0x8] sm:$0x20] %vm896, %v3017
    %v3022 = vpack.c.bf16 %v2884, %v2884
    %v3023 = vpack.c.bf16 %v2885, %v2885
    %v3026 = vunpack.c.l.b16 %v3022
    %v3027 = vunpack.c.l.b16 %v3023
    %v3028 = vrot.slane %v3026, 2
    %v3029 = vrot.slane %v3027, 1
    %v3030 = vsel %vm400, %v3029, %v3028
    %v3031 = vpack.c.b16 %v3030, %v3030
    %3032 = vrot.lane.b32.xlu0 %v3031, 64
    %v3033 = vpop.permute.xlu0 %3032
    %v3035 = vsel %vm166, %v3033, 0
    %3037 = vmatprep.subr.bf16.mxu0 0
    %3038 = vmatpush1.bf16.msra.mxu0 0
    %3039 = vmatprep.subr.bf16.mxu0 0
    %3040 = vmatpush1.bf16.msra.mxu0 0
    %3041 = vmatprep.subr.bf16.mxu0 0
    %3042 = vmatpush1.bf16.msra.mxu0 0
    %3043 = vmatprep.subr.bf16.mxu0 0
    %3044 = vmatpush1.bf16.msra.mxu0 0
    %3045 = vmatprep.subr.bf16.mxu0 0
    %3046 = vmatpush1.bf16.msra.mxu0 0
    %3047 = vmatprep.subr.bf16.mxu0 0
    %3048 = vmatpush1.bf16.msra.mxu0 0
    %3049 = vmatprep.subr.bf16.mxu0 0
    %3050 = vmatpush1.bf16.msra.mxu0 %v2297
    %3051 = vmatprep.subr.bf16.mxu0 0
    %3052 = vmatpush1.bf16.msra.mxu0 %v2296
    %3053 = vmatprep.subr.bf16.mxu0 0
    %3054 = vmatpush2.bf16.msra.mxu0 0
    %3055 = vmatprep.subr.bf16.mxu0 0
    %3056 = vmatpush2.bf16.msra.mxu0 0
    %3057 = vmatprep.subr.bf16.mxu0 0
    %3058 = vmatpush2.bf16.msra.mxu0 0
    %3059 = vmatprep.subr.bf16.mxu0 0
    %3060 = vmatpush2.bf16.msra.mxu0 0
    %3061 = vmatprep.subr.bf16.mxu0 0
    %3062 = vmatpush2.bf16.msra.mxu0 0
    %3063 = vmatprep.subr.bf16.mxu0 0
    %3064 = vmatpush2.bf16.msra.mxu0 0
    %3065 = vmatprep.subr.bf16.mxu0 0
    %3066 = vmatpush2.bf16.msra.mxu0 0
    %3067 = vmatprep.subr.bf16.mxu0 0
    %3068 = vmatpush2.bf16.msra.mxu0 0
    %3069 = vmatprep.mubr.bf16.mxu0 0
    %3070 = vmatmul.mubr.bf16.gmra.mxu0 %v3035
    %v3071 = vpop.f32.mrf.mxu0
    %v3072 = vadd.f32 0.0, %v3071
    %v3073 = vpop.f32.mrf.mxu0
    %v3074 = vpop.f32.mrf.mxu0
    %v3075 = vpop.f32.mrf.mxu0
    %3076 = vdwg.mxu0
    %v3078 = vrot.slane %v3072, 5
    %v3079 = vrot.slane %v3072, 6
    %v3082 = vadd.f32 %v2280, %v3078
    %v3083 = vadd.f32 %v2284, %v3079
    %v3084 = vxor.u32 %v3082, 2147483648
    %v3085 = vxor.u32 %v3083, 2147483648
    %v3086 = vmul.f32 %v3084, 1.442695
    %v3087 = vpow.pop %v3086
    %v3088 = vmul.f32 %v3085, 1.442695
    %v3089 = vpow.pop %v3088
    %v3090 = vadd.f32 %v3087, 1.0
    %v3091 = vadd.f32 %v3089, 1.0
    %v3092 = vrcp.pop %v3090
    %v3093 = vmul.f32 1.0, %v3092
    %v3094 = vrcp.pop %v3091
    %v3095 = vmul.f32 1.0, %v3094
    %v3096 = vtanh.pop %v3082
    %v3097 = vtanh.pop %v3083
    %v3100 = vrot.slane %v2872, 7
    %v3101 = vrot.slane %v2873, 7
    %v3104 = vmul.f32 %v3093, %v3100
    %v3105 = vmul.f32 %v3095, %v3101
    %3108 = vrot.lane.b32.xlu0 %v3096, 32
    %v3109 = vpop.permute.xlu0 %3108
    %3110 = vrot.lane.b32.xlu0 %v3097, 32
    %v3111 = vpop.permute.xlu0 %3110
    %v3114 = vmul.f32 %v3093, %v3109
    %v3115 = vmul.f32 %v3095, %v3111
    %3118 = vrot.lane.b32.xlu0 %v3114, 32
    %v3119 = vpop.permute.xlu0 %3118
    %3120 = vrot.lane.b32.xlu0 %v3115, 32
    %v3121 = vpop.permute.xlu0 %3120
    %v3124 = vadd.f32 %v3104, %v3119
    %v3125 = vadd.f32 %v3105, %v3121
    %v3126 = vtanh.pop %v3124
    %v3127 = vtanh.pop %v3125
    %3130 = vrot.lane.b32.xlu0 %v3126, 32
    %v3131 = vpop.permute.xlu0 %3130
    %3132 = vrot.lane.b32.xlu0 %v3127, 32
    %v3133 = vpop.permute.xlu0 %3132
    %v3136 = vmul.f32 %v3093, %v3131
    %v3137 = vmul.f32 %v3095, %v3133
    %3140 = vrot.lane.b32.xlu0 %v3136, 64
    %v3141 = vpop.permute.xlu0 %3140
    %3142 = vrot.lane.b32.xlu0 %v3137, 64
    %v3143 = vpop.permute.xlu0 %3142
    %3146 = vst.msk [vmem:[#allocation2] sm:$0x8] %vm1023, %v3141
    %3147 = vst.msk [vmem:[#allocation2 + $0x8] sm:$0x8] %vm1023, %v3143
    %v3148 = vpack.c.bf16 %v3010, %v3010
    %v3149 = vpack.c.bf16 %v3011, %v3011
    %v3152 = vunpack.c.l.b16 %v3148
    %v3153 = vunpack.c.l.b16 %v3149
    %v3154 = vrot.slane %v3152, 5
    %v3155 = vrot.slane %v3153, 4
    %v3156 = vsel %vm400, %v3155, %v3154
    %v3157 = vpack.c.b16 %v3156, %v3156
    %3158 = vrot.lane.b32.xlu0 %v3157, 64
    %v3159 = vpop.permute.xlu0 %3158
    %v3161 = vsel %vm166, %v3159, 0
    %3163 = vmatprep.subr.bf16.mxu0 0
    %3164 = vmatpush1.bf16.msra.mxu0 0
    %3165 = vmatprep.subr.bf16.mxu0 0
    %3166 = vmatpush1.bf16.msra.mxu0 0
    %3167 = vmatprep.subr.bf16.mxu0 0
    %3168 = vmatpush1.bf16.msra.mxu0 0
    %3169 = vmatprep.subr.bf16.mxu0 0
    %3170 = vmatpush1.bf16.msra.mxu0 0
    %3171 = vmatprep.subr.bf16.mxu0 0
    %3172 = vmatpush1.bf16.msra.mxu0 0
    %3173 = vmatprep.subr.bf16.mxu0 0
    %3174 = vmatpush1.bf16.msra.mxu0 0
    %3175 = vmatprep.subr.bf16.mxu0 0
    %3176 = vmatpush1.bf16.msra.mxu0 %v2413
    %3177 = vmatprep.subr.bf16.mxu0 0
    %3178 = vmatpush1.bf16.msra.mxu0 %v2412
    %3179 = vmatprep.subr.bf16.mxu0 0
    %3180 = vmatpush2.bf16.msra.mxu0 0
    %3181 = vmatprep.subr.bf16.mxu0 0
    %3182 = vmatpush2.bf16.msra.mxu0 0
    %3183 = vmatprep.subr.bf16.mxu0 0
    %3184 = vmatpush2.bf16.msra.mxu0 0
    %3185 = vmatprep.subr.bf16.mxu0 0
    %3186 = vmatpush2.bf16.msra.mxu0 0
    %3187 = vmatprep.subr.bf16.mxu0 0
    %3188 = vmatpush2.bf16.msra.mxu0 0
    %3189 = vmatprep.subr.bf16.mxu0 0
    %3190 = vmatpush2.bf16.msra.mxu0 0
    %3191 = vmatprep.subr.bf16.mxu0 0
    %3192 = vmatpush2.bf16.msra.mxu0 0
    %3193 = vmatprep.subr.bf16.mxu0 0
    %3194 = vmatpush2.bf16.msra.mxu0 0
    %3195 = vmatprep.mubr.bf16.mxu0 0
    %3196 = vmatmul.mubr.bf16.gmra.mxu0 %v3161
    %v3197 = vpop.f32.mrf.mxu0
    %v3198 = vadd.f32 0.0, %v3197
    %v3199 = vpop.f32.mrf.mxu0
    %v3200 = vpop.f32.mrf.mxu0
    %v3201 = vpop.f32.mrf.mxu0
    %3202 = vdwg.mxu0
    %v3204 = vrot.slane %v3198, 4
    %v3205 = vrot.slane %v3198, 5
    %v3208 = vadd.f32 %v2282, %v3204
    %v3209 = vadd.f32 %v2286, %v3205
    %v3210 = vxor.u32 %v3208, 2147483648
    %v3211 = vxor.u32 %v3209, 2147483648
    %v3212 = vmul.f32 %v3210, 1.442695
    %v3213 = vpow.pop %v3212
    %v3214 = vmul.f32 %v3211, 1.442695
    %v3215 = vpow.pop %v3214
    %v3216 = vadd.f32 %v3213, 1.0
    %v3217 = vadd.f32 %v3215, 1.0
    %v3218 = vrcp.pop %v3216
    %v3219 = vmul.f32 1.0, %v3218
    %v3220 = vrcp.pop %v3217
    %v3221 = vmul.f32 1.0, %v3220
    %v3222 = vtanh.pop %v3208
    %v3223 = vtanh.pop %v3209
    %v3226 = vrot.slane %v2998, 1
    %v3227 = vrot.slane %v2999, 1
    %v3230 = vmul.f32 %v3219, %v3226
    %v3231 = vmul.f32 %v3221, %v3227
    %3234 = vrot.lane.b32.xlu0 %v3222, 32
    %v3235 = vpop.permute.xlu0 %3234
    %3236 = vrot.lane.b32.xlu0 %v3223, 32
    %v3237 = vpop.permute.xlu0 %3236
    %v3240 = vmul.f32 %v3219, %v3235
    %v3241 = vmul.f32 %v3221, %v3237
    %3244 = vrot.lane.b32.xlu0 %v3240, 32
    %v3245 = vpop.permute.xlu0 %3244
    %3246 = vrot.lane.b32.xlu0 %v3241, 32
    %v3247 = vpop.permute.xlu0 %3246
    %v3250 = vadd.f32 %v3230, %v3245
    %v3251 = vadd.f32 %v3231, %v3247
    %v3252 = vtanh.pop %v3250
    %v3253 = vtanh.pop %v3251
    %3256 = vrot.lane.b32.xlu0 %v3252, 32
    %v3257 = vpop.permute.xlu0 %3256
    %3258 = vrot.lane.b32.xlu0 %v3253, 32
    %v3259 = vpop.permute.xlu0 %3258
    %v3262 = vmul.f32 %v3219, %v3257
    %v3263 = vmul.f32 %v3221, %v3259
    %3266 = vrot.lane.b32.xlu0 %v3262, 64
    %v3267 = vpop.permute.xlu0 %3266
    %3268 = vrot.lane.b32.xlu0 %v3263, 64
    %v3269 = vpop.permute.xlu0 %3268
    %3272 = vst.msk [vmem:[#allocation3] sm:$0x10] %vm1150, %v3267
    %3273 = vst.msk [vmem:[#allocation3 + $0x8] sm:$0x10] %vm1150, %v3269
    %v3274 = vpack.c.bf16 %v3136, %v3136
    %v3275 = vpack.c.bf16 %v3137, %v3137
    %v3278 = vunpack.c.l.b16 %v3274
    %v3279 = vunpack.c.l.b16 %v3275
    %v3280 = vrot.slane %v3278, 3
    %v3281 = vrot.slane %v3279, 2
    %v3282 = vsel %vm400, %v3281, %v3280
    %v3283 = vpack.c.b16 %v3282, %v3282
    %3284 = vrot.lane.b32.xlu0 %v3283, 64
    %v3285 = vpop.permute.xlu0 %3284
    %v3287 = vsel %vm166, %v3285, 0
    %3289 = vmatprep.subr.bf16.mxu0 0
    %3290 = vmatpush1.bf16.msra.mxu0 0
    %3291 = vmatprep.subr.bf16.mxu0 0
    %3292 = vmatpush1.bf16.msra.mxu0 0
    %3293 = vmatprep.subr.bf16.mxu0 0
    %3294 = vmatpush1.bf16.msra.mxu0 0
    %3295 = vmatprep.subr.bf16.mxu0 0
    %3296 = vmatpush1.bf16.msra.mxu0 0
    %3297 = vmatprep.subr.bf16.mxu0 0
    %3298 = vmatpush1.bf16.msra.mxu0 0
    %3299 = vmatprep.subr.bf16.mxu0 0
    %3300 = vmatpush1.bf16.msra.mxu0 0
    %3301 = vmatprep.subr.bf16.mxu0 0
    %3302 = vmatpush1.bf16.msra.mxu0 %v2297
    %3303 = vmatprep.subr.bf16.mxu0 0
    %3304 = vmatpush1.bf16.msra.mxu0 %v2296
    %3305 = vmatprep.subr.bf16.mxu0 0
    %3306 = vmatpush2.bf16.msra.mxu0 0
    %3307 = vmatprep.subr.bf16.mxu0 0
    %3308 = vmatpush2.bf16.msra.mxu0 0
    %3309 = vmatprep.subr.bf16.mxu0 0
    %3310 = vmatpush2.bf16.msra.mxu0 0
    %3311 = vmatprep.subr.bf16.mxu0 0
    %3312 = vmatpush2.bf16.msra.mxu0 0
    %3313 = vmatprep.subr.bf16.mxu0 0
    %3314 = vmatpush2.bf16.msra.mxu0 0
    %3315 = vmatprep.subr.bf16.mxu0 0
    %3316 = vmatpush2.bf16.msra.mxu0 0
    %3317 = vmatprep.subr.bf16.mxu0 0
    %3318 = vmatpush2.bf16.msra.mxu0 0
    %3319 = vmatprep.subr.bf16.mxu0 0
    %3320 = vmatpush2.bf16.msra.mxu0 0
    %3321 = vmatprep.mubr.bf16.mxu0 0
    %3322 = vmatmul.mubr.bf16.gmra.mxu0 %v3287
    %v3323 = vpop.f32.mrf.mxu0
    %v3324 = vadd.f32 0.0, %v3323
    %v3325 = vpop.f32.mrf.mxu0
    %v3326 = vpop.f32.mrf.mxu0
    %v3327 = vpop.f32.mrf.mxu0
    %3328 = vdwg.mxu0
    %v3330 = vrot.slane %v3324, 4
    %v3331 = vrot.slane %v3324, 5
    %v3334 = vadd.f32 %v2280, %v3330
    %v3335 = vadd.f32 %v2284, %v3331
    %v3336 = vxor.u32 %v3334, 2147483648
    %v3337 = vxor.u32 %v3335, 2147483648
    %v3338 = vmul.f32 %v3336, 1.442695
    %v3339 = vpow.pop %v3338
    %v3340 = vmul.f32 %v3337, 1.442695
    %v3341 = vpow.pop %v3340
    %v3342 = vadd.f32 %v3339, 1.0
    %v3343 = vadd.f32 %v3341, 1.0
    %v3344 = vrcp.pop %v3342
    %v3345 = vmul.f32 1.0, %v3344
    %v3346 = vrcp.pop %v3343
    %v3347 = vmul.f32 1.0, %v3346
    %v3348 = vtanh.pop %v3334
    %v3349 = vtanh.pop %v3335
    %v3352 = vrot.slane %v3124, 7
    %v3353 = vrot.slane %v3125, 7
    %v3356 = vmul.f32 %v3345, %v3352
    %v3357 = vmul.f32 %v3347, %v3353
    %3360 = vrot.lane.b32.xlu0 %v3348, 32
    %v3361 = vpop.permute.xlu0 %3360
    %3362 = vrot.lane.b32.xlu0 %v3349, 32
    %v3363 = vpop.permute.xlu0 %3362
    %v3366 = vmul.f32 %v3345, %v3361
    %v3367 = vmul.f32 %v3347, %v3363
    %3370 = vrot.lane.b32.xlu0 %v3366, 32
    %v3371 = vpop.permute.xlu0 %3370
    %3372 = vrot.lane.b32.xlu0 %v3367, 32
    %v3373 = vpop.permute.xlu0 %3372
    %v3376 = vadd.f32 %v3356, %v3371
    %v3377 = vadd.f32 %v3357, %v3373
    %v3378 = vtanh.pop %v3376
    %v3379 = vtanh.pop %v3377
    %3382 = vrot.lane.b32.xlu0 %v3378, 32
    %v3383 = vpop.permute.xlu0 %3382
    %3384 = vrot.lane.b32.xlu0 %v3379, 32
    %v3385 = vpop.permute.xlu0 %3384
    %v3388 = vmul.f32 %v3345, %v3383
    %v3389 = vmul.f32 %v3347, %v3385
    %3392 = vrot.lane.b32.xlu0 %v3388, 64
    %v3393 = vpop.permute.xlu0 %3392
    %3394 = vrot.lane.b32.xlu0 %v3389, 64
    %v3395 = vpop.permute.xlu0 %3394
    %3398 = vst.msk [vmem:[#allocation2] sm:$0x10] %vm1150, %v3393
    %3399 = vst.msk [vmem:[#allocation2 + $0x8] sm:$0x10] %vm1150, %v3395
    %v3400 = vpack.c.bf16 %v3262, %v3262
    %v3401 = vpack.c.bf16 %v3263, %v3263
    %v3404 = vunpack.c.l.b16 %v3400
    %v3405 = vunpack.c.l.b16 %v3401
    %v3406 = vrot.slane %v3404, 4
    %v3407 = vrot.slane %v3405, 3
    %v3408 = vsel %vm400, %v3407, %v3406
    %v3409 = vpack.c.b16 %v3408, %v3408
    %3410 = vrot.lane.b32.xlu0 %v3409, 64
    %v3411 = vpop.permute.xlu0 %3410
    %v3413 = vsel %vm166, %v3411, 0
    %3415 = vmatprep.subr.bf16.mxu0 0
    %3416 = vmatpush1.bf16.msra.mxu0 0
    %3417 = vmatprep.subr.bf16.mxu0 0
    %3418 = vmatpush1.bf16.msra.mxu0 0
    %3419 = vmatprep.subr.bf16.mxu0 0
    %3420 = vmatpush1.bf16.msra.mxu0 0
    %3421 = vmatprep.subr.bf16.mxu0 0
    %3422 = vmatpush1.bf16.msra.mxu0 0
    %3423 = vmatprep.subr.bf16.mxu0 0
    %3424 = vmatpush1.bf16.msra.mxu0 0
    %3425 = vmatprep.subr.bf16.mxu0 0
    %3426 = vmatpush1.bf16.msra.mxu0 0
    %3427 = vmatprep.subr.bf16.mxu0 0
    %3428 = vmatpush1.bf16.msra.mxu0 %v2413
    %3429 = vmatprep.subr.bf16.mxu0 0
    %3430 = vmatpush1.bf16.msra.mxu0 %v2412
    %3431 = vmatprep.subr.bf16.mxu0 0
    %3432 = vmatpush2.bf16.msra.mxu0 0
    %3433 = vmatprep.subr.bf16.mxu0 0
    %3434 = vmatpush2.bf16.msra.mxu0 0
    %3435 = vmatprep.subr.bf16.mxu0 0
    %3436 = vmatpush2.bf16.msra.mxu0 0
    %3437 = vmatprep.subr.bf16.mxu0 0
    %3438 = vmatpush2.bf16.msra.mxu0 0
    %3439 = vmatprep.subr.bf16.mxu0 0
    %3440 = vmatpush2.bf16.msra.mxu0 0
    %3441 = vmatprep.subr.bf16.mxu0 0
    %3442 = vmatpush2.bf16.msra.mxu0 0
    %3443 = vmatprep.subr.bf16.mxu0 0
    %3444 = vmatpush2.bf16.msra.mxu0 0
    %3445 = vmatprep.subr.bf16.mxu0 0
    %3446 = vmatpush2.bf16.msra.mxu0 0
    %3447 = vmatprep.mubr.bf16.mxu0 0
    %3448 = vmatmul.mubr.bf16.gmra.mxu0 %v3413
    %v3449 = vpop.f32.mrf.mxu0
    %v3450 = vadd.f32 0.0, %v3449
    %v3451 = vpop.f32.mrf.mxu0
    %v3452 = vpop.f32.mrf.mxu0
    %v3453 = vpop.f32.mrf.mxu0
    %3454 = vdwg.mxu0
    %v3456 = vrot.slane %v3450, 5
    %v3457 = vrot.slane %v3450, 6
    %v3460 = vadd.f32 %v2282, %v3456
    %v3461 = vadd.f32 %v2286, %v3457
    %v3462 = vxor.u32 %v3460, 2147483648
    %v3463 = vxor.u32 %v3461, 2147483648
    %v3464 = vmul.f32 %v3462, 1.442695
    %v3465 = vpow.pop %v3464
    %v3466 = vmul.f32 %v3463, 1.442695
    %v3467 = vpow.pop %v3466
    %v3468 = vadd.f32 %v3465, 1.0
    %v3469 = vadd.f32 %v3467, 1.0
    %v3470 = vrcp.pop %v3468
    %v3471 = vmul.f32 1.0, %v3470
    %v3472 = vrcp.pop %v3469
    %v3473 = vmul.f32 1.0, %v3472
    %v3474 = vtanh.pop %v3460
    %v3475 = vtanh.pop %v3461
    %v3478 = vrot.slane %v3250, 1
    %v3479 = vrot.slane %v3251, 1
    %v3482 = vmul.f32 %v3471, %v3478
    %v3483 = vmul.f32 %v3473, %v3479
    %3486 = vrot.lane.b32.xlu0 %v3474, 32
    %v3487 = vpop.permute.xlu0 %3486
    %3488 = vrot.lane.b32.xlu0 %v3475, 32
    %v3489 = vpop.permute.xlu0 %3488
    %v3492 = vmul.f32 %v3471, %v3487
    %v3493 = vmul.f32 %v3473, %v3489
    %3496 = vrot.lane.b32.xlu0 %v3492, 32
    %v3497 = vpop.permute.xlu0 %3496
    %3498 = vrot.lane.b32.xlu0 %v3493, 32
    %v3499 = vpop.permute.xlu0 %3498
    %v3502 = vadd.f32 %v3482, %v3497
    %v3503 = vadd.f32 %v3483, %v3499
    %v3504 = vtanh.pop %v3502
    %v3505 = vtanh.pop %v3503
    %3508 = vrot.lane.b32.xlu0 %v3504, 32
    %v3509 = vpop.permute.xlu0 %3508
    %3510 = vrot.lane.b32.xlu0 %v3505, 32
    %v3511 = vpop.permute.xlu0 %3510
    %v3514 = vmul.f32 %v3471, %v3509
    %v3515 = vmul.f32 %v3473, %v3511
    %3518 = vrot.lane.b32.xlu0 %v3514, 64
    %v3519 = vpop.permute.xlu0 %3518
    %3520 = vrot.lane.b32.xlu0 %v3515, 64
    %v3521 = vpop.permute.xlu0 %3520
    %3524 = vst.msk [vmem:[#allocation3] sm:$0x8] %vm1023, %v3519
    %3525 = vst.msk [vmem:[#allocation3 + $0x8] sm:$0x8] %vm1023, %v3521
    %v3526 = vpack.c.bf16 %v3388, %v3388
    %v3527 = vpack.c.bf16 %v3389, %v3389
    %v3530 = vunpack.c.l.b16 %v3526
    %v3531 = vunpack.c.l.b16 %v3527
    %v3532 = vrot.slane %v3530, 4
    %v3533 = vrot.slane %v3531, 3
    %v3534 = vsel %vm400, %v3533, %v3532
    %v3535 = vpack.c.b16 %v3534, %v3534
    %3536 = vrot.lane.b32.xlu0 %v3535, 64
    %v3537 = vpop.permute.xlu0 %3536
    %v3539 = vsel %vm166, %v3537, 0
    %3541 = vmatprep.subr.bf16.mxu0 0
    %3542 = vmatpush1.bf16.msra.mxu0 0
    %3543 = vmatprep.subr.bf16.mxu0 0
    %3544 = vmatpush1.bf16.msra.mxu0 0
    %3545 = vmatprep.subr.bf16.mxu0 0
    %3546 = vmatpush1.bf16.msra.mxu0 0
    %3547 = vmatprep.subr.bf16.mxu0 0
    %3548 = vmatpush1.bf16.msra.mxu0 0
    %3549 = vmatprep.subr.bf16.mxu0 0
    %3550 = vmatpush1.bf16.msra.mxu0 0
    %3551 = vmatprep.subr.bf16.mxu0 0
    %3552 = vmatpush1.bf16.msra.mxu0 0
    %3553 = vmatprep.subr.bf16.mxu0 0
    %3554 = vmatpush1.bf16.msra.mxu0 %v2297
    %3555 = vmatprep.subr.bf16.mxu0 0
    %3556 = vmatpush1.bf16.msra.mxu0 %v2296
    %3557 = vmatprep.subr.bf16.mxu0 0
    %3558 = vmatpush2.bf16.msra.mxu0 0
    %3559 = vmatprep.subr.bf16.mxu0 0
    %3560 = vmatpush2.bf16.msra.mxu0 0
    %3561 = vmatprep.subr.bf16.mxu0 0
    %3562 = vmatpush2.bf16.msra.mxu0 0
    %3563 = vmatprep.subr.bf16.mxu0 0
    %3564 = vmatpush2.bf16.msra.mxu0 0
    %3565 = vmatprep.subr.bf16.mxu0 0
    %3566 = vmatpush2.bf16.msra.mxu0 0
    %3567 = vmatprep.subr.bf16.mxu0 0
    %3568 = vmatpush2.bf16.msra.mxu0 0
    %3569 = vmatprep.subr.bf16.mxu0 0
    %3570 = vmatpush2.bf16.msra.mxu0 0
    %3571 = vmatprep.subr.bf16.mxu0 0
    %3572 = vmatpush2.bf16.msra.mxu0 0
    %3573 = vmatprep.mubr.bf16.mxu0 0
    %3574 = vmatmul.mubr.bf16.gmra.mxu0 %v3539
    %v3575 = vpop.f32.mrf.mxu0
    %v3576 = vadd.f32 0.0, %v3575
    %v3577 = vpop.f32.mrf.mxu0
    %v3578 = vpop.f32.mrf.mxu0
    %v3579 = vpop.f32.mrf.mxu0
    %3580 = vdwg.mxu0
    %v3582 = vrot.slane %v3576, 3
    %v3583 = vrot.slane %v3576, 4
    %v3586 = vadd.f32 %v2280, %v3582
    %v3587 = vadd.f32 %v2284, %v3583
    %v3588 = vxor.u32 %v3586, 2147483648
    %v3589 = vxor.u32 %v3587, 2147483648
    %v3590 = vmul.f32 %v3588, 1.442695
    %v3591 = vpow.pop %v3590
    %v3592 = vmul.f32 %v3589, 1.442695
    %v3593 = vpow.pop %v3592
    %v3594 = vadd.f32 %v3591, 1.0
    %v3595 = vadd.f32 %v3593, 1.0
    %v3596 = vrcp.pop %v3594
    %v3597 = vmul.f32 1.0, %v3596
    %v3598 = vrcp.pop %v3595
    %v3599 = vmul.f32 1.0, %v3598
    %v3600 = vtanh.pop %v3586
    %v3601 = vtanh.pop %v3587
    %v3604 = vrot.slane %v3376, 7
    %v3605 = vrot.slane %v3377, 7
    %v3608 = vmul.f32 %v3597, %v3604
    %v3609 = vmul.f32 %v3599, %v3605
    %3612 = vrot.lane.b32.xlu0 %v3600, 32
    %v3613 = vpop.permute.xlu0 %3612
    %3614 = vrot.lane.b32.xlu0 %v3601, 32
    %v3615 = vpop.permute.xlu0 %3614
    %v3618 = vmul.f32 %v3597, %v3613
    %v3619 = vmul.f32 %v3599, %v3615
    %3622 = vrot.lane.b32.xlu0 %v3618, 32
    %v3623 = vpop.permute.xlu0 %3622
    %3624 = vrot.lane.b32.xlu0 %v3619, 32
    %v3625 = vpop.permute.xlu0 %3624
    %v3628 = vadd.f32 %v3608, %v3623
    %v3629 = vadd.f32 %v3609, %v3625
    %v3630 = vtanh.pop %v3628
    %v3631 = vtanh.pop %v3629
    %3634 = vrot.lane.b32.xlu0 %v3630, 32
    %v3635 = vpop.permute.xlu0 %3634
    %3636 = vrot.lane.b32.xlu0 %v3631, 32
    %v3637 = vpop.permute.xlu0 %3636
    %v3640 = vmul.f32 %v3597, %v3635
    %v3641 = vmul.f32 %v3599, %v3637
    %3644 = vrot.lane.b32.xlu0 %v3640, 64
    %v3645 = vpop.permute.xlu0 %3644
    %3646 = vrot.lane.b32.xlu0 %v3641, 64
    %v3647 = vpop.permute.xlu0 %3646
    %3650 = vst.msk [vmem:[#allocation2] sm:$0x20] %vm896, %v3645
    %3651 = vst.msk [vmem:[#allocation2 + $0x8] sm:$0x20] %vm896, %v3647
    %v3652 = vpack.c.bf16 %v3514, %v3514
    %v3653 = vpack.c.bf16 %v3515, %v3515
    %v3656 = vunpack.c.l.b16 %v3652
    %v3657 = vunpack.c.l.b16 %v3653
    %v3658 = vrot.slane %v3656, 3
    %v3659 = vrot.slane %v3657, 2
    %v3660 = vsel %vm400, %v3659, %v3658
    %v3661 = vpack.c.b16 %v3660, %v3660
    %3662 = vrot.lane.b32.xlu0 %v3661, 64
    %v3663 = vpop.permute.xlu0 %3662
    %v3665 = vsel %vm166, %v3663, 0
    %3667 = vmatprep.subr.bf16.mxu0 0
    %3668 = vmatpush1.bf16.msra.mxu0 0
    %3669 = vmatprep.subr.bf16.mxu0 0
    %3670 = vmatpush1.bf16.msra.mxu0 0
    %3671 = vmatprep.subr.bf16.mxu0 0
    %3672 = vmatpush1.bf16.msra.mxu0 0
    %3673 = vmatprep.subr.bf16.mxu0 0
    %3674 = vmatpush1.bf16.msra.mxu0 0
    %3675 = vmatprep.subr.bf16.mxu0 0
    %3676 = vmatpush1.bf16.msra.mxu0 0
    %3677 = vmatprep.subr.bf16.mxu0 0
    %3678 = vmatpush1.bf16.msra.mxu0 0
    %3679 = vmatprep.subr.bf16.mxu0 0
    %3680 = vmatpush1.bf16.msra.mxu0 %v2413
    %3681 = vmatprep.subr.bf16.mxu0 0
    %3682 = vmatpush1.bf16.msra.mxu0 %v2412
    %3683 = vmatprep.subr.bf16.mxu0 0
    %3684 = vmatpush2.bf16.msra.mxu0 0
    %3685 = vmatprep.subr.bf16.mxu0 0
    %3686 = vmatpush2.bf16.msra.mxu0 0
    %3687 = vmatprep.subr.bf16.mxu0 0
    %3688 = vmatpush2.bf16.msra.mxu0 0
    %3689 = vmatprep.subr.bf16.mxu0 0
    %3690 = vmatpush2.bf16.msra.mxu0 0
    %3691 = vmatprep.subr.bf16.mxu0 0
    %3692 = vmatpush2.bf16.msra.mxu0 0
    %3693 = vmatprep.subr.bf16.mxu0 0
    %3694 = vmatpush2.bf16.msra.mxu0 0
    %3695 = vmatprep.subr.bf16.mxu0 0
    %3696 = vmatpush2.bf16.msra.mxu0 0
    %3697 = vmatprep.subr.bf16.mxu0 0
    %3698 = vmatpush2.bf16.msra.mxu0 0
    %3699 = vmatprep.mubr.bf16.mxu0 0
    %3700 = vmatmul.mubr.bf16.gmra.mxu0 %v3665
    %v3701 = vpop.f32.mrf.mxu0
    %v3702 = vadd.f32 0.0, %v3701
    %v3703 = vpop.f32.mrf.mxu0
    %v3704 = vpop.f32.mrf.mxu0
    %v3705 = vpop.f32.mrf.mxu0
    %3706 = vdwg.mxu0
    %v3708 = vrot.slane %v3702, 6
    %v3709 = vrot.slane %v3702, 7
    %v3712 = vadd.f32 %v2282, %v3708
    %v3713 = vadd.f32 %v2286, %v3709
    %v3714 = vxor.u32 %v3712, 2147483648
    %v3715 = vxor.u32 %v3713, 2147483648
    %v3716 = vmul.f32 %v3714, 1.442695
    %v3717 = vpow.pop %v3716
    %v3718 = vmul.f32 %v3715, 1.442695
    %v3719 = vpow.pop %v3718
    %v3720 = vadd.f32 %v3717, 1.0
    %v3721 = vadd.f32 %v3719, 1.0
    %v3722 = vrcp.pop %v3720
    %v3723 = vmul.f32 1.0, %v3722
    %v3724 = vrcp.pop %v3721
    %v3725 = vmul.f32 1.0, %v3724
    %v3726 = vtanh.pop %v3712
    %v3727 = vtanh.pop %v3713
    %v3730 = vrot.slane %v3502, 1
    %v3731 = vrot.slane %v3503, 1
    %v3734 = vmul.f32 %v3723, %v3730
    %v3735 = vmul.f32 %v3725, %v3731
    %3738 = vrot.lane.b32.xlu0 %v3726, 32
    %v3739 = vpop.permute.xlu0 %3738
    %3740 = vrot.lane.b32.xlu0 %v3727, 32
    %v3741 = vpop.permute.xlu0 %3740
    %v3744 = vmul.f32 %v3723, %v3739
    %v3745 = vmul.f32 %v3725, %v3741
    %3748 = vrot.lane.b32.xlu0 %v3744, 32
    %v3749 = vpop.permute.xlu0 %3748
    %3750 = vrot.lane.b32.xlu0 %v3745, 32
    %v3751 = vpop.permute.xlu0 %3750
    %v3754 = vadd.f32 %v3734, %v3749
    %v3755 = vadd.f32 %v3735, %v3751
    %v3756 = vtanh.pop %v3754
    %v3757 = vtanh.pop %v3755
    %3760 = vrot.lane.b32.xlu0 %v3756, 32
    %v3761 = vpop.permute.xlu0 %3760
    %3762 = vrot.lane.b32.xlu0 %v3757, 32
    %v3763 = vpop.permute.xlu0 %3762
    %v3766 = vmul.f32 %v3723, %v3761
    %v3767 = vmul.f32 %v3725, %v3763
    %3770 = vrot.lane.b32.xlu0 %v3766, 64
    %v3771 = vpop.permute.xlu0 %3770
    %3772 = vrot.lane.b32.xlu0 %v3767, 64
    %v3773 = vpop.permute.xlu0 %3772
    %3776 = vst.msk [vmem:[#allocation3] sm:$0x4] %vm769, %v3771
    %3777 = vst.msk [vmem:[#allocation3 + $0x8] sm:$0x4] %vm769, %v3773
    %v3778 = vpack.c.bf16 %v3640, %v3640
    %v3779 = vpack.c.bf16 %v3641, %v3641
    %v3782 = vunpack.c.l.b16 %v3778
    %v3783 = vunpack.c.l.b16 %v3779
    %v3784 = vrot.slane %v3782, 5
    %v3785 = vrot.slane %v3783, 4
    %v3786 = vsel %vm400, %v3785, %v3784
    %v3787 = vpack.c.b16 %v3786, %v3786
    %3788 = vrot.lane.b32.xlu0 %v3787, 64
    %v3789 = vpop.permute.xlu0 %3788
    %v3791 = vsel %vm166, %v3789, 0
    %3793 = vmatprep.subr.bf16.mxu0 0
    %3794 = vmatpush1.bf16.msra.mxu0 0
    %3795 = vmatprep.subr.bf16.mxu0 0
    %3796 = vmatpush1.bf16.msra.mxu0 0
    %3797 = vmatprep.subr.bf16.mxu0 0
    %3798 = vmatpush1.bf16.msra.mxu0 0
    %3799 = vmatprep.subr.bf16.mxu0 0
    %3800 = vmatpush1.bf16.msra.mxu0 0
    %3801 = vmatprep.subr.bf16.mxu0 0
    %3802 = vmatpush1.bf16.msra.mxu0 0
    %3803 = vmatprep.subr.bf16.mxu0 0
    %3804 = vmatpush1.bf16.msra.mxu0 0
    %3805 = vmatprep.subr.bf16.mxu0 0
    %3806 = vmatpush1.bf16.msra.mxu0 %v2297
    %3807 = vmatprep.subr.bf16.mxu0 0
    %3808 = vmatpush1.bf16.msra.mxu0 %v2296
    %3809 = vmatprep.subr.bf16.mxu0 0
    %3810 = vmatpush2.bf16.msra.mxu0 0
    %3811 = vmatprep.subr.bf16.mxu0 0
    %3812 = vmatpush2.bf16.msra.mxu0 0
    %3813 = vmatprep.subr.bf16.mxu0 0
    %3814 = vmatpush2.bf16.msra.mxu0 0
    %3815 = vmatprep.subr.bf16.mxu0 0
    %3816 = vmatpush2.bf16.msra.mxu0 0
    %3817 = vmatprep.subr.bf16.mxu0 0
    %3818 = vmatpush2.bf16.msra.mxu0 0
    %3819 = vmatprep.subr.bf16.mxu0 0
    %3820 = vmatpush2.bf16.msra.mxu0 0
    %3821 = vmatprep.subr.bf16.mxu0 0
    %3822 = vmatpush2.bf16.msra.mxu0 0
    %3823 = vmatprep.subr.bf16.mxu0 0
    %3824 = vmatpush2.bf16.msra.mxu0 0
    %3825 = vmatprep.mubr.bf16.mxu0 0
    %3826 = vmatmul.mubr.bf16.gmra.mxu0 %v3791
    %v3827 = vpop.f32.mrf.mxu0
    %v3828 = vadd.f32 0.0, %v3827
    %v3829 = vpop.f32.mrf.mxu0
    %v3830 = vpop.f32.mrf.mxu0
    %v3831 = vpop.f32.mrf.mxu0
    %3832 = vdwg.mxu0
    %v3834 = vrot.slane %v3828, 2
    %v3835 = vrot.slane %v3828, 3
    %v3838 = vadd.f32 %v2280, %v3834
    %v3839 = vadd.f32 %v2284, %v3835
    %v3840 = vxor.u32 %v3838, 2147483648
    %v3841 = vxor.u32 %v3839, 2147483648
    %v3842 = vmul.f32 %v3840, 1.442695
    %v3843 = vpow.pop %v3842
    %v3844 = vmul.f32 %v3841, 1.442695
    %v3845 = vpow.pop %v3844
    %v3846 = vadd.f32 %v3843, 1.0
    %v3847 = vadd.f32 %v3845, 1.0
    %v3848 = vrcp.pop %v3846
    %v3849 = vmul.f32 1.0, %v3848
    %v3850 = vrcp.pop %v3847
    %v3851 = vmul.f32 1.0, %v3850
    %v3852 = vtanh.pop %v3838
    %v3853 = vtanh.pop %v3839
    %v3856 = vrot.slane %v3628, 7
    %v3857 = vrot.slane %v3629, 7
    %v3860 = vmul.f32 %v3849, %v3856
    %v3861 = vmul.f32 %v3851, %v3857
    %3864 = vrot.lane.b32.xlu0 %v3852, 32
    %v3865 = vpop.permute.xlu0 %3864
    %3866 = vrot.lane.b32.xlu0 %v3853, 32
    %v3867 = vpop.permute.xlu0 %3866
    %v3870 = vmul.f32 %v3849, %v3865
    %v3871 = vmul.f32 %v3851, %v3867
    %3874 = vrot.lane.b32.xlu0 %v3870, 32
    %v3875 = vpop.permute.xlu0 %3874
    %3876 = vrot.lane.b32.xlu0 %v3871, 32
    %v3877 = vpop.permute.xlu0 %3876
    %v3880 = vadd.f32 %v3860, %v3875
    %v3881 = vadd.f32 %v3861, %v3877
    %v3882 = vtanh.pop %v3880
    %v3883 = vtanh.pop %v3881
    %3886 = vrot.lane.b32.xlu0 %v3882, 32
    %v3887 = vpop.permute.xlu0 %3886
    %3888 = vrot.lane.b32.xlu0 %v3883, 32
    %v3889 = vpop.permute.xlu0 %3888
    %v3892 = vmul.f32 %v3849, %v3887
    %v3893 = vmul.f32 %v3851, %v3889
    %3896 = vrot.lane.b32.xlu0 %v3892, 64
    %v3897 = vpop.permute.xlu0 %3896
    %3898 = vrot.lane.b32.xlu0 %v3893, 64
    %v3899 = vpop.permute.xlu0 %3898
    %3902 = vst.msk [vmem:[#allocation2] sm:$0x40] %vm643, %v3897
    %3903 = vst.msk [vmem:[#allocation2 + $0x8] sm:$0x40] %vm643, %v3899
    %v3904 = vpack.c.bf16 %v3766, %v3766
    %v3905 = vpack.c.bf16 %v3767, %v3767
    %v3908 = vunpack.c.l.b16 %v3904
    %v3909 = vunpack.c.l.b16 %v3905
    %v3910 = vrot.slane %v3908, 2
    %v3911 = vrot.slane %v3909, 1
    %v3912 = vsel %vm400, %v3911, %v3910
    %v3913 = vpack.c.b16 %v3912, %v3912
    %3914 = vrot.lane.b32.xlu0 %v3913, 64
    %v3915 = vpop.permute.xlu0 %3914
    %v3917 = vsel %vm166, %v3915, 0
    %3919 = vmatprep.subr.bf16.mxu0 0
    %3920 = vmatpush1.bf16.msra.mxu0 0
    %3921 = vmatprep.subr.bf16.mxu0 0
    %3922 = vmatpush1.bf16.msra.mxu0 0
    %3923 = vmatprep.subr.bf16.mxu0 0
    %3924 = vmatpush1.bf16.msra.mxu0 0
    %3925 = vmatprep.subr.bf16.mxu0 0
    %3926 = vmatpush1.bf16.msra.mxu0 0
    %3927 = vmatprep.subr.bf16.mxu0 0
    %3928 = vmatpush1.bf16.msra.mxu0 0
    %3929 = vmatprep.subr.bf16.mxu0 0
    %3930 = vmatpush1.bf16.msra.mxu0 0
    %3931 = vmatprep.subr.bf16.mxu0 0
    %3932 = vmatpush1.bf16.msra.mxu0 %v2413
    %3933 = vmatprep.subr.bf16.mxu0 0
    %3934 = vmatpush1.bf16.msra.mxu0 %v2412
    %3935 = vmatprep.subr.bf16.mxu0 0
    %3936 = vmatpush2.bf16.msra.mxu0 0
    %3937 = vmatprep.subr.bf16.mxu0 0
    %3938 = vmatpush2.bf16.msra.mxu0 0
    %3939 = vmatprep.subr.bf16.mxu0 0
    %3940 = vmatpush2.bf16.msra.mxu0 0
    %3941 = vmatprep.subr.bf16.mxu0 0
    %3942 = vmatpush2.bf16.msra.mxu0 0
    %3943 = vmatprep.subr.bf16.mxu0 0
    %3944 = vmatpush2.bf16.msra.mxu0 0
    %3945 = vmatprep.subr.bf16.mxu0 0
    %3946 = vmatpush2.bf16.msra.mxu0 0
    %3947 = vmatprep.subr.bf16.mxu0 0
    %3948 = vmatpush2.bf16.msra.mxu0 0
    %3949 = vmatprep.subr.bf16.mxu0 0
    %3950 = vmatpush2.bf16.msra.mxu0 0
    %3951 = vmatprep.mubr.bf16.mxu0 0
    %3952 = vmatmul.mubr.bf16.gmra.mxu0 %v3917
    %v3953 = vpop.f32.mrf.mxu0
    %v3954 = vadd.f32 0.0, %v3953
    %v3955 = vpop.f32.mrf.mxu0
    %v3956 = vpop.f32.mrf.mxu0
    %v3957 = vpop.f32.mrf.mxu0
    %3958 = vdwg.mxu0
    %v3960 = vrot.slane %v3954, 7
    %v3963 = vadd.f32 %v2282, %v3960
    %v3964 = vadd.f32 %v2286, %v3954
    %v3965 = vxor.u32 %v3963, 2147483648
    %v3966 = vxor.u32 %v3964, 2147483648
    %v3967 = vmul.f32 %v3965, 1.442695
    %v3968 = vpow.pop %v3967
    %v3969 = vmul.f32 %v3966, 1.442695
    %v3970 = vpow.pop %v3969
    %v3971 = vadd.f32 %v3968, 1.0
    %v3972 = vadd.f32 %v3970, 1.0
    %v3973 = vrcp.pop %v3971
    %v3974 = vmul.f32 1.0, %v3973
    %v3975 = vrcp.pop %v3972
    %v3976 = vmul.f32 1.0, %v3975
    %v3977 = vtanh.pop %v3963
    %v3978 = vtanh.pop %v3964
    %v3981 = vrot.slane %v3754, 1
    %v3982 = vrot.slane %v3755, 1
    %v3985 = vmul.f32 %v3974, %v3981
    %v3986 = vmul.f32 %v3976, %v3982
    %3989 = vrot.lane.b32.xlu0 %v3977, 32
    %v3990 = vpop.permute.xlu0 %3989
    %3991 = vrot.lane.b32.xlu0 %v3978, 32
    %v3992 = vpop.permute.xlu0 %3991
    %v3995 = vmul.f32 %v3974, %v3990
    %v3996 = vmul.f32 %v3976, %v3992
    %3999 = vrot.lane.b32.xlu0 %v3995, 32
    %v4000 = vpop.permute.xlu0 %3999
    %4001 = vrot.lane.b32.xlu0 %v3996, 32
    %v4002 = vpop.permute.xlu0 %4001
    %v4005 = vadd.f32 %v3985, %v4000
    %v4006 = vadd.f32 %v3986, %v4002
    %v4007 = vtanh.pop %v4005
    %v4008 = vtanh.pop %v4006
    %4011 = vrot.lane.b32.xlu0 %v4007, 32
    %v4012 = vpop.permute.xlu0 %4011
    %4013 = vrot.lane.b32.xlu0 %v4008, 32
    %v4014 = vpop.permute.xlu0 %4013
    %v4017 = vmul.f32 %v3974, %v4012
    %v4018 = vmul.f32 %v3976, %v4014
    %4021 = vrot.lane.b32.xlu0 %v4017, 64
    %v4022 = vpop.permute.xlu0 %4021
    %4023 = vrot.lane.b32.xlu0 %v4018, 64
    %v4024 = vpop.permute.xlu0 %4023
    %4027 = vst.msk [vmem:[#allocation3] sm:$0x2] %vm516, %v4022
    %4028 = vst.msk [vmem:[#allocation3 + $0x8] sm:$0x2] %vm516, %v4024
    %v4029 = vpack.c.bf16 %v3892, %v3892
    %v4030 = vpack.c.bf16 %v3893, %v3893
    %v4033 = vunpack.c.l.b16 %v4029
    %v4034 = vunpack.c.l.b16 %v4030
    %v4035 = vrot.slane %v4033, 6
    %v4036 = vrot.slane %v4034, 5
    %v4037 = vsel %vm400, %v4036, %v4035
    %v4038 = vpack.c.b16 %v4037, %v4037
    %4039 = vrot.lane.b32.xlu0 %v4038, 64
    %v4040 = vpop.permute.xlu0 %4039
    %v4042 = vsel %vm166, %v4040, 0
    %4044 = vmatprep.subr.bf16.mxu0 0
    %4045 = vmatpush1.bf16.msra.mxu0 0
    %4046 = vmatprep.subr.bf16.mxu0 0
    %4047 = vmatpush1.bf16.msra.mxu0 0
    %4048 = vmatprep.subr.bf16.mxu0 0
    %4049 = vmatpush1.bf16.msra.mxu0 0
    %4050 = vmatprep.subr.bf16.mxu0 0
    %4051 = vmatpush1.bf16.msra.mxu0 0
    %4052 = vmatprep.subr.bf16.mxu0 0
    %4053 = vmatpush1.bf16.msra.mxu0 0
    %4054 = vmatprep.subr.bf16.mxu0 0
    %4055 = vmatpush1.bf16.msra.mxu0 0
    %4056 = vmatprep.subr.bf16.mxu0 0
    %4057 = vmatpush1.bf16.msra.mxu0 %v2297
    %4058 = vmatprep.subr.bf16.mxu0 0
    %4059 = vmatpush1.bf16.msra.mxu0 %v2296
    %4060 = vmatprep.subr.bf16.mxu0 0
    %4061 = vmatpush2.bf16.msra.mxu0 0
    %4062 = vmatprep.subr.bf16.mxu0 0
    %4063 = vmatpush2.bf16.msra.mxu0 0
    %4064 = vmatprep.subr.bf16.mxu0 0
    %4065 = vmatpush2.bf16.msra.mxu0 0
    %4066 = vmatprep.subr.bf16.mxu0 0
    %4067 = vmatpush2.bf16.msra.mxu0 0
    %4068 = vmatprep.subr.bf16.mxu0 0
    %4069 = vmatpush2.bf16.msra.mxu0 0
    %4070 = vmatprep.subr.bf16.mxu0 0
    %4071 = vmatpush2.bf16.msra.mxu0 0
    %4072 = vmatprep.subr.bf16.mxu0 0
    %4073 = vmatpush2.bf16.msra.mxu0 0
    %4074 = vmatprep.subr.bf16.mxu0 0
    %4075 = vmatpush2.bf16.msra.mxu0 0
    %4076 = vmatprep.mubr.bf16.mxu0 0
    %4077 = vmatmul.mubr.bf16.gmra.mxu0 %v4042
    %v4078 = vpop.f32.mrf.mxu0
    %v4079 = vadd.f32 0.0, %v4078
    %v4080 = vpop.f32.mrf.mxu0
    %v4081 = vpop.f32.mrf.mxu0
    %v4082 = vpop.f32.mrf.mxu0
    %4083 = vdwg.mxu0
    %v4085 = vrot.slane %v4079, 1
    %v4086 = vrot.slane %v4079, 2
    %v4089 = vadd.f32 %v2280, %v4085
    %v4090 = vadd.f32 %v2284, %v4086
    %v4091 = vxor.u32 %v4089, 2147483648
    %v4092 = vxor.u32 %v4090, 2147483648
    %v4093 = vmul.f32 %v4091, 1.442695
    %v4094 = vpow.pop %v4093
    %v4095 = vmul.f32 %v4092, 1.442695
    %v4096 = vpow.pop %v4095
    %v4097 = vadd.f32 %v4094, 1.0
    %v4098 = vadd.f32 %v4096, 1.0
    %v4099 = vrcp.pop %v4097
    %v4100 = vmul.f32 1.0, %v4099
    %v4101 = vrcp.pop %v4098
    %v4102 = vmul.f32 1.0, %v4101
    %v4103 = vtanh.pop %v4089
    %v4104 = vtanh.pop %v4090
    %v4107 = vrot.slane %v3880, 7
    %v4108 = vrot.slane %v3881, 7
    %v4111 = vmul.f32 %v4100, %v4107
    %v4112 = vmul.f32 %v4102, %v4108
    %4115 = vrot.lane.b32.xlu0 %v4103, 32
    %v4116 = vpop.permute.xlu0 %4115
    %4117 = vrot.lane.b32.xlu0 %v4104, 32
    %v4118 = vpop.permute.xlu0 %4117
    %v4121 = vmul.f32 %v4100, %v4116
    %v4122 = vmul.f32 %v4102, %v4118
    %4125 = vrot.lane.b32.xlu0 %v4121, 32
    %v4126 = vpop.permute.xlu0 %4125
    %4127 = vrot.lane.b32.xlu0 %v4122, 32
    %v4128 = vpop.permute.xlu0 %4127
    %v4131 = vadd.f32 %v4111, %v4126
    %v4132 = vadd.f32 %v4112, %v4128
    %v4133 = vtanh.pop %v4131
    %v4134 = vtanh.pop %v4132
    %4137 = vrot.lane.b32.xlu0 %v4133, 32
    %v4138 = vpop.permute.xlu0 %4137
    %4139 = vrot.lane.b32.xlu0 %v4134, 32
    %v4140 = vpop.permute.xlu0 %4139
    %v4143 = vmul.f32 %v4100, %v4138
    %v4144 = vmul.f32 %v4102, %v4140
    %4147 = vrot.lane.b32.xlu0 %v4143, 64
    %v4148 = vpop.permute.xlu0 %4147
    %4149 = vrot.lane.b32.xlu0 %v4144, 64
    %v4150 = vpop.permute.xlu0 %4149
    %4153 = vst.msk [vmem:[#allocation2] sm:$0x80] %vm390, %v4148
    %4154 = vst.msk [vmem:[#allocation2 + $0x8] sm:$0x80] %vm390, %v4150
    %v4155 = vpack.c.bf16 %v4017, %v4017
    %v4156 = vpack.c.bf16 %v4018, %v4018
    %v4159 = vunpack.c.l.b16 %v4155
    %v4160 = vunpack.c.l.b16 %v4156
    %v4161 = vrot.slane %v4159, 1
    %v4162 = vsel %vm400, %v4160, %v4161
    %v4163 = vpack.c.b16 %v4162, %v4162
    %4164 = vrot.lane.b32.xlu0 %v4163, 64
    %v4165 = vpop.permute.xlu0 %4164
    %v4167 = vsel %vm166, %v4165, 0
    %4169 = vmatprep.subr.bf16.mxu0 0
    %4170 = vmatpush1.bf16.msra.mxu0 0
    %4171 = vmatprep.subr.bf16.mxu0 0
    %4172 = vmatpush1.bf16.msra.mxu0 0
    %4173 = vmatprep.subr.bf16.mxu0 0
    %4174 = vmatpush1.bf16.msra.mxu0 0
    %4175 = vmatprep.subr.bf16.mxu0 0
    %4176 = vmatpush1.bf16.msra.mxu0 0
    %4177 = vmatprep.subr.bf16.mxu0 0
    %4178 = vmatpush1.bf16.msra.mxu0 0
    %4179 = vmatprep.subr.bf16.mxu0 0
    %4180 = vmatpush1.bf16.msra.mxu0 0
    %4181 = vmatprep.subr.bf16.mxu0 0
    %4182 = vmatpush1.bf16.msra.mxu0 %v2413
    %4183 = vmatprep.subr.bf16.mxu0 0
    %4184 = vmatpush1.bf16.msra.mxu0 %v2412
    %4185 = vmatprep.subr.bf16.mxu0 0
    %4186 = vmatpush2.bf16.msra.mxu0 0
    %4187 = vmatprep.subr.bf16.mxu0 0
    %4188 = vmatpush2.bf16.msra.mxu0 0
    %4189 = vmatprep.subr.bf16.mxu0 0
    %4190 = vmatpush2.bf16.msra.mxu0 0
    %4191 = vmatprep.subr.bf16.mxu0 0
    %4192 = vmatpush2.bf16.msra.mxu0 0
    %4193 = vmatprep.subr.bf16.mxu0 0
    %4194 = vmatpush2.bf16.msra.mxu0 0
    %4195 = vmatprep.subr.bf16.mxu0 0
    %4196 = vmatpush2.bf16.msra.mxu0 0
    %4197 = vmatprep.subr.bf16.mxu0 0
    %4198 = vmatpush2.bf16.msra.mxu0 0
    %4199 = vmatprep.subr.bf16.mxu0 0
    %4200 = vmatpush2.bf16.msra.mxu0 0
    %4201 = vmatprep.mubr.bf16.mxu0 0
    %4202 = vmatmul.mubr.bf16.gmra.mxu0 %v4167
    %v4203 = vpop.f32.mrf.mxu0
    %v4204 = vadd.f32 0.0, %v4203
    %v4205 = vpop.f32.mrf.mxu0
    %v4206 = vpop.f32.mrf.mxu0
    %v4207 = vpop.f32.mrf.mxu0
    %4208 = vdwg.mxu0
    %v4210 = vrot.slane %v4204, 1
    %v4213 = vadd.f32 %v2282, %v4204
    %v4214 = vadd.f32 %v2286, %v4210
    %v4215 = vxor.u32 %v4213, 2147483648
    %v4216 = vxor.u32 %v4214, 2147483648
    %v4217 = vmul.f32 %v4215, 1.442695
    %v4218 = vpow.pop %v4217
    %v4219 = vmul.f32 %v4216, 1.442695
    %v4220 = vpow.pop %v4219
    %v4221 = vadd.f32 %v4218, 1.0
    %v4222 = vadd.f32 %v4220, 1.0
    %v4223 = vrcp.pop %v4221
    %v4224 = vmul.f32 1.0, %v4223
    %v4225 = vrcp.pop %v4222
    %v4226 = vmul.f32 1.0, %v4225
    %v4227 = vtanh.pop %v4213
    %v4228 = vtanh.pop %v4214
    %v4231 = vrot.slane %v4005, 1
    %v4232 = vrot.slane %v4006, 1
    %v4235 = vmul.f32 %v4224, %v4231
    %v4236 = vmul.f32 %v4226, %v4232
    %4239 = vrot.lane.b32.xlu0 %v4227, 32
    %v4240 = vpop.permute.xlu0 %4239
    %4241 = vrot.lane.b32.xlu0 %v4228, 32
    %v4242 = vpop.permute.xlu0 %4241
    %v4245 = vmul.f32 %v4224, %v4240
    %v4246 = vmul.f32 %v4226, %v4242
    %4249 = vrot.lane.b32.xlu0 %v4245, 32
    %v4250 = vpop.permute.xlu0 %4249
    %4251 = vrot.lane.b32.xlu0 %v4246, 32
    %v4252 = vpop.permute.xlu0 %4251
    %v4255 = vadd.f32 %v4235, %v4250
    %v4256 = vadd.f32 %v4236, %v4252
    %v4257 = vtanh.pop %v4255
    %v4258 = vtanh.pop %v4256
    %4261 = vrot.lane.b32.xlu0 %v4257, 32
    %v4262 = vpop.permute.xlu0 %4261
    %4263 = vrot.lane.b32.xlu0 %v4258, 32
    %v4264 = vpop.permute.xlu0 %4263
    %v4267 = vmul.f32 %v4224, %v4262
    %v4268 = vmul.f32 %v4226, %v4264
    %4271 = vrot.lane.b32.xlu0 %v4267, 64
    %v4272 = vpop.permute.xlu0 %4271
    %4273 = vrot.lane.b32.xlu0 %v4268, 64
    %v4274 = vpop.permute.xlu0 %4273
    %4277 = vst.msk [vmem:[#allocation3] sm:$0x1] %vm272, %v4272
    %4278 = vst.msk [vmem:[#allocation3 + $0x8] sm:$0x1] %vm272, %v4274
    %v4279 = vld [vmem:[#allocation2] sm:$0xff]
    %v4280 = vld [vmem:[#allocation2 + $0x8] sm:$0xff]
    %v4281 = vld [vmem:[#allocation3] sm:$0xff]
    %v4282 = vld [vmem:[#allocation3 + $0x8] sm:$0xff]
    %4285 = vrot.lane.b32.xlu0 %v4281, 32
    %v4286 = vpop.permute.xlu0 %4285
    %4287 = vrot.lane.b32.xlu0 %v4282, 32
    %v4288 = vpop.permute.xlu0 %4287
    %v4291 = vsel %vm166, %v4279, %v4286
    %v4292 = vsel %vm166, %v4280, %v4288
    %v4293 = vsel %vm2241, %v4291, 0.0
    %v4294 = vrot.slane %v4293, 4
    %v4295 = vadd.f32 %v4293, %v4294
    %v4296 = vrot.slane %v4295, 2
    %v4297 = vadd.f32 %v4295, %v4296
    %v4298 = vrot.slane %v4297, 1
    %v4299 = vadd.f32 %v4297, %v4298
    %v4300 = vsel %vm2241, %v4292, 0.0
    %v4301 = vrot.slane %v4300, 4
    %v4302 = vadd.f32 %v4300, %v4301
    %v4303 = vrot.slane %v4302, 2
    %v4304 = vadd.f32 %v4302, %v4303
    %v4305 = vrot.slane %v4304, 1
    %v4306 = vadd.f32 %v4304, %v4305
    %v4307 = vmul.f32 %v4299, 0.125
    %v4308 = vmul.f32 %v4306, 0.125
    %v4309 = vld [vmem:[%s15] sm:$0x1]
    %v4310 = vld [vmem:[%s16] sm:$0x1]
    %v4313 = vsel %vm400, %v4308, %v4307
    %vm4315 = vcmask 517120
    %v4316 = vsel %vm4315, %v4313, 0.0
    %4317 = vadd.xlane.f32.xlu0 %v4316
    %v4318 = vpop.xlane.xlu0 %4317
    %v4319 = vrcp.pop 64.0
    %v4320 = vmul.f32 %v4318, %v4319
    %v4322 = vrot.slane %v4320, 1
    %v4325 = vsub.f32 %v4307, %v4320
    %v4326 = vsub.f32 %v4308, %v4322
    %v4327 = vmul.f32 %v4325, %v4325
    %v4328 = vmul.f32 %v4326, %v4326
    %v4331 = vrot.slane %v4328, 7
    %v4332 = vsel %vm400, %v4331, %v4327
    %v4334 = vsel %vm4315, %v4332, 0.0
    %4335 = vadd.xlane.f32.xlu0 %v4334
    %v4336 = vpop.xlane.xlu0 %4335
    %v4337 = vmul.f32 %v4336, %v4319
    %v4338 = vadd.f32 %v4337, 1e-05
    %v4339 = vrsqrt.pop %v4338
    %v4341 = vrot.slane %v4339, 1
    %v4344 = vmul.f32 %v4325, %v4339
    %v4345 = vmul.f32 %v4326, %v4341
    %v4347 = vlaneseq
    %v4348 = vshrl.u32 %v4347, 7
    %v4349 = vsub.s32 0, %v4348
    %v4350 = vrot.slane %v4309, %v4349
    %v4352 = vmul.f32 %v4344, %v4350
    %v4353 = vmul.f32 %v4345, %v4350
    %v4355 = vlaneseq
    %v4356 = vshrl.u32 %v4355, 7
    %v4357 = vsub.s32 0, %v4356
    %v4358 = vrot.slane %v4310, %v4357
    %v4360 = vadd.f32 %v4352, %v4358
    %v4361 = vadd.f32 %v4353, %v4358
    %v4362 = vpack.c.bf16 %v4360, %v4360
    %v4363 = vpack.c.bf16 %v4361, %v4361
    %v4364 = vld [vmem:[%s17] sm:$0xf]
    %v4365 = vld [vmem:[%s17 + $0x4] sm:$0xf]
    %v4366 = vld [vmem:[%s17 + $0x8] sm:$0xf]
    %v4367 = vld [vmem:[%s17 + $0xc] sm:$0xf]
    %v4368 = vld [vmem:[%s17 + $0x10] sm:$0xf]
    %v4369 = vld [vmem:[%s17 + $0x14] sm:$0xf]
    %v4370 = vld [vmem:[%s17 + $0x18] sm:$0xf]
    %v4371 = vld [vmem:[%s17 + $0x1c] sm:$0xf]
    %v4372 = vld [vmem:[%s18] sm:$0x1]
    %v4374 = vlaneseq
    %v4375 = vshrl.u32 %v4374, 7
    %v4376 = vsub.s32 0, %v4375
    %v4377 = vrot.slane %v4372, %v4376
    %v4381 = vunpack.c.l.b16 %v4362
    %v4382 = vunpack.c.l.b16 %v4363
    %v4383 = vrot.slane %v4382, 7
    %v4384 = vsel %vm400, %v4383, %v4381
    %v4385 = vpack.c.b16 %v4384, %v4384
    %v4394 = vunpack.c.l.b16 %v4364
    %v4395 = vunpack.c.l.b16 %v4365
    %v4396 = vunpack.c.l.b16 %v4366
    %v4397 = vunpack.c.l.b16 %v4367
    %v4398 = vunpack.c.l.b16 %v4368
    %v4399 = vunpack.c.l.b16 %v4369
    %v4400 = vunpack.c.l.b16 %v4370
    %v4401 = vunpack.c.l.b16 %v4371
    %v4402 = vpack.c.b16 %v4395, %v4394
    %v4403 = vpack.c.b16 %v4397, %v4396
    %v4404 = vpack.c.b16 %v4399, %v4398
    %v4405 = vpack.c.b16 %v4401, %v4400
    %v4411 = vsel %vm2241, %v4385, 0
    %4413 = vmatprep.subr.bf16.mxu0 0
    %4414 = vmatpush1.bf16.msra.mxu0 0
    %4415 = vmatprep.subr.bf16.mxu0 0
    %4416 = vmatpush1.bf16.msra.mxu0 0
    %4417 = vmatprep.subr.bf16.mxu0 0
    %4418 = vmatpush1.bf16.msra.mxu0 0
    %4419 = vmatprep.subr.bf16.mxu0 0
    %4420 = vmatpush1.bf16.msra.mxu0 0
    %4421 = vmatprep.subr.bf16.mxu0 0
    %4422 = vmatpush1.bf16.msra.mxu0 %v4405
    %4423 = vmatprep.subr.bf16.mxu0 0
    %4424 = vmatpush1.bf16.msra.mxu0 %v4404
    %4425 = vmatprep.subr.bf16.mxu0 0
    %4426 = vmatpush1.bf16.msra.mxu0 %v4403
    %4427 = vmatprep.subr.bf16.mxu0 0
    %4428 = vmatpush1.bf16.msra.mxu0 %v4402
    %4429 = vmatprep.subr.bf16.mxu0 0
    %4430 = vmatpush2.bf16.msra.mxu0 0
    %4431 = vmatprep.subr.bf16.mxu0 0
    %4432 = vmatpush2.bf16.msra.mxu0 0
    %4433 = vmatprep.subr.bf16.mxu0 0
    %4434 = vmatpush2.bf16.msra.mxu0 0
    %4435 = vmatprep.subr.bf16.mxu0 0
    %4436 = vmatpush2.bf16.msra.mxu0 0
    %4437 = vmatprep.subr.bf16.mxu0 0
    %4438 = vmatpush2.bf16.msra.mxu0 0
    %4439 = vmatprep.subr.bf16.mxu0 0
    %4440 = vmatpush2.bf16.msra.mxu0 0
    %4441 = vmatprep.subr.bf16.mxu0 0
    %4442 = vmatpush2.bf16.msra.mxu0 0
    %4443 = vmatprep.subr.bf16.mxu0 0
    %4444 = vmatpush2.bf16.msra.mxu0 0
    %4445 = vmatprep.mubr.bf16.mxu0 0
    %4446 = vmatmul.mubr.bf16.gmra.mxu0 %v4411
    %v4447 = vpop.f32.mrf.mxu0
    %v4448 = vadd.f32 %v4377, %v4447
    %v4449 = vpop.f32.mrf.mxu0
    %v4450 = vpop.f32.mrf.mxu0
    %v4451 = vpop.f32.mrf.mxu0
    %4452 = vdwg.mxu0
    %v4453 = vmul.f32 %v4448, 0.5
    %v4454 = vmul.f32 %v4448, 0.70710677
    %vm4455 = vcmp.ge.f32.partialorder %v4454, 0.0
    %v4456 = vsel %vm4455, 1.0, -1.0
    %v4457 = vand.u32 2147483647, %v4454
    %v4458 = vmul.f32 %v4457, 0.3275911
    %v4459 = vadd.f32 %v4458, 1.0
    %v4460 = vrcp.pop %v4459
    %v4461 = vmul.f32 1.0, %v4460
    %v4462 = vmul.f32 %v4461, 1.0614054
    %v4463 = vadd.f32 %v4462, -1.4531521
    %v4464 = vmul.f32 %v4463, %v4461
    %v4465 = vadd.f32 %v4464, 1.4214138
    %v4466 = vmul.f32 %v4465, %v4461
    %v4467 = vadd.f32 %v4466, -0.28449672
    %v4468 = vmul.f32 %v4467, %v4461
    %v4469 = vadd.f32 %v4468, 0.2548296
    %v4470 = vmul.f32 %v4469, %v4461
    %v4471 = vsub.f32 0.0, %v4457
    %v4472 = vmul.f32 %v4471, %v4457
    %v4473 = vmul.f32 %v4472, 1.442695
    %v4474 = vpow.pop %v4473
    %v4475 = vmul.f32 %v4470, %v4474
    %v4476 = vsub.f32 1.0, %v4475
    %v4477 = vmul.f32 %v4456, %v4476
    %v4478 = vadd.f32 %v4477, 1.0
    %v4479 = vmul.f32 %v4453, %v4478
    %v4480 = vpack.c.bf16 %v4479, %v4479
    %v4481 = vld [vmem:[%s19] sm:$0xf]
    %v4482 = vld [vmem:[%s19 + $0x4] sm:$0xf]
    %v4483 = vld [vmem:[%s19 + $0x8] sm:$0xf]
    %v4484 = vld [vmem:[%s19 + $0xc] sm:$0xf]
    %v4485 = vld [vmem:[%s19 + $0x10] sm:$0xf]
    %v4486 = vld [vmem:[%s19 + $0x14] sm:$0xf]
    %v4487 = vld [vmem:[%s19 + $0x18] sm:$0xf]
    %v4488 = vld [vmem:[%s19 + $0x1c] sm:$0xf]
    %v4489 = vld [vmem:[%s20] sm:$0x1]
    %v4491 = vlaneseq
    %v4492 = vshrl.u32 %v4491, 7
    %v4493 = vsub.s32 0, %v4492
    %v4494 = vrot.slane %v4489, %v4493
    %v4504 = vunpack.c.l.b16 %v4481
    %v4505 = vunpack.c.l.b16 %v4482
    %v4506 = vunpack.c.l.b16 %v4483
    %v4507 = vunpack.c.l.b16 %v4484
    %v4508 = vunpack.c.l.b16 %v4485
    %v4509 = vunpack.c.l.b16 %v4486
    %v4510 = vunpack.c.l.b16 %v4487
    %v4511 = vunpack.c.l.b16 %v4488
    %v4512 = vpack.c.b16 %v4505, %v4504
    %v4513 = vpack.c.b16 %v4507, %v4506
    %v4514 = vpack.c.b16 %v4509, %v4508
    %v4515 = vpack.c.b16 %v4511, %v4510
    %v4521 = vsel %vm2241, %v4480, 0
    %4523 = vmatprep.subr.bf16.mxu0 0
    %4524 = vmatpush1.bf16.msra.mxu0 0
    %4525 = vmatprep.subr.bf16.mxu0 0
    %4526 = vmatpush1.bf16.msra.mxu0 0
    %4527 = vmatprep.subr.bf16.mxu0 0
    %4528 = vmatpush1.bf16.msra.mxu0 0
    %4529 = vmatprep.subr.bf16.mxu0 0
    %4530 = vmatpush1.bf16.msra.mxu0 0
    %4531 = vmatprep.subr.bf16.mxu0 0
    %4532 = vmatpush1.bf16.msra.mxu0 %v4515
    %4533 = vmatprep.subr.bf16.mxu0 0
    %4534 = vmatpush1.bf16.msra.mxu0 %v4514
    %4535 = vmatprep.subr.bf16.mxu0 0
    %4536 = vmatpush1.bf16.msra.mxu0 %v4513
    %4537 = vmatprep.subr.bf16.mxu0 0
    %4538 = vmatpush1.bf16.msra.mxu0 %v4512
    %4539 = vmatprep.subr.bf16.mxu0 0
    %4540 = vmatpush2.bf16.msra.mxu0 0
    %4541 = vmatprep.subr.bf16.mxu0 0
    %4542 = vmatpush2.bf16.msra.mxu0 0
    %4543 = vmatprep.subr.bf16.mxu0 0
    %4544 = vmatpush2.bf16.msra.mxu0 0
    %4545 = vmatprep.subr.bf16.mxu0 0
    %4546 = vmatpush2.bf16.msra.mxu0 0
    %4547 = vmatprep.subr.bf16.mxu0 0
    %4548 = vmatpush2.bf16.msra.mxu0 0
    %4549 = vmatprep.subr.bf16.mxu0 0
    %4550 = vmatpush2.bf16.msra.mxu0 0
    %4551 = vmatprep.subr.bf16.mxu0 0
    %4552 = vmatpush2.bf16.msra.mxu0 0
    %4553 = vmatprep.subr.bf16.mxu0 0
    %4554 = vmatpush2.bf16.msra.mxu0 0
    %4555 = vmatprep.mubr.bf16.mxu0 0
    %4556 = vmatmul.mubr.bf16.gmra.mxu0 %v4521
    %v4557 = vpop.f32.mrf.mxu0
    %v4558 = vadd.f32 %v4494, %v4557
    %v4559 = vpop.f32.mrf.mxu0
    %v4560 = vpop.f32.mrf.mxu0
    %v4561 = vpop.f32.mrf.mxu0
    %4562 = vdwg.mxu0
    %v4563 = vxor.u32 %v4558, 2147483648
    %v4564 = vmul.f32 %v4563, 1.442695
    %v4565 = vpow.pop %v4564
    %v4566 = vadd.f32 %v4565, 1.0
    %v4567 = vrcp.pop %v4566
    %v4568 = vmul.f32 1.0, %v4567
    %vm4569 = vcmask 25600
    %4570 = vst.msk [vmem:[#allocation4] sm:$0x3] %vm4569, %v4568
    %v4571 = vld [vmem:[%s9] sm:$0x1]
    %v4572 = vld [vmem:[%s10] sm:$0x1]
    %4573 = vadd.xlane.f32.xlu0 %v4293
    %v4574 = vpop.xlane.xlu0 %4573
    %4575 = vadd.xlane.f32.xlu0 %v4300
    %v4576 = vpop.xlane.xlu0 %4575
    %v4577 = vmul.f32 %v4574, %v4319
    %v4578 = vmul.f32 %v4576, %v4319
    %v4579 = vsub.f32 %v4291, %v4577
    %v4580 = vsub.f32 %v4292, %v4578
    %v4581 = vmul.f32 %v4579, %v4579
    %v4582 = vmul.f32 %v4580, %v4580
    %v4583 = vsel %vm2241, %v4581, 0.0
    %4584 = vadd.xlane.f32.xlu0 %v4583
    %v4585 = vpop.xlane.xlu0 %4584
    %v4586 = vsel %vm2241, %v4582, 0.0
    %4587 = vadd.xlane.f32.xlu0 %v4586
    %v4588 = vpop.xlane.xlu0 %4587
    %v4589 = vmul.f32 %v4585, %v4319
    %v4590 = vmul.f32 %v4588, %v4319
    %v4591 = vadd.f32 %v4589, 1e-05
    %v4592 = vadd.f32 %v4590, 1e-05
    %v4593 = vrsqrt.pop %v4591
    %v4594 = vrsqrt.pop %v4592
    %v4595 = vmul.f32 %v4579, %v4593
    %v4596 = vmul.f32 %v4580, %v4594
    %v4598 = vlaneseq
    %v4599 = vshrl.u32 %v4598, 7
    %v4600 = vsub.s32 0, %v4599
    %v4601 = vrot.slane %v4571, %v4600
    %v4603 = vmul.f32 %v4595, %v4601
    %v4604 = vmul.f32 %v4596, %v4601
    %v4606 = vlaneseq
    %v4607 = vshrl.u32 %v4606, 7
    %v4608 = vsub.s32 0, %v4607
    %v4609 = vrot.slane %v4572, %v4608
    %v4611 = vadd.f32 %v4603, %v4609
    %v4612 = vadd.f32 %v4604, %v4609
    %v4615 = vcombine.high %v4611, %v4611
    %v4617 = vunpack.c.l.s4 1983009808
    %v4618 = vunpack.c.0.s8 %v4617
    %v4619 = vlaneseq
    %v4620 = vshrl.u32 %v4619, 7
    %v4621 = vsub.s32 %v4618, %v4620
    %v4622 = vrot.slane %v4611, %v4621
    %v4624 = vunpack.c.l.s4 1983009808
    %v4625 = vunpack.c.0.s8 %v4624
    %v4626 = vlaneseq
    %v4627 = vshrl.u32 %v4626, 7
    %v4628 = vsub.s32 %v4625, %v4627
    %v4629 = vrot.slane %v4615, %v4628
    %v4630 = vcombine.high %v4622, %v4622
    %v4631 = vcombine.high %v4629, %v4629
    %v4632 = vcombine.high %v4612, %v4612
    %v4634 = vunpack.c.l.s4 1983009808
    %v4635 = vunpack.c.0.s8 %v4634
    %v4636 = vlaneseq
    %v4637 = vshrl.u32 %v4636, 7
    %v4638 = vsub.s32 %v4635, %v4637
    %v4639 = vrot.slane %v4612, %v4638
    %v4641 = vunpack.c.l.s4 1983009808
    %v4642 = vunpack.c.0.s8 %v4641
    %v4643 = vlaneseq
    %v4644 = vshrl.u32 %v4643, 7
    %v4645 = vsub.s32 %v4642, %v4644
    %v4646 = vrot.slane %v4632, %v4645
    %v4647 = vcombine.high %v4639, %v4639
    %v4648 = vcombine.high %v4646, %v4646
    %v4657 = vpack.c.bf16 %v4622, %v4622
    %v4658 = vpack.c.bf16 %v4630, %v4630
    %v4659 = vpack.c.bf16 %v4629, %v4629
    %v4660 = vpack.c.bf16 %v4631, %v4631
    %v4661 = vpack.c.bf16 %v4639, %v4639
    %v4662 = vpack.c.bf16 %v4647, %v4647
    %v4663 = vpack.c.bf16 %v4646, %v4646
    %v4664 = vpack.c.bf16 %v4648, %v4648
    %v4665 = vld [vmem:[%s11] sm:$0xf]
    %v4666 = vld [vmem:[%s11 + $0x4] sm:$0xf]
    %v4667 = vld [vmem:[%s11 + $0x8] sm:$0xf]
    %v4668 = vld [vmem:[%s11 + $0xc] sm:$0xf]
    %v4669 = vld [vmem:[%s11 + $0x10] sm:$0xf]
    %v4670 = vld [vmem:[%s11 + $0x14] sm:$0xf]
    %v4671 = vld [vmem:[%s11 + $0x18] sm:$0xf]
    %v4672 = vld [vmem:[%s11 + $0x1c] sm:$0xf]
    %v4673 = vld [vmem:[%s11 + $0x20] sm:$0xf]
    %v4674 = vld [vmem:[%s11 + $0x24] sm:$0xf]
    %v4675 = vld [vmem:[%s11 + $0x28] sm:$0xf]
    %v4676 = vld [vmem:[%s11 + $0x2c] sm:$0xf]
    %v4677 = vld [vmem:[%s11 + $0x30] sm:$0xf]
    %v4678 = vld [vmem:[%s11 + $0x34] sm:$0xf]
    %v4679 = vld [vmem:[%s11 + $0x38] sm:$0xf]
    %v4680 = vld [vmem:[%s11 + $0x3c] sm:$0xf]
    %v4681 = vld [vmem:[%s11 + $0x40] sm:$0xf]
    %v4682 = vld [vmem:[%s11 + $0x44] sm:$0xf]
    %v4683 = vld [vmem:[%s11 + $0x48] sm:$0xf]
    %v4684 = vld [vmem:[%s11 + $0x4c] sm:$0xf]
    %v4685 = vld [vmem:[%s11 + $0x50] sm:$0xf]
    %v4686 = vld [vmem:[%s11 + $0x54] sm:$0xf]
    %v4687 = vld [vmem:[%s11 + $0x58] sm:$0xf]
    %v4688 = vld [vmem:[%s11 + $0x5c] sm:$0xf]
    %v4689 = vld [vmem:[%s11 + $0x60] sm:$0xf]
    %v4690 = vld [vmem:[%s11 + $0x64] sm:$0xf]
    %v4691 = vld [vmem:[%s11 + $0x68] sm:$0xf]
    %v4692 = vld [vmem:[%s11 + $0x6c] sm:$0xf]
    %v4693 = vld [vmem:[%s11 + $0x70] sm:$0xf]
    %v4694 = vld [vmem:[%s11 + $0x74] sm:$0xf]
    %v4695 = vld [vmem:[%s11 + $0x78] sm:$0xf]
    %v4696 = vld [vmem:[%s11 + $0x7c] sm:$0xf]
    %v4697 = vld [vmem:[%s11 + $0x80] sm:$0xf]
    %v4698 = vld [vmem:[%s11 + $0x84] sm:$0xf]
    %v4699 = vld [vmem:[%s11 + $0x88] sm:$0xf]
    %v4700 = vld [vmem:[%s11 + $0x8c] sm:$0xf]
    %v4701 = vld [vmem:[%s11 + $0x90] sm:$0xf]
    %v4702 = vld [vmem:[%s11 + $0x94] sm:$0xf]
    %v4703 = vld [vmem:[%s11 + $0x98] sm:$0xf]
    %v4704 = vld [vmem:[%s11 + $0x9c] sm:$0xf]
    %v4705 = vld [vmem:[%s11 + $0xa0] sm:$0xf]
    %v4706 = vld [vmem:[%s11 + $0xa4] sm:$0xf]
    %v4707 = vld [vmem:[%s11 + $0xa8] sm:$0xf]
    %v4708 = vld [vmem:[%s11 + $0xac] sm:$0xf]
    %v4709 = vld [vmem:[%s11 + $0xb0] sm:$0xf]
    %v4710 = vld [vmem:[%s11 + $0xb4] sm:$0xf]
    %v4711 = vld [vmem:[%s11 + $0xb8] sm:$0xf]
    %v4712 = vld [vmem:[%s11 + $0xbc] sm:$0xf]
    %v4713 = vld [vmem:[%s11 + $0xc0] sm:$0xf]
    %v4714 = vld [vmem:[%s11 + $0xc4] sm:$0xf]
    %v4715 = vld [vmem:[%s11 + $0xc8] sm:$0xf]
    %v4716 = vld [vmem:[%s11 + $0xcc] sm:$0xf]
    %v4717 = vld [vmem:[%s11 + $0xd0] sm:$0xf]
    %v4718 = vld [vmem:[%s11 + $0xd4] sm:$0xf]
    %v4719 = vld [vmem:[%s11 + $0xd8] sm:$0xf]
    %v4720 = vld [vmem:[%s11 + $0xdc] sm:$0xf]
    %v4721 = vld [vmem:[%s11 + $0xe0] sm:$0xf]
    %v4722 = vld [vmem:[%s11 + $0xe4] sm:$0xf]
    %v4723 = vld [vmem:[%s11 + $0xe8] sm:$0xf]
    %v4724 = vld [vmem:[%s11 + $0xec] sm:$0xf]
    %v4725 = vld [vmem:[%s11 + $0xf0] sm:$0xf]
    %v4726 = vld [vmem:[%s11 + $0xf4] sm:$0xf]
    %v4727 = vld [vmem:[%s11 + $0xf8] sm:$0xf]
    %v4728 = vld [vmem:[%s11 + $0xfc] sm:$0xf]
    %v4729 = vld [vmem:[%s12] sm:$0x1]
    %v4730 = vld [vmem:[%s12 + $0x1] sm:$0x1]
    %v4731 = vld [vmem:[%s12 + $0x2] sm:$0x1]
    %v4732 = vld [vmem:[%s12 + $0x3] sm:$0x1]
    %v4733 = vld [vmem:[%s12 + $0x4] sm:$0x1]
    %v4734 = vld [vmem:[%s12 + $0x5] sm:$0x1]
    %v4735 = vld [vmem:[%s12 + $0x6] sm:$0x1]
    %v4736 = vld [vmem:[%s12 + $0x7] sm:$0x1]
    %v4745 = vlaneseq
    %v4746 = vshrl.u32 %v4745, 7
    %v4747 = vsub.s32 0, %v4746
    %v4748 = vrot.slane %v4729, %v4747
    %v4749 = vlaneseq
    %v4750 = vshrl.u32 %v4749, 7
    %v4751 = vsub.s32 0, %v4750
    %v4752 = vrot.slane %v4730, %v4751
    %v4753 = vlaneseq
    %v4754 = vshrl.u32 %v4753, 7
    %v4755 = vsub.s32 0, %v4754
    %v4756 = vrot.slane %v4731, %v4755
    %v4757 = vlaneseq
    %v4758 = vshrl.u32 %v4757, 7
    %v4759 = vsub.s32 0, %v4758
    %v4760 = vrot.slane %v4732, %v4759
    %v4761 = vlaneseq
    %v4762 = vshrl.u32 %v4761, 7
    %v4763 = vsub.s32 0, %v4762
    %v4764 = vrot.slane %v4733, %v4763
    %v4765 = vlaneseq
    %v4766 = vshrl.u32 %v4765, 7
    %v4767 = vsub.s32 0, %v4766
    %v4768 = vrot.slane %v4734, %v4767
    %v4769 = vlaneseq
    %v4770 = vshrl.u32 %v4769, 7
    %v4771 = vsub.s32 0, %v4770
    %v4772 = vrot.slane %v4735, %v4771
    %v4773 = vlaneseq
    %v4774 = vshrl.u32 %v4773, 7
    %v4775 = vsub.s32 0, %v4774
    %v4776 = vrot.slane %v4736, %v4775
    %v4793 = vunpack.c.l.b16 %v4665
    %v4794 = vunpack.c.l.b16 %v4666
    %v4795 = vunpack.c.l.b16 %v4667
    %v4796 = vunpack.c.l.b16 %v4668
    %v4797 = vunpack.c.l.b16 %v4669
    %v4798 = vunpack.c.l.b16 %v4670
    %v4799 = vunpack.c.l.b16 %v4671
    %v4800 = vunpack.c.l.b16 %v4672
    %v4801 = vpack.c.b16 %v4794, %v4793
    %v4802 = vpack.c.b16 %v4796, %v4795
    %v4803 = vpack.c.b16 %v4798, %v4797
    %v4804 = vpack.c.b16 %v4800, %v4799
    %v4810 = vsel %vm2241, %v4657, 0
    %4812 = vmatprep.subr.bf16.mxu0 0
    %4813 = vmatpush1.bf16.msra.mxu0 0
    %4814 = vmatprep.subr.bf16.mxu0 0
    %4815 = vmatpush1.bf16.msra.mxu0 0
    %4816 = vmatprep.subr.bf16.mxu0 0
    %4817 = vmatpush1.bf16.msra.mxu0 0
    %4818 = vmatprep.subr.bf16.mxu0 0
    %4819 = vmatpush1.bf16.msra.mxu0 0
    %4820 = vmatprep.subr.bf16.mxu0 0
    %4821 = vmatpush1.bf16.msra.mxu0 %v4804
    %4822 = vmatprep.subr.bf16.mxu0 0
    %4823 = vmatpush1.bf16.msra.mxu0 %v4803
    %4824 = vmatprep.subr.bf16.mxu0 0
    %4825 = vmatpush1.bf16.msra.mxu0 %v4802
    %4826 = vmatprep.subr.bf16.mxu0 0
    %4827 = vmatpush1.bf16.msra.mxu0 %v4801
    %4828 = vmatprep.subr.bf16.mxu0 0
    %4829 = vmatpush2.bf16.msra.mxu0 0
    %4830 = vmatprep.subr.bf16.mxu0 0
    %4831 = vmatpush2.bf16.msra.mxu0 0
    %4832 = vmatprep.subr.bf16.mxu0 0
    %4833 = vmatpush2.bf16.msra.mxu0 0
    %4834 = vmatprep.subr.bf16.mxu0 0
    %4835 = vmatpush2.bf16.msra.mxu0 0
    %4836 = vmatprep.subr.bf16.mxu0 0
    %4837 = vmatpush2.bf16.msra.mxu0 0
    %4838 = vmatprep.subr.bf16.mxu0 0
    %4839 = vmatpush2.bf16.msra.mxu0 0
    %4840 = vmatprep.subr.bf16.mxu0 0
    %4841 = vmatpush2.bf16.msra.mxu0 0
    %4842 = vmatprep.subr.bf16.mxu0 0
    %4843 = vmatpush2.bf16.msra.mxu0 0
    %4844 = vmatprep.mubr.bf16.mxu0 0
    %4845 = vmatmul.mubr.bf16.gmra.mxu0 %v4810
    %v4846 = vpop.f32.mrf.mxu0
    %v4847 = vadd.f32 %v4748, %v4846
    %v4848 = vpop.f32.mrf.mxu0
    %v4849 = vpop.f32.mrf.mxu0
    %v4850 = vpop.f32.mrf.mxu0
    %4851 = vdwg.mxu0
    %v4860 = vunpack.c.l.b16 %v4673
    %v4861 = vunpack.c.l.b16 %v4674
    %v4862 = vunpack.c.l.b16 %v4675
    %v4863 = vunpack.c.l.b16 %v4676
    %v4864 = vunpack.c.l.b16 %v4677
    %v4865 = vunpack.c.l.b16 %v4678
    %v4866 = vunpack.c.l.b16 %v4679
    %v4867 = vunpack.c.l.b16 %v4680
    %v4868 = vpack.c.b16 %v4861, %v4860
    %v4869 = vpack.c.b16 %v4863, %v4862
    %v4870 = vpack.c.b16 %v4865, %v4864
    %v4871 = vpack.c.b16 %v4867, %v4866
    %v4877 = vsel %vm2241, %v4658, 0
    %4879 = vmatprep.subr.bf16.mxu0 0
    %4880 = vmatpush1.bf16.msra.mxu0 0
    %4881 = vmatprep.subr.bf16.mxu0 0
    %4882 = vmatpush1.bf16.msra.mxu0 0
    %4883 = vmatprep.subr.bf16.mxu0 0
    %4884 = vmatpush1.bf16.msra.mxu0 0
    %4885 = vmatprep.subr.bf16.mxu0 0
    %4886 = vmatpush1.bf16.msra.mxu0 0
    %4887 = vmatprep.subr.bf16.mxu0 0
    %4888 = vmatpush1.bf16.msra.mxu0 %v4871
    %4889 = vmatprep.subr.bf16.mxu0 0
    %4890 = vmatpush1.bf16.msra.mxu0 %v4870
    %4891 = vmatprep.subr.bf16.mxu0 0
    %4892 = vmatpush1.bf16.msra.mxu0 %v4869
    %4893 = vmatprep.subr.bf16.mxu0 0
    %4894 = vmatpush1.bf16.msra.mxu0 %v4868
    %4895 = vmatprep.subr.bf16.mxu0 0
    %4896 = vmatpush2.bf16.msra.mxu0 0
    %4897 = vmatprep.subr.bf16.mxu0 0
    %4898 = vmatpush2.bf16.msra.mxu0 0
    %4899 = vmatprep.subr.bf16.mxu0 0
    %4900 = vmatpush2.bf16.msra.mxu0 0
    %4901 = vmatprep.subr.bf16.mxu0 0
    %4902 = vmatpush2.bf16.msra.mxu0 0
    %4903 = vmatprep.subr.bf16.mxu0 0
    %4904 = vmatpush2.bf16.msra.mxu0 0
    %4905 = vmatprep.subr.bf16.mxu0 0
    %4906 = vmatpush2.bf16.msra.mxu0 0
    %4907 = vmatprep.subr.bf16.mxu0 0
    %4908 = vmatpush2.bf16.msra.mxu0 0
    %4909 = vmatprep.subr.bf16.mxu0 0
    %4910 = vmatpush2.bf16.msra.mxu0 0
    %4911 = vmatprep.mubr.bf16.mxu0 0
    %4912 = vmatmul.mubr.bf16.gmra.mxu0 %v4877
    %v4913 = vpop.f32.mrf.mxu0
    %v4914 = vadd.f32 %v4752, %v4913
    %v4915 = vpop.f32.mrf.mxu0
    %v4916 = vpop.f32.mrf.mxu0
    %v4917 = vpop.f32.mrf.mxu0
    %4918 = vdwg.mxu0
    %v4927 = vunpack.c.l.b16 %v4681
    %v4928 = vunpack.c.l.b16 %v4682
    %v4929 = vunpack.c.l.b16 %v4683
    %v4930 = vunpack.c.l.b16 %v4684
    %v4931 = vunpack.c.l.b16 %v4685
    %v4932 = vunpack.c.l.b16 %v4686
    %v4933 = vunpack.c.l.b16 %v4687
    %v4934 = vunpack.c.l.b16 %v4688
    %v4935 = vpack.c.b16 %v4928, %v4927
    %v4936 = vpack.c.b16 %v4930, %v4929
    %v4937 = vpack.c.b16 %v4932, %v4931
    %v4938 = vpack.c.b16 %v4934, %v4933
    %v4944 = vsel %vm2241, %v4659, 0
    %4946 = vmatprep.subr.bf16.mxu0 0
    %4947 = vmatpush1.bf16.msra.mxu0 0
    %4948 = vmatprep.subr.bf16.mxu0 0
    %4949 = vmatpush1.bf16.msra.mxu0 0
    %4950 = vmatprep.subr.bf16.mxu0 0
    %4951 = vmatpush1.bf16.msra.mxu0 0
    %4952 = vmatprep.subr.bf16.mxu0 0
    %4953 = vmatpush1.bf16.msra.mxu0 0
    %4954 = vmatprep.subr.bf16.mxu0 0
    %4955 = vmatpush1.bf16.msra.mxu0 %v4938
    %4956 = vmatprep.subr.bf16.mxu0 0
    %4957 = vmatpush1.bf16.msra.mxu0 %v4937
    %4958 = vmatprep.subr.bf16.mxu0 0
    %4959 = vmatpush1.bf16.msra.mxu0 %v4936
    %4960 = vmatprep.subr.bf16.mxu0 0
    %4961 = vmatpush1.bf16.msra.mxu0 %v4935
    %4962 = vmatprep.subr.bf16.mxu0 0
    %4963 = vmatpush2.bf16.msra.mxu0 0
    %4964 = vmatprep.subr.bf16.mxu0 0
    %4965 = vmatpush2.bf16.msra.mxu0 0
    %4966 = vmatprep.subr.bf16.mxu0 0
    %4967 = vmatpush2.bf16.msra.mxu0 0
    %4968 = vmatprep.subr.bf16.mxu0 0
    %4969 = vmatpush2.bf16.msra.mxu0 0
    %4970 = vmatprep.subr.bf16.mxu0 0
    %4971 = vmatpush2.bf16.msra.mxu0 0
    %4972 = vmatprep.subr.bf16.mxu0 0
    %4973 = vmatpush2.bf16.msra.mxu0 0
    %4974 = vmatprep.subr.bf16.mxu0 0
    %4975 = vmatpush2.bf16.msra.mxu0 0
    %4976 = vmatprep.subr.bf16.mxu0 0
    %4977 = vmatpush2.bf16.msra.mxu0 0
    %4978 = vmatprep.mubr.bf16.mxu0 0
    %4979 = vmatmul.mubr.bf16.gmra.mxu0 %v4944
    %v4980 = vpop.f32.mrf.mxu0
    %v4981 = vadd.f32 %v4756, %v4980
    %v4982 = vpop.f32.mrf.mxu0
    %v4983 = vpop.f32.mrf.mxu0
    %v4984 = vpop.f32.mrf.mxu0
    %4985 = vdwg.mxu0
    %v4994 = vunpack.c.l.b16 %v4689
    %v4995 = vunpack.c.l.b16 %v4690
    %v4996 = vunpack.c.l.b16 %v4691
    %v4997 = vunpack.c.l.b16 %v4692
    %v4998 = vunpack.c.l.b16 %v4693
    %v4999 = vunpack.c.l.b16 %v4694
    %v5000 = vunpack.c.l.b16 %v4695
    %v5001 = vunpack.c.l.b16 %v4696
    %v5002 = vpack.c.b16 %v4995, %v4994
    %v5003 = vpack.c.b16 %v4997, %v4996
    %v5004 = vpack.c.b16 %v4999, %v4998
    %v5005 = vpack.c.b16 %v5001, %v5000
    %v5011 = vsel %vm2241, %v4660, 0
    %5013 = vmatprep.subr.bf16.mxu0 0
    %5014 = vmatpush1.bf16.msra.mxu0 0
    %5015 = vmatprep.subr.bf16.mxu0 0
    %5016 = vmatpush1.bf16.msra.mxu0 0
    %5017 = vmatprep.subr.bf16.mxu0 0
    %5018 = vmatpush1.bf16.msra.mxu0 0
    %5019 = vmatprep.subr.bf16.mxu0 0
    %5020 = vmatpush1.bf16.msra.mxu0 0
    %5021 = vmatprep.subr.bf16.mxu0 0
    %5022 = vmatpush1.bf16.msra.mxu0 %v5005
    %5023 = vmatprep.subr.bf16.mxu0 0
    %5024 = vmatpush1.bf16.msra.mxu0 %v5004
    %5025 = vmatprep.subr.bf16.mxu0 0
    %5026 = vmatpush1.bf16.msra.mxu0 %v5003
    %5027 = vmatprep.subr.bf16.mxu0 0
    %5028 = vmatpush1.bf16.msra.mxu0 %v5002
    %5029 = vmatprep.subr.bf16.mxu0 0
    %5030 = vmatpush2.bf16.msra.mxu0 0
    %5031 = vmatprep.subr.bf16.mxu0 0
    %5032 = vmatpush2.bf16.msra.mxu0 0
    %5033 = vmatprep.subr.bf16.mxu0 0
    %5034 = vmatpush2.bf16.msra.mxu0 0
    %5035 = vmatprep.subr.bf16.mxu0 0
    %5036 = vmatpush2.bf16.msra.mxu0 0
    %5037 = vmatprep.subr.bf16.mxu0 0
    %5038 = vmatpush2.bf16.msra.mxu0 0
    %5039 = vmatprep.subr.bf16.mxu0 0
    %5040 = vmatpush2.bf16.msra.mxu0 0
    %5041 = vmatprep.subr.bf16.mxu0 0
    %5042 = vmatpush2.bf16.msra.mxu0 0
    %5043 = vmatprep.subr.bf16.mxu0 0
    %5044 = vmatpush2.bf16.msra.mxu0 0
    %5045 = vmatprep.mubr.bf16.mxu0 0
    %5046 = vmatmul.mubr.bf16.gmra.mxu0 %v5011
    %v5047 = vpop.f32.mrf.mxu0
    %v5048 = vadd.f32 %v4760, %v5047
    %v5049 = vpop.f32.mrf.mxu0
    %v5050 = vpop.f32.mrf.mxu0
    %v5051 = vpop.f32.mrf.mxu0
    %5052 = vdwg.mxu0
    %v5061 = vunpack.c.l.b16 %v4697
    %v5062 = vunpack.c.l.b16 %v4698
    %v5063 = vunpack.c.l.b16 %v4699
    %v5064 = vunpack.c.l.b16 %v4700
    %v5065 = vunpack.c.l.b16 %v4701
    %v5066 = vunpack.c.l.b16 %v4702
    %v5067 = vunpack.c.l.b16 %v4703
    %v5068 = vunpack.c.l.b16 %v4704
    %v5069 = vpack.c.b16 %v5062, %v5061
    %v5070 = vpack.c.b16 %v5064, %v5063
    %v5071 = vpack.c.b16 %v5066, %v5065
    %v5072 = vpack.c.b16 %v5068, %v5067
    %v5078 = vsel %vm2241, %v4661, 0
    %5080 = vmatprep.subr.bf16.mxu0 0
    %5081 = vmatpush1.bf16.msra.mxu0 0
    %5082 = vmatprep.subr.bf16.mxu0 0
    %5083 = vmatpush1.bf16.msra.mxu0 0
    %5084 = vmatprep.subr.bf16.mxu0 0
    %5085 = vmatpush1.bf16.msra.mxu0 0
    %5086 = vmatprep.subr.bf16.mxu0 0
    %5087 = vmatpush1.bf16.msra.mxu0 0
    %5088 = vmatprep.subr.bf16.mxu0 0
    %5089 = vmatpush1.bf16.msra.mxu0 %v5072
    %5090 = vmatprep.subr.bf16.mxu0 0
    %5091 = vmatpush1.bf16.msra.mxu0 %v5071
    %5092 = vmatprep.subr.bf16.mxu0 0
    %5093 = vmatpush1.bf16.msra.mxu0 %v5070
    %5094 = vmatprep.subr.bf16.mxu0 0
    %5095 = vmatpush1.bf16.msra.mxu0 %v5069
    %5096 = vmatprep.subr.bf16.mxu0 0
    %5097 = vmatpush2.bf16.msra.mxu0 0
    %5098 = vmatprep.subr.bf16.mxu0 0
    %5099 = vmatpush2.bf16.msra.mxu0 0
    %5100 = vmatprep.subr.bf16.mxu0 0
    %5101 = vmatpush2.bf16.msra.mxu0 0
    %5102 = vmatprep.subr.bf16.mxu0 0
    %5103 = vmatpush2.bf16.msra.mxu0 0
    %5104 = vmatprep.subr.bf16.mxu0 0
    %5105 = vmatpush2.bf16.msra.mxu0 0
    %5106 = vmatprep.subr.bf16.mxu0 0
    %5107 = vmatpush2.bf16.msra.mxu0 0
    %5108 = vmatprep.subr.bf16.mxu0 0
    %5109 = vmatpush2.bf16.msra.mxu0 0
    %5110 = vmatprep.subr.bf16.mxu0 0
    %5111 = vmatpush2.bf16.msra.mxu0 0
    %5112 = vmatprep.mubr.bf16.mxu0 0
    %5113 = vmatmul.mubr.bf16.gmra.mxu0 %v5078
    %v5114 = vpop.f32.mrf.mxu0
    %v5115 = vadd.f32 %v4764, %v5114
    %v5116 = vpop.f32.mrf.mxu0
    %v5117 = vpop.f32.mrf.mxu0
    %v5118 = vpop.f32.mrf.mxu0
    %5119 = vdwg.mxu0
    %v5128 = vunpack.c.l.b16 %v4705
    %v5129 = vunpack.c.l.b16 %v4706
    %v5130 = vunpack.c.l.b16 %v4707
    %v5131 = vunpack.c.l.b16 %v4708
    %v5132 = vunpack.c.l.b16 %v4709
    %v5133 = vunpack.c.l.b16 %v4710
    %v5134 = vunpack.c.l.b16 %v4711
    %v5135 = vunpack.c.l.b16 %v4712
    %v5136 = vpack.c.b16 %v5129, %v5128
    %v5137 = vpack.c.b16 %v5131, %v5130
    %v5138 = vpack.c.b16 %v5133, %v5132
    %v5139 = vpack.c.b16 %v5135, %v5134
    %v5145 = vsel %vm2241, %v4662, 0
    %5147 = vmatprep.subr.bf16.mxu0 0
    %5148 = vmatpush1.bf16.msra.mxu0 0
    %5149 = vmatprep.subr.bf16.mxu0 0
    %5150 = vmatpush1.bf16.msra.mxu0 0
    %5151 = vmatprep.subr.bf16.mxu0 0
    %5152 = vmatpush1.bf16.msra.mxu0 0
    %5153 = vmatprep.subr.bf16.mxu0 0
    %5154 = vmatpush1.bf16.msra.mxu0 0
    %5155 = vmatprep.subr.bf16.mxu0 0
    %5156 = vmatpush1.bf16.msra.mxu0 %v5139
    %5157 = vmatprep.subr.bf16.mxu0 0
    %5158 = vmatpush1.bf16.msra.mxu0 %v5138
    %5159 = vmatprep.subr.bf16.mxu0 0
    %5160 = vmatpush1.bf16.msra.mxu0 %v5137
    %5161 = vmatprep.subr.bf16.mxu0 0
    %5162 = vmatpush1.bf16.msra.mxu0 %v5136
    %5163 = vmatprep.subr.bf16.mxu0 0
    %5164 = vmatpush2.bf16.msra.mxu0 0
    %5165 = vmatprep.subr.bf16.mxu0 0
    %5166 = vmatpush2.bf16.msra.mxu0 0
    %5167 = vmatprep.subr.bf16.mxu0 0
    %5168 = vmatpush2.bf16.msra.mxu0 0
    %5169 = vmatprep.subr.bf16.mxu0 0
    %5170 = vmatpush2.bf16.msra.mxu0 0
    %5171 = vmatprep.subr.bf16.mxu0 0
    %5172 = vmatpush2.bf16.msra.mxu0 0
    %5173 = vmatprep.subr.bf16.mxu0 0
    %5174 = vmatpush2.bf16.msra.mxu0 0
    %5175 = vmatprep.subr.bf16.mxu0 0
    %5176 = vmatpush2.bf16.msra.mxu0 0
    %5177 = vmatprep.subr.bf16.mxu0 0
    %5178 = vmatpush2.bf16.msra.mxu0 0
    %5179 = vmatprep.mubr.bf16.mxu0 0
    %5180 = vmatmul.mubr.bf16.gmra.mxu0 %v5145
    %v5181 = vpop.f32.mrf.mxu0
    %v5182 = vadd.f32 %v4768, %v5181
    %v5183 = vpop.f32.mrf.mxu0
    %v5184 = vpop.f32.mrf.mxu0
    %v5185 = vpop.f32.mrf.mxu0
    %5186 = vdwg.mxu0
    %v5195 = vunpack.c.l.b16 %v4713
    %v5196 = vunpack.c.l.b16 %v4714
    %v5197 = vunpack.c.l.b16 %v4715
    %v5198 = vunpack.c.l.b16 %v4716
    %v5199 = vunpack.c.l.b16 %v4717
    %v5200 = vunpack.c.l.b16 %v4718
    %v5201 = vunpack.c.l.b16 %v4719
    %v5202 = vunpack.c.l.b16 %v4720
    %v5203 = vpack.c.b16 %v5196, %v5195
    %v5204 = vpack.c.b16 %v5198, %v5197
    %v5205 = vpack.c.b16 %v5200, %v5199
    %v5206 = vpack.c.b16 %v5202, %v5201
    %v5212 = vsel %vm2241, %v4663, 0
    %5214 = vmatprep.subr.bf16.mxu0 0
    %5215 = vmatpush1.bf16.msra.mxu0 0
    %5216 = vmatprep.subr.bf16.mxu0 0
    %5217 = vmatpush1.bf16.msra.mxu0 0
    %5218 = vmatprep.subr.bf16.mxu0 0
    %5219 = vmatpush1.bf16.msra.mxu0 0
    %5220 = vmatprep.subr.bf16.mxu0 0
    %5221 = vmatpush1.bf16.msra.mxu0 0
    %5222 = vmatprep.subr.bf16.mxu0 0
    %5223 = vmatpush1.bf16.msra.mxu0 %v5206
    %5224 = vmatprep.subr.bf16.mxu0 0
    %5225 = vmatpush1.bf16.msra.mxu0 %v5205
    %5226 = vmatprep.subr.bf16.mxu0 0
    %5227 = vmatpush1.bf16.msra.mxu0 %v5204
    %5228 = vmatprep.subr.bf16.mxu0 0
    %5229 = vmatpush1.bf16.msra.mxu0 %v5203
    %5230 = vmatprep.subr.bf16.mxu0 0
    %5231 = vmatpush2.bf16.msra.mxu0 0
    %5232 = vmatprep.subr.bf16.mxu0 0
    %5233 = vmatpush2.bf16.msra.mxu0 0
    %5234 = vmatprep.subr.bf16.mxu0 0
    %5235 = vmatpush2.bf16.msra.mxu0 0
    %5236 = vmatprep.subr.bf16.mxu0 0
    %5237 = vmatpush2.bf16.msra.mxu0 0
    %5238 = vmatprep.subr.bf16.mxu0 0
    %5239 = vmatpush2.bf16.msra.mxu0 0
    %5240 = vmatprep.subr.bf16.mxu0 0
    %5241 = vmatpush2.bf16.msra.mxu0 0
    %5242 = vmatprep.subr.bf16.mxu0 0
    %5243 = vmatpush2.bf16.msra.mxu0 0
    %5244 = vmatprep.subr.bf16.mxu0 0
    %5245 = vmatpush2.bf16.msra.mxu0 0
    %5246 = vmatprep.mubr.bf16.mxu0 0
    %5247 = vmatmul.mubr.bf16.gmra.mxu0 %v5212
    %v5248 = vpop.f32.mrf.mxu0
    %v5249 = vadd.f32 %v4772, %v5248
    %v5250 = vpop.f32.mrf.mxu0
    %v5251 = vpop.f32.mrf.mxu0
    %v5252 = vpop.f32.mrf.mxu0
    %5253 = vdwg.mxu0
    %v5262 = vunpack.c.l.b16 %v4721
    %v5263 = vunpack.c.l.b16 %v4722
    %v5264 = vunpack.c.l.b16 %v4723
    %v5265 = vunpack.c.l.b16 %v4724
    %v5266 = vunpack.c.l.b16 %v4725
    %v5267 = vunpack.c.l.b16 %v4726
    %v5268 = vunpack.c.l.b16 %v4727
    %v5269 = vunpack.c.l.b16 %v4728
    %v5270 = vpack.c.b16 %v5263, %v5262
    %v5271 = vpack.c.b16 %v5265, %v5264
    %v5272 = vpack.c.b16 %v5267, %v5266
    %v5273 = vpack.c.b16 %v5269, %v5268
    %v5279 = vsel %vm2241, %v4664, 0
    %5281 = vmatprep.subr.bf16.mxu0 0
    %5282 = vmatpush1.bf16.msra.mxu0 0
    %5283 = vmatprep.subr.bf16.mxu0 0
    %5284 = vmatpush1.bf16.msra.mxu0 0
    %5285 = vmatprep.subr.bf16.mxu0 0
    %5286 = vmatpush1.bf16.msra.mxu0 0
    %5287 = vmatprep.subr.bf16.mxu0 0
    %5288 = vmatpush1.bf16.msra.mxu0 0
    %5289 = vmatprep.subr.bf16.mxu0 0
    %5290 = vmatpush1.bf16.msra.mxu0 %v5273
    %5291 = vmatprep.subr.bf16.mxu0 0
    %5292 = vmatpush1.bf16.msra.mxu0 %v5272
    %5293 = vmatprep.subr.bf16.mxu0 0
    %5294 = vmatpush1.bf16.msra.mxu0 %v5271
    %5295 = vmatprep.subr.bf16.mxu0 0
    %5296 = vmatpush1.bf16.msra.mxu0 %v5270
    %5297 = vmatprep.subr.bf16.mxu0 0
    %5298 = vmatpush2.bf16.msra.mxu0 0
    %5299 = vmatprep.subr.bf16.mxu0 0
    %5300 = vmatpush2.bf16.msra.mxu0 0
    %5301 = vmatprep.subr.bf16.mxu0 0
    %5302 = vmatpush2.bf16.msra.mxu0 0
    %5303 = vmatprep.subr.bf16.mxu0 0
    %5304 = vmatpush2.bf16.msra.mxu0 0
    %5305 = vmatprep.subr.bf16.mxu0 0
    %5306 = vmatpush2.bf16.msra.mxu0 0
    %5307 = vmatprep.subr.bf16.mxu0 0
    %5308 = vmatpush2.bf16.msra.mxu0 0
    %5309 = vmatprep.subr.bf16.mxu0 0
    %5310 = vmatpush2.bf16.msra.mxu0 0
    %5311 = vmatprep.subr.bf16.mxu0 0
    %5312 = vmatpush2.bf16.msra.mxu0 0
    %5313 = vmatprep.mubr.bf16.mxu0 0
    %5314 = vmatmul.mubr.bf16.gmra.mxu0 %v5279
    %v5315 = vpop.f32.mrf.mxu0
    %v5316 = vadd.f32 %v4776, %v5315
    %v5317 = vpop.f32.mrf.mxu0
    %v5318 = vpop.f32.mrf.mxu0
    %v5319 = vpop.f32.mrf.mxu0
    %5320 = vdwg.mxu0
    %v5321 = vmul.f32 %v4847, 0.5
    %v5322 = vmul.f32 %v4914, 0.5
    %v5323 = vmul.f32 %v4981, 0.5
    %v5324 = vmul.f32 %v5048, 0.5
    %v5325 = vmul.f32 %v5115, 0.5
    %v5326 = vmul.f32 %v5182, 0.5
    %v5327 = vmul.f32 %v5249, 0.5
    %v5328 = vmul.f32 %v5316, 0.5
    %v5329 = vmul.f32 %v4847, 0.70710677
    %v5330 = vmul.f32 %v4914, 0.70710677
    %v5331 = vmul.f32 %v4981, 0.70710677
    %v5332 = vmul.f32 %v5048, 0.70710677
    %v5333 = vmul.f32 %v5115, 0.70710677
    %v5334 = vmul.f32 %v5182, 0.70710677
    %v5335 = vmul.f32 %v5249, 0.70710677
    %v5336 = vmul.f32 %v5316, 0.70710677
    %vm5337 = vcmp.ge.f32.partialorder %v5329, 0.0
    %vm5338 = vcmp.ge.f32.partialorder %v5330, 0.0
    %vm5339 = vcmp.ge.f32.partialorder %v5331, 0.0
    %vm5340 = vcmp.ge.f32.partialorder %v5332, 0.0
    %vm5341 = vcmp.ge.f32.partialorder %v5333, 0.0
    %vm5342 = vcmp.ge.f32.partialorder %v5334, 0.0
    %vm5343 = vcmp.ge.f32.partialorder %v5335, 0.0
    %vm5344 = vcmp.ge.f32.partialorder %v5336, 0.0
    %v5345 = vsel %vm5337, 1.0, -1.0
    %v5346 = vsel %vm5338, 1.0, -1.0
    %v5347 = vsel %vm5339, 1.0, -1.0
    %v5348 = vsel %vm5340, 1.0, -1.0
    %v5349 = vsel %vm5341, 1.0, -1.0
    %v5350 = vsel %vm5342, 1.0, -1.0
    %v5351 = vsel %vm5343, 1.0, -1.0
    %v5352 = vsel %vm5344, 1.0, -1.0
    %v5353 = vand.u32 2147483647, %v5329
    %v5354 = vand.u32 2147483647, %v5330
    %v5355 = vand.u32 2147483647, %v5331
    %v5356 = vand.u32 2147483647, %v5332
    %v5357 = vand.u32 2147483647, %v5333
    %v5358 = vand.u32 2147483647, %v5334
    %v5359 = vand.u32 2147483647, %v5335
    %v5360 = vand.u32 2147483647, %v5336
    %v5361 = vmul.f32 %v5353, 0.3275911
    %v5362 = vmul.f32 %v5354, 0.3275911
    %v5363 = vmul.f32 %v5355, 0.3275911
    %v5364 = vmul.f32 %v5356, 0.3275911
    %v5365 = vmul.f32 %v5357, 0.3275911
    %v5366 = vmul.f32 %v5358, 0.3275911
    %v5367 = vmul.f32 %v5359, 0.3275911
    %v5368 = vmul.f32 %v5360, 0.3275911
    %v5369 = vadd.f32 %v5361, 1.0
    %v5370 = vadd.f32 %v5362, 1.0
    %v5371 = vadd.f32 %v5363, 1.0
    %v5372 = vadd.f32 %v5364, 1.0
    %v5373 = vadd.f32 %v5365, 1.0
    %v5374 = vadd.f32 %v5366, 1.0
    %v5375 = vadd.f32 %v5367, 1.0
    %v5376 = vadd.f32 %v5368, 1.0
    %v5377 = vrcp.pop %v5369
    %v5378 = vmul.f32 1.0, %v5377
    %v5379 = vrcp.pop %v5370
    %v5380 = vmul.f32 1.0, %v5379
    %v5381 = vrcp.pop %v5371
    %v5382 = vmul.f32 1.0, %v5381
    %v5383 = vrcp.pop %v5372
    %v5384 = vmul.f32 1.0, %v5383
    %v5385 = vrcp.pop %v5373
    %v5386 = vmul.f32 1.0, %v5385
    %v5387 = vrcp.pop %v5374
    %v5388 = vmul.f32 1.0, %v5387
    %v5389 = vrcp.pop %v5375
    %v5390 = vmul.f32 1.0, %v5389
    %v5391 = vrcp.pop %v5376
    %v5392 = vmul.f32 1.0, %v5391
    %v5393 = vmul.f32 %v5378, 1.0614054
    %v5394 = vmul.f32 %v5380, 1.0614054
    %v5395 = vmul.f32 %v5382, 1.0614054
    %v5396 = vmul.f32 %v5384, 1.0614054
    %v5397 = vmul.f32 %v5386, 1.0614054
    %v5398 = vmul.f32 %v5388, 1.0614054
    %v5399 = vmul.f32 %v5390, 1.0614054
    %v5400 = vmul.f32 %v5392, 1.0614054
    %v5401 = vadd.f32 %v5393, -1.4531521
    %v5402 = vadd.f32 %v5394, -1.4531521
    %v5403 = vadd.f32 %v5395, -1.4531521
    %v5404 = vadd.f32 %v5396, -1.4531521
    %v5405 = vadd.f32 %v5397, -1.4531521
    %v5406 = vadd.f32 %v5398, -1.4531521
    %v5407 = vadd.f32 %v5399, -1.4531521
    %v5408 = vadd.f32 %v5400, -1.4531521
    %v5409 = vmul.f32 %v5401, %v5378
    %v5410 = vmul.f32 %v5402, %v5380
    %v5411 = vmul.f32 %v5403, %v5382
    %v5412 = vmul.f32 %v5404, %v5384
    %v5413 = vmul.f32 %v5405, %v5386
    %v5414 = vmul.f32 %v5406, %v5388
    %v5415 = vmul.f32 %v5407, %v5390
    %v5416 = vmul.f32 %v5408, %v5392
    %v5417 = vadd.f32 %v5409, 1.4214138
    %v5418 = vadd.f32 %v5410, 1.4214138
    %v5419 = vadd.f32 %v5411, 1.4214138
    %v5420 = vadd.f32 %v5412, 1.4214138
    %v5421 = vadd.f32 %v5413, 1.4214138
    %v5422 = vadd.f32 %v5414, 1.4214138
    %v5423 = vadd.f32 %v5415, 1.4214138
    %v5424 = vadd.f32 %v5416, 1.4214138
    %v5425 = vmul.f32 %v5417, %v5378
    %v5426 = vmul.f32 %v5418, %v5380
    %v5427 = vmul.f32 %v5419, %v5382
    %v5428 = vmul.f32 %v5420, %v5384
    %v5429 = vmul.f32 %v5421, %v5386
    %v5430 = vmul.f32 %v5422, %v5388
    %v5431 = vmul.f32 %v5423, %v5390
    %v5432 = vmul.f32 %v5424, %v5392
    %v5433 = vadd.f32 %v5425, -0.28449672
    %v5434 = vadd.f32 %v5426, -0.28449672
    %v5435 = vadd.f32 %v5427, -0.28449672
    %v5436 = vadd.f32 %v5428, -0.28449672
    %v5437 = vadd.f32 %v5429, -0.28449672
    %v5438 = vadd.f32 %v5430, -0.28449672
    %v5439 = vadd.f32 %v5431, -0.28449672
    %v5440 = vadd.f32 %v5432, -0.28449672
    %v5441 = vmul.f32 %v5433, %v5378
    %v5442 = vmul.f32 %v5434, %v5380
    %v5443 = vmul.f32 %v5435, %v5382
    %v5444 = vmul.f32 %v5436, %v5384
    %v5445 = vmul.f32 %v5437, %v5386
    %v5446 = vmul.f32 %v5438, %v5388
    %v5447 = vmul.f32 %v5439, %v5390
    %v5448 = vmul.f32 %v5440, %v5392
    %v5449 = vadd.f32 %v5441, 0.2548296
    %v5450 = vadd.f32 %v5442, 0.2548296
    %v5451 = vadd.f32 %v5443, 0.2548296
    %v5452 = vadd.f32 %v5444, 0.2548296
    %v5453 = vadd.f32 %v5445, 0.2548296
    %v5454 = vadd.f32 %v5446, 0.2548296
    %v5455 = vadd.f32 %v5447, 0.2548296
    %v5456 = vadd.f32 %v5448, 0.2548296
    %v5457 = vmul.f32 %v5449, %v5378
    %v5458 = vmul.f32 %v5450, %v5380
    %v5459 = vmul.f32 %v5451, %v5382
    %v5460 = vmul.f32 %v5452, %v5384
    %v5461 = vmul.f32 %v5453, %v5386
    %v5462 = vmul.f32 %v5454, %v5388
    %v5463 = vmul.f32 %v5455, %v5390
    %v5464 = vmul.f32 %v5456, %v5392
    %v5465 = vsub.f32 0.0, %v5353
    %v5466 = vsub.f32 0.0, %v5354
    %v5467 = vsub.f32 0.0, %v5355
    %v5468 = vsub.f32 0.0, %v5356
    %v5469 = vsub.f32 0.0, %v5357
    %v5470 = vsub.f32 0.0, %v5358
    %v5471 = vsub.f32 0.0, %v5359
    %v5472 = vsub.f32 0.0, %v5360
    %v5473 = vmul.f32 %v5465, %v5353
    %v5474 = vmul.f32 %v5466, %v5354
    %v5475 = vmul.f32 %v5467, %v5355
    %v5476 = vmul.f32 %v5468, %v5356
    %v5477 = vmul.f32 %v5469, %v5357
    %v5478 = vmul.f32 %v5470, %v5358
    %v5479 = vmul.f32 %v5471, %v5359
    %v5480 = vmul.f32 %v5472, %v5360
    %v5481 = vmul.f32 %v5473, 1.442695
    %v5482 = vpow.pop %v5481
    %v5483 = vmul.f32 %v5474, 1.442695
    %v5484 = vpow.pop %v5483
    %v5485 = vmul.f32 %v5475, 1.442695
    %v5486 = vpow.pop %v5485
    %v5487 = vmul.f32 %v5476, 1.442695
    %v5488 = vpow.pop %v5487
    %v5489 = vmul.f32 %v5477, 1.442695
    %v5490 = vpow.pop %v5489
    %v5491 = vmul.f32 %v5478, 1.442695
    %v5492 = vpow.pop %v5491
    %v5493 = vmul.f32 %v5479, 1.442695
    %v5494 = vpow.pop %v5493
    %v5495 = vmul.f32 %v5480, 1.442695
    %v5496 = vpow.pop %v5495
    %v5497 = vmul.f32 %v5457, %v5482
    %v5498 = vmul.f32 %v5458, %v5484
    %v5499 = vmul.f32 %v5459, %v5486
    %v5500 = vmul.f32 %v5460, %v5488
    %v5501 = vmul.f32 %v5461, %v5490
    %v5502 = vmul.f32 %v5462, %v5492
    %v5503 = vmul.f32 %v5463, %v5494
    %v5504 = vmul.f32 %v5464, %v5496
    %v5505 = vsub.f32 1.0, %v5497
    %v5506 = vsub.f32 1.0, %v5498
    %v5507 = vsub.f32 1.0, %v5499
    %v5508 = vsub.f32 1.0, %v5500
    %v5509 = vsub.f32 1.0, %v5501
    %v5510 = vsub.f32 1.0, %v5502
    %v5511 = vsub.f32 1.0, %v5503
    %v5512 = vsub.f32 1.0, %v5504
    %v5513 = vmul.f32 %v5345, %v5505
    %v5514 = vmul.f32 %v5346, %v5506
    %v5515 = vmul.f32 %v5347, %v5507
    %v5516 = vmul.f32 %v5348, %v5508
    %v5517 = vmul.f32 %v5349, %v5509
    %v5518 = vmul.f32 %v5350, %v5510
    %v5519 = vmul.f32 %v5351, %v5511
    %v5520 = vmul.f32 %v5352, %v5512
    %v5521 = vadd.f32 %v5513, 1.0
    %v5522 = vadd.f32 %v5514, 1.0
    %v5523 = vadd.f32 %v5515, 1.0
    %v5524 = vadd.f32 %v5516, 1.0
    %v5525 = vadd.f32 %v5517, 1.0
    %v5526 = vadd.f32 %v5518, 1.0
    %v5527 = vadd.f32 %v5519, 1.0
    %v5528 = vadd.f32 %v5520, 1.0
    %v5529 = vmul.f32 %v5321, %v5521
    %v5530 = vmul.f32 %v5322, %v5522
    %v5531 = vmul.f32 %v5323, %v5523
    %v5532 = vmul.f32 %v5324, %v5524
    %v5533 = vmul.f32 %v5325, %v5525
    %v5534 = vmul.f32 %v5326, %v5526
    %v5535 = vmul.f32 %v5327, %v5527
    %v5536 = vmul.f32 %v5328, %v5528
    %v5537 = vld [vmem:[%s13] sm:$0x1]
    %v5538 = vld [vmem:[%s13 + $0x1] sm:$0x1]
    %v5539 = vld [vmem:[%s13 + $0x2] sm:$0x1]
    %v5540 = vld [vmem:[%s13 + $0x3] sm:$0x1]
    %v5541 = vld [vmem:[%s13 + $0x4] sm:$0x1]
    %v5542 = vld [vmem:[%s13 + $0x5] sm:$0x1]
    %v5543 = vld [vmem:[%s13 + $0x6] sm:$0x1]
    %v5544 = vld [vmem:[%s13 + $0x7] sm:$0x1]
    %v5553 = vlaneseq
    %v5554 = vshrl.u32 %v5553, 7
    %v5555 = vsub.s32 0, %v5554
    %v5556 = vrot.slane %v5537, %v5555
    %v5557 = vlaneseq
    %v5558 = vshrl.u32 %v5557, 7
    %v5559 = vsub.s32 0, %v5558
    %v5560 = vrot.slane %v5538, %v5559
    %v5561 = vlaneseq
    %v5562 = vshrl.u32 %v5561, 7
    %v5563 = vsub.s32 0, %v5562
    %v5564 = vrot.slane %v5539, %v5563
    %v5565 = vlaneseq
    %v5566 = vshrl.u32 %v5565, 7
    %v5567 = vsub.s32 0, %v5566
    %v5568 = vrot.slane %v5540, %v5567
    %v5569 = vlaneseq
    %v5570 = vshrl.u32 %v5569, 7
    %v5571 = vsub.s32 0, %v5570
    %v5572 = vrot.slane %v5541, %v5571
    %v5573 = vlaneseq
    %v5574 = vshrl.u32 %v5573, 7
    %v5575 = vsub.s32 0, %v5574
    %v5576 = vrot.slane %v5542, %v5575
    %v5577 = vlaneseq
    %v5578 = vshrl.u32 %v5577, 7
    %v5579 = vsub.s32 0, %v5578
    %v5580 = vrot.slane %v5543, %v5579
    %v5581 = vlaneseq
    %v5582 = vshrl.u32 %v5581, 7
    %v5583 = vsub.s32 0, %v5582
    %v5584 = vrot.slane %v5544, %v5583
    %v5593 = vmul.f32 %v5529, %v5556
    %v5594 = vmul.f32 %v5530, %v5560
    %v5595 = vmul.f32 %v5531, %v5564
    %v5596 = vmul.f32 %v5532, %v5568
    %v5597 = vmul.f32 %v5533, %v5572
    %v5598 = vmul.f32 %v5534, %v5576
    %v5599 = vmul.f32 %v5535, %v5580
    %v5600 = vmul.f32 %v5536, %v5584
    %vm5601 = vcmask 58368
    %v5602 = vsel %vm5601, %v5593, 0.0
    %5603 = vadd.xlane.f32.xlu0 %v5602
    %v5604 = vpop.xlane.xlu0 %5603
    %v5605 = vsel %vm5601, %v5594, 0.0
    %5606 = vadd.xlane.f32.xlu0 %v5605
    %v5607 = vpop.xlane.xlu0 %5606
    %v5608 = vsel %vm5601, %v5595, 0.0
    %5609 = vadd.xlane.f32.xlu0 %v5608
    %v5610 = vpop.xlane.xlu0 %5609
    %v5611 = vsel %vm5601, %v5596, 0.0
    %5612 = vadd.xlane.f32.xlu0 %v5611
    %v5613 = vpop.xlane.xlu0 %5612
    %v5614 = vsel %vm5601, %v5597, 0.0
    %5615 = vadd.xlane.f32.xlu0 %v5614
    %v5616 = vpop.xlane.xlu0 %5615
    %v5617 = vsel %vm5601, %v5598, 0.0
    %5618 = vadd.xlane.f32.xlu0 %v5617
    %v5619 = vpop.xlane.xlu0 %5618
    %v5620 = vsel %vm5601, %v5599, 0.0
    %5621 = vadd.xlane.f32.xlu0 %v5620
    %v5622 = vpop.xlane.xlu0 %5621
    %v5623 = vsel %vm5601, %v5600, 0.0
    %5624 = vadd.xlane.f32.xlu0 %v5623
    %v5625 = vpop.xlane.xlu0 %5624
    %v5626 = vld [vmem:[%s14] sm:$0x1]
    %v5627 = vld [vmem:[%s14 + $0x1] sm:$0x1]
    %v5628 = vld [vmem:[%s14 + $0x2] sm:$0x1]
    %v5629 = vld [vmem:[%s14 + $0x3] sm:$0x1]
    %v5630 = vld [vmem:[%s14 + $0x4] sm:$0x1]
    %v5631 = vld [vmem:[%s14 + $0x5] sm:$0x1]
    %v5632 = vld [vmem:[%s14 + $0x6] sm:$0x1]
    %v5633 = vld [vmem:[%s14 + $0x7] sm:$0x1]
    %v5642 = vlaneseq
    %v5643 = vshrl.u32 %v5642, 7
    %v5644 = vsub.s32 0, %v5643
    %v5645 = vrot.slane %v5626, %v5644
    %v5646 = vlaneseq
    %v5647 = vshrl.u32 %v5646, 7
    %v5648 = vsub.s32 0, %v5647
    %v5649 = vrot.slane %v5627, %v5648
    %v5650 = vlaneseq
    %v5651 = vshrl.u32 %v5650, 7
    %v5652 = vsub.s32 0, %v5651
    %v5653 = vrot.slane %v5628, %v5652
    %v5654 = vlaneseq
    %v5655 = vshrl.u32 %v5654, 7
    %v5656 = vsub.s32 0, %v5655
    %v5657 = vrot.slane %v5629, %v5656
    %v5658 = vlaneseq
    %v5659 = vshrl.u32 %v5658, 7
    %v5660 = vsub.s32 0, %v5659
    %v5661 = vrot.slane %v5630, %v5660
    %v5662 = vlaneseq
    %v5663 = vshrl.u32 %v5662, 7
    %v5664 = vsub.s32 0, %v5663
    %v5665 = vrot.slane %v5631, %v5664
    %v5666 = vlaneseq
    %v5667 = vshrl.u32 %v5666, 7
    %v5668 = vsub.s32 0, %v5667
    %v5669 = vrot.slane %v5632, %v5668
    %v5670 = vlaneseq
    %v5671 = vshrl.u32 %v5670, 7
    %v5672 = vsub.s32 0, %v5671
    %v5673 = vrot.slane %v5633, %v5672
    %v5682 = vadd.f32 %v5604, %v5645
    %v5683 = vadd.f32 %v5607, %v5649
    %v5684 = vadd.f32 %v5610, %v5653
    %v5685 = vadd.f32 %v5613, %v5657
    %v5686 = vadd.f32 %v5616, %v5661
    %v5687 = vadd.f32 %v5619, %v5665
    %v5688 = vadd.f32 %v5622, %v5669
    %v5689 = vadd.f32 %v5625, %v5673
    %v5690 = vxor.u32 %v5682, 2147483648
    %v5691 = vxor.u32 %v5683, 2147483648
    %v5692 = vxor.u32 %v5684, 2147483648
    %v5693 = vxor.u32 %v5685, 2147483648
    %v5694 = vxor.u32 %v5686, 2147483648
    %v5695 = vxor.u32 %v5687, 2147483648
    %v5696 = vxor.u32 %v5688, 2147483648
    %v5697 = vxor.u32 %v5689, 2147483648
    %v5698 = vmul.f32 %v5690, 1.442695
    %v5699 = vpow.pop %v5698
    %v5700 = vmul.f32 %v5691, 1.442695
    %v5701 = vpow.pop %v5700
    %v5702 = vmul.f32 %v5692, 1.442695
    %v5703 = vpow.pop %v5702
    %v5704 = vmul.f32 %v5693, 1.442695
    %v5705 = vpow.pop %v5704
    %v5706 = vmul.f32 %v5694, 1.442695
    %v5707 = vpow.pop %v5706
    %v5708 = vmul.f32 %v5695, 1.442695
    %v5709 = vpow.pop %v5708
    %v5710 = vmul.f32 %v5696, 1.442695
    %v5711 = vpow.pop %v5710
    %v5712 = vmul.f32 %v5697, 1.442695
    %v5713 = vpow.pop %v5712
    %v5714 = vadd.f32 %v5699, 1.0
    %v5715 = vadd.f32 %v5701, 1.0
    %v5716 = vadd.f32 %v5703, 1.0
    %v5717 = vadd.f32 %v5705, 1.0
    %v5718 = vadd.f32 %v5707, 1.0
    %v5719 = vadd.f32 %v5709, 1.0
    %v5720 = vadd.f32 %v5711, 1.0
    %v5721 = vadd.f32 %v5713, 1.0
    %v5722 = vrcp.pop %v5714
    %v5723 = vmul.f32 1.0, %v5722
    %v5724 = vrcp.pop %v5715
    %v5725 = vmul.f32 1.0, %v5724
    %v5726 = vrcp.pop %v5716
    %v5727 = vmul.f32 1.0, %v5726
    %v5728 = vrcp.pop %v5717
    %v5729 = vmul.f32 1.0, %v5728
    %v5730 = vrcp.pop %v5718
    %v5731 = vmul.f32 1.0, %v5730
    %v5732 = vrcp.pop %v5719
    %v5733 = vmul.f32 1.0, %v5732
    %v5734 = vrcp.pop %v5720
    %v5735 = vmul.f32 1.0, %v5734
    %v5736 = vrcp.pop %v5721
    %v5737 = vmul.f32 1.0, %v5736
    %vm5738 = vcmask 1024
    %5739 = vst.msk [vmem:[%s22] sm:$0x3] %vm5738, %v5723
    %5740 = vst.msk [vmem:[%s22 + $0x2] sm:$0x3] %vm5738, %v5725
    %5741 = vst.msk [vmem:[%s22 + $0x4] sm:$0x3] %vm5738, %v5727
    %5742 = vst.msk [vmem:[%s22 + $0x6] sm:$0x3] %vm5738, %v5729
    %5743 = vst.msk [vmem:[%s22 + $0x8] sm:$0x3] %vm5738, %v5731
    %5744 = vst.msk [vmem:[%s22 + $0xa] sm:$0x3] %vm5738, %v5733
    %5745 = vst.msk [vmem:[%s22 + $0xc] sm:$0x3] %vm5738, %v5735
    %5746 = vst.msk [vmem:[%s22 + $0xe] sm:$0x3] %vm5738, %v5737
    // Predicated region
    $region86: #{forward.1} parent=1 // pred_check
      _
    $region87: #{forward.1} parent=1 // pred_check_branch
      %5748 = sbr.rel (0) target = $region89
    $region88: #{forward.1} parent=1 // pred_region
      %s5750 = ssub.s32 32, 32
      %5751 = vsyncadd [#allocation5], %s5750
      %s5753 = sshll.u32 [#allocation4], 4
      %s5754 = int_to_ptr.vmem [resolvable:$true] %s5753
      %5756 = dma.vmem_to_hbm [thread:$0]  %s5754, 32, %s21, [#allocation5]
    $region89: #{forward.1} parent=1 // pred_fallthru
      _
    // Predicated region
    $region90: #{forward.1} parent=1 // pred_check
      _
    $region91: #{forward.1} parent=1 // pred_check_branch
      %5758 = sbr.rel (0) target = $region93
    $region92: #{forward.1} parent=1 // pred_region
      _
    $region93: #{forward.1} parent=1 // pred_fallthru
      _
    // Predicated region
    $region94: #{forward.1} parent=1 // pred_check
      _
    $region95: #{forward.1} parent=1 // pred_check_branch
      %5760 = sbr.rel (0) target = $region97
    $region96: #{forward.1} parent=1 // pred_region
      %5761 = dma.done [#allocation5], 32
    $region97: #{forward.1} parent=1 // pred_fallthru
      _
    // Predicated region
    $region98: #{forward.1} parent=1 // pred_check
      _
    $region99: #{forward.1} parent=1 // pred_check_branch
      %5763 = sbr.rel (0) target = $region101
    $region100: #{forward.1} parent=1 // pred_region
      _
    $region101: #{forward.1} parent=1 // pred_fallthru
      _
    %5764 = vsyncpa [#allocation5], 1

</llo_original>
